<compile_context>
chip_gen: v5e
topology: v5e:2x2
jax: 0.10.0
libtpu: 0.0.40
codegen_flags: <defaults>
</compile_context>

<pallas_src>
from functools import partial

import jax
import jax.numpy as jnp
from jax.experimental import pallas as pl
from jax.experimental.pallas import tpu as pltpu


def _depth_agg_fused_kernel(x_ref, w1_ref, b1_ref, w2_ref, b2_ref,
                            w3_ref, b3_ref, w4t_ref, b4_ref, o_ref, pad_ref):
    """One image per grid step; all four 3x3 convs + residual fused.

    x_ref   : (1, H, W, Cin) f32            input tile (VMEM)
    w*_ref  : (3, 3*Cin_l, Cout_l)           per-dy im2col weights (BN folded), MXU dtype
    w4t_ref : (3, Cout, 3*Cmid)              out_conv weights, transposed for NCHW output
    b*_ref  : (1, Cout_l) f32 / (Cout,1) f32 bias
    o_ref   : (1, Cout, H*W) f32             lane-dense NCHW output
    pad_ref : (H+2, W+2, max(Cin,Cmid)) f32  halo scratch, reused by every stage
    """
    H, W = x_ref.shape[1], x_ref.shape[2]
    HW = H * W
    Cpad = pad_ref.shape[-1]

    # (Re)zero only the 1-pixel border each step: O(H+W), not O(H*W*C).  No stage ever writes
    # the border, and interior channels beyond ':cin' are never read, so this is sufficient.
    zrow = jnp.zeros((1, W + 2, Cpad), pad_ref.dtype)
    zcol = jnp.zeros((H + 2, 1, Cpad), pad_ref.dtype)
    pad_ref[0:1, :, :] = zrow
    pad_ref[H + 1:H + 2, :, :] = zrow
    pad_ref[:, 0:1, :] = zcol
    pad_ref[:, W + 1:W + 2, :] = zcol

    def gather(dy, cin, mxu_dtype):
        # 3 shifted taps (dx = 0..2) concatenated on the channel axis -> (H*W, 3*cin).
        taps = [pad_ref[dy:dy + H, dx:dx + W, :cin] for dx in range(3)]
        p = jnp.concatenate(taps, axis=-1).reshape(HW, 3 * cin)
        return p.astype(mxu_dtype)               # cast just before the dot (f32 path: no-op)

    def conv3x3(act_hwc, w_ref, b_ref, relu):
        cin = act_hwc.shape[-1]
        # In-VMEM zero padding: overwrite only the interior of the halo buffer.
        pad_ref[1:H + 1, 1:W + 1, :cin] = act_hwc
        # 3 partial contractions (K = 3*cin), accumulated in f32.
        acc = jax.lax.dot_general(
            gather(0, cin, w_ref.dtype), w_ref[0],
            dimension_numbers=(((1,), (0,)), ((), ())),
            preferred_element_type=jnp.float32)
        for dy in (1, 2):
            acc = acc + jax.lax.dot_general(
                gather(dy, cin, w_ref.dtype), w_ref[dy],
                dimension_numbers=(((1,), (0,)), ((), ())),
                preferred_element_type=jnp.float32)
        y = acc + b_ref[...]                      # (1, cout) broadcasts; f32 elementwise
        if relu:
            y = jnp.maximum(y, 0.0)
        cout = w_ref.shape[-1]
        return y.reshape(H, W, cout)

    def out_conv_nchw(act_hwc, wt_ref, b_ref):
        # Final conv produced transposed: (Cout, H*W) so the output store is lane-dense and
        # the result is already NCHW (wrapper only reshapes).
        cin = act_hwc.shape[-1]
        cout = wt_ref.shape[1]
        pad_ref[1:H + 1, 1:W + 1, :cin] = act_hwc
        acc = jnp.zeros((cout, HW), jnp.float32)
        for dy in range(3):
            acc = acc + jax.lax.dot_general(
                wt_ref[dy], gather(dy, cin, wt_ref.dtype),
                dimension_numbers=(((1,), (1,)), ((), ())),   # (cout,3cin) . (HW,3cin)^T
                preferred_element_type=jnp.float32)
        return acc + b_ref[...]                   # (Cout, 1) broadcasts over lanes

    x = x_ref[0]                                  # (H, W, Cin) f32
    h = conv3x3(x, w1_ref, b1_ref, relu=True)     # reduce_conv
    t = conv3x3(h, w2_ref, b2_ref, relu=True)     # conv[0:3]
    t = conv3x3(t, w3_ref, b3_ref, relu=True)     # conv[3:6]
    h = t + h                                     # residual, f32, VMEM/vreg resident
    o_ref[0] = out_conv_nchw(h, w4t_ref, b4_ref).astype(o_ref.dtype)


def _fold_bn(gamma, beta, mean, var, eps=1e-5):
    scale = gamma / jnp.sqrt(var + eps)
    bias = beta - mean * scale
    return scale, bias


def _prep_params(p, Cin, Cmid, Cout, mxu_dtype):
    """Fold eval-mode BN into conv weights, split per-dy, pre-cast to the MXU dtype once."""
    s1, b1 = _fold_bn(p["gamma1"], p["beta1"], p["mean1"], p["var1"])
    s2, b2 = _fold_bn(p["gamma2"], p["beta2"], p["mean2"], p["var2"])
    s3, b3 = _fold_bn(p["gamma3"], p["beta3"], p["mean3"], p["var3"])
    w1f = (p["w1"] * s1[None, None, None, :]).reshape(3, 3 * Cin, Cmid).astype(mxu_dtype)
    w2f = (p["w2"] * s2[None, None, None, :]).reshape(3, 3 * Cmid, Cmid).astype(mxu_dtype)
    w3f = (p["w3"] * s3[None, None, None, :]).reshape(3, 3 * Cmid, Cmid).astype(mxu_dtype)
    # out_conv weight transposed to (3, Cout, 3*Cmid) for the NCHW-producing dot.
    w4t = jnp.transpose(p["w4"].reshape(3, 3 * Cmid, Cout), (0, 2, 1)).astype(mxu_dtype)
    return (w1f, b1.reshape(1, Cmid).astype(jnp.float32),
            w2f, b2.reshape(1, Cmid).astype(jnp.float32),
            w3f, b3.reshape(1, Cmid).astype(jnp.float32),
            w4t, p["b4"].reshape(Cout, 1).astype(jnp.float32))


def _vmem_limit_bytes(H, W, Cin, Cmid, Cout, mxu_dtype):
    """Rough footprint estimate (logical) with headroom; floored so toy shapes never lower
    the scoped default, capped well under physical VMEM."""
    f32 = 4
    mx = jnp.dtype(mxu_dtype).itemsize
    cpad = max(Cin, Cmid)
    hw = H * W
    blocks = 2 * hw * Cin * f32 + 2 * hw * Cout * f32                      # dbl-buffered in/out
    weights = 2 * 9 * (Cin * Cmid + 2 * Cmid * Cmid + Cmid * Cout) * mx    # dbl-buffered weights
    scratch = (H + 2) * (W + 2) * cpad * f32                               # halo scratch
    live = hw * (3 * cpad * (f32 + mx) + 3 * Cmid * f32 + max(Cmid, Cout) * f32)
    est = blocks + weights + scratch + live
    return int(min(128 * 2**20, max(32 * 2**20, 2 * est)))


@partial(jax.jit, static_argnames=("mxu_dtype",))
def depth_aggregation_forward(x_nchw, p, mxu_dtype=jnp.bfloat16):
    """Matches DepthAggregation.forward (BN in eval mode). NCHW in, NCHW out."""
    B, Cin, H, W = x_nchw.shape
    Cmid = p["w1"].shape[-1]
    Cout = p["w4"].shape[-1]
    Cpad = max(Cin, Cmid)
    HW = H * W

    x = jnp.transpose(x_nchw, (0, 2, 3, 1)).astype(jnp.float32)   # NCHW -> NHWC (input only)
    w1f, b1r, w2f, b2r, w3f, b3r, w4t, b4r = _prep_params(p, Cin, Cmid, Cout, mxu_dtype)

    out = pl.pallas_call(
        _depth_agg_fused_kernel,
        out_shape=jax.ShapeDtypeStruct((B, Cout, HW), jnp.float32),
        grid=(B,),
        in_specs=[
            pl.BlockSpec((1, H, W, Cin), lambda b: (b, 0, 0, 0)),
            pl.BlockSpec((3, 3 * Cin, Cmid), lambda b: (0, 0, 0)),
            pl.BlockSpec((1, Cmid), lambda b: (0, 0)),
            pl.BlockSpec((3, 3 * Cmid, Cmid), lambda b: (0, 0, 0)),
            pl.BlockSpec((1, Cmid), lambda b: (0, 0)),
            pl.BlockSpec((3, 3 * Cmid, Cmid), lambda b: (0, 0, 0)),
            pl.BlockSpec((1, Cmid), lambda b: (0, 0)),
            pl.BlockSpec((3, Cout, 3 * Cmid), lambda b: (0, 0, 0)),
            pl.BlockSpec((Cout, 1), lambda b: (0, 0)),
        ],
        out_specs=pl.BlockSpec((1, Cout, HW), lambda b: (b, 0, 0)),
        scratch_shapes=[pltpu.VMEM((H + 2, W + 2, Cpad), jnp.float32)],
        compiler_params=pltpu.CompilerParams(
            dimension_semantics=("parallel",),
            vmem_limit_bytes=_vmem_limit_bytes(H, W, Cin, Cmid, Cout, mxu_dtype)),
    )(x, w1f, b1r, w2f, b2r, w3f, b3r, w4t, b4r)

    return out.reshape(B, Cout, H, W)                              # already NCHW


def init_params(key, in_channels, mid_channels, out_channels):
    ks = jax.random.split(key, 17)
    p = {}
    # conv weights stored HWIO (3, 3, Cin, Cout)
    p["w1"] = 0.1 * jax.random.normal(ks[0], (3, 3, in_channels, mid_channels), jnp.float32)
    p["w2"] = 0.1 * jax.random.normal(ks[1], (3, 3, mid_channels, mid_channels), jnp.float32)
    p["w3"] = 0.1 * jax.random.normal(ks[2], (3, 3, mid_channels, mid_channels), jnp.float32)
    p["w4"] = 0.1 * jax.random.normal(ks[3], (3, 3, mid_channels, out_channels), jnp.float32)
    p["b4"] = 0.1 * jax.random.normal(ks[4], (out_channels,), jnp.float32)
    idx = 5
    for i in range(1, 4):
        p[f"gamma{i}"] = 1.0 + 0.1 * jax.random.normal(ks[idx], (mid_channels,), jnp.float32); idx += 1
        p[f"beta{i}"] = 0.1 * jax.random.normal(ks[idx], (mid_channels,), jnp.float32); idx += 1
        p[f"mean{i}"] = 0.1 * jax.random.normal(ks[idx], (mid_channels,), jnp.float32); idx += 1
        p[f"var{i}"] = 1.0 + 0.1 * jax.random.uniform(ks[idx], (mid_channels,), jnp.float32); idx += 1
    return p


# ---- pure-JAX reference (for correctness check) ----
def _conv_ref(x_nchw, w_hwio, scale, bias, relu):
    w_oihw = jnp.transpose(w_hwio, (3, 2, 0, 1))
    y = jax.lax.conv_general_dilated(
        x_nchw, w_oihw, window_strides=(1, 1), padding="SAME",
        dimension_numbers=("NCHW", "OIHW", "NCHW"))
    y = y * scale[None, :, None, None] + bias[None, :, None, None]
    if relu:
        y = jnp.maximum(y, 0.0)
    return y


def depth_aggregation_ref(x_nchw, p):
    s1, b1 = _fold_bn(p["gamma1"], p["beta1"], p["mean1"], p["var1"])
    s2, b2 = _fold_bn(p["gamma2"], p["beta2"], p["mean2"], p["var2"])
    s3, b3 = _fold_bn(p["gamma3"], p["beta3"], p["mean3"], p["var3"])
    h = _conv_ref(x_nchw, p["w1"], s1, b1, True)
    t = _conv_ref(h, p["w2"], s2, b2, True)
    t = _conv_ref(t, p["w3"], s3, b3, True)
    h = t + h
    ones = jnp.ones((p["w4"].shape[-1],), jnp.float32)
    return _conv_ref(h, p["w4"], ones, p["b4"], False)


if __name__ == "__main__":
    key = jax.random.PRNGKey(0)
    kx, kp = jax.random.split(key)

    B, Cin, Cmid, Cout, H, W = 2, 4, 8, 4, 16, 16
    x = jax.random.normal(kx, (B, Cin, H, W), jnp.float32)   # NCHW, like PyTorch
    params = init_params(kp, Cin, Cmid, Cout)

    ref = depth_aggregation_ref(x, params)

    # Exact-validation path: f32 MXU operands, tight tolerance.
    out_f32 = jax.block_until_ready(
        depth_aggregation_forward(x, params, mxu_dtype=jnp.float32))
    assert out_f32.shape == (B, Cout, H, W), out_f32.shape
    assert jnp.allclose(out_f32, ref, atol=1e-4, rtol=1e-4), \
        float(jnp.max(jnp.abs(out_f32 - ref)))

    # Production path: bf16 MXU operands (f32 accumulate / f32 elementwise), loose tolerance.
    out_bf16 = jax.block_until_ready(
        depth_aggregation_forward(x, params, mxu_dtype=jnp.bfloat16))
    assert out_bf16.shape == (B, Cout, H, W), out_bf16.shape
    err = float(jnp.max(jnp.abs(out_bf16 - ref)))
    assert err < 0.2, err

    print("KERNEL_OK")
</pallas_src>

<mosaic_0001>
module attributes {stable_mosaic.version = 11 : i64} {
  func.func @_depth_agg_fused_kernel(%arg0: i32, %arg1: memref<1x16x16x4xf32, #tpu.memory_space<vmem>>, %arg2: memref<3x12x8xf32, #tpu.memory_space<vmem>>, %arg3: memref<1x8xf32, #tpu.memory_space<vmem>>, %arg4: memref<3x24x8xf32, #tpu.memory_space<vmem>>, %arg5: memref<1x8xf32, #tpu.memory_space<vmem>>, %arg6: memref<3x24x8xf32, #tpu.memory_space<vmem>>, %arg7: memref<1x8xf32, #tpu.memory_space<vmem>>, %arg8: memref<3x4x24xf32, #tpu.memory_space<vmem>>, %arg9: memref<4x1xf32, #tpu.memory_space<vmem>>, %arg10: memref<1x4x256xf32, #tpu.memory_space<vmem>>, %arg11: memref<18x18x8xf32, #tpu.memory_space<vmem>>) attributes {dimension_semantics = [#tpu.dimension_semantics<parallel>], iteration_bounds = array<i64: 2>, scalar_prefetch = 0 : i64, scratch_operands = 1 : i64, tpu.core_type = #tpu.core_type<tc>, window_params = [{transform_indices = @transform_0, window_bounds = array<i64: 1, 16, 16, 4>}, {pipeline_mode = #tpu.pipeline_mode<synchronous>, transform_indices = @transform_1, window_bounds = array<i64: 3, 12, 8>}, {pipeline_mode = #tpu.pipeline_mode<synchronous>, transform_indices = @transform_2, window_bounds = array<i64: 1, 8>}, {pipeline_mode = #tpu.pipeline_mode<synchronous>, transform_indices = @transform_3, window_bounds = array<i64: 3, 24, 8>}, {pipeline_mode = #tpu.pipeline_mode<synchronous>, transform_indices = @transform_4, window_bounds = array<i64: 1, 8>}, {pipeline_mode = #tpu.pipeline_mode<synchronous>, transform_indices = @transform_5, window_bounds = array<i64: 3, 24, 8>}, {pipeline_mode = #tpu.pipeline_mode<synchronous>, transform_indices = @transform_6, window_bounds = array<i64: 1, 8>}, {pipeline_mode = #tpu.pipeline_mode<synchronous>, transform_indices = @transform_7, window_bounds = array<i64: 3, 4, 24>}, {pipeline_mode = #tpu.pipeline_mode<synchronous>, transform_indices = @transform_8, window_bounds = array<i64: 4, 1>}, {transform_indices = @transform_9, window_bounds = array<i64: 1, 4, 256>}]} {
    %cst = arith.constant 0.000000e+00 : f32
    %0 = vector.broadcast %cst : f32 to vector<1x18x8xf32>
    %cst_0 = arith.constant 0.000000e+00 : f32
    %1 = vector.broadcast %cst_0 : f32 to vector<18x1x8xf32>
    %c0 = arith.constant 0 : index
    %c0_1 = arith.constant 0 : index
    %c0_2 = arith.constant 0 : index
    %2 = vector.load %arg11[%c0, %c0_1, %c0_2] : memref<18x18x8xf32, #tpu.memory_space<vmem>>, vector<1x18x8xf32>
    tpu.vector_store %arg11[%c0, %c0_1, %c0_2], %0 {strides = array<i32>} : memref<18x18x8xf32, #tpu.memory_space<vmem>>, vector<1x18x8xf32>,
    %c17 = arith.constant 17 : index
    %c0_3 = arith.constant 0 : index
    %c0_4 = arith.constant 0 : index
    %3 = vector.load %arg11[%c17, %c0_3, %c0_4] : memref<18x18x8xf32, #tpu.memory_space<vmem>>, vector<1x18x8xf32>
    tpu.vector_store %arg11[%c17, %c0_3, %c0_4], %0 {strides = array<i32>} : memref<18x18x8xf32, #tpu.memory_space<vmem>>, vector<1x18x8xf32>,
    %c0_5 = arith.constant 0 : index
    %c0_6 = arith.constant 0 : index
    %c0_7 = arith.constant 0 : index
    %4 = vector.load %arg11[%c0_5, %c0_6, %c0_7] : memref<18x18x8xf32, #tpu.memory_space<vmem>>, vector<18x1x8xf32>
    tpu.vector_store %arg11[%c0_5, %c0_6, %c0_7], %1 {strides = array<i32>} : memref<18x18x8xf32, #tpu.memory_space<vmem>>, vector<18x1x8xf32>,
    %c0_8 = arith.constant 0 : index
    %c17_9 = arith.constant 17 : index
    %c0_10 = arith.constant 0 : index
    %5 = vector.load %arg11[%c0_8, %c17_9, %c0_10] : memref<18x18x8xf32, #tpu.memory_space<vmem>>, vector<18x1x8xf32>
    tpu.vector_store %arg11[%c0_8, %c17_9, %c0_10], %1 {strides = array<i32>} : memref<18x18x8xf32, #tpu.memory_space<vmem>>, vector<18x1x8xf32>,
    %c0_11 = arith.constant 0 : index
    %c0_12 = arith.constant 0 : index
    %c0_13 = arith.constant 0 : index
    %c0_14 = arith.constant 0 : index
    %6 = vector.load %arg1[%c0_11, %c0_12, %c0_13, %c0_14] : memref<1x16x16x4xf32, #tpu.memory_space<vmem>>, vector<1x16x16x4xf32>
    %7 = vector.shape_cast %6 : vector<1x16x16x4xf32> to vector<16x16x4xf32>
    %c1 = arith.constant 1 : index
    %c1_15 = arith.constant 1 : index
    %c0_16 = arith.constant 0 : index
    %8 = vector.load %arg11[%c1, %c1_15, %c0_16] : memref<18x18x8xf32, #tpu.memory_space<vmem>>, vector<16x16x4xf32>
    tpu.vector_store %arg11[%c1, %c1_15, %c0_16], %7 {strides = array<i32>} : memref<18x18x8xf32, #tpu.memory_space<vmem>>, vector<16x16x4xf32>,
    %c0_17 = arith.constant 0 : index
    %c0_18 = arith.constant 0 : index
    %c0_19 = arith.constant 0 : index
    %9 = vector.load %arg11[%c0_17, %c0_18, %c0_19] : memref<18x18x8xf32, #tpu.memory_space<vmem>>, vector<16x16x4xf32>
    %c0_20 = arith.constant 0 : index
    %c1_21 = arith.constant 1 : index
    %c0_22 = arith.constant 0 : index
    %10 = vector.load %arg11[%c0_20, %c1_21, %c0_22] : memref<18x18x8xf32, #tpu.memory_space<vmem>>, vector<16x16x4xf32>
    %c0_23 = arith.constant 0 : index
    %c2 = arith.constant 2 : index
    %c0_24 = arith.constant 0 : index
    %11 = vector.load %arg11[%c0_23, %c2, %c0_24] : memref<18x18x8xf32, #tpu.memory_space<vmem>>, vector<16x16x4xf32>
    %12 = tpu.concatenate %9, %10, %11 in 2 : vector<16x16x4xf32>, vector<16x16x4xf32>, vector<16x16x4xf32> -> vector<16x16x12xf32>
    %13 = vector.shape_cast %12 : vector<16x16x12xf32> to vector<256x12xf32>
    %c0_25 = arith.constant 0 : index
    %c0_26 = arith.constant 0 : index
    %c0_27 = arith.constant 0 : index
    %14 = vector.load %arg2[%c0_25, %c0_26, %c0_27] : memref<3x12x8xf32, #tpu.memory_space<vmem>>, vector<1x12x8xf32>
    %15 = vector.shape_cast %14 : vector<1x12x8xf32> to vector<12x8xf32>
    %cst_28 = arith.constant dense<0.000000e+00> : vector<256x8xf32>
    %16 = tpu.matmul %13, %15, %cst_28 {dimension_numbers = #tpu.dot_dimension_numbers<[1], [0], [0], [1], [0, 0, 1, 1], [], []>} : vector<256x12xf32>, vector<12x8xf32>, vector<256x8xf32> -> vector<256x8xf32>
    %c1_29 = arith.constant 1 : index
    %c0_30 = arith.constant 0 : index
    %c0_31 = arith.constant 0 : index
    %17 = vector.load %arg11[%c1_29, %c0_30, %c0_31] : memref<18x18x8xf32, #tpu.memory_space<vmem>>, vector<16x16x4xf32>
    %c1_32 = arith.constant 1 : index
    %c1_33 = arith.constant 1 : index
    %c0_34 = arith.constant 0 : index
    %18 = vector.load %arg11[%c1_32, %c1_33, %c0_34] : memref<18x18x8xf32, #tpu.memory_space<vmem>>, vector<16x16x4xf32>
    %c1_35 = arith.constant 1 : index
    %c2_36 = arith.constant 2 : index
    %c0_37 = arith.constant 0 : index
    %19 = vector.load %arg11[%c1_35, %c2_36, %c0_37] : memref<18x18x8xf32, #tpu.memory_space<vmem>>, vector<16x16x4xf32>
    %20 = tpu.concatenate %17, %18, %19 in 2 : vector<16x16x4xf32>, vector<16x16x4xf32>, vector<16x16x4xf32> -> vector<16x16x12xf32>
    %21 = vector.shape_cast %20 : vector<16x16x12xf32> to vector<256x12xf32>
    %c1_38 = arith.constant 1 : index
    %c0_39 = arith.constant 0 : index
    %c0_40 = arith.constant 0 : index
    %22 = vector.load %arg2[%c1_38, %c0_39, %c0_40] : memref<3x12x8xf32, #tpu.memory_space<vmem>>, vector<1x12x8xf32>
    %23 = vector.shape_cast %22 : vector<1x12x8xf32> to vector<12x8xf32>
    %cst_41 = arith.constant dense<0.000000e+00> : vector<256x8xf32>
    %24 = tpu.matmul %21, %23, %cst_41 {dimension_numbers = #tpu.dot_dimension_numbers<[1], [0], [0], [1], [0, 0, 1, 1], [], []>} : vector<256x12xf32>, vector<12x8xf32>, vector<256x8xf32> -> vector<256x8xf32>
    %25 = arith.addf %16, %24 : vector<256x8xf32>
    %c2_42 = arith.constant 2 : index
    %c0_43 = arith.constant 0 : index
    %c0_44 = arith.constant 0 : index
    %26 = vector.load %arg11[%c2_42, %c0_43, %c0_44] : memref<18x18x8xf32, #tpu.memory_space<vmem>>, vector<16x16x4xf32>
    %c2_45 = arith.constant 2 : index
    %c1_46 = arith.constant 1 : index
    %c0_47 = arith.constant 0 : index
    %27 = vector.load %arg11[%c2_45, %c1_46, %c0_47] : memref<18x18x8xf32, #tpu.memory_space<vmem>>, vector<16x16x4xf32>
    %c2_48 = arith.constant 2 : index
    %c2_49 = arith.constant 2 : index
    %c0_50 = arith.constant 0 : index
    %28 = vector.load %arg11[%c2_48, %c2_49, %c0_50] : memref<18x18x8xf32, #tpu.memory_space<vmem>>, vector<16x16x4xf32>
    %29 = tpu.concatenate %26, %27, %28 in 2 : vector<16x16x4xf32>, vector<16x16x4xf32>, vector<16x16x4xf32> -> vector<16x16x12xf32>
    %30 = vector.shape_cast %29 : vector<16x16x12xf32> to vector<256x12xf32>
    %c2_51 = arith.constant 2 : index
    %c0_52 = arith.constant 0 : index
    %c0_53 = arith.constant 0 : index
    %31 = vector.load %arg2[%c2_51, %c0_52, %c0_53] : memref<3x12x8xf32, #tpu.memory_space<vmem>>, vector<1x12x8xf32>
    %32 = vector.shape_cast %31 : vector<1x12x8xf32> to vector<12x8xf32>
    %cst_54 = arith.constant dense<0.000000e+00> : vector<256x8xf32>
    %33 = tpu.matmul %30, %32, %cst_54 {dimension_numbers = #tpu.dot_dimension_numbers<[1], [0], [0], [1], [0, 0, 1, 1], [], []>} : vector<256x12xf32>, vector<12x8xf32>, vector<256x8xf32> -> vector<256x8xf32>
    %34 = arith.addf %25, %33 : vector<256x8xf32>
    %c0_55 = arith.constant 0 : index
    %c0_56 = arith.constant 0 : index
    %35 = vector.load %arg3[%c0_55, %c0_56] : memref<1x8xf32, #tpu.memory_space<vmem>>, vector<1x8xf32>
    %36 = vector.broadcast %35 : vector<1x8xf32> to vector<256x8xf32>
    %37 = arith.addf %34, %36 : vector<256x8xf32>
    %cst_57 = arith.constant 0.000000e+00 : f32
    %38 = vector.broadcast %cst_57 : f32 to vector<256x8xf32>
    %39 = arith.maximumf %37, %38 : vector<256x8xf32>
    %40 = vector.shape_cast %39 : vector<256x8xf32> to vector<16x16x8xf32>
    %c1_58 = arith.constant 1 : index
    %c1_59 = arith.constant 1 : index
    %c0_60 = arith.constant 0 : index
    %41 = vector.load %arg11[%c1_58, %c1_59, %c0_60] : memref<18x18x8xf32, #tpu.memory_space<vmem>>, vector<16x16x8xf32>
    tpu.vector_store %arg11[%c1_58, %c1_59, %c0_60], %40 {strides = array<i32>} : memref<18x18x8xf32, #tpu.memory_space<vmem>>, vector<16x16x8xf32>,
    %c0_61 = arith.constant 0 : index
    %c0_62 = arith.constant 0 : index
    %c0_63 = arith.constant 0 : index
    %42 = vector.load %arg11[%c0_61, %c0_62, %c0_63] : memref<18x18x8xf32, #tpu.memory_space<vmem>>, vector<16x16x8xf32>
    %c0_64 = arith.constant 0 : index
    %c1_65 = arith.constant 1 : index
    %c0_66 = arith.constant 0 : index
    %43 = vector.load %arg11[%c0_64, %c1_65, %c0_66] : memref<18x18x8xf32, #tpu.memory_space<vmem>>, vector<16x16x8xf32>
    %c0_67 = arith.constant 0 : index
    %c2_68 = arith.constant 2 : index
    %c0_69 = arith.constant 0 : index
    %44 = vector.load %arg11[%c0_67, %c2_68, %c0_69] : memref<18x18x8xf32, #tpu.memory_space<vmem>>, vector<16x16x8xf32>
    %45 = tpu.concatenate %42, %43, %44 in 2 : vector<16x16x8xf32>, vector<16x16x8xf32>, vector<16x16x8xf32> -> vector<16x16x24xf32>
    %46 = vector.shape_cast %45 : vector<16x16x24xf32> to vector<256x24xf32>
    %c0_70 = arith.constant 0 : index
    %c0_71 = arith.constant 0 : index
    %c0_72 = arith.constant 0 : index
    %47 = vector.load %arg4[%c0_70, %c0_71, %c0_72] : memref<3x24x8xf32, #tpu.memory_space<vmem>>, vector<1x24x8xf32>
    %48 = vector.shape_cast %47 : vector<1x24x8xf32> to vector<24x8xf32>
    %cst_73 = arith.constant dense<0.000000e+00> : vector<256x8xf32>
    %49 = tpu.matmul %46, %48, %cst_73 {dimension_numbers = #tpu.dot_dimension_numbers<[1], [0], [0], [1], [0, 0, 1, 1], [], []>} : vector<256x24xf32>, vector<24x8xf32>, vector<256x8xf32> -> vector<256x8xf32>
    %c1_74 = arith.constant 1 : index
    %c0_75 = arith.constant 0 : index
    %c0_76 = arith.constant 0 : index
    %50 = vector.load %arg11[%c1_74, %c0_75, %c0_76] : memref<18x18x8xf32, #tpu.memory_space<vmem>>, vector<16x16x8xf32>
    %c1_77 = arith.constant 1 : index
    %c1_78 = arith.constant 1 : index
    %c0_79 = arith.constant 0 : index
    %51 = vector.load %arg11[%c1_77, %c1_78, %c0_79] : memref<18x18x8xf32, #tpu.memory_space<vmem>>, vector<16x16x8xf32>
    %c1_80 = arith.constant 1 : index
    %c2_81 = arith.constant 2 : index
    %c0_82 = arith.constant 0 : index
    %52 = vector.load %arg11[%c1_80, %c2_81, %c0_82] : memref<18x18x8xf32, #tpu.memory_space<vmem>>, vector<16x16x8xf32>
    %53 = tpu.concatenate %50, %51, %52 in 2 : vector<16x16x8xf32>, vector<16x16x8xf32>, vector<16x16x8xf32> -> vector<16x16x24xf32>
    %54 = vector.shape_cast %53 : vector<16x16x24xf32> to vector<256x24xf32>
    %c1_83 = arith.constant 1 : index
    %c0_84 = arith.constant 0 : index
    %c0_85 = arith.constant 0 : index
    %55 = vector.load %arg4[%c1_83, %c0_84, %c0_85] : memref<3x24x8xf32, #tpu.memory_space<vmem>>, vector<1x24x8xf32>
    %56 = vector.shape_cast %55 : vector<1x24x8xf32> to vector<24x8xf32>
    %cst_86 = arith.constant dense<0.000000e+00> : vector<256x8xf32>
    %57 = tpu.matmul %54, %56, %cst_86 {dimension_numbers = #tpu.dot_dimension_numbers<[1], [0], [0], [1], [0, 0, 1, 1], [], []>} : vector<256x24xf32>, vector<24x8xf32>, vector<256x8xf32> -> vector<256x8xf32>
    %58 = arith.addf %49, %57 : vector<256x8xf32>
    %c2_87 = arith.constant 2 : index
    %c0_88 = arith.constant 0 : index
    %c0_89 = arith.constant 0 : index
    %59 = vector.load %arg11[%c2_87, %c0_88, %c0_89] : memref<18x18x8xf32, #tpu.memory_space<vmem>>, vector<16x16x8xf32>
    %c2_90 = arith.constant 2 : index
    %c1_91 = arith.constant 1 : index
    %c0_92 = arith.constant 0 : index
    %60 = vector.load %arg11[%c2_90, %c1_91, %c0_92] : memref<18x18x8xf32, #tpu.memory_space<vmem>>, vector<16x16x8xf32>
    %c2_93 = arith.constant 2 : index
    %c2_94 = arith.constant 2 : index
    %c0_95 = arith.constant 0 : index
    %61 = vector.load %arg11[%c2_93, %c2_94, %c0_95] : memref<18x18x8xf32, #tpu.memory_space<vmem>>, vector<16x16x8xf32>
    %62 = tpu.concatenate %59, %60, %61 in 2 : vector<16x16x8xf32>, vector<16x16x8xf32>, vector<16x16x8xf32> -> vector<16x16x24xf32>
    %63 = vector.shape_cast %62 : vector<16x16x24xf32> to vector<256x24xf32>
    %c2_96 = arith.constant 2 : index
    %c0_97 = arith.constant 0 : index
    %c0_98 = arith.constant 0 : index
    %64 = vector.load %arg4[%c2_96, %c0_97, %c0_98] : memref<3x24x8xf32, #tpu.memory_space<vmem>>, vector<1x24x8xf32>
    %65 = vector.shape_cast %64 : vector<1x24x8xf32> to vector<24x8xf32>
    %cst_99 = arith.constant dense<0.000000e+00> : vector<256x8xf32>
    %66 = tpu.matmul %63, %65, %cst_99 {dimension_numbers = #tpu.dot_dimension_numbers<[1], [0], [0], [1], [0, 0, 1, 1], [], []>} : vector<256x24xf32>, vector<24x8xf32>, vector<256x8xf32> -> vector<256x8xf32>
    %67 = arith.addf %58, %66 : vector<256x8xf32>
    %c0_100 = arith.constant 0 : index
    %c0_101 = arith.constant 0 : index
    %68 = vector.load %arg5[%c0_100, %c0_101] : memref<1x8xf32, #tpu.memory_space<vmem>>, vector<1x8xf32>
    %69 = vector.broadcast %68 : vector<1x8xf32> to vector<256x8xf32>
    %70 = arith.addf %67, %69 : vector<256x8xf32>
    %cst_102 = arith.constant 0.000000e+00 : f32
    %71 = vector.broadcast %cst_102 : f32 to vector<256x8xf32>
    %72 = arith.maximumf %70, %71 : vector<256x8xf32>
    %73 = vector.shape_cast %72 : vector<256x8xf32> to vector<16x16x8xf32>
    %c1_103 = arith.constant 1 : index
    %c1_104 = arith.constant 1 : index
    %c0_105 = arith.constant 0 : index
    %74 = vector.load %arg11[%c1_103, %c1_104, %c0_105] : memref<18x18x8xf32, #tpu.memory_space<vmem>>, vector<16x16x8xf32>
    tpu.vector_store %arg11[%c1_103, %c1_104, %c0_105], %73 {strides = array<i32>} : memref<18x18x8xf32, #tpu.memory_space<vmem>>, vector<16x16x8xf32>,
    %c0_106 = arith.constant 0 : index
    %c0_107 = arith.constant 0 : index
    %c0_108 = arith.constant 0 : index
    %75 = vector.load %arg11[%c0_106, %c0_107, %c0_108] : memref<18x18x8xf32, #tpu.memory_space<vmem>>, vector<16x16x8xf32>
    %c0_109 = arith.constant 0 : index
    %c1_110 = arith.constant 1 : index
    %c0_111 = arith.constant 0 : index
    %76 = vector.load %arg11[%c0_109, %c1_110, %c0_111] : memref<18x18x8xf32, #tpu.memory_space<vmem>>, vector<16x16x8xf32>
    %c0_112 = arith.constant 0 : index
    %c2_113 = arith.constant 2 : index
    %c0_114 = arith.constant 0 : index
    %77 = vector.load %arg11[%c0_112, %c2_113, %c0_114] : memref<18x18x8xf32, #tpu.memory_space<vmem>>, vector<16x16x8xf32>
    %78 = tpu.concatenate %75, %76, %77 in 2 : vector<16x16x8xf32>, vector<16x16x8xf32>, vector<16x16x8xf32> -> vector<16x16x24xf32>
    %79 = vector.shape_cast %78 : vector<16x16x24xf32> to vector<256x24xf32>
    %c0_115 = arith.constant 0 : index
    %c0_116 = arith.constant 0 : index
    %c0_117 = arith.constant 0 : index
    %80 = vector.load %arg6[%c0_115, %c0_116, %c0_117] : memref<3x24x8xf32, #tpu.memory_space<vmem>>, vector<1x24x8xf32>
    %81 = vector.shape_cast %80 : vector<1x24x8xf32> to vector<24x8xf32>
    %cst_118 = arith.constant dense<0.000000e+00> : vector<256x8xf32>
    %82 = tpu.matmul %79, %81, %cst_118 {dimension_numbers = #tpu.dot_dimension_numbers<[1], [0], [0], [1], [0, 0, 1, 1], [], []>} : vector<256x24xf32>, vector<24x8xf32>, vector<256x8xf32> -> vector<256x8xf32>
    %c1_119 = arith.constant 1 : index
    %c0_120 = arith.constant 0 : index
    %c0_121 = arith.constant 0 : index
    %83 = vector.load %arg11[%c1_119, %c0_120, %c0_121] : memref<18x18x8xf32, #tpu.memory_space<vmem>>, vector<16x16x8xf32>
    %c1_122 = arith.constant 1 : index
    %c1_123 = arith.constant 1 : index
    %c0_124 = arith.constant 0 : index
    %84 = vector.load %arg11[%c1_122, %c1_123, %c0_124] : memref<18x18x8xf32, #tpu.memory_space<vmem>>, vector<16x16x8xf32>
    %c1_125 = arith.constant 1 : index
    %c2_126 = arith.constant 2 : index
    %c0_127 = arith.constant 0 : index
    %85 = vector.load %arg11[%c1_125, %c2_126, %c0_127] : memref<18x18x8xf32, #tpu.memory_space<vmem>>, vector<16x16x8xf32>
    %86 = tpu.concatenate %83, %84, %85 in 2 : vector<16x16x8xf32>, vector<16x16x8xf32>, vector<16x16x8xf32> -> vector<16x16x24xf32>
    %87 = vector.shape_cast %86 : vector<16x16x24xf32> to vector<256x24xf32>
    %c1_128 = arith.constant 1 : index
    %c0_129 = arith.constant 0 : index
    %c0_130 = arith.constant 0 : index
    %88 = vector.load %arg6[%c1_128, %c0_129, %c0_130] : memref<3x24x8xf32, #tpu.memory_space<vmem>>, vector<1x24x8xf32>
    %89 = vector.shape_cast %88 : vector<1x24x8xf32> to vector<24x8xf32>
    %cst_131 = arith.constant dense<0.000000e+00> : vector<256x8xf32>
    %90 = tpu.matmul %87, %89, %cst_131 {dimension_numbers = #tpu.dot_dimension_numbers<[1], [0], [0], [1], [0, 0, 1, 1], [], []>} : vector<256x24xf32>, vector<24x8xf32>, vector<256x8xf32> -> vector<256x8xf32>
    %91 = arith.addf %82, %90 : vector<256x8xf32>
    %c2_132 = arith.constant 2 : index
    %c0_133 = arith.constant 0 : index
    %c0_134 = arith.constant 0 : index
    %92 = vector.load %arg11[%c2_132, %c0_133, %c0_134] : memref<18x18x8xf32, #tpu.memory_space<vmem>>, vector<16x16x8xf32>
    %c2_135 = arith.constant 2 : index
    %c1_136 = arith.constant 1 : index
    %c0_137 = arith.constant 0 : index
    %93 = vector.load %arg11[%c2_135, %c1_136, %c0_137] : memref<18x18x8xf32, #tpu.memory_space<vmem>>, vector<16x16x8xf32>
    %c2_138 = arith.constant 2 : index
    %c2_139 = arith.constant 2 : index
    %c0_140 = arith.constant 0 : index
    %94 = vector.load %arg11[%c2_138, %c2_139, %c0_140] : memref<18x18x8xf32, #tpu.memory_space<vmem>>, vector<16x16x8xf32>
    %95 = tpu.concatenate %92, %93, %94 in 2 : vector<16x16x8xf32>, vector<16x16x8xf32>, vector<16x16x8xf32> -> vector<16x16x24xf32>
    %96 = vector.shape_cast %95 : vector<16x16x24xf32> to vector<256x24xf32>
    %c2_141 = arith.constant 2 : index
    %c0_142 = arith.constant 0 : index
    %c0_143 = arith.constant 0 : index
    %97 = vector.load %arg6[%c2_141, %c0_142, %c0_143] : memref<3x24x8xf32, #tpu.memory_space<vmem>>, vector<1x24x8xf32>
    %98 = vector.shape_cast %97 : vector<1x24x8xf32> to vector<24x8xf32>
    %cst_144 = arith.constant dense<0.000000e+00> : vector<256x8xf32>
    %99 = tpu.matmul %96, %98, %cst_144 {dimension_numbers = #tpu.dot_dimension_numbers<[1], [0], [0], [1], [0, 0, 1, 1], [], []>} : vector<256x24xf32>, vector<24x8xf32>, vector<256x8xf32> -> vector<256x8xf32>
    %100 = arith.addf %91, %99 : vector<256x8xf32>
    %c0_145 = arith.constant 0 : index
    %c0_146 = arith.constant 0 : index
    %101 = vector.load %arg7[%c0_145, %c0_146] : memref<1x8xf32, #tpu.memory_space<vmem>>, vector<1x8xf32>
    %102 = vector.broadcast %101 : vector<1x8xf32> to vector<256x8xf32>
    %103 = arith.addf %100, %102 : vector<256x8xf32>
    %cst_147 = arith.constant 0.000000e+00 : f32
    %104 = vector.broadcast %cst_147 : f32 to vector<256x8xf32>
    %105 = arith.maximumf %103, %104 : vector<256x8xf32>
    %106 = vector.shape_cast %105 : vector<256x8xf32> to vector<16x16x8xf32>
    %107 = arith.addf %106, %40 : vector<16x16x8xf32>
    %c1_148 = arith.constant 1 : index
    %c1_149 = arith.constant 1 : index
    %c0_150 = arith.constant 0 : index
    %108 = vector.load %arg11[%c1_148, %c1_149, %c0_150] : memref<18x18x8xf32, #tpu.memory_space<vmem>>, vector<16x16x8xf32>
    tpu.vector_store %arg11[%c1_148, %c1_149, %c0_150], %107 {strides = array<i32>} : memref<18x18x8xf32, #tpu.memory_space<vmem>>, vector<16x16x8xf32>,
    %cst_151 = arith.constant 0.000000e+00 : f32
    %109 = vector.broadcast %cst_151 : f32 to vector<4x256xf32>
    %c0_152 = arith.constant 0 : index
    %c0_153 = arith.constant 0 : index
    %c0_154 = arith.constant 0 : index
    %110 = vector.load %arg8[%c0_152, %c0_153, %c0_154] : memref<3x4x24xf32, #tpu.memory_space<vmem>>, vector<1x4x24xf32>
    %111 = vector.shape_cast %110 : vector<1x4x24xf32> to vector<4x24xf32>
    %c0_155 = arith.constant 0 : index
    %c0_156 = arith.constant 0 : index
    %c0_157 = arith.constant 0 : index
    %112 = vector.load %arg11[%c0_155, %c0_156, %c0_157] : memref<18x18x8xf32, #tpu.memory_space<vmem>>, vector<16x16x8xf32>
    %c0_158 = arith.constant 0 : index
    %c1_159 = arith.constant 1 : index
    %c0_160 = arith.constant 0 : index
    %113 = vector.load %arg11[%c0_158, %c1_159, %c0_160] : memref<18x18x8xf32, #tpu.memory_space<vmem>>, vector<16x16x8xf32>
    %c0_161 = arith.constant 0 : index
    %c2_162 = arith.constant 2 : index
    %c0_163 = arith.constant 0 : index
    %114 = vector.load %arg11[%c0_161, %c2_162, %c0_163] : memref<18x18x8xf32, #tpu.memory_space<vmem>>, vector<16x16x8xf32>
    %115 = tpu.concatenate %112, %113, %114 in 2 : vector<16x16x8xf32>, vector<16x16x8xf32>, vector<16x16x8xf32> -> vector<16x16x24xf32>
    %116 = vector.shape_cast %115 : vector<16x16x24xf32> to vector<256x24xf32>
    %cst_164 = arith.constant dense<0.000000e+00> : vector<4x256xf32>
    %117 = tpu.matmul %111, %116, %cst_164 {dimension_numbers = #tpu.dot_dimension_numbers<[1], [1], [0], [0], [0, 0, 1, 0], [], []>} : vector<4x24xf32>, vector<256x24xf32>, vector<4x256xf32> -> vector<4x256xf32>
    %118 = arith.addf %109, %117 : vector<4x256xf32>
    %c1_165 = arith.constant 1 : index
    %c0_166 = arith.constant 0 : index
    %c0_167 = arith.constant 0 : index
    %119 = vector.load %arg8[%c1_165, %c0_166, %c0_167] : memref<3x4x24xf32, #tpu.memory_space<vmem>>, vector<1x4x24xf32>
    %120 = vector.shape_cast %119 : vector<1x4x24xf32> to vector<4x24xf32>
    %c1_168 = arith.constant 1 : index
    %c0_169 = arith.constant 0 : index
    %c0_170 = arith.constant 0 : index
    %121 = vector.load %arg11[%c1_168, %c0_169, %c0_170] : memref<18x18x8xf32, #tpu.memory_space<vmem>>, vector<16x16x8xf32>
    %c1_171 = arith.constant 1 : index
    %c1_172 = arith.constant 1 : index
    %c0_173 = arith.constant 0 : index
    %122 = vector.load %arg11[%c1_171, %c1_172, %c0_173] : memref<18x18x8xf32, #tpu.memory_space<vmem>>, vector<16x16x8xf32>
    %c1_174 = arith.constant 1 : index
    %c2_175 = arith.constant 2 : index
    %c0_176 = arith.constant 0 : index
    %123 = vector.load %arg11[%c1_174, %c2_175, %c0_176] : memref<18x18x8xf32, #tpu.memory_space<vmem>>, vector<16x16x8xf32>
    %124 = tpu.concatenate %121, %122, %123 in 2 : vector<16x16x8xf32>, vector<16x16x8xf32>, vector<16x16x8xf32> -> vector<16x16x24xf32>
    %125 = vector.shape_cast %124 : vector<16x16x24xf32> to vector<256x24xf32>
    %cst_177 = arith.constant dense<0.000000e+00> : vector<4x256xf32>
    %126 = tpu.matmul %120, %125, %cst_177 {dimension_numbers = #tpu.dot_dimension_numbers<[1], [1], [0], [0], [0, 0, 1, 0], [], []>} : vector<4x24xf32>, vector<256x24xf32>, vector<4x256xf32> -> vector<4x256xf32>
    %127 = arith.addf %118, %126 : vector<4x256xf32>
    %c2_178 = arith.constant 2 : index
    %c0_179 = arith.constant 0 : index
    %c0_180 = arith.constant 0 : index
    %128 = vector.load %arg8[%c2_178, %c0_179, %c0_180] : memref<3x4x24xf32, #tpu.memory_space<vmem>>, vector<1x4x24xf32>
    %129 = vector.shape_cast %128 : vector<1x4x24xf32> to vector<4x24xf32>
    %c2_181 = arith.constant 2 : index
    %c0_182 = arith.constant 0 : index
    %c0_183 = arith.constant 0 : index
    %130 = vector.load %arg11[%c2_181, %c0_182, %c0_183] : memref<18x18x8xf32, #tpu.memory_space<vmem>>, vector<16x16x8xf32>
    %c2_184 = arith.constant 2 : index
    %c1_185 = arith.constant 1 : index
    %c0_186 = arith.constant 0 : index
    %131 = vector.load %arg11[%c2_184, %c1_185, %c0_186] : memref<18x18x8xf32, #tpu.memory_space<vmem>>, vector<16x16x8xf32>
    %c2_187 = arith.constant 2 : index
    %c2_188 = arith.constant 2 : index
    %c0_189 = arith.constant 0 : index
    %132 = vector.load %arg11[%c2_187, %c2_188, %c0_189] : memref<18x18x8xf32, #tpu.memory_space<vmem>>, vector<16x16x8xf32>
    %133 = tpu.concatenate %130, %131, %132 in 2 : vector<16x16x8xf32>, vector<16x16x8xf32>, vector<16x16x8xf32> -> vector<16x16x24xf32>
    %134 = vector.shape_cast %133 : vector<16x16x24xf32> to vector<256x24xf32>
    %cst_190 = arith.constant dense<0.000000e+00> : vector<4x256xf32>
    %135 = tpu.matmul %129, %134, %cst_190 {dimension_numbers = #tpu.dot_dimension_numbers<[1], [1], [0], [0], [0, 0, 1, 0], [], []>} : vector<4x24xf32>, vector<256x24xf32>, vector<4x256xf32> -> vector<4x256xf32>
    %136 = arith.addf %127, %135 : vector<4x256xf32>
    %c0_191 = arith.constant 0 : index
    %c0_192 = arith.constant 0 : index
    %137 = vector.load %arg9[%c0_191, %c0_192] : memref<4x1xf32, #tpu.memory_space<vmem>>, vector<4x1xf32>
    %138 = vector.broadcast %137 : vector<4x1xf32> to vector<4x256xf32>
    %139 = arith.addf %136, %138 : vector<4x256xf32>
    %c0_193 = arith.constant 0 : index
    %c0_194 = arith.constant 0 : index
    %c0_195 = arith.constant 0 : index
    %140 = vector.load %arg10[%c0_193, %c0_194, %c0_195] : memref<1x4x256xf32, #tpu.memory_space<vmem>>, vector<1x4x256xf32>
    %141 = vector.shape_cast %140 : vector<1x4x256xf32> to vector<4x256xf32>
    %142 = vector.shape_cast %139 : vector<4x256xf32> to vector<1x4x256xf32>
    tpu.vector_store %arg10[%c0_193, %c0_194, %c0_195], %142 {strides = array<i32>} : memref<1x4x256xf32, #tpu.memory_space<vmem>>, vector<1x4x256xf32>,
    return
  }
  func.func @transform_0(%arg0: i32) -> (i32, i32, i32, i32) {
    %c0_i32 = arith.constant 0 : i32
    %c0_i32_0 = arith.constant 0 : i32
    %c0_i32_1 = arith.constant 0 : i32
    %c0_i32_2 = arith.constant 0 : i32
    return %arg0, %c0_i32, %c0_i32_0, %c0_i32_1 : i32, i32, i32, i32
  }
  func.func @transform_1(%arg0: i32) -> (i32, i32, i32) {
    %c0_i32 = arith.constant 0 : i32
    %c0_i32_0 = arith.constant 0 : i32
    %c0_i32_1 = arith.constant 0 : i32
    %c0_i32_2 = arith.constant 0 : i32
    return %c0_i32, %c0_i32_0, %c0_i32_1 : i32, i32, i32
  }
  func.func @transform_2(%arg0: i32) -> (i32, i32) {
    %c0_i32 = arith.constant 0 : i32
    %c0_i32_0 = arith.constant 0 : i32
    %c0_i32_1 = arith.constant 0 : i32
    return %c0_i32, %c0_i32_0 : i32, i32
  }
  func.func @transform_3(%arg0: i32) -> (i32, i32, i32) {
    %c0_i32 = arith.constant 0 : i32
    %c0_i32_0 = arith.constant 0 : i32
    %c0_i32_1 = arith.constant 0 : i32
    %c0_i32_2 = arith.constant 0 : i32
    return %c0_i32, %c0_i32_0, %c0_i32_1 : i32, i32, i32
  }
  func.func @transform_4(%arg0: i32) -> (i32, i32) {
    %c0_i32 = arith.constant 0 : i32
    %c0_i32_0 = arith.constant 0 : i32
    %c0_i32_1 = arith.constant 0 : i32
    return %c0_i32, %c0_i32_0 : i32, i32
  }
  func.func @transform_5(%arg0: i32) -> (i32, i32, i32) {
    %c0_i32 = arith.constant 0 : i32
    %c0_i32_0 = arith.constant 0 : i32
    %c0_i32_1 = arith.constant 0 : i32
    %c0_i32_2 = arith.constant 0 : i32
    return %c0_i32, %c0_i32_0, %c0_i32_1 : i32, i32, i32
  }
  func.func @transform_6(%arg0: i32) -> (i32, i32) {
    %c0_i32 = arith.constant 0 : i32
    %c0_i32_0 = arith.constant 0 : i32
    %c0_i32_1 = arith.constant 0 : i32
    return %c0_i32, %c0_i32_0 : i32, i32
  }
  func.func @transform_7(%arg0: i32) -> (i32, i32, i32) {
    %c0_i32 = arith.constant 0 : i32
    %c0_i32_0 = arith.constant 0 : i32
    %c0_i32_1 = arith.constant 0 : i32
    %c0_i32_2 = arith.constant 0 : i32
    return %c0_i32, %c0_i32_0, %c0_i32_1 : i32, i32, i32
  }
  func.func @transform_8(%arg0: i32) -> (i32, i32) {
    %c0_i32 = arith.constant 0 : i32
    %c0_i32_0 = arith.constant 0 : i32
    %c0_i32_1 = arith.constant 0 : i32
    return %c0_i32, %c0_i32_0 : i32, i32
  }
  func.func @transform_9(%arg0: i32) -> (i32, i32, i32) {
    %c0_i32 = arith.constant 0 : i32
    %c0_i32_0 = arith.constant 0 : i32
    %c0_i32_1 = arith.constant 0 : i32
    return %arg0, %c0_i32, %c0_i32_0 : i32, i32, i32
  }
}

</mosaic_0001>

<llo_original>
// kernel: depth_aggregation_forward.1
$region0: #{depth_aggregation_forward.1}
  #allocation0 [shape = 'u32[]', space=smem, size = 0x4, offset = 0x4, fixed_abs, tag = 'smem constant byte address 0x4 - core index']
  #allocation1 [shape = 'u32[72,128]{1,0:T(1,128)}', space=vmem, size = 0x9000, scoped, tag = 'internal scratch']
  #allocation2 [shape = 'f32[18,18,8]{2,1,0:T(8,128)}', space=vmem, size = 0x36000, scoped, tag = 'scratch operand']
  %s0 = inlined_call_operand.vmem [shape: f32[2,16,16,4], index: 0, kind: input, shape index: {}]
  %s1 = inlined_call_operand.vmem [shape: f32[3,12,8], index: 1, kind: input, shape index: {}]
  %s2 = inlined_call_operand.vmem [shape: f32[1,8], index: 2, kind: input, shape index: {}]
  %s3 = inlined_call_operand.vmem [shape: f32[3,24,8], index: 3, kind: input, shape index: {}]
  %s4 = inlined_call_operand.vmem [shape: f32[1,8], index: 4, kind: input, shape index: {}]
  %s5 = inlined_call_operand.vmem [shape: f32[3,24,8], index: 5, kind: input, shape index: {}]
  %s6 = inlined_call_operand.vmem [shape: f32[1,8], index: 6, kind: input, shape index: {}]
  %s7 = inlined_call_operand.vmem [shape: f32[3,4,24], index: 7, kind: input, shape index: {}]
  %s8 = inlined_call_operand.vmem [shape: f32[4,1], index: 8, kind: input, shape index: {}]
  %s9 = inlined_call_operand.vmem [shape: f32[2,4,256], index: 9, kind: output, shape index: {}]
  %s10 = sld [smem:[#allocation0]]
  $region69: #{depth_aggregation_forward.1} parent=0
    _
  %s12 = ssub.s32 1, %s10
  %s13 = scalar_select 0, %s12, %s10
  loop: start=0, step=1, limit=4
  $region2: #{depth_aggregation_forward.1} parent=0 // loop_pre_header
    _
  $region3: #{depth_aggregation_forward.1} parent=0 // loop_header
    %s15 = sphi 0, %s19
    %p16 = scmp.ge.s32.totalorder %s15, 4
    %s25 = sphi 0, %s27
    %s28 = sphi 0, %s25
    %s29 = sphi 0, %s28
    %s45 = sphi 0, %s29
    %s49 = sphi 0, %s49
    %s51 = sphi 0, %s49
    %s52 = sphi 0, %s51
    %s66 = sphi 0, %s52
    %s70 = sphi 0, %s70
    %s72 = sphi 0, %s70
    %s73 = sphi 0, %s72
    %s87 = sphi 0, %s73
    %s91 = sphi 0, %s91
    %s93 = sphi 0, %s91
    %s94 = sphi 0, %s93
    %s108 = sphi 0, %s94
    %s112 = sphi 0, %s112
    %s114 = sphi 0, %s112
    %s115 = sphi 0, %s114
    %s129 = sphi 0, %s115
    %s133 = sphi 0, %s133
    %s135 = sphi 0, %s133
    %s136 = sphi 0, %s135
    %s150 = sphi 0, %s136
    %s154 = sphi 0, %s154
    %s156 = sphi 0, %s154
    %s157 = sphi 0, %s156
    %s171 = sphi 0, %s157
    %s175 = sphi 0, %s175
    %s177 = sphi 0, %s175
    %s178 = sphi 0, %s177
    %s192 = sphi 0, %s178
    %s196 = sphi 0, %s196
    %s198 = sphi 0, %s196
    %s199 = sphi 0, %s198
    %s213 = sphi 0, %s199
    %s219 = sphi 0, %s221
    %s222 = sphi 0, %s219
    %s223 = sphi 0, %s222
    %s239 = sphi 0, %s223
  $region4: #{depth_aggregation_forward.1} parent=0 // loop_header_branch
    %18 = sbr.rel (%p16) target = $region8
  $region5: #{depth_aggregation_forward.1} parent=0 // loop_body
    %s20 = ssub.s32 %s15, 1
    %s21 = ssub.s32 %s15, 2
    %s22 = sadd.s32 %s15, 1
    %s23 = ssub.s32 %s15, %s22
    %p24 = scmp.eq.s32.totalorder %s23, 0
    %s26 = sadd.s32 %s25, 1
    %s27 = scalar_select %p24, %s25, %s26
    %p30 = pneg %p24
    %p31 = scmp.eq.s32.totalorder %s15, 1
    %p32 = por %p30, %p31
    %p33 = scmp.ne.s32.totalorder %s25, %s28
    %p34 = scmp.eq.s32.totalorder %s15, 0
    %p35 = por %p33, %p34
    %p36 = scmp.ne.s32.totalorder %s25, %s28
    %p37 = scmp.eq.s32.totalorder %s20, 1
    %p38 = por %p36, %p37
    %p39 = scmp.ne.s32.totalorder %s28, %s29
    %p40 = scmp.eq.s32.totalorder %s20, 0
    %p41 = por %p39, %p40
    %p42 = scmp.ne.s32.totalorder %s28, %s29
    %p43 = scmp.eq.s32.totalorder %s21, 1
    %p44 = por %p42, %p43
    %p46 = scmp.ne.s32.totalorder %s29, %s45
    %p47 = scmp.eq.s32.totalorder %s21, 0
    %p48 = por %p46, %p47
    %s50 = sadd.s32 %s49, 1
    %p53 = scmp.eq.s32.totalorder %s15, 1
    %p54 = scmp.ne.s32.totalorder %s49, %s51
    %p55 = scmp.eq.s32.totalorder %s15, 0
    %p56 = por %p54, %p55
    %p57 = scmp.ne.s32.totalorder %s49, %s51
    %p58 = scmp.eq.s32.totalorder %s20, 1
    %p59 = por %p57, %p58
    %p60 = scmp.ne.s32.totalorder %s51, %s52
    %p61 = scmp.eq.s32.totalorder %s20, 0
    %p62 = por %p60, %p61
    %p63 = scmp.ne.s32.totalorder %s51, %s52
    %p64 = scmp.eq.s32.totalorder %s21, 1
    %p65 = por %p63, %p64
    %p67 = scmp.ne.s32.totalorder %s52, %s66
    %p68 = scmp.eq.s32.totalorder %s21, 0
    %p69 = por %p67, %p68
    %s71 = sadd.s32 %s70, 1
    %p74 = scmp.eq.s32.totalorder %s15, 1
    %p75 = scmp.ne.s32.totalorder %s70, %s72
    %p76 = scmp.eq.s32.totalorder %s15, 0
    %p77 = por %p75, %p76
    %p78 = scmp.ne.s32.totalorder %s70, %s72
    %p79 = scmp.eq.s32.totalorder %s20, 1
    %p80 = por %p78, %p79
    %p81 = scmp.ne.s32.totalorder %s72, %s73
    %p82 = scmp.eq.s32.totalorder %s20, 0
    %p83 = por %p81, %p82
    %p84 = scmp.ne.s32.totalorder %s72, %s73
    %p85 = scmp.eq.s32.totalorder %s21, 1
    %p86 = por %p84, %p85
    %p88 = scmp.ne.s32.totalorder %s73, %s87
    %p89 = scmp.eq.s32.totalorder %s21, 0
    %p90 = por %p88, %p89
    %s92 = sadd.s32 %s91, 1
    %p95 = scmp.eq.s32.totalorder %s15, 1
    %p96 = scmp.ne.s32.totalorder %s91, %s93
    %p97 = scmp.eq.s32.totalorder %s15, 0
    %p98 = por %p96, %p97
    %p99 = scmp.ne.s32.totalorder %s91, %s93
    %p100 = scmp.eq.s32.totalorder %s20, 1
    %p101 = por %p99, %p100
    %p102 = scmp.ne.s32.totalorder %s93, %s94
    %p103 = scmp.eq.s32.totalorder %s20, 0
    %p104 = por %p102, %p103
    %p105 = scmp.ne.s32.totalorder %s93, %s94
    %p106 = scmp.eq.s32.totalorder %s21, 1
    %p107 = por %p105, %p106
    %p109 = scmp.ne.s32.totalorder %s94, %s108
    %p110 = scmp.eq.s32.totalorder %s21, 0
    %p111 = por %p109, %p110
    %s113 = sadd.s32 %s112, 1
    %p116 = scmp.eq.s32.totalorder %s15, 1
    %p117 = scmp.ne.s32.totalorder %s112, %s114
    %p118 = scmp.eq.s32.totalorder %s15, 0
    %p119 = por %p117, %p118
    %p120 = scmp.ne.s32.totalorder %s112, %s114
    %p121 = scmp.eq.s32.totalorder %s20, 1
    %p122 = por %p120, %p121
    %p123 = scmp.ne.s32.totalorder %s114, %s115
    %p124 = scmp.eq.s32.totalorder %s20, 0
    %p125 = por %p123, %p124
    %p126 = scmp.ne.s32.totalorder %s114, %s115
    %p127 = scmp.eq.s32.totalorder %s21, 1
    %p128 = por %p126, %p127
    %p130 = scmp.ne.s32.totalorder %s115, %s129
    %p131 = scmp.eq.s32.totalorder %s21, 0
    %p132 = por %p130, %p131
    %s134 = sadd.s32 %s133, 1
    %p137 = scmp.eq.s32.totalorder %s15, 1
    %p138 = scmp.ne.s32.totalorder %s133, %s135
    %p139 = scmp.eq.s32.totalorder %s15, 0
    %p140 = por %p138, %p139
    %p141 = scmp.ne.s32.totalorder %s133, %s135
    %p142 = scmp.eq.s32.totalorder %s20, 1
    %p143 = por %p141, %p142
    %p144 = scmp.ne.s32.totalorder %s135, %s136
    %p145 = scmp.eq.s32.totalorder %s20, 0
    %p146 = por %p144, %p145
    %p147 = scmp.ne.s32.totalorder %s135, %s136
    %p148 = scmp.eq.s32.totalorder %s21, 1
    %p149 = por %p147, %p148
    %p151 = scmp.ne.s32.totalorder %s136, %s150
    %p152 = scmp.eq.s32.totalorder %s21, 0
    %p153 = por %p151, %p152
    %s155 = sadd.s32 %s154, 1
    %p158 = scmp.eq.s32.totalorder %s15, 1
    %p159 = scmp.ne.s32.totalorder %s154, %s156
    %p160 = scmp.eq.s32.totalorder %s15, 0
    %p161 = por %p159, %p160
    %p162 = scmp.ne.s32.totalorder %s154, %s156
    %p163 = scmp.eq.s32.totalorder %s20, 1
    %p164 = por %p162, %p163
    %p165 = scmp.ne.s32.totalorder %s156, %s157
    %p166 = scmp.eq.s32.totalorder %s20, 0
    %p167 = por %p165, %p166
    %p168 = scmp.ne.s32.totalorder %s156, %s157
    %p169 = scmp.eq.s32.totalorder %s21, 1
    %p170 = por %p168, %p169
    %p172 = scmp.ne.s32.totalorder %s157, %s171
    %p173 = scmp.eq.s32.totalorder %s21, 0
    %p174 = por %p172, %p173
    %s176 = sadd.s32 %s175, 1
    %p179 = scmp.eq.s32.totalorder %s15, 1
    %p180 = scmp.ne.s32.totalorder %s175, %s177
    %p181 = scmp.eq.s32.totalorder %s15, 0
    %p182 = por %p180, %p181
    %p183 = scmp.ne.s32.totalorder %s175, %s177
    %p184 = scmp.eq.s32.totalorder %s20, 1
    %p185 = por %p183, %p184
    %p186 = scmp.ne.s32.totalorder %s177, %s178
    %p187 = scmp.eq.s32.totalorder %s20, 0
    %p188 = por %p186, %p187
    %p189 = scmp.ne.s32.totalorder %s177, %s178
    %p190 = scmp.eq.s32.totalorder %s21, 1
    %p191 = por %p189, %p190
    %p193 = scmp.ne.s32.totalorder %s178, %s192
    %p194 = scmp.eq.s32.totalorder %s21, 0
    %p195 = por %p193, %p194
    %s197 = sadd.s32 %s196, 1
    %p200 = scmp.eq.s32.totalorder %s15, 1
    %p201 = scmp.ne.s32.totalorder %s196, %s198
    %p202 = scmp.eq.s32.totalorder %s15, 0
    %p203 = por %p201, %p202
    %p204 = scmp.ne.s32.totalorder %s196, %s198
    %p205 = scmp.eq.s32.totalorder %s20, 1
    %p206 = por %p204, %p205
    %p207 = scmp.ne.s32.totalorder %s198, %s199
    %p208 = scmp.eq.s32.totalorder %s20, 0
    %p209 = por %p207, %p208
    %p210 = scmp.ne.s32.totalorder %s198, %s199
    %p211 = scmp.eq.s32.totalorder %s21, 1
    %p212 = por %p210, %p211
    %p214 = scmp.ne.s32.totalorder %s199, %s213
    %p215 = scmp.eq.s32.totalorder %s21, 0
    %p216 = por %p214, %p215
    %s217 = ssub.s32 %s15, %s22
    %p218 = scmp.eq.s32.totalorder %s217, 0
    %s220 = sadd.s32 %s219, 1
    %s221 = scalar_select %p218, %s219, %s220
    %p224 = pneg %p218
    %p225 = scmp.eq.s32.totalorder %s15, 1
    %p226 = por %p224, %p225
    %p227 = scmp.ne.s32.totalorder %s219, %s222
    %p228 = scmp.eq.s32.totalorder %s15, 0
    %p229 = por %p227, %p228
    %p230 = scmp.ne.s32.totalorder %s219, %s222
    %p231 = scmp.eq.s32.totalorder %s20, 1
    %p232 = por %p230, %p231
    %p233 = scmp.ne.s32.totalorder %s222, %s223
    %p234 = scmp.eq.s32.totalorder %s20, 0
    %p235 = por %p233, %p234
    %p236 = scmp.ne.s32.totalorder %s222, %s223
    %p237 = scmp.eq.s32.totalorder %s21, 1
    %p238 = por %p236, %p237
    %p240 = scmp.ne.s32.totalorder %s223, %s239
    %p241 = scmp.eq.s32.totalorder %s21, 0
    %p242 = por %p240, %p241
    %p243 = scmp.le.s32.totalorder 1, %s15
    %p244 = scmp.lt.s32.totalorder %s15, 3
    %p245 = pnand %p243, %p244
    %p246 = pneg %p245
    // Predicated region
    $region9: #{depth_aggregation_forward.1} parent=5 // pred_check
      _
    $region10: #{depth_aggregation_forward.1} parent=5 // pred_check_branch
      %248 = sbr.rel (%p245) target = $region12
    $region11: #{depth_aggregation_forward.1} parent=5 // pred_region
      %s249 = ssub.s32 %s15, 1
      // Predicated region
      $region13: #{depth_aggregation_forward.1} parent=11 // pred_check
        %p250 = pneg %p62
      $region14: #{depth_aggregation_forward.1} parent=11 // pred_check_branch
        %252 = sbr.rel (%p250) target = $region16
      $region15: #{depth_aggregation_forward.1} parent=11 // pred_region
        _
      $region16: #{depth_aggregation_forward.1} parent=11 // pred_fallthru
        _
      // Predicated region
      $region17: #{depth_aggregation_forward.1} parent=11 // pred_check
        %p253 = pneg %p83
      $region18: #{depth_aggregation_forward.1} parent=11 // pred_check_branch
        %255 = sbr.rel (%p253) target = $region20
      $region19: #{depth_aggregation_forward.1} parent=11 // pred_region
        _
      $region20: #{depth_aggregation_forward.1} parent=11 // pred_fallthru
        _
      // Predicated region
      $region21: #{depth_aggregation_forward.1} parent=11 // pred_check
        %p256 = pneg %p104
      $region22: #{depth_aggregation_forward.1} parent=11 // pred_check_branch
        %258 = sbr.rel (%p256) target = $region24
      $region23: #{depth_aggregation_forward.1} parent=11 // pred_region
        _
      $region24: #{depth_aggregation_forward.1} parent=11 // pred_fallthru
        _
      // Predicated region
      $region25: #{depth_aggregation_forward.1} parent=11 // pred_check
        %p259 = pneg %p125
      $region26: #{depth_aggregation_forward.1} parent=11 // pred_check_branch
        %261 = sbr.rel (%p259) target = $region28
      $region27: #{depth_aggregation_forward.1} parent=11 // pred_region
        _
      $region28: #{depth_aggregation_forward.1} parent=11 // pred_fallthru
        _
      // Predicated region
      $region29: #{depth_aggregation_forward.1} parent=11 // pred_check
        %p262 = pneg %p146
      $region30: #{depth_aggregation_forward.1} parent=11 // pred_check_branch
        %264 = sbr.rel (%p262) target = $region32
      $region31: #{depth_aggregation_forward.1} parent=11 // pred_region
        _
      $region32: #{depth_aggregation_forward.1} parent=11 // pred_fallthru
        _
      // Predicated region
      $region33: #{depth_aggregation_forward.1} parent=11 // pred_check
        %p265 = pneg %p167
      $region34: #{depth_aggregation_forward.1} parent=11 // pred_check_branch
        %267 = sbr.rel (%p265) target = $region36
      $region35: #{depth_aggregation_forward.1} parent=11 // pred_region
        _
      $region36: #{depth_aggregation_forward.1} parent=11 // pred_fallthru
        _
      // Predicated region
      $region37: #{depth_aggregation_forward.1} parent=11 // pred_check
        %p268 = pneg %p188
      $region38: #{depth_aggregation_forward.1} parent=11 // pred_check_branch
        %270 = sbr.rel (%p268) target = $region40
      $region39: #{depth_aggregation_forward.1} parent=11 // pred_region
        _
      $region40: #{depth_aggregation_forward.1} parent=11 // pred_fallthru
        _
      // Predicated region
      $region41: #{depth_aggregation_forward.1} parent=11 // pred_check
        %p271 = pneg %p209
      $region42: #{depth_aggregation_forward.1} parent=11 // pred_check_branch
        %273 = sbr.rel (%p271) target = $region44
      $region43: #{depth_aggregation_forward.1} parent=11 // pred_region
        _
      $region44: #{depth_aggregation_forward.1} parent=11 // pred_fallthru
        _
    $region12: #{depth_aggregation_forward.1} parent=5 // pred_fallthru
      _
    %p274 = scmp.lt.s32.totalorder %s15, 2
    // Predicated region
    $region45: #{depth_aggregation_forward.1} parent=5 // pred_check
      %p275 = pneg %p274
    $region46: #{depth_aggregation_forward.1} parent=5 // pred_check_branch
      %277 = sbr.rel (%p275) target = $region48
    $region47: #{depth_aggregation_forward.1} parent=5 // pred_region
      // Predicated region
      $region49: #{depth_aggregation_forward.1} parent=47 // pred_check
        %p278 = pneg %p35
      $region50: #{depth_aggregation_forward.1} parent=47 // pred_check_branch
        %280 = sbr.rel (%p278) target = $region52
      $region51: #{depth_aggregation_forward.1} parent=47 // pred_region
        %p281 = scmp.lt.s32.totalorder %s15, 1
        %s282 = scalar_select %p281, %s15, 1
        %s283 = smul.addr %s282, 32
        %s284 = smul.addr %s283, 8
        %s285 = scalar_lea.vmem %s0, %s284
      $region52: #{depth_aggregation_forward.1} parent=47 // pred_fallthru
        _
    $region48: #{depth_aggregation_forward.1} parent=5 // pred_fallthru
      _
    %p286 = scmp.le.s32.totalorder 1, %s15
    %p287 = scmp.lt.s32.totalorder %s15, 3
    %p288 = pnand %p286, %p287
    %p289 = pneg %p288
    // Predicated region
    $region53: #{depth_aggregation_forward.1} parent=5 // pred_check
      _
    $region54: #{depth_aggregation_forward.1} parent=5 // pred_check_branch
      %291 = sbr.rel (%p288) target = $region56
    $region55: #{depth_aggregation_forward.1} parent=5 // pred_region
      %s292 = ssub.s32 %s15, 1
      %p293 = scmp.lt.s32.totalorder %s20, 1
      %s294 = scalar_select %p293, %s20, 1
      %s295 = smul.addr %s294, 32
      %s296 = smul.addr %s295, 8
      %s297 = scalar_lea.vmem %s0, %s296
      %p298 = pneg %p41
      %p299 = pneg %p38
      %p300 = pneg %p62
      %p301 = pneg %p59
      %p302 = pneg %p83
      %p303 = pneg %p80
      %p304 = pneg %p104
      %p305 = pneg %p101
      %p306 = pneg %p125
      %p307 = pneg %p122
      %p308 = pneg %p146
      %p309 = pneg %p143
      %p310 = pneg %p167
      %p311 = pneg %p164
      %p312 = pneg %p188
      %p313 = pneg %p185
      %p314 = pneg %p209
      %p315 = pneg %p206
      %p316 = pneg %p235
      %p317 = pneg %p232
      %p318 = scmp.lt.s32.totalorder %s20, 1
      %s319 = scalar_select %p318, %s20, 1
      %s320 = smul.addr %s319, 2
      %s321 = smul.addr %s320, 4
      %s322 = scalar_lea.vmem %s9, %s321
      %p323 = scmp.lt.s32.totalorder %s20, 1
      %s324 = scalar_select %p323, %s20, 1
      %s325 = smul.addr %s324, 32
      %s326 = smul.addr %s325, 8
      %s327 = scalar_lea.vmem %s0, %s326
      %p328 = scmp.lt.s32.totalorder %s20, 1
      %s329 = scalar_select %p328, %s20, 1
      %s330 = smul.addr %s329, 2
      %s331 = smul.addr %s330, 4
      %s332 = scalar_lea.vmem %s9, %s331
      %vm333 = vcmask 64512
      %334 = vst.msk [vmem:[#allocation2] sm:$0xff] %vm333, 0.0
      %335 = vst.msk [vmem:[#allocation2 + $0x8] sm:$0xff] %vm333, 0.0
      %vm336 = vcmask 58368
      %337 = vst.msk [vmem:[#allocation2 + $0x10] sm:$0x3] %vm336, 0.0
      %s338 = scalar_lea.vmem [#allocation2], 408
      %339 = vst.msk [vmem:[%s338] sm:$0xff] %vm333, 0.0
      %340 = vst.msk [vmem:[%s338 + $0x8] sm:$0xff] %vm333, 0.0
      %341 = vst.msk [vmem:[%s338 + $0x10] sm:$0x3] %vm336, 0.0
      %vm342 = vcmask 57344
      %343 = vst.msk [vmem:[#allocation2] sm:$0x1] %vm342, 0.0
      %344 = vst.msk [vmem:[#allocation2 + $0x18] sm:$0x1] %vm342, 0.0
      %345 = vst.msk [vmem:[#allocation2 + $0x30] sm:$0x1] %vm342, 0.0
      %346 = vst.msk [vmem:[#allocation2 + $0x48] sm:$0x1] %vm342, 0.0
      %347 = vst.msk [vmem:[#allocation2 + $0x60] sm:$0x1] %vm342, 0.0
      %348 = vst.msk [vmem:[#allocation2 + $0x78] sm:$0x1] %vm342, 0.0
      %349 = vst.msk [vmem:[#allocation2 + $0x90] sm:$0x1] %vm342, 0.0
      %350 = vst.msk [vmem:[#allocation2 + $0xa8] sm:$0x1] %vm342, 0.0
      %351 = vst.msk [vmem:[#allocation2 + $0xc0] sm:$0x1] %vm342, 0.0
      %352 = vst.msk [vmem:[#allocation2 + $0xd8] sm:$0x1] %vm342, 0.0
      %353 = vst.msk [vmem:[#allocation2 + $0xf0] sm:$0x1] %vm342, 0.0
      %354 = vst.msk [vmem:[#allocation2 + $0x108] sm:$0x1] %vm342, 0.0
      %355 = vst.msk [vmem:[#allocation2 + $0x120] sm:$0x1] %vm342, 0.0
      %356 = vst.msk [vmem:[#allocation2 + $0x138] sm:$0x1] %vm342, 0.0
      %357 = vst.msk [vmem:[#allocation2 + $0x150] sm:$0x1] %vm342, 0.0
      %358 = vst.msk [vmem:[#allocation2 + $0x168] sm:$0x1] %vm342, 0.0
      %359 = vst.msk [vmem:[#allocation2 + $0x180] sm:$0x1] %vm342, 0.0
      %360 = vst.msk [vmem:[#allocation2 + $0x198] sm:$0x1] %vm342, 0.0
      %361 = vst.msk [vmem:[#allocation2 + $0x11] sm:$0x1] %vm342, 0.0
      %362 = vst.msk [vmem:[#allocation2 + $0x29] sm:$0x1] %vm342, 0.0
      %363 = vst.msk [vmem:[#allocation2 + $0x41] sm:$0x1] %vm342, 0.0
      %364 = vst.msk [vmem:[#allocation2 + $0x59] sm:$0x1] %vm342, 0.0
      %365 = vst.msk [vmem:[#allocation2 + $0x71] sm:$0x1] %vm342, 0.0
      %366 = vst.msk [vmem:[#allocation2 + $0x89] sm:$0x1] %vm342, 0.0
      %367 = vst.msk [vmem:[#allocation2 + $0xa1] sm:$0x1] %vm342, 0.0
      %368 = vst.msk [vmem:[#allocation2 + $0xb9] sm:$0x1] %vm342, 0.0
      %369 = vst.msk [vmem:[#allocation2 + $0xd1] sm:$0x1] %vm342, 0.0
      %370 = vst.msk [vmem:[#allocation2 + $0xe9] sm:$0x1] %vm342, 0.0
      %371 = vst.msk [vmem:[#allocation2 + $0x101] sm:$0x1] %vm342, 0.0
      %372 = vst.msk [vmem:[#allocation2 + $0x119] sm:$0x1] %vm342, 0.0
      %373 = vst.msk [vmem:[#allocation2 + $0x131] sm:$0x1] %vm342, 0.0
      %374 = vst.msk [vmem:[#allocation2 + $0x149] sm:$0x1] %vm342, 0.0
      %375 = vst.msk [vmem:[#allocation2 + $0x161] sm:$0x1] %vm342, 0.0
      %376 = vst.msk [vmem:[#allocation2 + $0x179] sm:$0x1] %vm342, 0.0
      %377 = vst.msk [vmem:[#allocation2 + $0x191] sm:$0x1] %vm342, 0.0
      %378 = vst.msk [vmem:[#allocation2 + $0x1a9] sm:$0x1] %vm342, 0.0
      %v379 = vld [vmem:[%s327] sm:$0xff]
      %v380 = vld [vmem:[%s327 + $0x8] sm:$0xff]
      %v381 = vld [vmem:[%s327 + $0x10] sm:$0xff]
      %v382 = vld [vmem:[%s327 + $0x18] sm:$0xff]
      %v383 = vld [vmem:[%s327 + $0x20] sm:$0xff]
      %v384 = vld [vmem:[%s327 + $0x28] sm:$0xff]
      %v385 = vld [vmem:[%s327 + $0x30] sm:$0xff]
      %v386 = vld [vmem:[%s327 + $0x38] sm:$0xff]
      %v387 = vld [vmem:[%s327 + $0x40] sm:$0xff]
      %v388 = vld [vmem:[%s327 + $0x48] sm:$0xff]
      %v389 = vld [vmem:[%s327 + $0x50] sm:$0xff]
      %v390 = vld [vmem:[%s327 + $0x58] sm:$0xff]
      %v391 = vld [vmem:[%s327 + $0x60] sm:$0xff]
      %v392 = vld [vmem:[%s327 + $0x68] sm:$0xff]
      %v393 = vld [vmem:[%s327 + $0x70] sm:$0xff]
      %v394 = vld [vmem:[%s327 + $0x78] sm:$0xff]
      %v395 = vld [vmem:[%s327 + $0x80] sm:$0xff]
      %v396 = vld [vmem:[%s327 + $0x88] sm:$0xff]
      %v397 = vld [vmem:[%s327 + $0x90] sm:$0xff]
      %v398 = vld [vmem:[%s327 + $0x98] sm:$0xff]
      %v399 = vld [vmem:[%s327 + $0xa0] sm:$0xff]
      %v400 = vld [vmem:[%s327 + $0xa8] sm:$0xff]
      %v401 = vld [vmem:[%s327 + $0xb0] sm:$0xff]
      %v402 = vld [vmem:[%s327 + $0xb8] sm:$0xff]
      %v403 = vld [vmem:[%s327 + $0xc0] sm:$0xff]
      %v404 = vld [vmem:[%s327 + $0xc8] sm:$0xff]
      %v405 = vld [vmem:[%s327 + $0xd0] sm:$0xff]
      %v406 = vld [vmem:[%s327 + $0xd8] sm:$0xff]
      %v407 = vld [vmem:[%s327 + $0xe0] sm:$0xff]
      %v408 = vld [vmem:[%s327 + $0xe8] sm:$0xff]
      %v409 = vld [vmem:[%s327 + $0xf0] sm:$0xff]
      %v410 = vld [vmem:[%s327 + $0xf8] sm:$0xff]
      %s411 = scalar_lea.vmem [#allocation2], 24
      %vm412 = vcmask 31744
      %413 = vst.msk [vmem:[%s411 + $0x1] sm:$0xff] %vm412, %v379
      %414 = vst.msk [vmem:[%s411 + $0x9] sm:$0xff] %vm412, %v380
      %415 = vst.msk [vmem:[%s411 + $0x19] sm:$0xff] %vm412, %v381
      %416 = vst.msk [vmem:[%s411 + $0x21] sm:$0xff] %vm412, %v382
      %417 = vst.msk [vmem:[%s411 + $0x31] sm:$0xff] %vm412, %v383
      %418 = vst.msk [vmem:[%s411 + $0x39] sm:$0xff] %vm412, %v384
      %419 = vst.msk [vmem:[%s411 + $0x49] sm:$0xff] %vm412, %v385
      %420 = vst.msk [vmem:[%s411 + $0x51] sm:$0xff] %vm412, %v386
      %421 = vst.msk [vmem:[%s411 + $0x61] sm:$0xff] %vm412, %v387
      %422 = vst.msk [vmem:[%s411 + $0x69] sm:$0xff] %vm412, %v388
      %423 = vst.msk [vmem:[%s411 + $0x79] sm:$0xff] %vm412, %v389
      %424 = vst.msk [vmem:[%s411 + $0x81] sm:$0xff] %vm412, %v390
      %425 = vst.msk [vmem:[%s411 + $0x91] sm:$0xff] %vm412, %v391
      %426 = vst.msk [vmem:[%s411 + $0x99] sm:$0xff] %vm412, %v392
      %427 = vst.msk [vmem:[%s411 + $0xa9] sm:$0xff] %vm412, %v393
      %428 = vst.msk [vmem:[%s411 + $0xb1] sm:$0xff] %vm412, %v394
      %429 = vst.msk [vmem:[%s411 + $0xc1] sm:$0xff] %vm412, %v395
      %430 = vst.msk [vmem:[%s411 + $0xc9] sm:$0xff] %vm412, %v396
      %431 = vst.msk [vmem:[%s411 + $0xd9] sm:$0xff] %vm412, %v397
      %432 = vst.msk [vmem:[%s411 + $0xe1] sm:$0xff] %vm412, %v398
      %433 = vst.msk [vmem:[%s411 + $0xf1] sm:$0xff] %vm412, %v399
      %434 = vst.msk [vmem:[%s411 + $0xf9] sm:$0xff] %vm412, %v400
      %435 = vst.msk [vmem:[%s411 + $0x109] sm:$0xff] %vm412, %v401
      %436 = vst.msk [vmem:[%s411 + $0x111] sm:$0xff] %vm412, %v402
      %437 = vst.msk [vmem:[%s411 + $0x121] sm:$0xff] %vm412, %v403
      %438 = vst.msk [vmem:[%s411 + $0x129] sm:$0xff] %vm412, %v404
      %439 = vst.msk [vmem:[%s411 + $0x139] sm:$0xff] %vm412, %v405
      %440 = vst.msk [vmem:[%s411 + $0x141] sm:$0xff] %vm412, %v406
      %441 = vst.msk [vmem:[%s411 + $0x151] sm:$0xff] %vm412, %v407
      %442 = vst.msk [vmem:[%s411 + $0x159] sm:$0xff] %vm412, %v408
      %443 = vst.msk [vmem:[%s411 + $0x169] sm:$0xff] %vm412, %v409
      %444 = vst.msk [vmem:[%s411 + $0x171] sm:$0xff] %vm412, %v410
      %v445 = vld [vmem:[#allocation2] sm:$0xff]
      %v446 = vld [vmem:[#allocation2 + $0x8] sm:$0xff]
      %v447 = vld [vmem:[#allocation2 + $0x18] sm:$0xff]
      %v448 = vld [vmem:[#allocation2 + $0x20] sm:$0xff]
      %v449 = vld [vmem:[#allocation2 + $0x30] sm:$0xff]
      %v450 = vld [vmem:[#allocation2 + $0x38] sm:$0xff]
      %v451 = vld [vmem:[#allocation2 + $0x48] sm:$0xff]
      %v452 = vld [vmem:[#allocation2 + $0x50] sm:$0xff]
      %v453 = vld [vmem:[#allocation2 + $0x60] sm:$0xff]
      %v454 = vld [vmem:[#allocation2 + $0x68] sm:$0xff]
      %v455 = vld [vmem:[#allocation2 + $0x78] sm:$0xff]
      %v456 = vld [vmem:[#allocation2 + $0x80] sm:$0xff]
      %v457 = vld [vmem:[#allocation2 + $0x90] sm:$0xff]
      %v458 = vld [vmem:[#allocation2 + $0x98] sm:$0xff]
      %v459 = vld [vmem:[#allocation2 + $0xa8] sm:$0xff]
      %v460 = vld [vmem:[#allocation2 + $0xb0] sm:$0xff]
      %v461 = vld [vmem:[#allocation2 + $0xc0] sm:$0xff]
      %v462 = vld [vmem:[#allocation2 + $0xc8] sm:$0xff]
      %v463 = vld [vmem:[#allocation2 + $0xd8] sm:$0xff]
      %v464 = vld [vmem:[#allocation2 + $0xe0] sm:$0xff]
      %v465 = vld [vmem:[#allocation2 + $0xf0] sm:$0xff]
      %v466 = vld [vmem:[#allocation2 + $0xf8] sm:$0xff]
      %v467 = vld [vmem:[#allocation2 + $0x108] sm:$0xff]
      %v468 = vld [vmem:[#allocation2 + $0x110] sm:$0xff]
      %v469 = vld [vmem:[#allocation2 + $0x120] sm:$0xff]
      %v470 = vld [vmem:[#allocation2 + $0x128] sm:$0xff]
      %v471 = vld [vmem:[#allocation2 + $0x138] sm:$0xff]
      %v472 = vld [vmem:[#allocation2 + $0x140] sm:$0xff]
      %v473 = vld [vmem:[#allocation2 + $0x150] sm:$0xff]
      %v474 = vld [vmem:[#allocation2 + $0x158] sm:$0xff]
      %v475 = vld [vmem:[#allocation2 + $0x168] sm:$0xff]
      %v476 = vld [vmem:[#allocation2 + $0x170] sm:$0xff]
      %v477 = vld [vmem:[#allocation2 + $0x1] sm:$0xff]
      %v478 = vld [vmem:[#allocation2 + $0x9] sm:$0xff]
      %v479 = vld [vmem:[#allocation2 + $0x19] sm:$0xff]
      %v480 = vld [vmem:[#allocation2 + $0x21] sm:$0xff]
      %v481 = vld [vmem:[#allocation2 + $0x31] sm:$0xff]
      %v482 = vld [vmem:[#allocation2 + $0x39] sm:$0xff]
      %v483 = vld [vmem:[#allocation2 + $0x49] sm:$0xff]
      %v484 = vld [vmem:[#allocation2 + $0x51] sm:$0xff]
      %v485 = vld [vmem:[#allocation2 + $0x61] sm:$0xff]
      %v486 = vld [vmem:[#allocation2 + $0x69] sm:$0xff]
      %v487 = vld [vmem:[#allocation2 + $0x79] sm:$0xff]
      %v488 = vld [vmem:[#allocation2 + $0x81] sm:$0xff]
      %v489 = vld [vmem:[#allocation2 + $0x91] sm:$0xff]
      %v490 = vld [vmem:[#allocation2 + $0x99] sm:$0xff]
      %v491 = vld [vmem:[#allocation2 + $0xa9] sm:$0xff]
      %v492 = vld [vmem:[#allocation2 + $0xb1] sm:$0xff]
      %v493 = vld [vmem:[#allocation2 + $0xc1] sm:$0xff]
      %v494 = vld [vmem:[#allocation2 + $0xc9] sm:$0xff]
      %v495 = vld [vmem:[#allocation2 + $0xd9] sm:$0xff]
      %v496 = vld [vmem:[#allocation2 + $0xe1] sm:$0xff]
      %v497 = vld [vmem:[#allocation2 + $0xf1] sm:$0xff]
      %v498 = vld [vmem:[#allocation2 + $0xf9] sm:$0xff]
      %v499 = vld [vmem:[#allocation2 + $0x109] sm:$0xff]
      %v500 = vld [vmem:[#allocation2 + $0x111] sm:$0xff]
      %v501 = vld [vmem:[#allocation2 + $0x121] sm:$0xff]
      %v502 = vld [vmem:[#allocation2 + $0x129] sm:$0xff]
      %v503 = vld [vmem:[#allocation2 + $0x139] sm:$0xff]
      %v504 = vld [vmem:[#allocation2 + $0x141] sm:$0xff]
      %v505 = vld [vmem:[#allocation2 + $0x151] sm:$0xff]
      %v506 = vld [vmem:[#allocation2 + $0x159] sm:$0xff]
      %v507 = vld [vmem:[#allocation2 + $0x169] sm:$0xff]
      %v508 = vld [vmem:[#allocation2 + $0x171] sm:$0xff]
      %v509 = vld [vmem:[#allocation2 + $0x2] sm:$0xff]
      %v510 = vld [vmem:[#allocation2 + $0xa] sm:$0xff]
      %v511 = vld [vmem:[#allocation2 + $0x1a] sm:$0xff]
      %v512 = vld [vmem:[#allocation2 + $0x22] sm:$0xff]
      %v513 = vld [vmem:[#allocation2 + $0x32] sm:$0xff]
      %v514 = vld [vmem:[#allocation2 + $0x3a] sm:$0xff]
      %v515 = vld [vmem:[#allocation2 + $0x4a] sm:$0xff]
      %v516 = vld [vmem:[#allocation2 + $0x52] sm:$0xff]
      %v517 = vld [vmem:[#allocation2 + $0x62] sm:$0xff]
      %v518 = vld [vmem:[#allocation2 + $0x6a] sm:$0xff]
      %v519 = vld [vmem:[#allocation2 + $0x7a] sm:$0xff]
      %v520 = vld [vmem:[#allocation2 + $0x82] sm:$0xff]
      %v521 = vld [vmem:[#allocation2 + $0x92] sm:$0xff]
      %v522 = vld [vmem:[#allocation2 + $0x9a] sm:$0xff]
      %v523 = vld [vmem:[#allocation2 + $0xaa] sm:$0xff]
      %v524 = vld [vmem:[#allocation2 + $0xb2] sm:$0xff]
      %v525 = vld [vmem:[#allocation2 + $0xc2] sm:$0xff]
      %v526 = vld [vmem:[#allocation2 + $0xca] sm:$0xff]
      %v527 = vld [vmem:[#allocation2 + $0xda] sm:$0xff]
      %v528 = vld [vmem:[#allocation2 + $0xe2] sm:$0xff]
      %v529 = vld [vmem:[#allocation2 + $0xf2] sm:$0xff]
      %v530 = vld [vmem:[#allocation2 + $0xfa] sm:$0xff]
      %v531 = vld [vmem:[#allocation2 + $0x10a] sm:$0xff]
      %v532 = vld [vmem:[#allocation2 + $0x112] sm:$0xff]
      %v533 = vld [vmem:[#allocation2 + $0x122] sm:$0xff]
      %v534 = vld [vmem:[#allocation2 + $0x12a] sm:$0xff]
      %v535 = vld [vmem:[#allocation2 + $0x13a] sm:$0xff]
      %v536 = vld [vmem:[#allocation2 + $0x142] sm:$0xff]
      %v537 = vld [vmem:[#allocation2 + $0x152] sm:$0xff]
      %v538 = vld [vmem:[#allocation2 + $0x15a] sm:$0xff]
      %v539 = vld [vmem:[#allocation2 + $0x16a] sm:$0xff]
      %v540 = vld [vmem:[#allocation2 + $0x172] sm:$0xff]
      %573 = vrot.lane.b32.xlu0 %v477, 4
      %v574 = vpop.permute.xlu0 %573
      %575 = vrot.lane.b32.xlu0 %v478, 4
      %v576 = vpop.permute.xlu0 %575
      %577 = vrot.lane.b32.xlu0 %v479, 4
      %v578 = vpop.permute.xlu0 %577
      %579 = vrot.lane.b32.xlu0 %v480, 4
      %v580 = vpop.permute.xlu0 %579
      %581 = vrot.lane.b32.xlu0 %v481, 4
      %v582 = vpop.permute.xlu0 %581
      %583 = vrot.lane.b32.xlu0 %v482, 4
      %v584 = vpop.permute.xlu0 %583
      %585 = vrot.lane.b32.xlu0 %v483, 4
      %v586 = vpop.permute.xlu0 %585
      %587 = vrot.lane.b32.xlu0 %v484, 4
      %v588 = vpop.permute.xlu0 %587
      %589 = vrot.lane.b32.xlu0 %v485, 4
      %v590 = vpop.permute.xlu0 %589
      %591 = vrot.lane.b32.xlu0 %v486, 4
      %v592 = vpop.permute.xlu0 %591
      %593 = vrot.lane.b32.xlu0 %v487, 4
      %v594 = vpop.permute.xlu0 %593
      %595 = vrot.lane.b32.xlu0 %v488, 4
      %v596 = vpop.permute.xlu0 %595
      %597 = vrot.lane.b32.xlu0 %v489, 4
      %v598 = vpop.permute.xlu0 %597
      %599 = vrot.lane.b32.xlu0 %v490, 4
      %v600 = vpop.permute.xlu0 %599
      %601 = vrot.lane.b32.xlu0 %v491, 4
      %v602 = vpop.permute.xlu0 %601
      %603 = vrot.lane.b32.xlu0 %v492, 4
      %v604 = vpop.permute.xlu0 %603
      %605 = vrot.lane.b32.xlu0 %v493, 4
      %v606 = vpop.permute.xlu0 %605
      %607 = vrot.lane.b32.xlu0 %v494, 4
      %v608 = vpop.permute.xlu0 %607
      %609 = vrot.lane.b32.xlu0 %v495, 4
      %v610 = vpop.permute.xlu0 %609
      %611 = vrot.lane.b32.xlu0 %v496, 4
      %v612 = vpop.permute.xlu0 %611
      %613 = vrot.lane.b32.xlu0 %v497, 4
      %v614 = vpop.permute.xlu0 %613
      %615 = vrot.lane.b32.xlu0 %v498, 4
      %v616 = vpop.permute.xlu0 %615
      %617 = vrot.lane.b32.xlu0 %v499, 4
      %v618 = vpop.permute.xlu0 %617
      %619 = vrot.lane.b32.xlu0 %v500, 4
      %v620 = vpop.permute.xlu0 %619
      %621 = vrot.lane.b32.xlu0 %v501, 4
      %v622 = vpop.permute.xlu0 %621
      %623 = vrot.lane.b32.xlu0 %v502, 4
      %v624 = vpop.permute.xlu0 %623
      %625 = vrot.lane.b32.xlu0 %v503, 4
      %v626 = vpop.permute.xlu0 %625
      %627 = vrot.lane.b32.xlu0 %v504, 4
      %v628 = vpop.permute.xlu0 %627
      %629 = vrot.lane.b32.xlu0 %v505, 4
      %v630 = vpop.permute.xlu0 %629
      %631 = vrot.lane.b32.xlu0 %v506, 4
      %v632 = vpop.permute.xlu0 %631
      %633 = vrot.lane.b32.xlu0 %v507, 4
      %v634 = vpop.permute.xlu0 %633
      %635 = vrot.lane.b32.xlu0 %v508, 4
      %v636 = vpop.permute.xlu0 %635
      %701 = vrot.lane.b32.xlu0 %v509, 8
      %v702 = vpop.permute.xlu0 %701
      %703 = vrot.lane.b32.xlu0 %v510, 8
      %v704 = vpop.permute.xlu0 %703
      %705 = vrot.lane.b32.xlu0 %v511, 8
      %v706 = vpop.permute.xlu0 %705
      %707 = vrot.lane.b32.xlu0 %v512, 8
      %v708 = vpop.permute.xlu0 %707
      %709 = vrot.lane.b32.xlu0 %v513, 8
      %v710 = vpop.permute.xlu0 %709
      %711 = vrot.lane.b32.xlu0 %v514, 8
      %v712 = vpop.permute.xlu0 %711
      %713 = vrot.lane.b32.xlu0 %v515, 8
      %v714 = vpop.permute.xlu0 %713
      %715 = vrot.lane.b32.xlu0 %v516, 8
      %v716 = vpop.permute.xlu0 %715
      %717 = vrot.lane.b32.xlu0 %v517, 8
      %v718 = vpop.permute.xlu0 %717
      %719 = vrot.lane.b32.xlu0 %v518, 8
      %v720 = vpop.permute.xlu0 %719
      %721 = vrot.lane.b32.xlu0 %v519, 8
      %v722 = vpop.permute.xlu0 %721
      %723 = vrot.lane.b32.xlu0 %v520, 8
      %v724 = vpop.permute.xlu0 %723
      %725 = vrot.lane.b32.xlu0 %v521, 8
      %v726 = vpop.permute.xlu0 %725
      %727 = vrot.lane.b32.xlu0 %v522, 8
      %v728 = vpop.permute.xlu0 %727
      %729 = vrot.lane.b32.xlu0 %v523, 8
      %v730 = vpop.permute.xlu0 %729
      %731 = vrot.lane.b32.xlu0 %v524, 8
      %v732 = vpop.permute.xlu0 %731
      %733 = vrot.lane.b32.xlu0 %v525, 8
      %v734 = vpop.permute.xlu0 %733
      %735 = vrot.lane.b32.xlu0 %v526, 8
      %v736 = vpop.permute.xlu0 %735
      %737 = vrot.lane.b32.xlu0 %v527, 8
      %v738 = vpop.permute.xlu0 %737
      %739 = vrot.lane.b32.xlu0 %v528, 8
      %v740 = vpop.permute.xlu0 %739
      %741 = vrot.lane.b32.xlu0 %v529, 8
      %v742 = vpop.permute.xlu0 %741
      %743 = vrot.lane.b32.xlu0 %v530, 8
      %v744 = vpop.permute.xlu0 %743
      %745 = vrot.lane.b32.xlu0 %v531, 8
      %v746 = vpop.permute.xlu0 %745
      %747 = vrot.lane.b32.xlu0 %v532, 8
      %v748 = vpop.permute.xlu0 %747
      %749 = vrot.lane.b32.xlu0 %v533, 8
      %v750 = vpop.permute.xlu0 %749
      %751 = vrot.lane.b32.xlu0 %v534, 8
      %v752 = vpop.permute.xlu0 %751
      %753 = vrot.lane.b32.xlu0 %v535, 8
      %v754 = vpop.permute.xlu0 %753
      %755 = vrot.lane.b32.xlu0 %v536, 8
      %v756 = vpop.permute.xlu0 %755
      %757 = vrot.lane.b32.xlu0 %v537, 8
      %v758 = vpop.permute.xlu0 %757
      %759 = vrot.lane.b32.xlu0 %v538, 8
      %v760 = vpop.permute.xlu0 %759
      %761 = vrot.lane.b32.xlu0 %v539, 8
      %v762 = vpop.permute.xlu0 %761
      %763 = vrot.lane.b32.xlu0 %v540, 8
      %v764 = vpop.permute.xlu0 %763
      %v797 = vsel %vm412, %v445, %v574
      %v798 = vsel %vm412, %v446, %v576
      %v799 = vsel %vm412, %v447, %v578
      %v800 = vsel %vm412, %v448, %v580
      %v801 = vsel %vm412, %v449, %v582
      %v802 = vsel %vm412, %v450, %v584
      %v803 = vsel %vm412, %v451, %v586
      %v804 = vsel %vm412, %v452, %v588
      %v805 = vsel %vm412, %v453, %v590
      %v806 = vsel %vm412, %v454, %v592
      %v807 = vsel %vm412, %v455, %v594
      %v808 = vsel %vm412, %v456, %v596
      %v809 = vsel %vm412, %v457, %v598
      %v810 = vsel %vm412, %v458, %v600
      %v811 = vsel %vm412, %v459, %v602
      %v812 = vsel %vm412, %v460, %v604
      %v813 = vsel %vm412, %v461, %v606
      %v814 = vsel %vm412, %v462, %v608
      %v815 = vsel %vm412, %v463, %v610
      %v816 = vsel %vm412, %v464, %v612
      %v817 = vsel %vm412, %v465, %v614
      %v818 = vsel %vm412, %v466, %v616
      %v819 = vsel %vm412, %v467, %v618
      %v820 = vsel %vm412, %v468, %v620
      %v821 = vsel %vm412, %v469, %v622
      %v822 = vsel %vm412, %v470, %v624
      %v823 = vsel %vm412, %v471, %v626
      %v824 = vsel %vm412, %v472, %v628
      %v825 = vsel %vm412, %v473, %v630
      %v826 = vsel %vm412, %v474, %v632
      %v827 = vsel %vm412, %v475, %v634
      %v828 = vsel %vm412, %v476, %v636
      %v829 = vsel %vm333, %v797, %v702
      %v830 = vsel %vm333, %v798, %v704
      %v831 = vsel %vm333, %v799, %v706
      %v832 = vsel %vm333, %v800, %v708
      %v833 = vsel %vm333, %v801, %v710
      %v834 = vsel %vm333, %v802, %v712
      %v835 = vsel %vm333, %v803, %v714
      %v836 = vsel %vm333, %v804, %v716
      %v837 = vsel %vm333, %v805, %v718
      %v838 = vsel %vm333, %v806, %v720
      %v839 = vsel %vm333, %v807, %v722
      %v840 = vsel %vm333, %v808, %v724
      %v841 = vsel %vm333, %v809, %v726
      %v842 = vsel %vm333, %v810, %v728
      %v843 = vsel %vm333, %v811, %v730
      %v844 = vsel %vm333, %v812, %v732
      %v845 = vsel %vm333, %v813, %v734
      %v846 = vsel %vm333, %v814, %v736
      %v847 = vsel %vm333, %v815, %v738
      %v848 = vsel %vm333, %v816, %v740
      %v849 = vsel %vm333, %v817, %v742
      %v850 = vsel %vm333, %v818, %v744
      %v851 = vsel %vm333, %v819, %v746
      %v852 = vsel %vm333, %v820, %v748
      %v853 = vsel %vm333, %v821, %v750
      %v854 = vsel %vm333, %v822, %v752
      %v855 = vsel %vm333, %v823, %v754
      %v856 = vsel %vm333, %v824, %v756
      %v857 = vsel %vm333, %v825, %v758
      %v858 = vsel %vm333, %v826, %v760
      %v859 = vsel %vm333, %v827, %v762
      %v860 = vsel %vm333, %v828, %v764
      %v861 = vld [vmem:[%s1] sm:$0xff]
      %v862 = vld [vmem:[%s1 + $0x8] sm:$0xf]
      %v863 = vld [vmem:[%s411] sm:$0xff]
      %v864 = vld [vmem:[%s411 + $0x8] sm:$0xff]
      %v865 = vld [vmem:[%s411 + $0x18] sm:$0xff]
      %v866 = vld [vmem:[%s411 + $0x20] sm:$0xff]
      %v867 = vld [vmem:[%s411 + $0x30] sm:$0xff]
      %v868 = vld [vmem:[%s411 + $0x38] sm:$0xff]
      %v869 = vld [vmem:[%s411 + $0x48] sm:$0xff]
      %v870 = vld [vmem:[%s411 + $0x50] sm:$0xff]
      %v871 = vld [vmem:[%s411 + $0x60] sm:$0xff]
      %v872 = vld [vmem:[%s411 + $0x68] sm:$0xff]
      %v873 = vld [vmem:[%s411 + $0x78] sm:$0xff]
      %v874 = vld [vmem:[%s411 + $0x80] sm:$0xff]
      %v875 = vld [vmem:[%s411 + $0x90] sm:$0xff]
      %v876 = vld [vmem:[%s411 + $0x98] sm:$0xff]
      %v877 = vld [vmem:[%s411 + $0xa8] sm:$0xff]
      %v878 = vld [vmem:[%s411 + $0xb0] sm:$0xff]
      %v879 = vld [vmem:[%s411 + $0xc0] sm:$0xff]
      %v880 = vld [vmem:[%s411 + $0xc8] sm:$0xff]
      %v881 = vld [vmem:[%s411 + $0xd8] sm:$0xff]
      %v882 = vld [vmem:[%s411 + $0xe0] sm:$0xff]
      %v883 = vld [vmem:[%s411 + $0xf0] sm:$0xff]
      %v884 = vld [vmem:[%s411 + $0xf8] sm:$0xff]
      %v885 = vld [vmem:[%s411 + $0x108] sm:$0xff]
      %v886 = vld [vmem:[%s411 + $0x110] sm:$0xff]
      %v887 = vld [vmem:[%s411 + $0x120] sm:$0xff]
      %v888 = vld [vmem:[%s411 + $0x128] sm:$0xff]
      %v889 = vld [vmem:[%s411 + $0x138] sm:$0xff]
      %v890 = vld [vmem:[%s411 + $0x140] sm:$0xff]
      %v891 = vld [vmem:[%s411 + $0x150] sm:$0xff]
      %v892 = vld [vmem:[%s411 + $0x158] sm:$0xff]
      %v893 = vld [vmem:[%s411 + $0x168] sm:$0xff]
      %v894 = vld [vmem:[%s411 + $0x170] sm:$0xff]
      %v895 = vld [vmem:[%s411 + $0x1] sm:$0xff]
      %v896 = vld [vmem:[%s411 + $0x9] sm:$0xff]
      %v897 = vld [vmem:[%s411 + $0x19] sm:$0xff]
      %v898 = vld [vmem:[%s411 + $0x21] sm:$0xff]
      %v899 = vld [vmem:[%s411 + $0x31] sm:$0xff]
      %v900 = vld [vmem:[%s411 + $0x39] sm:$0xff]
      %v901 = vld [vmem:[%s411 + $0x49] sm:$0xff]
      %v902 = vld [vmem:[%s411 + $0x51] sm:$0xff]
      %v903 = vld [vmem:[%s411 + $0x61] sm:$0xff]
      %v904 = vld [vmem:[%s411 + $0x69] sm:$0xff]
      %v905 = vld [vmem:[%s411 + $0x79] sm:$0xff]
      %v906 = vld [vmem:[%s411 + $0x81] sm:$0xff]
      %v907 = vld [vmem:[%s411 + $0x91] sm:$0xff]
      %v908 = vld [vmem:[%s411 + $0x99] sm:$0xff]
      %v909 = vld [vmem:[%s411 + $0xa9] sm:$0xff]
      %v910 = vld [vmem:[%s411 + $0xb1] sm:$0xff]
      %v911 = vld [vmem:[%s411 + $0xc1] sm:$0xff]
      %v912 = vld [vmem:[%s411 + $0xc9] sm:$0xff]
      %v913 = vld [vmem:[%s411 + $0xd9] sm:$0xff]
      %v914 = vld [vmem:[%s411 + $0xe1] sm:$0xff]
      %v915 = vld [vmem:[%s411 + $0xf1] sm:$0xff]
      %v916 = vld [vmem:[%s411 + $0xf9] sm:$0xff]
      %v917 = vld [vmem:[%s411 + $0x109] sm:$0xff]
      %v918 = vld [vmem:[%s411 + $0x111] sm:$0xff]
      %v919 = vld [vmem:[%s411 + $0x121] sm:$0xff]
      %v920 = vld [vmem:[%s411 + $0x129] sm:$0xff]
      %v921 = vld [vmem:[%s411 + $0x139] sm:$0xff]
      %v922 = vld [vmem:[%s411 + $0x141] sm:$0xff]
      %v923 = vld [vmem:[%s411 + $0x151] sm:$0xff]
      %v924 = vld [vmem:[%s411 + $0x159] sm:$0xff]
      %v925 = vld [vmem:[%s411 + $0x169] sm:$0xff]
      %v926 = vld [vmem:[%s411 + $0x171] sm:$0xff]
      %v927 = vld [vmem:[%s411 + $0x2] sm:$0xff]
      %v928 = vld [vmem:[%s411 + $0xa] sm:$0xff]
      %v929 = vld [vmem:[%s411 + $0x1a] sm:$0xff]
      %v930 = vld [vmem:[%s411 + $0x22] sm:$0xff]
      %v931 = vld [vmem:[%s411 + $0x32] sm:$0xff]
      %v932 = vld [vmem:[%s411 + $0x3a] sm:$0xff]
      %v933 = vld [vmem:[%s411 + $0x4a] sm:$0xff]
      %v934 = vld [vmem:[%s411 + $0x52] sm:$0xff]
      %v935 = vld [vmem:[%s411 + $0x62] sm:$0xff]
      %v936 = vld [vmem:[%s411 + $0x6a] sm:$0xff]
      %v937 = vld [vmem:[%s411 + $0x7a] sm:$0xff]
      %v938 = vld [vmem:[%s411 + $0x82] sm:$0xff]
      %v939 = vld [vmem:[%s411 + $0x92] sm:$0xff]
      %v940 = vld [vmem:[%s411 + $0x9a] sm:$0xff]
      %v941 = vld [vmem:[%s411 + $0xaa] sm:$0xff]
      %v942 = vld [vmem:[%s411 + $0xb2] sm:$0xff]
      %v943 = vld [vmem:[%s411 + $0xc2] sm:$0xff]
      %v944 = vld [vmem:[%s411 + $0xca] sm:$0xff]
      %v945 = vld [vmem:[%s411 + $0xda] sm:$0xff]
      %v946 = vld [vmem:[%s411 + $0xe2] sm:$0xff]
      %v947 = vld [vmem:[%s411 + $0xf2] sm:$0xff]
      %v948 = vld [vmem:[%s411 + $0xfa] sm:$0xff]
      %v949 = vld [vmem:[%s411 + $0x10a] sm:$0xff]
      %v950 = vld [vmem:[%s411 + $0x112] sm:$0xff]
      %v951 = vld [vmem:[%s411 + $0x122] sm:$0xff]
      %v952 = vld [vmem:[%s411 + $0x12a] sm:$0xff]
      %v953 = vld [vmem:[%s411 + $0x13a] sm:$0xff]
      %v954 = vld [vmem:[%s411 + $0x142] sm:$0xff]
      %v955 = vld [vmem:[%s411 + $0x152] sm:$0xff]
      %v956 = vld [vmem:[%s411 + $0x15a] sm:$0xff]
      %v957 = vld [vmem:[%s411 + $0x16a] sm:$0xff]
      %v958 = vld [vmem:[%s411 + $0x172] sm:$0xff]
      %991 = vrot.lane.b32.xlu0 %v895, 4
      %v992 = vpop.permute.xlu0 %991
      %993 = vrot.lane.b32.xlu0 %v896, 4
      %v994 = vpop.permute.xlu0 %993
      %995 = vrot.lane.b32.xlu0 %v897, 4
      %v996 = vpop.permute.xlu0 %995
      %997 = vrot.lane.b32.xlu0 %v898, 4
      %v998 = vpop.permute.xlu0 %997
      %999 = vrot.lane.b32.xlu0 %v899, 4
      %v1000 = vpop.permute.xlu0 %999
      %1001 = vrot.lane.b32.xlu0 %v900, 4
      %v1002 = vpop.permute.xlu0 %1001
      %1003 = vrot.lane.b32.xlu0 %v901, 4
      %v1004 = vpop.permute.xlu0 %1003
      %1005 = vrot.lane.b32.xlu0 %v902, 4
      %v1006 = vpop.permute.xlu0 %1005
      %1007 = vrot.lane.b32.xlu0 %v903, 4
      %v1008 = vpop.permute.xlu0 %1007
      %1009 = vrot.lane.b32.xlu0 %v904, 4
      %v1010 = vpop.permute.xlu0 %1009
      %1011 = vrot.lane.b32.xlu0 %v905, 4
      %v1012 = vpop.permute.xlu0 %1011
      %1013 = vrot.lane.b32.xlu0 %v906, 4
      %v1014 = vpop.permute.xlu0 %1013
      %1015 = vrot.lane.b32.xlu0 %v907, 4
      %v1016 = vpop.permute.xlu0 %1015
      %1017 = vrot.lane.b32.xlu0 %v908, 4
      %v1018 = vpop.permute.xlu0 %1017
      %1019 = vrot.lane.b32.xlu0 %v909, 4
      %v1020 = vpop.permute.xlu0 %1019
      %1021 = vrot.lane.b32.xlu0 %v910, 4
      %v1022 = vpop.permute.xlu0 %1021
      %1023 = vrot.lane.b32.xlu0 %v911, 4
      %v1024 = vpop.permute.xlu0 %1023
      %1025 = vrot.lane.b32.xlu0 %v912, 4
      %v1026 = vpop.permute.xlu0 %1025
      %1027 = vrot.lane.b32.xlu0 %v913, 4
      %v1028 = vpop.permute.xlu0 %1027
      %1029 = vrot.lane.b32.xlu0 %v914, 4
      %v1030 = vpop.permute.xlu0 %1029
      %1031 = vrot.lane.b32.xlu0 %v915, 4
      %v1032 = vpop.permute.xlu0 %1031
      %1033 = vrot.lane.b32.xlu0 %v916, 4
      %v1034 = vpop.permute.xlu0 %1033
      %1035 = vrot.lane.b32.xlu0 %v917, 4
      %v1036 = vpop.permute.xlu0 %1035
      %1037 = vrot.lane.b32.xlu0 %v918, 4
      %v1038 = vpop.permute.xlu0 %1037
      %1039 = vrot.lane.b32.xlu0 %v919, 4
      %v1040 = vpop.permute.xlu0 %1039
      %1041 = vrot.lane.b32.xlu0 %v920, 4
      %v1042 = vpop.permute.xlu0 %1041
      %1043 = vrot.lane.b32.xlu0 %v921, 4
      %v1044 = vpop.permute.xlu0 %1043
      %1045 = vrot.lane.b32.xlu0 %v922, 4
      %v1046 = vpop.permute.xlu0 %1045
      %1047 = vrot.lane.b32.xlu0 %v923, 4
      %v1048 = vpop.permute.xlu0 %1047
      %1049 = vrot.lane.b32.xlu0 %v924, 4
      %v1050 = vpop.permute.xlu0 %1049
      %1051 = vrot.lane.b32.xlu0 %v925, 4
      %v1052 = vpop.permute.xlu0 %1051
      %1053 = vrot.lane.b32.xlu0 %v926, 4
      %v1054 = vpop.permute.xlu0 %1053
      %1119 = vrot.lane.b32.xlu0 %v927, 8
      %v1120 = vpop.permute.xlu0 %1119
      %1121 = vrot.lane.b32.xlu0 %v928, 8
      %v1122 = vpop.permute.xlu0 %1121
      %1123 = vrot.lane.b32.xlu0 %v929, 8
      %v1124 = vpop.permute.xlu0 %1123
      %1125 = vrot.lane.b32.xlu0 %v930, 8
      %v1126 = vpop.permute.xlu0 %1125
      %1127 = vrot.lane.b32.xlu0 %v931, 8
      %v1128 = vpop.permute.xlu0 %1127
      %1129 = vrot.lane.b32.xlu0 %v932, 8
      %v1130 = vpop.permute.xlu0 %1129
      %1131 = vrot.lane.b32.xlu0 %v933, 8
      %v1132 = vpop.permute.xlu0 %1131
      %1133 = vrot.lane.b32.xlu0 %v934, 8
      %v1134 = vpop.permute.xlu0 %1133
      %1135 = vrot.lane.b32.xlu0 %v935, 8
      %v1136 = vpop.permute.xlu0 %1135
      %1137 = vrot.lane.b32.xlu0 %v936, 8
      %v1138 = vpop.permute.xlu0 %1137
      %1139 = vrot.lane.b32.xlu0 %v937, 8
      %v1140 = vpop.permute.xlu0 %1139
      %1141 = vrot.lane.b32.xlu0 %v938, 8
      %v1142 = vpop.permute.xlu0 %1141
      %1143 = vrot.lane.b32.xlu0 %v939, 8
      %v1144 = vpop.permute.xlu0 %1143
      %1145 = vrot.lane.b32.xlu0 %v940, 8
      %v1146 = vpop.permute.xlu0 %1145
      %1147 = vrot.lane.b32.xlu0 %v941, 8
      %v1148 = vpop.permute.xlu0 %1147
      %1149 = vrot.lane.b32.xlu0 %v942, 8
      %v1150 = vpop.permute.xlu0 %1149
      %1151 = vrot.lane.b32.xlu0 %v943, 8
      %v1152 = vpop.permute.xlu0 %1151
      %1153 = vrot.lane.b32.xlu0 %v944, 8
      %v1154 = vpop.permute.xlu0 %1153
      %1155 = vrot.lane.b32.xlu0 %v945, 8
      %v1156 = vpop.permute.xlu0 %1155
      %1157 = vrot.lane.b32.xlu0 %v946, 8
      %v1158 = vpop.permute.xlu0 %1157
      %1159 = vrot.lane.b32.xlu0 %v947, 8
      %v1160 = vpop.permute.xlu0 %1159
      %1161 = vrot.lane.b32.xlu0 %v948, 8
      %v1162 = vpop.permute.xlu0 %1161
      %1163 = vrot.lane.b32.xlu0 %v949, 8
      %v1164 = vpop.permute.xlu0 %1163
      %1165 = vrot.lane.b32.xlu0 %v950, 8
      %v1166 = vpop.permute.xlu0 %1165
      %1167 = vrot.lane.b32.xlu0 %v951, 8
      %v1168 = vpop.permute.xlu0 %1167
      %1169 = vrot.lane.b32.xlu0 %v952, 8
      %v1170 = vpop.permute.xlu0 %1169
      %1171 = vrot.lane.b32.xlu0 %v953, 8
      %v1172 = vpop.permute.xlu0 %1171
      %1173 = vrot.lane.b32.xlu0 %v954, 8
      %v1174 = vpop.permute.xlu0 %1173
      %1175 = vrot.lane.b32.xlu0 %v955, 8
      %v1176 = vpop.permute.xlu0 %1175
      %1177 = vrot.lane.b32.xlu0 %v956, 8
      %v1178 = vpop.permute.xlu0 %1177
      %1179 = vrot.lane.b32.xlu0 %v957, 8
      %v1180 = vpop.permute.xlu0 %1179
      %1181 = vrot.lane.b32.xlu0 %v958, 8
      %v1182 = vpop.permute.xlu0 %1181
      %v1215 = vsel %vm412, %v863, %v992
      %v1216 = vsel %vm412, %v864, %v994
      %v1217 = vsel %vm412, %v865, %v996
      %v1218 = vsel %vm412, %v866, %v998
      %v1219 = vsel %vm412, %v867, %v1000
      %v1220 = vsel %vm412, %v868, %v1002
      %v1221 = vsel %vm412, %v869, %v1004
      %v1222 = vsel %vm412, %v870, %v1006
      %v1223 = vsel %vm412, %v871, %v1008
      %v1224 = vsel %vm412, %v872, %v1010
      %v1225 = vsel %vm412, %v873, %v1012
      %v1226 = vsel %vm412, %v874, %v1014
      %v1227 = vsel %vm412, %v875, %v1016
      %v1228 = vsel %vm412, %v876, %v1018
      %v1229 = vsel %vm412, %v877, %v1020
      %v1230 = vsel %vm412, %v878, %v1022
      %v1231 = vsel %vm412, %v879, %v1024
      %v1232 = vsel %vm412, %v880, %v1026
      %v1233 = vsel %vm412, %v881, %v1028
      %v1234 = vsel %vm412, %v882, %v1030
      %v1235 = vsel %vm412, %v883, %v1032
      %v1236 = vsel %vm412, %v884, %v1034
      %v1237 = vsel %vm412, %v885, %v1036
      %v1238 = vsel %vm412, %v886, %v1038
      %v1239 = vsel %vm412, %v887, %v1040
      %v1240 = vsel %vm412, %v888, %v1042
      %v1241 = vsel %vm412, %v889, %v1044
      %v1242 = vsel %vm412, %v890, %v1046
      %v1243 = vsel %vm412, %v891, %v1048
      %v1244 = vsel %vm412, %v892, %v1050
      %v1245 = vsel %vm412, %v893, %v1052
      %v1246 = vsel %vm412, %v894, %v1054
      %v1247 = vsel %vm333, %v1215, %v1120
      %v1248 = vsel %vm333, %v1216, %v1122
      %v1249 = vsel %vm333, %v1217, %v1124
      %v1250 = vsel %vm333, %v1218, %v1126
      %v1251 = vsel %vm333, %v1219, %v1128
      %v1252 = vsel %vm333, %v1220, %v1130
      %v1253 = vsel %vm333, %v1221, %v1132
      %v1254 = vsel %vm333, %v1222, %v1134
      %v1255 = vsel %vm333, %v1223, %v1136
      %v1256 = vsel %vm333, %v1224, %v1138
      %v1257 = vsel %vm333, %v1225, %v1140
      %v1258 = vsel %vm333, %v1226, %v1142
      %v1259 = vsel %vm333, %v1227, %v1144
      %v1260 = vsel %vm333, %v1228, %v1146
      %v1261 = vsel %vm333, %v1229, %v1148
      %v1262 = vsel %vm333, %v1230, %v1150
      %v1263 = vsel %vm333, %v1231, %v1152
      %v1264 = vsel %vm333, %v1232, %v1154
      %v1265 = vsel %vm333, %v1233, %v1156
      %v1266 = vsel %vm333, %v1234, %v1158
      %v1267 = vsel %vm333, %v1235, %v1160
      %v1268 = vsel %vm333, %v1236, %v1162
      %v1269 = vsel %vm333, %v1237, %v1164
      %v1270 = vsel %vm333, %v1238, %v1166
      %v1271 = vsel %vm333, %v1239, %v1168
      %v1272 = vsel %vm333, %v1240, %v1170
      %v1273 = vsel %vm333, %v1241, %v1172
      %v1274 = vsel %vm333, %v1242, %v1174
      %v1275 = vsel %vm333, %v1243, %v1176
      %v1276 = vsel %vm333, %v1244, %v1178
      %v1277 = vsel %vm333, %v1245, %v1180
      %v1278 = vsel %vm333, %v1246, %v1182
      %s1279 = scalar_lea.vmem %s1, 16
      %v1280 = vld [vmem:[%s1279] sm:$0xff]
      %v1281 = vld [vmem:[%s1279 + $0x8] sm:$0xf]
      %vm1282 = vcmask 97280
      %v1284 = vsel %vm1282, %v1247, 0
      %v1287 = vsel %vm1282, %v1248, 0
      %v1290 = vsel %vm1282, %v1249, 0
      %v1293 = vsel %vm1282, %v1250, 0
      %v1296 = vsel %vm1282, %v1251, 0
      %v1299 = vsel %vm1282, %v1252, 0
      %v1302 = vsel %vm1282, %v1253, 0
      %v1305 = vsel %vm1282, %v1254, 0
      %v1308 = vsel %vm1282, %v1255, 0
      %v1311 = vsel %vm1282, %v1256, 0
      %v1314 = vsel %vm1282, %v1257, 0
      %v1317 = vsel %vm1282, %v1258, 0
      %v1320 = vsel %vm1282, %v1259, 0
      %v1323 = vsel %vm1282, %v1260, 0
      %v1326 = vsel %vm1282, %v1261, 0
      %v1329 = vsel %vm1282, %v1262, 0
      %v1332 = vsel %vm1282, %v1263, 0
      %v1335 = vsel %vm1282, %v1264, 0
      %v1338 = vsel %vm1282, %v1265, 0
      %v1341 = vsel %vm1282, %v1266, 0
      %v1344 = vsel %vm1282, %v1267, 0
      %v1347 = vsel %vm1282, %v1268, 0
      %v1350 = vsel %vm1282, %v1269, 0
      %v1353 = vsel %vm1282, %v1270, 0
      %v1356 = vsel %vm1282, %v1271, 0
      %v1359 = vsel %vm1282, %v1272, 0
      %v1362 = vsel %vm1282, %v1273, 0
      %v1365 = vsel %vm1282, %v1274, 0
      %v1368 = vsel %vm1282, %v1275, 0
      %v1371 = vsel %vm1282, %v1276, 0
      %v1374 = vsel %vm1282, %v1277, 0
      %v1377 = vsel %vm1282, %v1278, 0
      %vm1379 = vcmask 1043456
      %v1381 = vsel %vm1379, %v1281, 0
      %1383 = vmatpush.msra.mxu0 0.0
      %1384 = vmatpush.msra.mxu0 0.0
      %1385 = vmatpush.msra.mxu0 0.0
      %1386 = vmatpush.msra.mxu0 0.0
      %1387 = vmatpush.msra.mxu0 0.0
      %1388 = vmatpush.msra.mxu0 0.0
      %1389 = vmatpush.msra.mxu0 0.0
      %1390 = vmatpush.msra.mxu0 0.0
      %1391 = vmatpush.msra.mxu0 0.0
      %1392 = vmatpush.msra.mxu0 0.0
      %1393 = vmatpush.msra.mxu0 0.0
      %1394 = vmatpush.msra.mxu0 0.0
      %1395 = vmatpush.msra.mxu0 0.0
      %1396 = vmatpush.msra.mxu0 0.0
      %1397 = vmatpush.msra.mxu0 %v1381
      %1398 = vmatpush.msra.mxu0 %v1280
      %1399 = vmatmul.f32.gmra.mxu0 %v1284
      %v1400 = vpop.f32.mrf.mxu0
      %v1401 = vadd.f32 0.0, %v1400
      %1402 = vmatmul.f32.gmra.mxu0 %v1287
      %v1403 = vpop.f32.mrf.mxu0
      %v1404 = vadd.f32 0.0, %v1403
      %1405 = vmatmul.f32.gmra.mxu0 %v1290
      %v1406 = vpop.f32.mrf.mxu0
      %v1407 = vadd.f32 0.0, %v1406
      %1408 = vmatmul.f32.gmra.mxu0 %v1293
      %v1409 = vpop.f32.mrf.mxu0
      %v1410 = vadd.f32 0.0, %v1409
      %1411 = vmatmul.f32.gmra.mxu0 %v1296
      %v1412 = vpop.f32.mrf.mxu0
      %v1413 = vadd.f32 0.0, %v1412
      %1414 = vmatmul.f32.gmra.mxu0 %v1299
      %v1415 = vpop.f32.mrf.mxu0
      %v1416 = vadd.f32 0.0, %v1415
      %1417 = vmatmul.f32.gmra.mxu0 %v1302
      %v1418 = vpop.f32.mrf.mxu0
      %v1419 = vadd.f32 0.0, %v1418
      %1420 = vmatmul.f32.gmra.mxu0 %v1305
      %v1421 = vpop.f32.mrf.mxu0
      %v1422 = vadd.f32 0.0, %v1421
      %1423 = vmatmul.f32.gmra.mxu0 %v1308
      %v1424 = vpop.f32.mrf.mxu0
      %v1425 = vadd.f32 0.0, %v1424
      %1426 = vmatmul.f32.gmra.mxu0 %v1311
      %v1427 = vpop.f32.mrf.mxu0
      %v1428 = vadd.f32 0.0, %v1427
      %1429 = vmatmul.f32.gmra.mxu0 %v1314
      %v1430 = vpop.f32.mrf.mxu0
      %v1431 = vadd.f32 0.0, %v1430
      %1432 = vmatmul.f32.gmra.mxu0 %v1317
      %v1433 = vpop.f32.mrf.mxu0
      %v1434 = vadd.f32 0.0, %v1433
      %1435 = vmatmul.f32.gmra.mxu0 %v1320
      %v1436 = vpop.f32.mrf.mxu0
      %v1437 = vadd.f32 0.0, %v1436
      %1438 = vmatmul.f32.gmra.mxu0 %v1323
      %v1439 = vpop.f32.mrf.mxu0
      %v1440 = vadd.f32 0.0, %v1439
      %1441 = vmatmul.f32.gmra.mxu0 %v1326
      %v1442 = vpop.f32.mrf.mxu0
      %v1443 = vadd.f32 0.0, %v1442
      %1444 = vmatmul.f32.gmra.mxu0 %v1329
      %v1445 = vpop.f32.mrf.mxu0
      %v1446 = vadd.f32 0.0, %v1445
      %1447 = vmatmul.f32.gmra.mxu0 %v1332
      %v1448 = vpop.f32.mrf.mxu0
      %v1449 = vadd.f32 0.0, %v1448
      %1450 = vmatmul.f32.gmra.mxu0 %v1335
      %v1451 = vpop.f32.mrf.mxu0
      %v1452 = vadd.f32 0.0, %v1451
      %1453 = vmatmul.f32.gmra.mxu0 %v1338
      %v1454 = vpop.f32.mrf.mxu0
      %v1455 = vadd.f32 0.0, %v1454
      %1456 = vmatmul.f32.gmra.mxu0 %v1341
      %v1457 = vpop.f32.mrf.mxu0
      %v1458 = vadd.f32 0.0, %v1457
      %1459 = vmatmul.f32.gmra.mxu0 %v1344
      %v1460 = vpop.f32.mrf.mxu0
      %v1461 = vadd.f32 0.0, %v1460
      %1462 = vmatmul.f32.gmra.mxu0 %v1347
      %v1463 = vpop.f32.mrf.mxu0
      %v1464 = vadd.f32 0.0, %v1463
      %1465 = vmatmul.f32.gmra.mxu0 %v1350
      %v1466 = vpop.f32.mrf.mxu0
      %v1467 = vadd.f32 0.0, %v1466
      %1468 = vmatmul.f32.gmra.mxu0 %v1353
      %v1469 = vpop.f32.mrf.mxu0
      %v1470 = vadd.f32 0.0, %v1469
      %1471 = vmatmul.f32.gmra.mxu0 %v1356
      %v1472 = vpop.f32.mrf.mxu0
      %v1473 = vadd.f32 0.0, %v1472
      %1474 = vmatmul.f32.gmra.mxu0 %v1359
      %v1475 = vpop.f32.mrf.mxu0
      %v1476 = vadd.f32 0.0, %v1475
      %1477 = vmatmul.f32.gmra.mxu0 %v1362
      %v1478 = vpop.f32.mrf.mxu0
      %v1479 = vadd.f32 0.0, %v1478
      %1480 = vmatmul.f32.gmra.mxu0 %v1365
      %v1481 = vpop.f32.mrf.mxu0
      %v1482 = vadd.f32 0.0, %v1481
      %1483 = vmatmul.f32.gmra.mxu0 %v1368
      %v1484 = vpop.f32.mrf.mxu0
      %v1485 = vadd.f32 0.0, %v1484
      %1486 = vmatmul.f32.gmra.mxu0 %v1371
      %v1487 = vpop.f32.mrf.mxu0
      %v1488 = vadd.f32 0.0, %v1487
      %1489 = vmatmul.f32.gmra.mxu0 %v1374
      %v1490 = vpop.f32.mrf.mxu0
      %v1491 = vadd.f32 0.0, %v1490
      %1492 = vmatmul.f32.gmra.mxu0 %v1377
      %v1493 = vpop.f32.mrf.mxu0
      %v1494 = vadd.f32 0.0, %v1493
      %1495 = vdwg.mxu0
      %v1497 = vsel %vm1282, %v829, 0
      %v1500 = vsel %vm1282, %v830, 0
      %v1503 = vsel %vm1282, %v831, 0
      %v1506 = vsel %vm1282, %v832, 0
      %v1509 = vsel %vm1282, %v833, 0
      %v1512 = vsel %vm1282, %v834, 0
      %v1515 = vsel %vm1282, %v835, 0
      %v1518 = vsel %vm1282, %v836, 0
      %v1521 = vsel %vm1282, %v837, 0
      %v1524 = vsel %vm1282, %v838, 0
      %v1527 = vsel %vm1282, %v839, 0
      %v1530 = vsel %vm1282, %v840, 0
      %v1533 = vsel %vm1282, %v841, 0
      %v1536 = vsel %vm1282, %v842, 0
      %v1539 = vsel %vm1282, %v843, 0
      %v1542 = vsel %vm1282, %v844, 0
      %v1545 = vsel %vm1282, %v845, 0
      %v1548 = vsel %vm1282, %v846, 0
      %v1551 = vsel %vm1282, %v847, 0
      %v1554 = vsel %vm1282, %v848, 0
      %v1557 = vsel %vm1282, %v849, 0
      %v1560 = vsel %vm1282, %v850, 0
      %v1563 = vsel %vm1282, %v851, 0
      %v1566 = vsel %vm1282, %v852, 0
      %v1569 = vsel %vm1282, %v853, 0
      %v1572 = vsel %vm1282, %v854, 0
      %v1575 = vsel %vm1282, %v855, 0
      %v1578 = vsel %vm1282, %v856, 0
      %v1581 = vsel %vm1282, %v857, 0
      %v1584 = vsel %vm1282, %v858, 0
      %v1587 = vsel %vm1282, %v859, 0
      %v1590 = vsel %vm1282, %v860, 0
      %v1593 = vsel %vm1379, %v862, 0
      %1595 = vmatpush.msra.mxu0 0.0
      %1596 = vmatpush.msra.mxu0 0.0
      %1597 = vmatpush.msra.mxu0 0.0
      %1598 = vmatpush.msra.mxu0 0.0
      %1599 = vmatpush.msra.mxu0 0.0
      %1600 = vmatpush.msra.mxu0 0.0
      %1601 = vmatpush.msra.mxu0 0.0
      %1602 = vmatpush.msra.mxu0 0.0
      %1603 = vmatpush.msra.mxu0 0.0
      %1604 = vmatpush.msra.mxu0 0.0
      %1605 = vmatpush.msra.mxu0 0.0
      %1606 = vmatpush.msra.mxu0 0.0
      %1607 = vmatpush.msra.mxu0 0.0
      %1608 = vmatpush.msra.mxu0 0.0
      %1609 = vmatpush.msra.mxu0 %v1593
      %1610 = vmatpush.msra.mxu0 %v861
      %1611 = vmatmul.f32.gmra.mxu0 %v1497
      %v1612 = vpop.f32.mrf.mxu0
      %v1613 = vadd.f32 %v1401, %v1612
      %1614 = vmatmul.f32.gmra.mxu0 %v1500
      %v1615 = vpop.f32.mrf.mxu0
      %v1616 = vadd.f32 %v1404, %v1615
      %1617 = vmatmul.f32.gmra.mxu0 %v1503
      %v1618 = vpop.f32.mrf.mxu0
      %v1619 = vadd.f32 %v1407, %v1618
      %1620 = vmatmul.f32.gmra.mxu0 %v1506
      %v1621 = vpop.f32.mrf.mxu0
      %v1622 = vadd.f32 %v1410, %v1621
      %1623 = vmatmul.f32.gmra.mxu0 %v1509
      %v1624 = vpop.f32.mrf.mxu0
      %v1625 = vadd.f32 %v1413, %v1624
      %1626 = vmatmul.f32.gmra.mxu0 %v1512
      %v1627 = vpop.f32.mrf.mxu0
      %v1628 = vadd.f32 %v1416, %v1627
      %1629 = vmatmul.f32.gmra.mxu0 %v1515
      %v1630 = vpop.f32.mrf.mxu0
      %v1631 = vadd.f32 %v1419, %v1630
      %1632 = vmatmul.f32.gmra.mxu0 %v1518
      %v1633 = vpop.f32.mrf.mxu0
      %v1634 = vadd.f32 %v1422, %v1633
      %1635 = vmatmul.f32.gmra.mxu0 %v1521
      %v1636 = vpop.f32.mrf.mxu0
      %v1637 = vadd.f32 %v1425, %v1636
      %1638 = vmatmul.f32.gmra.mxu0 %v1524
      %v1639 = vpop.f32.mrf.mxu0
      %v1640 = vadd.f32 %v1428, %v1639
      %1641 = vmatmul.f32.gmra.mxu0 %v1527
      %v1642 = vpop.f32.mrf.mxu0
      %v1643 = vadd.f32 %v1431, %v1642
      %1644 = vmatmul.f32.gmra.mxu0 %v1530
      %v1645 = vpop.f32.mrf.mxu0
      %v1646 = vadd.f32 %v1434, %v1645
      %1647 = vmatmul.f32.gmra.mxu0 %v1533
      %v1648 = vpop.f32.mrf.mxu0
      %v1649 = vadd.f32 %v1437, %v1648
      %1650 = vmatmul.f32.gmra.mxu0 %v1536
      %v1651 = vpop.f32.mrf.mxu0
      %v1652 = vadd.f32 %v1440, %v1651
      %1653 = vmatmul.f32.gmra.mxu0 %v1539
      %v1654 = vpop.f32.mrf.mxu0
      %v1655 = vadd.f32 %v1443, %v1654
      %1656 = vmatmul.f32.gmra.mxu0 %v1542
      %v1657 = vpop.f32.mrf.mxu0
      %v1658 = vadd.f32 %v1446, %v1657
      %1659 = vmatmul.f32.gmra.mxu0 %v1545
      %v1660 = vpop.f32.mrf.mxu0
      %v1661 = vadd.f32 %v1449, %v1660
      %1662 = vmatmul.f32.gmra.mxu0 %v1548
      %v1663 = vpop.f32.mrf.mxu0
      %v1664 = vadd.f32 %v1452, %v1663
      %1665 = vmatmul.f32.gmra.mxu0 %v1551
      %v1666 = vpop.f32.mrf.mxu0
      %v1667 = vadd.f32 %v1455, %v1666
      %1668 = vmatmul.f32.gmra.mxu0 %v1554
      %v1669 = vpop.f32.mrf.mxu0
      %v1670 = vadd.f32 %v1458, %v1669
      %1671 = vmatmul.f32.gmra.mxu0 %v1557
      %v1672 = vpop.f32.mrf.mxu0
      %v1673 = vadd.f32 %v1461, %v1672
      %1674 = vmatmul.f32.gmra.mxu0 %v1560
      %v1675 = vpop.f32.mrf.mxu0
      %v1676 = vadd.f32 %v1464, %v1675
      %1677 = vmatmul.f32.gmra.mxu0 %v1563
      %v1678 = vpop.f32.mrf.mxu0
      %v1679 = vadd.f32 %v1467, %v1678
      %1680 = vmatmul.f32.gmra.mxu0 %v1566
      %v1681 = vpop.f32.mrf.mxu0
      %v1682 = vadd.f32 %v1470, %v1681
      %1683 = vmatmul.f32.gmra.mxu0 %v1569
      %v1684 = vpop.f32.mrf.mxu0
      %v1685 = vadd.f32 %v1473, %v1684
      %1686 = vmatmul.f32.gmra.mxu0 %v1572
      %v1687 = vpop.f32.mrf.mxu0
      %v1688 = vadd.f32 %v1476, %v1687
      %1689 = vmatmul.f32.gmra.mxu0 %v1575
      %v1690 = vpop.f32.mrf.mxu0
      %v1691 = vadd.f32 %v1479, %v1690
      %1692 = vmatmul.f32.gmra.mxu0 %v1578
      %v1693 = vpop.f32.mrf.mxu0
      %v1694 = vadd.f32 %v1482, %v1693
      %1695 = vmatmul.f32.gmra.mxu0 %v1581
      %v1696 = vpop.f32.mrf.mxu0
      %v1697 = vadd.f32 %v1485, %v1696
      %1698 = vmatmul.f32.gmra.mxu0 %v1584
      %v1699 = vpop.f32.mrf.mxu0
      %v1700 = vadd.f32 %v1488, %v1699
      %1701 = vmatmul.f32.gmra.mxu0 %v1587
      %v1702 = vpop.f32.mrf.mxu0
      %v1703 = vadd.f32 %v1491, %v1702
      %1704 = vmatmul.f32.gmra.mxu0 %v1590
      %v1705 = vpop.f32.mrf.mxu0
      %v1706 = vadd.f32 %v1494, %v1705
      %1707 = vdwg.mxu0
      %s1708 = scalar_lea.vmem [#allocation2], 48
      %v1709 = vld [vmem:[%s1708] sm:$0xff]
      %v1710 = vld [vmem:[%s1708 + $0x8] sm:$0xff]
      %v1711 = vld [vmem:[%s1708 + $0x18] sm:$0xff]
      %v1712 = vld [vmem:[%s1708 + $0x20] sm:$0xff]
      %v1713 = vld [vmem:[%s1708 + $0x30] sm:$0xff]
      %v1714 = vld [vmem:[%s1708 + $0x38] sm:$0xff]
      %v1715 = vld [vmem:[%s1708 + $0x48] sm:$0xff]
      %v1716 = vld [vmem:[%s1708 + $0x50] sm:$0xff]
      %v1717 = vld [vmem:[%s1708 + $0x60] sm:$0xff]
      %v1718 = vld [vmem:[%s1708 + $0x68] sm:$0xff]
      %v1719 = vld [vmem:[%s1708 + $0x78] sm:$0xff]
      %v1720 = vld [vmem:[%s1708 + $0x80] sm:$0xff]
      %v1721 = vld [vmem:[%s1708 + $0x90] sm:$0xff]
      %v1722 = vld [vmem:[%s1708 + $0x98] sm:$0xff]
      %v1723 = vld [vmem:[%s1708 + $0xa8] sm:$0xff]
      %v1724 = vld [vmem:[%s1708 + $0xb0] sm:$0xff]
      %v1725 = vld [vmem:[%s1708 + $0xc0] sm:$0xff]
      %v1726 = vld [vmem:[%s1708 + $0xc8] sm:$0xff]
      %v1727 = vld [vmem:[%s1708 + $0xd8] sm:$0xff]
      %v1728 = vld [vmem:[%s1708 + $0xe0] sm:$0xff]
      %v1729 = vld [vmem:[%s1708 + $0xf0] sm:$0xff]
      %v1730 = vld [vmem:[%s1708 + $0xf8] sm:$0xff]
      %v1731 = vld [vmem:[%s1708 + $0x108] sm:$0xff]
      %v1732 = vld [vmem:[%s1708 + $0x110] sm:$0xff]
      %v1733 = vld [vmem:[%s1708 + $0x120] sm:$0xff]
      %v1734 = vld [vmem:[%s1708 + $0x128] sm:$0xff]
      %v1735 = vld [vmem:[%s1708 + $0x138] sm:$0xff]
      %v1736 = vld [vmem:[%s1708 + $0x140] sm:$0xff]
      %v1737 = vld [vmem:[%s1708 + $0x150] sm:$0xff]
      %v1738 = vld [vmem:[%s1708 + $0x158] sm:$0xff]
      %v1739 = vld [vmem:[%s1708 + $0x168] sm:$0xff]
      %v1740 = vld [vmem:[%s1708 + $0x170] sm:$0xff]
      %v1741 = vld [vmem:[%s1708 + $0x1] sm:$0xff]
      %v1742 = vld [vmem:[%s1708 + $0x9] sm:$0xff]
      %v1743 = vld [vmem:[%s1708 + $0x19] sm:$0xff]
      %v1744 = vld [vmem:[%s1708 + $0x21] sm:$0xff]
      %v1745 = vld [vmem:[%s1708 + $0x31] sm:$0xff]
      %v1746 = vld [vmem:[%s1708 + $0x39] sm:$0xff]
      %v1747 = vld [vmem:[%s1708 + $0x49] sm:$0xff]
      %v1748 = vld [vmem:[%s1708 + $0x51] sm:$0xff]
      %v1749 = vld [vmem:[%s1708 + $0x61] sm:$0xff]
      %v1750 = vld [vmem:[%s1708 + $0x69] sm:$0xff]
      %v1751 = vld [vmem:[%s1708 + $0x79] sm:$0xff]
      %v1752 = vld [vmem:[%s1708 + $0x81] sm:$0xff]
      %v1753 = vld [vmem:[%s1708 + $0x91] sm:$0xff]
      %v1754 = vld [vmem:[%s1708 + $0x99] sm:$0xff]
      %v1755 = vld [vmem:[%s1708 + $0xa9] sm:$0xff]
      %v1756 = vld [vmem:[%s1708 + $0xb1] sm:$0xff]
      %v1757 = vld [vmem:[%s1708 + $0xc1] sm:$0xff]
      %v1758 = vld [vmem:[%s1708 + $0xc9] sm:$0xff]
      %v1759 = vld [vmem:[%s1708 + $0xd9] sm:$0xff]
      %v1760 = vld [vmem:[%s1708 + $0xe1] sm:$0xff]
      %v1761 = vld [vmem:[%s1708 + $0xf1] sm:$0xff]
      %v1762 = vld [vmem:[%s1708 + $0xf9] sm:$0xff]
      %v1763 = vld [vmem:[%s1708 + $0x109] sm:$0xff]
      %v1764 = vld [vmem:[%s1708 + $0x111] sm:$0xff]
      %v1765 = vld [vmem:[%s1708 + $0x121] sm:$0xff]
      %v1766 = vld [vmem:[%s1708 + $0x129] sm:$0xff]
      %v1767 = vld [vmem:[%s1708 + $0x139] sm:$0xff]
      %v1768 = vld [vmem:[%s1708 + $0x141] sm:$0xff]
      %v1769 = vld [vmem:[%s1708 + $0x151] sm:$0xff]
      %v1770 = vld [vmem:[%s1708 + $0x159] sm:$0xff]
      %v1771 = vld [vmem:[%s1708 + $0x169] sm:$0xff]
      %v1772 = vld [vmem:[%s1708 + $0x171] sm:$0xff]
      %v1773 = vld [vmem:[%s1708 + $0x2] sm:$0xff]
      %v1774 = vld [vmem:[%s1708 + $0xa] sm:$0xff]
      %v1775 = vld [vmem:[%s1708 + $0x1a] sm:$0xff]
      %v1776 = vld [vmem:[%s1708 + $0x22] sm:$0xff]
      %v1777 = vld [vmem:[%s1708 + $0x32] sm:$0xff]
      %v1778 = vld [vmem:[%s1708 + $0x3a] sm:$0xff]
      %v1779 = vld [vmem:[%s1708 + $0x4a] sm:$0xff]
      %v1780 = vld [vmem:[%s1708 + $0x52] sm:$0xff]
      %v1781 = vld [vmem:[%s1708 + $0x62] sm:$0xff]
      %v1782 = vld [vmem:[%s1708 + $0x6a] sm:$0xff]
      %v1783 = vld [vmem:[%s1708 + $0x7a] sm:$0xff]
      %v1784 = vld [vmem:[%s1708 + $0x82] sm:$0xff]
      %v1785 = vld [vmem:[%s1708 + $0x92] sm:$0xff]
      %v1786 = vld [vmem:[%s1708 + $0x9a] sm:$0xff]
      %v1787 = vld [vmem:[%s1708 + $0xaa] sm:$0xff]
      %v1788 = vld [vmem:[%s1708 + $0xb2] sm:$0xff]
      %v1789 = vld [vmem:[%s1708 + $0xc2] sm:$0xff]
      %v1790 = vld [vmem:[%s1708 + $0xca] sm:$0xff]
      %v1791 = vld [vmem:[%s1708 + $0xda] sm:$0xff]
      %v1792 = vld [vmem:[%s1708 + $0xe2] sm:$0xff]
      %v1793 = vld [vmem:[%s1708 + $0xf2] sm:$0xff]
      %v1794 = vld [vmem:[%s1708 + $0xfa] sm:$0xff]
      %v1795 = vld [vmem:[%s1708 + $0x10a] sm:$0xff]
      %v1796 = vld [vmem:[%s1708 + $0x112] sm:$0xff]
      %v1797 = vld [vmem:[%s1708 + $0x122] sm:$0xff]
      %v1798 = vld [vmem:[%s1708 + $0x12a] sm:$0xff]
      %v1799 = vld [vmem:[%s1708 + $0x13a] sm:$0xff]
      %v1800 = vld [vmem:[%s1708 + $0x142] sm:$0xff]
      %v1801 = vld [vmem:[%s1708 + $0x152] sm:$0xff]
      %v1802 = vld [vmem:[%s1708 + $0x15a] sm:$0xff]
      %v1803 = vld [vmem:[%s1708 + $0x16a] sm:$0xff]
      %v1804 = vld [vmem:[%s1708 + $0x172] sm:$0xff]
      %1837 = vrot.lane.b32.xlu0 %v1741, 4
      %v1838 = vpop.permute.xlu0 %1837
      %1839 = vrot.lane.b32.xlu0 %v1742, 4
      %v1840 = vpop.permute.xlu0 %1839
      %1841 = vrot.lane.b32.xlu0 %v1743, 4
      %v1842 = vpop.permute.xlu0 %1841
      %1843 = vrot.lane.b32.xlu0 %v1744, 4
      %v1844 = vpop.permute.xlu0 %1843
      %1845 = vrot.lane.b32.xlu0 %v1745, 4
      %v1846 = vpop.permute.xlu0 %1845
      %1847 = vrot.lane.b32.xlu0 %v1746, 4
      %v1848 = vpop.permute.xlu0 %1847
      %1849 = vrot.lane.b32.xlu0 %v1747, 4
      %v1850 = vpop.permute.xlu0 %1849
      %1851 = vrot.lane.b32.xlu0 %v1748, 4
      %v1852 = vpop.permute.xlu0 %1851
      %1853 = vrot.lane.b32.xlu0 %v1749, 4
      %v1854 = vpop.permute.xlu0 %1853
      %1855 = vrot.lane.b32.xlu0 %v1750, 4
      %v1856 = vpop.permute.xlu0 %1855
      %1857 = vrot.lane.b32.xlu0 %v1751, 4
      %v1858 = vpop.permute.xlu0 %1857
      %1859 = vrot.lane.b32.xlu0 %v1752, 4
      %v1860 = vpop.permute.xlu0 %1859
      %1861 = vrot.lane.b32.xlu0 %v1753, 4
      %v1862 = vpop.permute.xlu0 %1861
      %1863 = vrot.lane.b32.xlu0 %v1754, 4
      %v1864 = vpop.permute.xlu0 %1863
      %1865 = vrot.lane.b32.xlu0 %v1755, 4
      %v1866 = vpop.permute.xlu0 %1865
      %1867 = vrot.lane.b32.xlu0 %v1756, 4
      %v1868 = vpop.permute.xlu0 %1867
      %1869 = vrot.lane.b32.xlu0 %v1757, 4
      %v1870 = vpop.permute.xlu0 %1869
      %1871 = vrot.lane.b32.xlu0 %v1758, 4
      %v1872 = vpop.permute.xlu0 %1871
      %1873 = vrot.lane.b32.xlu0 %v1759, 4
      %v1874 = vpop.permute.xlu0 %1873
      %1875 = vrot.lane.b32.xlu0 %v1760, 4
      %v1876 = vpop.permute.xlu0 %1875
      %1877 = vrot.lane.b32.xlu0 %v1761, 4
      %v1878 = vpop.permute.xlu0 %1877
      %1879 = vrot.lane.b32.xlu0 %v1762, 4
      %v1880 = vpop.permute.xlu0 %1879
      %1881 = vrot.lane.b32.xlu0 %v1763, 4
      %v1882 = vpop.permute.xlu0 %1881
      %1883 = vrot.lane.b32.xlu0 %v1764, 4
      %v1884 = vpop.permute.xlu0 %1883
      %1885 = vrot.lane.b32.xlu0 %v1765, 4
      %v1886 = vpop.permute.xlu0 %1885
      %1887 = vrot.lane.b32.xlu0 %v1766, 4
      %v1888 = vpop.permute.xlu0 %1887
      %1889 = vrot.lane.b32.xlu0 %v1767, 4
      %v1890 = vpop.permute.xlu0 %1889
      %1891 = vrot.lane.b32.xlu0 %v1768, 4
      %v1892 = vpop.permute.xlu0 %1891
      %1893 = vrot.lane.b32.xlu0 %v1769, 4
      %v1894 = vpop.permute.xlu0 %1893
      %1895 = vrot.lane.b32.xlu0 %v1770, 4
      %v1896 = vpop.permute.xlu0 %1895
      %1897 = vrot.lane.b32.xlu0 %v1771, 4
      %v1898 = vpop.permute.xlu0 %1897
      %1899 = vrot.lane.b32.xlu0 %v1772, 4
      %v1900 = vpop.permute.xlu0 %1899
      %1965 = vrot.lane.b32.xlu0 %v1773, 8
      %v1966 = vpop.permute.xlu0 %1965
      %1967 = vrot.lane.b32.xlu0 %v1774, 8
      %v1968 = vpop.permute.xlu0 %1967
      %1969 = vrot.lane.b32.xlu0 %v1775, 8
      %v1970 = vpop.permute.xlu0 %1969
      %1971 = vrot.lane.b32.xlu0 %v1776, 8
      %v1972 = vpop.permute.xlu0 %1971
      %1973 = vrot.lane.b32.xlu0 %v1777, 8
      %v1974 = vpop.permute.xlu0 %1973
      %1975 = vrot.lane.b32.xlu0 %v1778, 8
      %v1976 = vpop.permute.xlu0 %1975
      %1977 = vrot.lane.b32.xlu0 %v1779, 8
      %v1978 = vpop.permute.xlu0 %1977
      %1979 = vrot.lane.b32.xlu0 %v1780, 8
      %v1980 = vpop.permute.xlu0 %1979
      %1981 = vrot.lane.b32.xlu0 %v1781, 8
      %v1982 = vpop.permute.xlu0 %1981
      %1983 = vrot.lane.b32.xlu0 %v1782, 8
      %v1984 = vpop.permute.xlu0 %1983
      %1985 = vrot.lane.b32.xlu0 %v1783, 8
      %v1986 = vpop.permute.xlu0 %1985
      %1987 = vrot.lane.b32.xlu0 %v1784, 8
      %v1988 = vpop.permute.xlu0 %1987
      %1989 = vrot.lane.b32.xlu0 %v1785, 8
      %v1990 = vpop.permute.xlu0 %1989
      %1991 = vrot.lane.b32.xlu0 %v1786, 8
      %v1992 = vpop.permute.xlu0 %1991
      %1993 = vrot.lane.b32.xlu0 %v1787, 8
      %v1994 = vpop.permute.xlu0 %1993
      %1995 = vrot.lane.b32.xlu0 %v1788, 8
      %v1996 = vpop.permute.xlu0 %1995
      %1997 = vrot.lane.b32.xlu0 %v1789, 8
      %v1998 = vpop.permute.xlu0 %1997
      %1999 = vrot.lane.b32.xlu0 %v1790, 8
      %v2000 = vpop.permute.xlu0 %1999
      %2001 = vrot.lane.b32.xlu0 %v1791, 8
      %v2002 = vpop.permute.xlu0 %2001
      %2003 = vrot.lane.b32.xlu0 %v1792, 8
      %v2004 = vpop.permute.xlu0 %2003
      %2005 = vrot.lane.b32.xlu0 %v1793, 8
      %v2006 = vpop.permute.xlu0 %2005
      %2007 = vrot.lane.b32.xlu0 %v1794, 8
      %v2008 = vpop.permute.xlu0 %2007
      %2009 = vrot.lane.b32.xlu0 %v1795, 8
      %v2010 = vpop.permute.xlu0 %2009
      %2011 = vrot.lane.b32.xlu0 %v1796, 8
      %v2012 = vpop.permute.xlu0 %2011
      %2013 = vrot.lane.b32.xlu0 %v1797, 8
      %v2014 = vpop.permute.xlu0 %2013
      %2015 = vrot.lane.b32.xlu0 %v1798, 8
      %v2016 = vpop.permute.xlu0 %2015
      %2017 = vrot.lane.b32.xlu0 %v1799, 8
      %v2018 = vpop.permute.xlu0 %2017
      %2019 = vrot.lane.b32.xlu0 %v1800, 8
      %v2020 = vpop.permute.xlu0 %2019
      %2021 = vrot.lane.b32.xlu0 %v1801, 8
      %v2022 = vpop.permute.xlu0 %2021
      %2023 = vrot.lane.b32.xlu0 %v1802, 8
      %v2024 = vpop.permute.xlu0 %2023
      %2025 = vrot.lane.b32.xlu0 %v1803, 8
      %v2026 = vpop.permute.xlu0 %2025
      %2027 = vrot.lane.b32.xlu0 %v1804, 8
      %v2028 = vpop.permute.xlu0 %2027
      %v2061 = vsel %vm412, %v1709, %v1838
      %v2062 = vsel %vm412, %v1710, %v1840
      %v2063 = vsel %vm412, %v1711, %v1842
      %v2064 = vsel %vm412, %v1712, %v1844
      %v2065 = vsel %vm412, %v1713, %v1846
      %v2066 = vsel %vm412, %v1714, %v1848
      %v2067 = vsel %vm412, %v1715, %v1850
      %v2068 = vsel %vm412, %v1716, %v1852
      %v2069 = vsel %vm412, %v1717, %v1854
      %v2070 = vsel %vm412, %v1718, %v1856
      %v2071 = vsel %vm412, %v1719, %v1858
      %v2072 = vsel %vm412, %v1720, %v1860
      %v2073 = vsel %vm412, %v1721, %v1862
      %v2074 = vsel %vm412, %v1722, %v1864
      %v2075 = vsel %vm412, %v1723, %v1866
      %v2076 = vsel %vm412, %v1724, %v1868
      %v2077 = vsel %vm412, %v1725, %v1870
      %v2078 = vsel %vm412, %v1726, %v1872
      %v2079 = vsel %vm412, %v1727, %v1874
      %v2080 = vsel %vm412, %v1728, %v1876
      %v2081 = vsel %vm412, %v1729, %v1878
      %v2082 = vsel %vm412, %v1730, %v1880
      %v2083 = vsel %vm412, %v1731, %v1882
      %v2084 = vsel %vm412, %v1732, %v1884
      %v2085 = vsel %vm412, %v1733, %v1886
      %v2086 = vsel %vm412, %v1734, %v1888
      %v2087 = vsel %vm412, %v1735, %v1890
      %v2088 = vsel %vm412, %v1736, %v1892
      %v2089 = vsel %vm412, %v1737, %v1894
      %v2090 = vsel %vm412, %v1738, %v1896
      %v2091 = vsel %vm412, %v1739, %v1898
      %v2092 = vsel %vm412, %v1740, %v1900
      %v2093 = vsel %vm333, %v2061, %v1966
      %v2094 = vsel %vm333, %v2062, %v1968
      %v2095 = vsel %vm333, %v2063, %v1970
      %v2096 = vsel %vm333, %v2064, %v1972
      %v2097 = vsel %vm333, %v2065, %v1974
      %v2098 = vsel %vm333, %v2066, %v1976
      %v2099 = vsel %vm333, %v2067, %v1978
      %v2100 = vsel %vm333, %v2068, %v1980
      %v2101 = vsel %vm333, %v2069, %v1982
      %v2102 = vsel %vm333, %v2070, %v1984
      %v2103 = vsel %vm333, %v2071, %v1986
      %v2104 = vsel %vm333, %v2072, %v1988
      %v2105 = vsel %vm333, %v2073, %v1990
      %v2106 = vsel %vm333, %v2074, %v1992
      %v2107 = vsel %vm333, %v2075, %v1994
      %v2108 = vsel %vm333, %v2076, %v1996
      %v2109 = vsel %vm333, %v2077, %v1998
      %v2110 = vsel %vm333, %v2078, %v2000
      %v2111 = vsel %vm333, %v2079, %v2002
      %v2112 = vsel %vm333, %v2080, %v2004
      %v2113 = vsel %vm333, %v2081, %v2006
      %v2114 = vsel %vm333, %v2082, %v2008
      %v2115 = vsel %vm333, %v2083, %v2010
      %v2116 = vsel %vm333, %v2084, %v2012
      %v2117 = vsel %vm333, %v2085, %v2014
      %v2118 = vsel %vm333, %v2086, %v2016
      %v2119 = vsel %vm333, %v2087, %v2018
      %v2120 = vsel %vm333, %v2088, %v2020
      %v2121 = vsel %vm333, %v2089, %v2022
      %v2122 = vsel %vm333, %v2090, %v2024
      %v2123 = vsel %vm333, %v2091, %v2026
      %v2124 = vsel %vm333, %v2092, %v2028
      %s2125 = scalar_lea.vmem %s1, 32
      %v2126 = vld [vmem:[%s2125] sm:$0xff]
      %v2127 = vld [vmem:[%s2125 + $0x8] sm:$0xf]
      %v2129 = vsel %vm1282, %v2093, 0
      %v2132 = vsel %vm1282, %v2094, 0
      %v2135 = vsel %vm1282, %v2095, 0
      %v2138 = vsel %vm1282, %v2096, 0
      %v2141 = vsel %vm1282, %v2097, 0
      %v2144 = vsel %vm1282, %v2098, 0
      %v2147 = vsel %vm1282, %v2099, 0
      %v2150 = vsel %vm1282, %v2100, 0
      %v2153 = vsel %vm1282, %v2101, 0
      %v2156 = vsel %vm1282, %v2102, 0
      %v2159 = vsel %vm1282, %v2103, 0
      %v2162 = vsel %vm1282, %v2104, 0
      %v2165 = vsel %vm1282, %v2105, 0
      %v2168 = vsel %vm1282, %v2106, 0
      %v2171 = vsel %vm1282, %v2107, 0
      %v2174 = vsel %vm1282, %v2108, 0
      %v2177 = vsel %vm1282, %v2109, 0
      %v2180 = vsel %vm1282, %v2110, 0
      %v2183 = vsel %vm1282, %v2111, 0
      %v2186 = vsel %vm1282, %v2112, 0
      %v2189 = vsel %vm1282, %v2113, 0
      %v2192 = vsel %vm1282, %v2114, 0
      %v2195 = vsel %vm1282, %v2115, 0
      %v2198 = vsel %vm1282, %v2116, 0
      %v2201 = vsel %vm1282, %v2117, 0
      %v2204 = vsel %vm1282, %v2118, 0
      %v2207 = vsel %vm1282, %v2119, 0
      %v2210 = vsel %vm1282, %v2120, 0
      %v2213 = vsel %vm1282, %v2121, 0
      %v2216 = vsel %vm1282, %v2122, 0
      %v2219 = vsel %vm1282, %v2123, 0
      %v2222 = vsel %vm1282, %v2124, 0
      %v2225 = vsel %vm1379, %v2127, 0
      %2227 = vmatpush.msra.mxu0 0.0
      %2228 = vmatpush.msra.mxu0 0.0
      %2229 = vmatpush.msra.mxu0 0.0
      %2230 = vmatpush.msra.mxu0 0.0
      %2231 = vmatpush.msra.mxu0 0.0
      %2232 = vmatpush.msra.mxu0 0.0
      %2233 = vmatpush.msra.mxu0 0.0
      %2234 = vmatpush.msra.mxu0 0.0
      %2235 = vmatpush.msra.mxu0 0.0
      %2236 = vmatpush.msra.mxu0 0.0
      %2237 = vmatpush.msra.mxu0 0.0
      %2238 = vmatpush.msra.mxu0 0.0
      %2239 = vmatpush.msra.mxu0 0.0
      %2240 = vmatpush.msra.mxu0 0.0
      %2241 = vmatpush.msra.mxu0 %v2225
      %2242 = vmatpush.msra.mxu0 %v2126
      %2243 = vmatmul.f32.gmra.mxu0 %v2129
      %v2244 = vpop.f32.mrf.mxu0
      %v2245 = vadd.f32 0.0, %v2244
      %2246 = vmatmul.f32.gmra.mxu0 %v2132
      %v2247 = vpop.f32.mrf.mxu0
      %v2248 = vadd.f32 0.0, %v2247
      %2249 = vmatmul.f32.gmra.mxu0 %v2135
      %v2250 = vpop.f32.mrf.mxu0
      %v2251 = vadd.f32 0.0, %v2250
      %2252 = vmatmul.f32.gmra.mxu0 %v2138
      %v2253 = vpop.f32.mrf.mxu0
      %v2254 = vadd.f32 0.0, %v2253
      %2255 = vmatmul.f32.gmra.mxu0 %v2141
      %v2256 = vpop.f32.mrf.mxu0
      %v2257 = vadd.f32 0.0, %v2256
      %2258 = vmatmul.f32.gmra.mxu0 %v2144
      %v2259 = vpop.f32.mrf.mxu0
      %v2260 = vadd.f32 0.0, %v2259
      %2261 = vmatmul.f32.gmra.mxu0 %v2147
      %v2262 = vpop.f32.mrf.mxu0
      %v2263 = vadd.f32 0.0, %v2262
      %2264 = vmatmul.f32.gmra.mxu0 %v2150
      %v2265 = vpop.f32.mrf.mxu0
      %v2266 = vadd.f32 0.0, %v2265
      %2267 = vmatmul.f32.gmra.mxu0 %v2153
      %v2268 = vpop.f32.mrf.mxu0
      %v2269 = vadd.f32 0.0, %v2268
      %2270 = vmatmul.f32.gmra.mxu0 %v2156
      %v2271 = vpop.f32.mrf.mxu0
      %v2272 = vadd.f32 0.0, %v2271
      %2273 = vmatmul.f32.gmra.mxu0 %v2159
      %v2274 = vpop.f32.mrf.mxu0
      %v2275 = vadd.f32 0.0, %v2274
      %2276 = vmatmul.f32.gmra.mxu0 %v2162
      %v2277 = vpop.f32.mrf.mxu0
      %v2278 = vadd.f32 0.0, %v2277
      %2279 = vmatmul.f32.gmra.mxu0 %v2165
      %v2280 = vpop.f32.mrf.mxu0
      %v2281 = vadd.f32 0.0, %v2280
      %2282 = vmatmul.f32.gmra.mxu0 %v2168
      %v2283 = vpop.f32.mrf.mxu0
      %v2284 = vadd.f32 0.0, %v2283
      %2285 = vmatmul.f32.gmra.mxu0 %v2171
      %v2286 = vpop.f32.mrf.mxu0
      %v2287 = vadd.f32 0.0, %v2286
      %2288 = vmatmul.f32.gmra.mxu0 %v2174
      %v2289 = vpop.f32.mrf.mxu0
      %v2290 = vadd.f32 0.0, %v2289
      %2291 = vmatmul.f32.gmra.mxu0 %v2177
      %v2292 = vpop.f32.mrf.mxu0
      %v2293 = vadd.f32 0.0, %v2292
      %2294 = vmatmul.f32.gmra.mxu0 %v2180
      %v2295 = vpop.f32.mrf.mxu0
      %v2296 = vadd.f32 0.0, %v2295
      %2297 = vmatmul.f32.gmra.mxu0 %v2183
      %v2298 = vpop.f32.mrf.mxu0
      %v2299 = vadd.f32 0.0, %v2298
      %2300 = vmatmul.f32.gmra.mxu0 %v2186
      %v2301 = vpop.f32.mrf.mxu0
      %v2302 = vadd.f32 0.0, %v2301
      %2303 = vmatmul.f32.gmra.mxu0 %v2189
      %v2304 = vpop.f32.mrf.mxu0
      %v2305 = vadd.f32 0.0, %v2304
      %2306 = vmatmul.f32.gmra.mxu0 %v2192
      %v2307 = vpop.f32.mrf.mxu0
      %v2308 = vadd.f32 0.0, %v2307
      %2309 = vmatmul.f32.gmra.mxu0 %v2195
      %v2310 = vpop.f32.mrf.mxu0
      %v2311 = vadd.f32 0.0, %v2310
      %2312 = vmatmul.f32.gmra.mxu0 %v2198
      %v2313 = vpop.f32.mrf.mxu0
      %v2314 = vadd.f32 0.0, %v2313
      %2315 = vmatmul.f32.gmra.mxu0 %v2201
      %v2316 = vpop.f32.mrf.mxu0
      %v2317 = vadd.f32 0.0, %v2316
      %2318 = vmatmul.f32.gmra.mxu0 %v2204
      %v2319 = vpop.f32.mrf.mxu0
      %v2320 = vadd.f32 0.0, %v2319
      %2321 = vmatmul.f32.gmra.mxu0 %v2207
      %v2322 = vpop.f32.mrf.mxu0
      %v2323 = vadd.f32 0.0, %v2322
      %2324 = vmatmul.f32.gmra.mxu0 %v2210
      %v2325 = vpop.f32.mrf.mxu0
      %v2326 = vadd.f32 0.0, %v2325
      %2327 = vmatmul.f32.gmra.mxu0 %v2213
      %v2328 = vpop.f32.mrf.mxu0
      %v2329 = vadd.f32 0.0, %v2328
      %2330 = vmatmul.f32.gmra.mxu0 %v2216
      %v2331 = vpop.f32.mrf.mxu0
      %v2332 = vadd.f32 0.0, %v2331
      %2333 = vmatmul.f32.gmra.mxu0 %v2219
      %v2334 = vpop.f32.mrf.mxu0
      %v2335 = vadd.f32 0.0, %v2334
      %2336 = vmatmul.f32.gmra.mxu0 %v2222
      %v2337 = vpop.f32.mrf.mxu0
      %v2338 = vadd.f32 0.0, %v2337
      %2339 = vdwg.mxu0
      %v2340 = vadd.f32 %v1613, %v2245
      %v2341 = vadd.f32 %v1616, %v2248
      %v2342 = vadd.f32 %v1619, %v2251
      %v2343 = vadd.f32 %v1622, %v2254
      %v2344 = vadd.f32 %v1625, %v2257
      %v2345 = vadd.f32 %v1628, %v2260
      %v2346 = vadd.f32 %v1631, %v2263
      %v2347 = vadd.f32 %v1634, %v2266
      %v2348 = vadd.f32 %v1637, %v2269
      %v2349 = vadd.f32 %v1640, %v2272
      %v2350 = vadd.f32 %v1643, %v2275
      %v2351 = vadd.f32 %v1646, %v2278
      %v2352 = vadd.f32 %v1649, %v2281
      %v2353 = vadd.f32 %v1652, %v2284
      %v2354 = vadd.f32 %v1655, %v2287
      %v2355 = vadd.f32 %v1658, %v2290
      %v2356 = vadd.f32 %v1661, %v2293
      %v2357 = vadd.f32 %v1664, %v2296
      %v2358 = vadd.f32 %v1667, %v2299
      %v2359 = vadd.f32 %v1670, %v2302
      %v2360 = vadd.f32 %v1673, %v2305
      %v2361 = vadd.f32 %v1676, %v2308
      %v2362 = vadd.f32 %v1679, %v2311
      %v2363 = vadd.f32 %v1682, %v2314
      %v2364 = vadd.f32 %v1685, %v2317
      %v2365 = vadd.f32 %v1688, %v2320
      %v2366 = vadd.f32 %v1691, %v2323
      %v2367 = vadd.f32 %v1694, %v2326
      %v2368 = vadd.f32 %v1697, %v2329
      %v2369 = vadd.f32 %v1700, %v2332
      %v2370 = vadd.f32 %v1703, %v2335
      %v2371 = vadd.f32 %v1706, %v2338
      %v2372 = vld [vmem:[%s2] sm:$0x1]
      %v2374 = vperm.slane %v2372, 0
      %v2376 = vadd.f32 %v2340, %v2374
      %v2377 = vadd.f32 %v2341, %v2374
      %v2378 = vadd.f32 %v2342, %v2374
      %v2379 = vadd.f32 %v2343, %v2374
      %v2380 = vadd.f32 %v2344, %v2374
      %v2381 = vadd.f32 %v2345, %v2374
      %v2382 = vadd.f32 %v2346, %v2374
      %v2383 = vadd.f32 %v2347, %v2374
      %v2384 = vadd.f32 %v2348, %v2374
      %v2385 = vadd.f32 %v2349, %v2374
      %v2386 = vadd.f32 %v2350, %v2374
      %v2387 = vadd.f32 %v2351, %v2374
      %v2388 = vadd.f32 %v2352, %v2374
      %v2389 = vadd.f32 %v2353, %v2374
      %v2390 = vadd.f32 %v2354, %v2374
      %v2391 = vadd.f32 %v2355, %v2374
      %v2392 = vadd.f32 %v2356, %v2374
      %v2393 = vadd.f32 %v2357, %v2374
      %v2394 = vadd.f32 %v2358, %v2374
      %v2395 = vadd.f32 %v2359, %v2374
      %v2396 = vadd.f32 %v2360, %v2374
      %v2397 = vadd.f32 %v2361, %v2374
      %v2398 = vadd.f32 %v2362, %v2374
      %v2399 = vadd.f32 %v2363, %v2374
      %v2400 = vadd.f32 %v2364, %v2374
      %v2401 = vadd.f32 %v2365, %v2374
      %v2402 = vadd.f32 %v2366, %v2374
      %v2403 = vadd.f32 %v2367, %v2374
      %v2404 = vadd.f32 %v2368, %v2374
      %v2405 = vadd.f32 %v2369, %v2374
      %v2406 = vadd.f32 %v2370, %v2374
      %v2407 = vadd.f32 %v2371, %v2374
      %v2408 = vmax.f32 %v2376, 0.0
      %v2409 = vmax.f32 %v2377, 0.0
      %v2410 = vmax.f32 %v2378, 0.0
      %v2411 = vmax.f32 %v2379, 0.0
      %v2412 = vmax.f32 %v2380, 0.0
      %v2413 = vmax.f32 %v2381, 0.0
      %v2414 = vmax.f32 %v2382, 0.0
      %v2415 = vmax.f32 %v2383, 0.0
      %v2416 = vmax.f32 %v2384, 0.0
      %v2417 = vmax.f32 %v2385, 0.0
      %v2418 = vmax.f32 %v2386, 0.0
      %v2419 = vmax.f32 %v2387, 0.0
      %v2420 = vmax.f32 %v2388, 0.0
      %v2421 = vmax.f32 %v2389, 0.0
      %v2422 = vmax.f32 %v2390, 0.0
      %v2423 = vmax.f32 %v2391, 0.0
      %v2424 = vmax.f32 %v2392, 0.0
      %v2425 = vmax.f32 %v2393, 0.0
      %v2426 = vmax.f32 %v2394, 0.0
      %v2427 = vmax.f32 %v2395, 0.0
      %v2428 = vmax.f32 %v2396, 0.0
      %v2429 = vmax.f32 %v2397, 0.0
      %v2430 = vmax.f32 %v2398, 0.0
      %v2431 = vmax.f32 %v2399, 0.0
      %v2432 = vmax.f32 %v2400, 0.0
      %v2433 = vmax.f32 %v2401, 0.0
      %v2434 = vmax.f32 %v2402, 0.0
      %v2435 = vmax.f32 %v2403, 0.0
      %v2436 = vmax.f32 %v2404, 0.0
      %v2437 = vmax.f32 %v2405, 0.0
      %v2438 = vmax.f32 %v2406, 0.0
      %v2439 = vmax.f32 %v2407, 0.0
      %2440 = vst.msk [vmem:[%s411 + $0x1] sm:$0xff] %vm333, %v2408
      %2441 = vst.msk [vmem:[%s411 + $0x9] sm:$0xff] %vm333, %v2409
      %2442 = vst.msk [vmem:[%s411 + $0x19] sm:$0xff] %vm333, %v2410
      %2443 = vst.msk [vmem:[%s411 + $0x21] sm:$0xff] %vm333, %v2411
      %2444 = vst.msk [vmem:[%s411 + $0x31] sm:$0xff] %vm333, %v2412
      %2445 = vst.msk [vmem:[%s411 + $0x39] sm:$0xff] %vm333, %v2413
      %2446 = vst.msk [vmem:[%s411 + $0x49] sm:$0xff] %vm333, %v2414
      %2447 = vst.msk [vmem:[%s411 + $0x51] sm:$0xff] %vm333, %v2415
      %2448 = vst.msk [vmem:[%s411 + $0x61] sm:$0xff] %vm333, %v2416
      %2449 = vst.msk [vmem:[%s411 + $0x69] sm:$0xff] %vm333, %v2417
      %2450 = vst.msk [vmem:[%s411 + $0x79] sm:$0xff] %vm333, %v2418
      %2451 = vst.msk [vmem:[%s411 + $0x81] sm:$0xff] %vm333, %v2419
      %2452 = vst.msk [vmem:[%s411 + $0x91] sm:$0xff] %vm333, %v2420
      %2453 = vst.msk [vmem:[%s411 + $0x99] sm:$0xff] %vm333, %v2421
      %2454 = vst.msk [vmem:[%s411 + $0xa9] sm:$0xff] %vm333, %v2422
      %2455 = vst.msk [vmem:[%s411 + $0xb1] sm:$0xff] %vm333, %v2423
      %2456 = vst.msk [vmem:[%s411 + $0xc1] sm:$0xff] %vm333, %v2424
      %2457 = vst.msk [vmem:[%s411 + $0xc9] sm:$0xff] %vm333, %v2425
      %2458 = vst.msk [vmem:[%s411 + $0xd9] sm:$0xff] %vm333, %v2426
      %2459 = vst.msk [vmem:[%s411 + $0xe1] sm:$0xff] %vm333, %v2427
      %2460 = vst.msk [vmem:[%s411 + $0xf1] sm:$0xff] %vm333, %v2428
      %2461 = vst.msk [vmem:[%s411 + $0xf9] sm:$0xff] %vm333, %v2429
      %2462 = vst.msk [vmem:[%s411 + $0x109] sm:$0xff] %vm333, %v2430
      %2463 = vst.msk [vmem:[%s411 + $0x111] sm:$0xff] %vm333, %v2431
      %2464 = vst.msk [vmem:[%s411 + $0x121] sm:$0xff] %vm333, %v2432
      %2465 = vst.msk [vmem:[%s411 + $0x129] sm:$0xff] %vm333, %v2433
      %2466 = vst.msk [vmem:[%s411 + $0x139] sm:$0xff] %vm333, %v2434
      %2467 = vst.msk [vmem:[%s411 + $0x141] sm:$0xff] %vm333, %v2435
      %2468 = vst.msk [vmem:[%s411 + $0x151] sm:$0xff] %vm333, %v2436
      %2469 = vst.msk [vmem:[%s411 + $0x159] sm:$0xff] %vm333, %v2437
      %2470 = vst.msk [vmem:[%s411 + $0x169] sm:$0xff] %vm333, %v2438
      %2471 = vst.msk [vmem:[%s411 + $0x171] sm:$0xff] %vm333, %v2439
      %v2472 = vld [vmem:[#allocation2] sm:$0xff]
      %v2473 = vld [vmem:[#allocation2 + $0x8] sm:$0xff]
      %v2474 = vld [vmem:[#allocation2 + $0x18] sm:$0xff]
      %v2475 = vld [vmem:[#allocation2 + $0x20] sm:$0xff]
      %v2476 = vld [vmem:[#allocation2 + $0x30] sm:$0xff]
      %v2477 = vld [vmem:[#allocation2 + $0x38] sm:$0xff]
      %v2478 = vld [vmem:[#allocation2 + $0x48] sm:$0xff]
      %v2479 = vld [vmem:[#allocation2 + $0x50] sm:$0xff]
      %v2480 = vld [vmem:[#allocation2 + $0x60] sm:$0xff]
      %v2481 = vld [vmem:[#allocation2 + $0x68] sm:$0xff]
      %v2482 = vld [vmem:[#allocation2 + $0x78] sm:$0xff]
      %v2483 = vld [vmem:[#allocation2 + $0x80] sm:$0xff]
      %v2484 = vld [vmem:[#allocation2 + $0x90] sm:$0xff]
      %v2485 = vld [vmem:[#allocation2 + $0x98] sm:$0xff]
      %v2486 = vld [vmem:[#allocation2 + $0xa8] sm:$0xff]
      %v2487 = vld [vmem:[#allocation2 + $0xb0] sm:$0xff]
      %v2488 = vld [vmem:[#allocation2 + $0xc0] sm:$0xff]
      %v2489 = vld [vmem:[#allocation2 + $0xc8] sm:$0xff]
      %v2490 = vld [vmem:[#allocation2 + $0xd8] sm:$0xff]
      %v2491 = vld [vmem:[#allocation2 + $0xe0] sm:$0xff]
      %v2492 = vld [vmem:[#allocation2 + $0xf0] sm:$0xff]
      %v2493 = vld [vmem:[#allocation2 + $0xf8] sm:$0xff]
      %v2494 = vld [vmem:[#allocation2 + $0x108] sm:$0xff]
      %v2495 = vld [vmem:[#allocation2 + $0x110] sm:$0xff]
      %v2496 = vld [vmem:[#allocation2 + $0x120] sm:$0xff]
      %v2497 = vld [vmem:[#allocation2 + $0x128] sm:$0xff]
      %v2498 = vld [vmem:[#allocation2 + $0x138] sm:$0xff]
      %v2499 = vld [vmem:[#allocation2 + $0x140] sm:$0xff]
      %v2500 = vld [vmem:[#allocation2 + $0x150] sm:$0xff]
      %v2501 = vld [vmem:[#allocation2 + $0x158] sm:$0xff]
      %v2502 = vld [vmem:[#allocation2 + $0x168] sm:$0xff]
      %v2503 = vld [vmem:[#allocation2 + $0x170] sm:$0xff]
      %v2504 = vld [vmem:[#allocation2 + $0x1] sm:$0xff]
      %v2505 = vld [vmem:[#allocation2 + $0x9] sm:$0xff]
      %v2506 = vld [vmem:[#allocation2 + $0x19] sm:$0xff]
      %v2507 = vld [vmem:[#allocation2 + $0x21] sm:$0xff]
      %v2508 = vld [vmem:[#allocation2 + $0x31] sm:$0xff]
      %v2509 = vld [vmem:[#allocation2 + $0x39] sm:$0xff]
      %v2510 = vld [vmem:[#allocation2 + $0x49] sm:$0xff]
      %v2511 = vld [vmem:[#allocation2 + $0x51] sm:$0xff]
      %v2512 = vld [vmem:[#allocation2 + $0x61] sm:$0xff]
      %v2513 = vld [vmem:[#allocation2 + $0x69] sm:$0xff]
      %v2514 = vld [vmem:[#allocation2 + $0x79] sm:$0xff]
      %v2515 = vld [vmem:[#allocation2 + $0x81] sm:$0xff]
      %v2516 = vld [vmem:[#allocation2 + $0x91] sm:$0xff]
      %v2517 = vld [vmem:[#allocation2 + $0x99] sm:$0xff]
      %v2518 = vld [vmem:[#allocation2 + $0xa9] sm:$0xff]
      %v2519 = vld [vmem:[#allocation2 + $0xb1] sm:$0xff]
      %v2520 = vld [vmem:[#allocation2 + $0xc1] sm:$0xff]
      %v2521 = vld [vmem:[#allocation2 + $0xc9] sm:$0xff]
      %v2522 = vld [vmem:[#allocation2 + $0xd9] sm:$0xff]
      %v2523 = vld [vmem:[#allocation2 + $0xe1] sm:$0xff]
      %v2524 = vld [vmem:[#allocation2 + $0xf1] sm:$0xff]
      %v2525 = vld [vmem:[#allocation2 + $0xf9] sm:$0xff]
      %v2526 = vld [vmem:[#allocation2 + $0x109] sm:$0xff]
      %v2527 = vld [vmem:[#allocation2 + $0x111] sm:$0xff]
      %v2528 = vld [vmem:[#allocation2 + $0x121] sm:$0xff]
      %v2529 = vld [vmem:[#allocation2 + $0x129] sm:$0xff]
      %v2530 = vld [vmem:[#allocation2 + $0x139] sm:$0xff]
      %v2531 = vld [vmem:[#allocation2 + $0x141] sm:$0xff]
      %v2532 = vld [vmem:[#allocation2 + $0x151] sm:$0xff]
      %v2533 = vld [vmem:[#allocation2 + $0x159] sm:$0xff]
      %v2534 = vld [vmem:[#allocation2 + $0x169] sm:$0xff]
      %v2535 = vld [vmem:[#allocation2 + $0x171] sm:$0xff]
      %v2536 = vld [vmem:[#allocation2 + $0x2] sm:$0xff]
      %v2537 = vld [vmem:[#allocation2 + $0xa] sm:$0xff]
      %v2538 = vld [vmem:[#allocation2 + $0x1a] sm:$0xff]
      %v2539 = vld [vmem:[#allocation2 + $0x22] sm:$0xff]
      %v2540 = vld [vmem:[#allocation2 + $0x32] sm:$0xff]
      %v2541 = vld [vmem:[#allocation2 + $0x3a] sm:$0xff]
      %v2542 = vld [vmem:[#allocation2 + $0x4a] sm:$0xff]
      %v2543 = vld [vmem:[#allocation2 + $0x52] sm:$0xff]
      %v2544 = vld [vmem:[#allocation2 + $0x62] sm:$0xff]
      %v2545 = vld [vmem:[#allocation2 + $0x6a] sm:$0xff]
      %v2546 = vld [vmem:[#allocation2 + $0x7a] sm:$0xff]
      %v2547 = vld [vmem:[#allocation2 + $0x82] sm:$0xff]
      %v2548 = vld [vmem:[#allocation2 + $0x92] sm:$0xff]
      %v2549 = vld [vmem:[#allocation2 + $0x9a] sm:$0xff]
      %v2550 = vld [vmem:[#allocation2 + $0xaa] sm:$0xff]
      %v2551 = vld [vmem:[#allocation2 + $0xb2] sm:$0xff]
      %v2552 = vld [vmem:[#allocation2 + $0xc2] sm:$0xff]
      %v2553 = vld [vmem:[#allocation2 + $0xca] sm:$0xff]
      %v2554 = vld [vmem:[#allocation2 + $0xda] sm:$0xff]
      %v2555 = vld [vmem:[#allocation2 + $0xe2] sm:$0xff]
      %v2556 = vld [vmem:[#allocation2 + $0xf2] sm:$0xff]
      %v2557 = vld [vmem:[#allocation2 + $0xfa] sm:$0xff]
      %v2558 = vld [vmem:[#allocation2 + $0x10a] sm:$0xff]
      %v2559 = vld [vmem:[#allocation2 + $0x112] sm:$0xff]
      %v2560 = vld [vmem:[#allocation2 + $0x122] sm:$0xff]
      %v2561 = vld [vmem:[#allocation2 + $0x12a] sm:$0xff]
      %v2562 = vld [vmem:[#allocation2 + $0x13a] sm:$0xff]
      %v2563 = vld [vmem:[#allocation2 + $0x142] sm:$0xff]
      %v2564 = vld [vmem:[#allocation2 + $0x152] sm:$0xff]
      %v2565 = vld [vmem:[#allocation2 + $0x15a] sm:$0xff]
      %v2566 = vld [vmem:[#allocation2 + $0x16a] sm:$0xff]
      %v2567 = vld [vmem:[#allocation2 + $0x172] sm:$0xff]
      %2600 = vrot.lane.b32.xlu0 %v2504, 8
      %v2601 = vpop.permute.xlu0 %2600
      %2602 = vrot.lane.b32.xlu0 %v2505, 8
      %v2603 = vpop.permute.xlu0 %2602
      %2604 = vrot.lane.b32.xlu0 %v2506, 8
      %v2605 = vpop.permute.xlu0 %2604
      %2606 = vrot.lane.b32.xlu0 %v2507, 8
      %v2607 = vpop.permute.xlu0 %2606
      %2608 = vrot.lane.b32.xlu0 %v2508, 8
      %v2609 = vpop.permute.xlu0 %2608
      %2610 = vrot.lane.b32.xlu0 %v2509, 8
      %v2611 = vpop.permute.xlu0 %2610
      %2612 = vrot.lane.b32.xlu0 %v2510, 8
      %v2613 = vpop.permute.xlu0 %2612
      %2614 = vrot.lane.b32.xlu0 %v2511, 8
      %v2615 = vpop.permute.xlu0 %2614
      %2616 = vrot.lane.b32.xlu0 %v2512, 8
      %v2617 = vpop.permute.xlu0 %2616
      %2618 = vrot.lane.b32.xlu0 %v2513, 8
      %v2619 = vpop.permute.xlu0 %2618
      %2620 = vrot.lane.b32.xlu0 %v2514, 8
      %v2621 = vpop.permute.xlu0 %2620
      %2622 = vrot.lane.b32.xlu0 %v2515, 8
      %v2623 = vpop.permute.xlu0 %2622
      %2624 = vrot.lane.b32.xlu0 %v2516, 8
      %v2625 = vpop.permute.xlu0 %2624
      %2626 = vrot.lane.b32.xlu0 %v2517, 8
      %v2627 = vpop.permute.xlu0 %2626
      %2628 = vrot.lane.b32.xlu0 %v2518, 8
      %v2629 = vpop.permute.xlu0 %2628
      %2630 = vrot.lane.b32.xlu0 %v2519, 8
      %v2631 = vpop.permute.xlu0 %2630
      %2632 = vrot.lane.b32.xlu0 %v2520, 8
      %v2633 = vpop.permute.xlu0 %2632
      %2634 = vrot.lane.b32.xlu0 %v2521, 8
      %v2635 = vpop.permute.xlu0 %2634
      %2636 = vrot.lane.b32.xlu0 %v2522, 8
      %v2637 = vpop.permute.xlu0 %2636
      %2638 = vrot.lane.b32.xlu0 %v2523, 8
      %v2639 = vpop.permute.xlu0 %2638
      %2640 = vrot.lane.b32.xlu0 %v2524, 8
      %v2641 = vpop.permute.xlu0 %2640
      %2642 = vrot.lane.b32.xlu0 %v2525, 8
      %v2643 = vpop.permute.xlu0 %2642
      %2644 = vrot.lane.b32.xlu0 %v2526, 8
      %v2645 = vpop.permute.xlu0 %2644
      %2646 = vrot.lane.b32.xlu0 %v2527, 8
      %v2647 = vpop.permute.xlu0 %2646
      %2648 = vrot.lane.b32.xlu0 %v2528, 8
      %v2649 = vpop.permute.xlu0 %2648
      %2650 = vrot.lane.b32.xlu0 %v2529, 8
      %v2651 = vpop.permute.xlu0 %2650
      %2652 = vrot.lane.b32.xlu0 %v2530, 8
      %v2653 = vpop.permute.xlu0 %2652
      %2654 = vrot.lane.b32.xlu0 %v2531, 8
      %v2655 = vpop.permute.xlu0 %2654
      %2656 = vrot.lane.b32.xlu0 %v2532, 8
      %v2657 = vpop.permute.xlu0 %2656
      %2658 = vrot.lane.b32.xlu0 %v2533, 8
      %v2659 = vpop.permute.xlu0 %2658
      %2660 = vrot.lane.b32.xlu0 %v2534, 8
      %v2661 = vpop.permute.xlu0 %2660
      %2662 = vrot.lane.b32.xlu0 %v2535, 8
      %v2663 = vpop.permute.xlu0 %2662
      %2728 = vrot.lane.b32.xlu0 %v2536, 16
      %v2729 = vpop.permute.xlu0 %2728
      %2730 = vrot.lane.b32.xlu0 %v2537, 16
      %v2731 = vpop.permute.xlu0 %2730
      %2732 = vrot.lane.b32.xlu0 %v2538, 16
      %v2733 = vpop.permute.xlu0 %2732
      %2734 = vrot.lane.b32.xlu0 %v2539, 16
      %v2735 = vpop.permute.xlu0 %2734
      %2736 = vrot.lane.b32.xlu0 %v2540, 16
      %v2737 = vpop.permute.xlu0 %2736
      %2738 = vrot.lane.b32.xlu0 %v2541, 16
      %v2739 = vpop.permute.xlu0 %2738
      %2740 = vrot.lane.b32.xlu0 %v2542, 16
      %v2741 = vpop.permute.xlu0 %2740
      %2742 = vrot.lane.b32.xlu0 %v2543, 16
      %v2743 = vpop.permute.xlu0 %2742
      %2744 = vrot.lane.b32.xlu0 %v2544, 16
      %v2745 = vpop.permute.xlu0 %2744
      %2746 = vrot.lane.b32.xlu0 %v2545, 16
      %v2747 = vpop.permute.xlu0 %2746
      %2748 = vrot.lane.b32.xlu0 %v2546, 16
      %v2749 = vpop.permute.xlu0 %2748
      %2750 = vrot.lane.b32.xlu0 %v2547, 16
      %v2751 = vpop.permute.xlu0 %2750
      %2752 = vrot.lane.b32.xlu0 %v2548, 16
      %v2753 = vpop.permute.xlu0 %2752
      %2754 = vrot.lane.b32.xlu0 %v2549, 16
      %v2755 = vpop.permute.xlu0 %2754
      %2756 = vrot.lane.b32.xlu0 %v2550, 16
      %v2757 = vpop.permute.xlu0 %2756
      %2758 = vrot.lane.b32.xlu0 %v2551, 16
      %v2759 = vpop.permute.xlu0 %2758
      %2760 = vrot.lane.b32.xlu0 %v2552, 16
      %v2761 = vpop.permute.xlu0 %2760
      %2762 = vrot.lane.b32.xlu0 %v2553, 16
      %v2763 = vpop.permute.xlu0 %2762
      %2764 = vrot.lane.b32.xlu0 %v2554, 16
      %v2765 = vpop.permute.xlu0 %2764
      %2766 = vrot.lane.b32.xlu0 %v2555, 16
      %v2767 = vpop.permute.xlu0 %2766
      %2768 = vrot.lane.b32.xlu0 %v2556, 16
      %v2769 = vpop.permute.xlu0 %2768
      %2770 = vrot.lane.b32.xlu0 %v2557, 16
      %v2771 = vpop.permute.xlu0 %2770
      %2772 = vrot.lane.b32.xlu0 %v2558, 16
      %v2773 = vpop.permute.xlu0 %2772
      %2774 = vrot.lane.b32.xlu0 %v2559, 16
      %v2775 = vpop.permute.xlu0 %2774
      %2776 = vrot.lane.b32.xlu0 %v2560, 16
      %v2777 = vpop.permute.xlu0 %2776
      %2778 = vrot.lane.b32.xlu0 %v2561, 16
      %v2779 = vpop.permute.xlu0 %2778
      %2780 = vrot.lane.b32.xlu0 %v2562, 16
      %v2781 = vpop.permute.xlu0 %2780
      %2782 = vrot.lane.b32.xlu0 %v2563, 16
      %v2783 = vpop.permute.xlu0 %2782
      %2784 = vrot.lane.b32.xlu0 %v2564, 16
      %v2785 = vpop.permute.xlu0 %2784
      %2786 = vrot.lane.b32.xlu0 %v2565, 16
      %v2787 = vpop.permute.xlu0 %2786
      %2788 = vrot.lane.b32.xlu0 %v2566, 16
      %v2789 = vpop.permute.xlu0 %2788
      %2790 = vrot.lane.b32.xlu0 %v2567, 16
      %v2791 = vpop.permute.xlu0 %2790
      %v2824 = vsel %vm333, %v2472, %v2601
      %v2825 = vsel %vm333, %v2473, %v2603
      %v2826 = vsel %vm333, %v2474, %v2605
      %v2827 = vsel %vm333, %v2475, %v2607
      %v2828 = vsel %vm333, %v2476, %v2609
      %v2829 = vsel %vm333, %v2477, %v2611
      %v2830 = vsel %vm333, %v2478, %v2613
      %v2831 = vsel %vm333, %v2479, %v2615
      %v2832 = vsel %vm333, %v2480, %v2617
      %v2833 = vsel %vm333, %v2481, %v2619
      %v2834 = vsel %vm333, %v2482, %v2621
      %v2835 = vsel %vm333, %v2483, %v2623
      %v2836 = vsel %vm333, %v2484, %v2625
      %v2837 = vsel %vm333, %v2485, %v2627
      %v2838 = vsel %vm333, %v2486, %v2629
      %v2839 = vsel %vm333, %v2487, %v2631
      %v2840 = vsel %vm333, %v2488, %v2633
      %v2841 = vsel %vm333, %v2489, %v2635
      %v2842 = vsel %vm333, %v2490, %v2637
      %v2843 = vsel %vm333, %v2491, %v2639
      %v2844 = vsel %vm333, %v2492, %v2641
      %v2845 = vsel %vm333, %v2493, %v2643
      %v2846 = vsel %vm333, %v2494, %v2645
      %v2847 = vsel %vm333, %v2495, %v2647
      %v2848 = vsel %vm333, %v2496, %v2649
      %v2849 = vsel %vm333, %v2497, %v2651
      %v2850 = vsel %vm333, %v2498, %v2653
      %v2851 = vsel %vm333, %v2499, %v2655
      %v2852 = vsel %vm333, %v2500, %v2657
      %v2853 = vsel %vm333, %v2501, %v2659
      %v2854 = vsel %vm333, %v2502, %v2661
      %v2855 = vsel %vm333, %v2503, %v2663
      %vm2856 = vcmask 130048
      %v2857 = vsel %vm2856, %v2824, %v2729
      %v2858 = vsel %vm2856, %v2825, %v2731
      %v2859 = vsel %vm2856, %v2826, %v2733
      %v2860 = vsel %vm2856, %v2827, %v2735
      %v2861 = vsel %vm2856, %v2828, %v2737
      %v2862 = vsel %vm2856, %v2829, %v2739
      %v2863 = vsel %vm2856, %v2830, %v2741
      %v2864 = vsel %vm2856, %v2831, %v2743
      %v2865 = vsel %vm2856, %v2832, %v2745
      %v2866 = vsel %vm2856, %v2833, %v2747
      %v2867 = vsel %vm2856, %v2834, %v2749
      %v2868 = vsel %vm2856, %v2835, %v2751
      %v2869 = vsel %vm2856, %v2836, %v2753
      %v2870 = vsel %vm2856, %v2837, %v2755
      %v2871 = vsel %vm2856, %v2838, %v2757
      %v2872 = vsel %vm2856, %v2839, %v2759
      %v2873 = vsel %vm2856, %v2840, %v2761
      %v2874 = vsel %vm2856, %v2841, %v2763
      %v2875 = vsel %vm2856, %v2842, %v2765
      %v2876 = vsel %vm2856, %v2843, %v2767
      %v2877 = vsel %vm2856, %v2844, %v2769
      %v2878 = vsel %vm2856, %v2845, %v2771
      %v2879 = vsel %vm2856, %v2846, %v2773
      %v2880 = vsel %vm2856, %v2847, %v2775
      %v2881 = vsel %vm2856, %v2848, %v2777
      %v2882 = vsel %vm2856, %v2849, %v2779
      %v2883 = vsel %vm2856, %v2850, %v2781
      %v2884 = vsel %vm2856, %v2851, %v2783
      %v2885 = vsel %vm2856, %v2852, %v2785
      %v2886 = vsel %vm2856, %v2853, %v2787
      %v2887 = vsel %vm2856, %v2854, %v2789
      %v2888 = vsel %vm2856, %v2855, %v2791
      %v2889 = vld [vmem:[%s3] sm:$0xff]
      %v2890 = vld [vmem:[%s3 + $0x8] sm:$0xff]
      %v2891 = vld [vmem:[%s3 + $0x10] sm:$0xff]
      %v2892 = vld [vmem:[%s411] sm:$0xff]
      %v2893 = vld [vmem:[%s411 + $0x8] sm:$0xff]
      %v2894 = vld [vmem:[%s411 + $0x18] sm:$0xff]
      %v2895 = vld [vmem:[%s411 + $0x20] sm:$0xff]
      %v2896 = vld [vmem:[%s411 + $0x30] sm:$0xff]
      %v2897 = vld [vmem:[%s411 + $0x38] sm:$0xff]
      %v2898 = vld [vmem:[%s411 + $0x48] sm:$0xff]
      %v2899 = vld [vmem:[%s411 + $0x50] sm:$0xff]
      %v2900 = vld [vmem:[%s411 + $0x60] sm:$0xff]
      %v2901 = vld [vmem:[%s411 + $0x68] sm:$0xff]
      %v2902 = vld [vmem:[%s411 + $0x78] sm:$0xff]
      %v2903 = vld [vmem:[%s411 + $0x80] sm:$0xff]
      %v2904 = vld [vmem:[%s411 + $0x90] sm:$0xff]
      %v2905 = vld [vmem:[%s411 + $0x98] sm:$0xff]
      %v2906 = vld [vmem:[%s411 + $0xa8] sm:$0xff]
      %v2907 = vld [vmem:[%s411 + $0xb0] sm:$0xff]
      %v2908 = vld [vmem:[%s411 + $0xc0] sm:$0xff]
      %v2909 = vld [vmem:[%s411 + $0xc8] sm:$0xff]
      %v2910 = vld [vmem:[%s411 + $0xd8] sm:$0xff]
      %v2911 = vld [vmem:[%s411 + $0xe0] sm:$0xff]
      %v2912 = vld [vmem:[%s411 + $0xf0] sm:$0xff]
      %v2913 = vld [vmem:[%s411 + $0xf8] sm:$0xff]
      %v2914 = vld [vmem:[%s411 + $0x108] sm:$0xff]
      %v2915 = vld [vmem:[%s411 + $0x110] sm:$0xff]
      %v2916 = vld [vmem:[%s411 + $0x120] sm:$0xff]
      %v2917 = vld [vmem:[%s411 + $0x128] sm:$0xff]
      %v2918 = vld [vmem:[%s411 + $0x138] sm:$0xff]
      %v2919 = vld [vmem:[%s411 + $0x140] sm:$0xff]
      %v2920 = vld [vmem:[%s411 + $0x150] sm:$0xff]
      %v2921 = vld [vmem:[%s411 + $0x158] sm:$0xff]
      %v2922 = vld [vmem:[%s411 + $0x168] sm:$0xff]
      %v2923 = vld [vmem:[%s411 + $0x170] sm:$0xff]
      %v2924 = vld [vmem:[%s411 + $0x1] sm:$0xff]
      %v2925 = vld [vmem:[%s411 + $0x9] sm:$0xff]
      %v2926 = vld [vmem:[%s411 + $0x19] sm:$0xff]
      %v2927 = vld [vmem:[%s411 + $0x21] sm:$0xff]
      %v2928 = vld [vmem:[%s411 + $0x31] sm:$0xff]
      %v2929 = vld [vmem:[%s411 + $0x39] sm:$0xff]
      %v2930 = vld [vmem:[%s411 + $0x49] sm:$0xff]
      %v2931 = vld [vmem:[%s411 + $0x51] sm:$0xff]
      %v2932 = vld [vmem:[%s411 + $0x61] sm:$0xff]
      %v2933 = vld [vmem:[%s411 + $0x69] sm:$0xff]
      %v2934 = vld [vmem:[%s411 + $0x79] sm:$0xff]
      %v2935 = vld [vmem:[%s411 + $0x81] sm:$0xff]
      %v2936 = vld [vmem:[%s411 + $0x91] sm:$0xff]
      %v2937 = vld [vmem:[%s411 + $0x99] sm:$0xff]
      %v2938 = vld [vmem:[%s411 + $0xa9] sm:$0xff]
      %v2939 = vld [vmem:[%s411 + $0xb1] sm:$0xff]
      %v2940 = vld [vmem:[%s411 + $0xc1] sm:$0xff]
      %v2941 = vld [vmem:[%s411 + $0xc9] sm:$0xff]
      %v2942 = vld [vmem:[%s411 + $0xd9] sm:$0xff]
      %v2943 = vld [vmem:[%s411 + $0xe1] sm:$0xff]
      %v2944 = vld [vmem:[%s411 + $0xf1] sm:$0xff]
      %v2945 = vld [vmem:[%s411 + $0xf9] sm:$0xff]
      %v2946 = vld [vmem:[%s411 + $0x109] sm:$0xff]
      %v2947 = vld [vmem:[%s411 + $0x111] sm:$0xff]
      %v2948 = vld [vmem:[%s411 + $0x121] sm:$0xff]
      %v2949 = vld [vmem:[%s411 + $0x129] sm:$0xff]
      %v2950 = vld [vmem:[%s411 + $0x139] sm:$0xff]
      %v2951 = vld [vmem:[%s411 + $0x141] sm:$0xff]
      %v2952 = vld [vmem:[%s411 + $0x151] sm:$0xff]
      %v2953 = vld [vmem:[%s411 + $0x159] sm:$0xff]
      %v2954 = vld [vmem:[%s411 + $0x169] sm:$0xff]
      %v2955 = vld [vmem:[%s411 + $0x171] sm:$0xff]
      %v2956 = vld [vmem:[%s411 + $0x2] sm:$0xff]
      %v2957 = vld [vmem:[%s411 + $0xa] sm:$0xff]
      %v2958 = vld [vmem:[%s411 + $0x1a] sm:$0xff]
      %v2959 = vld [vmem:[%s411 + $0x22] sm:$0xff]
      %v2960 = vld [vmem:[%s411 + $0x32] sm:$0xff]
      %v2961 = vld [vmem:[%s411 + $0x3a] sm:$0xff]
      %v2962 = vld [vmem:[%s411 + $0x4a] sm:$0xff]
      %v2963 = vld [vmem:[%s411 + $0x52] sm:$0xff]
      %v2964 = vld [vmem:[%s411 + $0x62] sm:$0xff]
      %v2965 = vld [vmem:[%s411 + $0x6a] sm:$0xff]
      %v2966 = vld [vmem:[%s411 + $0x7a] sm:$0xff]
      %v2967 = vld [vmem:[%s411 + $0x82] sm:$0xff]
      %v2968 = vld [vmem:[%s411 + $0x92] sm:$0xff]
      %v2969 = vld [vmem:[%s411 + $0x9a] sm:$0xff]
      %v2970 = vld [vmem:[%s411 + $0xaa] sm:$0xff]
      %v2971 = vld [vmem:[%s411 + $0xb2] sm:$0xff]
      %v2972 = vld [vmem:[%s411 + $0xc2] sm:$0xff]
      %v2973 = vld [vmem:[%s411 + $0xca] sm:$0xff]
      %v2974 = vld [vmem:[%s411 + $0xda] sm:$0xff]
      %v2975 = vld [vmem:[%s411 + $0xe2] sm:$0xff]
      %v2976 = vld [vmem:[%s411 + $0xf2] sm:$0xff]
      %v2977 = vld [vmem:[%s411 + $0xfa] sm:$0xff]
      %v2978 = vld [vmem:[%s411 + $0x10a] sm:$0xff]
      %v2979 = vld [vmem:[%s411 + $0x112] sm:$0xff]
      %v2980 = vld [vmem:[%s411 + $0x122] sm:$0xff]
      %v2981 = vld [vmem:[%s411 + $0x12a] sm:$0xff]
      %v2982 = vld [vmem:[%s411 + $0x13a] sm:$0xff]
      %v2983 = vld [vmem:[%s411 + $0x142] sm:$0xff]
      %v2984 = vld [vmem:[%s411 + $0x152] sm:$0xff]
      %v2985 = vld [vmem:[%s411 + $0x15a] sm:$0xff]
      %v2986 = vld [vmem:[%s411 + $0x16a] sm:$0xff]
      %v2987 = vld [vmem:[%s411 + $0x172] sm:$0xff]
      %3020 = vrot.lane.b32.xlu0 %v2924, 8
      %v3021 = vpop.permute.xlu0 %3020
      %3022 = vrot.lane.b32.xlu0 %v2925, 8
      %v3023 = vpop.permute.xlu0 %3022
      %3024 = vrot.lane.b32.xlu0 %v2926, 8
      %v3025 = vpop.permute.xlu0 %3024
      %3026 = vrot.lane.b32.xlu0 %v2927, 8
      %v3027 = vpop.permute.xlu0 %3026
      %3028 = vrot.lane.b32.xlu0 %v2928, 8
      %v3029 = vpop.permute.xlu0 %3028
      %3030 = vrot.lane.b32.xlu0 %v2929, 8
      %v3031 = vpop.permute.xlu0 %3030
      %3032 = vrot.lane.b32.xlu0 %v2930, 8
      %v3033 = vpop.permute.xlu0 %3032
      %3034 = vrot.lane.b32.xlu0 %v2931, 8
      %v3035 = vpop.permute.xlu0 %3034
      %3036 = vrot.lane.b32.xlu0 %v2932, 8
      %v3037 = vpop.permute.xlu0 %3036
      %3038 = vrot.lane.b32.xlu0 %v2933, 8
      %v3039 = vpop.permute.xlu0 %3038
      %3040 = vrot.lane.b32.xlu0 %v2934, 8
      %v3041 = vpop.permute.xlu0 %3040
      %3042 = vrot.lane.b32.xlu0 %v2935, 8
      %v3043 = vpop.permute.xlu0 %3042
      %3044 = vrot.lane.b32.xlu0 %v2936, 8
      %v3045 = vpop.permute.xlu0 %3044
      %3046 = vrot.lane.b32.xlu0 %v2937, 8
      %v3047 = vpop.permute.xlu0 %3046
      %3048 = vrot.lane.b32.xlu0 %v2938, 8
      %v3049 = vpop.permute.xlu0 %3048
      %3050 = vrot.lane.b32.xlu0 %v2939, 8
      %v3051 = vpop.permute.xlu0 %3050
      %3052 = vrot.lane.b32.xlu0 %v2940, 8
      %v3053 = vpop.permute.xlu0 %3052
      %3054 = vrot.lane.b32.xlu0 %v2941, 8
      %v3055 = vpop.permute.xlu0 %3054
      %3056 = vrot.lane.b32.xlu0 %v2942, 8
      %v3057 = vpop.permute.xlu0 %3056
      %3058 = vrot.lane.b32.xlu0 %v2943, 8
      %v3059 = vpop.permute.xlu0 %3058
      %3060 = vrot.lane.b32.xlu0 %v2944, 8
      %v3061 = vpop.permute.xlu0 %3060
      %3062 = vrot.lane.b32.xlu0 %v2945, 8
      %v3063 = vpop.permute.xlu0 %3062
      %3064 = vrot.lane.b32.xlu0 %v2946, 8
      %v3065 = vpop.permute.xlu0 %3064
      %3066 = vrot.lane.b32.xlu0 %v2947, 8
      %v3067 = vpop.permute.xlu0 %3066
      %3068 = vrot.lane.b32.xlu0 %v2948, 8
      %v3069 = vpop.permute.xlu0 %3068
      %3070 = vrot.lane.b32.xlu0 %v2949, 8
      %v3071 = vpop.permute.xlu0 %3070
      %3072 = vrot.lane.b32.xlu0 %v2950, 8
      %v3073 = vpop.permute.xlu0 %3072
      %3074 = vrot.lane.b32.xlu0 %v2951, 8
      %v3075 = vpop.permute.xlu0 %3074
      %3076 = vrot.lane.b32.xlu0 %v2952, 8
      %v3077 = vpop.permute.xlu0 %3076
      %3078 = vrot.lane.b32.xlu0 %v2953, 8
      %v3079 = vpop.permute.xlu0 %3078
      %3080 = vrot.lane.b32.xlu0 %v2954, 8
      %v3081 = vpop.permute.xlu0 %3080
      %3082 = vrot.lane.b32.xlu0 %v2955, 8
      %v3083 = vpop.permute.xlu0 %3082
      %3148 = vrot.lane.b32.xlu0 %v2956, 16
      %v3149 = vpop.permute.xlu0 %3148
      %3150 = vrot.lane.b32.xlu0 %v2957, 16
      %v3151 = vpop.permute.xlu0 %3150
      %3152 = vrot.lane.b32.xlu0 %v2958, 16
      %v3153 = vpop.permute.xlu0 %3152
      %3154 = vrot.lane.b32.xlu0 %v2959, 16
      %v3155 = vpop.permute.xlu0 %3154
      %3156 = vrot.lane.b32.xlu0 %v2960, 16
      %v3157 = vpop.permute.xlu0 %3156
      %3158 = vrot.lane.b32.xlu0 %v2961, 16
      %v3159 = vpop.permute.xlu0 %3158
      %3160 = vrot.lane.b32.xlu0 %v2962, 16
      %v3161 = vpop.permute.xlu0 %3160
      %3162 = vrot.lane.b32.xlu0 %v2963, 16
      %v3163 = vpop.permute.xlu0 %3162
      %3164 = vrot.lane.b32.xlu0 %v2964, 16
      %v3165 = vpop.permute.xlu0 %3164
      %3166 = vrot.lane.b32.xlu0 %v2965, 16
      %v3167 = vpop.permute.xlu0 %3166
      %3168 = vrot.lane.b32.xlu0 %v2966, 16
      %v3169 = vpop.permute.xlu0 %3168
      %3170 = vrot.lane.b32.xlu0 %v2967, 16
      %v3171 = vpop.permute.xlu0 %3170
      %3172 = vrot.lane.b32.xlu0 %v2968, 16
      %v3173 = vpop.permute.xlu0 %3172
      %3174 = vrot.lane.b32.xlu0 %v2969, 16
      %v3175 = vpop.permute.xlu0 %3174
      %3176 = vrot.lane.b32.xlu0 %v2970, 16
      %v3177 = vpop.permute.xlu0 %3176
      %3178 = vrot.lane.b32.xlu0 %v2971, 16
      %v3179 = vpop.permute.xlu0 %3178
      %3180 = vrot.lane.b32.xlu0 %v2972, 16
      %v3181 = vpop.permute.xlu0 %3180
      %3182 = vrot.lane.b32.xlu0 %v2973, 16
      %v3183 = vpop.permute.xlu0 %3182
      %3184 = vrot.lane.b32.xlu0 %v2974, 16
      %v3185 = vpop.permute.xlu0 %3184
      %3186 = vrot.lane.b32.xlu0 %v2975, 16
      %v3187 = vpop.permute.xlu0 %3186
      %3188 = vrot.lane.b32.xlu0 %v2976, 16
      %v3189 = vpop.permute.xlu0 %3188
      %3190 = vrot.lane.b32.xlu0 %v2977, 16
      %v3191 = vpop.permute.xlu0 %3190
      %3192 = vrot.lane.b32.xlu0 %v2978, 16
      %v3193 = vpop.permute.xlu0 %3192
      %3194 = vrot.lane.b32.xlu0 %v2979, 16
      %v3195 = vpop.permute.xlu0 %3194
      %3196 = vrot.lane.b32.xlu0 %v2980, 16
      %v3197 = vpop.permute.xlu0 %3196
      %3198 = vrot.lane.b32.xlu0 %v2981, 16
      %v3199 = vpop.permute.xlu0 %3198
      %3200 = vrot.lane.b32.xlu0 %v2982, 16
      %v3201 = vpop.permute.xlu0 %3200
      %3202 = vrot.lane.b32.xlu0 %v2983, 16
      %v3203 = vpop.permute.xlu0 %3202
      %3204 = vrot.lane.b32.xlu0 %v2984, 16
      %v3205 = vpop.permute.xlu0 %3204
      %3206 = vrot.lane.b32.xlu0 %v2985, 16
      %v3207 = vpop.permute.xlu0 %3206
      %3208 = vrot.lane.b32.xlu0 %v2986, 16
      %v3209 = vpop.permute.xlu0 %3208
      %3210 = vrot.lane.b32.xlu0 %v2987, 16
      %v3211 = vpop.permute.xlu0 %3210
      %v3244 = vsel %vm333, %v2892, %v3021
      %v3245 = vsel %vm333, %v2893, %v3023
      %v3246 = vsel %vm333, %v2894, %v3025
      %v3247 = vsel %vm333, %v2895, %v3027
      %v3248 = vsel %vm333, %v2896, %v3029
      %v3249 = vsel %vm333, %v2897, %v3031
      %v3250 = vsel %vm333, %v2898, %v3033
      %v3251 = vsel %vm333, %v2899, %v3035
      %v3252 = vsel %vm333, %v2900, %v3037
      %v3253 = vsel %vm333, %v2901, %v3039
      %v3254 = vsel %vm333, %v2902, %v3041
      %v3255 = vsel %vm333, %v2903, %v3043
      %v3256 = vsel %vm333, %v2904, %v3045
      %v3257 = vsel %vm333, %v2905, %v3047
      %v3258 = vsel %vm333, %v2906, %v3049
      %v3259 = vsel %vm333, %v2907, %v3051
      %v3260 = vsel %vm333, %v2908, %v3053
      %v3261 = vsel %vm333, %v2909, %v3055
      %v3262 = vsel %vm333, %v2910, %v3057
      %v3263 = vsel %vm333, %v2911, %v3059
      %v3264 = vsel %vm333, %v2912, %v3061
      %v3265 = vsel %vm333, %v2913, %v3063
      %v3266 = vsel %vm333, %v2914, %v3065
      %v3267 = vsel %vm333, %v2915, %v3067
      %v3268 = vsel %vm333, %v2916, %v3069
      %v3269 = vsel %vm333, %v2917, %v3071
      %v3270 = vsel %vm333, %v2918, %v3073
      %v3271 = vsel %vm333, %v2919, %v3075
      %v3272 = vsel %vm333, %v2920, %v3077
      %v3273 = vsel %vm333, %v2921, %v3079
      %v3274 = vsel %vm333, %v2922, %v3081
      %v3275 = vsel %vm333, %v2923, %v3083
      %v3276 = vsel %vm2856, %v3244, %v3149
      %v3277 = vsel %vm2856, %v3245, %v3151
      %v3278 = vsel %vm2856, %v3246, %v3153
      %v3279 = vsel %vm2856, %v3247, %v3155
      %v3280 = vsel %vm2856, %v3248, %v3157
      %v3281 = vsel %vm2856, %v3249, %v3159
      %v3282 = vsel %vm2856, %v3250, %v3161
      %v3283 = vsel %vm2856, %v3251, %v3163
      %v3284 = vsel %vm2856, %v3252, %v3165
      %v3285 = vsel %vm2856, %v3253, %v3167
      %v3286 = vsel %vm2856, %v3254, %v3169
      %v3287 = vsel %vm2856, %v3255, %v3171
      %v3288 = vsel %vm2856, %v3256, %v3173
      %v3289 = vsel %vm2856, %v3257, %v3175
      %v3290 = vsel %vm2856, %v3258, %v3177
      %v3291 = vsel %vm2856, %v3259, %v3179
      %v3292 = vsel %vm2856, %v3260, %v3181
      %v3293 = vsel %vm2856, %v3261, %v3183
      %v3294 = vsel %vm2856, %v3262, %v3185
      %v3295 = vsel %vm2856, %v3263, %v3187
      %v3296 = vsel %vm2856, %v3264, %v3189
      %v3297 = vsel %vm2856, %v3265, %v3191
      %v3298 = vsel %vm2856, %v3266, %v3193
      %v3299 = vsel %vm2856, %v3267, %v3195
      %v3300 = vsel %vm2856, %v3268, %v3197
      %v3301 = vsel %vm2856, %v3269, %v3199
      %v3302 = vsel %vm2856, %v3270, %v3201
      %v3303 = vsel %vm2856, %v3271, %v3203
      %v3304 = vsel %vm2856, %v3272, %v3205
      %v3305 = vsel %vm2856, %v3273, %v3207
      %v3306 = vsel %vm2856, %v3274, %v3209
      %v3307 = vsel %vm2856, %v3275, %v3211
      %s3308 = scalar_lea.vmem %s3, 24
      %v3309 = vld [vmem:[%s3308] sm:$0xff]
      %v3310 = vld [vmem:[%s3308 + $0x8] sm:$0xff]
      %v3311 = vld [vmem:[%s3308 + $0x10] sm:$0xff]
      %vm3312 = vcmask 195584
      %v3314 = vsel %vm3312, %v3276, 0
      %v3317 = vsel %vm3312, %v3277, 0
      %v3320 = vsel %vm3312, %v3278, 0
      %v3323 = vsel %vm3312, %v3279, 0
      %v3326 = vsel %vm3312, %v3280, 0
      %v3329 = vsel %vm3312, %v3281, 0
      %v3332 = vsel %vm3312, %v3282, 0
      %v3335 = vsel %vm3312, %v3283, 0
      %v3338 = vsel %vm3312, %v3284, 0
      %v3341 = vsel %vm3312, %v3285, 0
      %v3344 = vsel %vm3312, %v3286, 0
      %v3347 = vsel %vm3312, %v3287, 0
      %v3350 = vsel %vm3312, %v3288, 0
      %v3353 = vsel %vm3312, %v3289, 0
      %v3356 = vsel %vm3312, %v3290, 0
      %v3359 = vsel %vm3312, %v3291, 0
      %v3362 = vsel %vm3312, %v3292, 0
      %v3365 = vsel %vm3312, %v3293, 0
      %v3368 = vsel %vm3312, %v3294, 0
      %v3371 = vsel %vm3312, %v3295, 0
      %v3374 = vsel %vm3312, %v3296, 0
      %v3377 = vsel %vm3312, %v3297, 0
      %v3380 = vsel %vm3312, %v3298, 0
      %v3383 = vsel %vm3312, %v3299, 0
      %v3386 = vsel %vm3312, %v3300, 0
      %v3389 = vsel %vm3312, %v3301, 0
      %v3392 = vsel %vm3312, %v3302, 0
      %v3395 = vsel %vm3312, %v3303, 0
      %v3398 = vsel %vm3312, %v3304, 0
      %v3401 = vsel %vm3312, %v3305, 0
      %v3404 = vsel %vm3312, %v3306, 0
      %v3407 = vsel %vm3312, %v3307, 0
      %3409 = vmatpush.msra.mxu0 0.0
      %3410 = vmatpush.msra.mxu0 0.0
      %3411 = vmatpush.msra.mxu0 0.0
      %3412 = vmatpush.msra.mxu0 0.0
      %3413 = vmatpush.msra.mxu0 0.0
      %3414 = vmatpush.msra.mxu0 0.0
      %3415 = vmatpush.msra.mxu0 0.0
      %3416 = vmatpush.msra.mxu0 0.0
      %3417 = vmatpush.msra.mxu0 0.0
      %3418 = vmatpush.msra.mxu0 0.0
      %3419 = vmatpush.msra.mxu0 0.0
      %3420 = vmatpush.msra.mxu0 0.0
      %3421 = vmatpush.msra.mxu0 0.0
      %3422 = vmatpush.msra.mxu0 %v3311
      %3423 = vmatpush.msra.mxu0 %v3310
      %3424 = vmatpush.msra.mxu0 %v3309
      %3425 = vmatmul.f32.gmra.mxu0 %v3314
      %v3426 = vpop.f32.mrf.mxu0
      %v3427 = vadd.f32 0.0, %v3426
      %3428 = vmatmul.f32.gmra.mxu0 %v3317
      %v3429 = vpop.f32.mrf.mxu0
      %v3430 = vadd.f32 0.0, %v3429
      %3431 = vmatmul.f32.gmra.mxu0 %v3320
      %v3432 = vpop.f32.mrf.mxu0
      %v3433 = vadd.f32 0.0, %v3432
      %3434 = vmatmul.f32.gmra.mxu0 %v3323
      %v3435 = vpop.f32.mrf.mxu0
      %v3436 = vadd.f32 0.0, %v3435
      %3437 = vmatmul.f32.gmra.mxu0 %v3326
      %v3438 = vpop.f32.mrf.mxu0
      %v3439 = vadd.f32 0.0, %v3438
      %3440 = vmatmul.f32.gmra.mxu0 %v3329
      %v3441 = vpop.f32.mrf.mxu0
      %v3442 = vadd.f32 0.0, %v3441
      %3443 = vmatmul.f32.gmra.mxu0 %v3332
      %v3444 = vpop.f32.mrf.mxu0
      %v3445 = vadd.f32 0.0, %v3444
      %3446 = vmatmul.f32.gmra.mxu0 %v3335
      %v3447 = vpop.f32.mrf.mxu0
      %v3448 = vadd.f32 0.0, %v3447
      %3449 = vmatmul.f32.gmra.mxu0 %v3338
      %v3450 = vpop.f32.mrf.mxu0
      %v3451 = vadd.f32 0.0, %v3450
      %3452 = vmatmul.f32.gmra.mxu0 %v3341
      %v3453 = vpop.f32.mrf.mxu0
      %v3454 = vadd.f32 0.0, %v3453
      %3455 = vmatmul.f32.gmra.mxu0 %v3344
      %v3456 = vpop.f32.mrf.mxu0
      %v3457 = vadd.f32 0.0, %v3456
      %3458 = vmatmul.f32.gmra.mxu0 %v3347
      %v3459 = vpop.f32.mrf.mxu0
      %v3460 = vadd.f32 0.0, %v3459
      %3461 = vmatmul.f32.gmra.mxu0 %v3350
      %v3462 = vpop.f32.mrf.mxu0
      %v3463 = vadd.f32 0.0, %v3462
      %3464 = vmatmul.f32.gmra.mxu0 %v3353
      %v3465 = vpop.f32.mrf.mxu0
      %v3466 = vadd.f32 0.0, %v3465
      %3467 = vmatmul.f32.gmra.mxu0 %v3356
      %v3468 = vpop.f32.mrf.mxu0
      %v3469 = vadd.f32 0.0, %v3468
      %3470 = vmatmul.f32.gmra.mxu0 %v3359
      %v3471 = vpop.f32.mrf.mxu0
      %v3472 = vadd.f32 0.0, %v3471
      %3473 = vmatmul.f32.gmra.mxu0 %v3362
      %v3474 = vpop.f32.mrf.mxu0
      %v3475 = vadd.f32 0.0, %v3474
      %3476 = vmatmul.f32.gmra.mxu0 %v3365
      %v3477 = vpop.f32.mrf.mxu0
      %v3478 = vadd.f32 0.0, %v3477
      %3479 = vmatmul.f32.gmra.mxu0 %v3368
      %v3480 = vpop.f32.mrf.mxu0
      %v3481 = vadd.f32 0.0, %v3480
      %3482 = vmatmul.f32.gmra.mxu0 %v3371
      %v3483 = vpop.f32.mrf.mxu0
      %v3484 = vadd.f32 0.0, %v3483
      %3485 = vmatmul.f32.gmra.mxu0 %v3374
      %v3486 = vpop.f32.mrf.mxu0
      %v3487 = vadd.f32 0.0, %v3486
      %3488 = vmatmul.f32.gmra.mxu0 %v3377
      %v3489 = vpop.f32.mrf.mxu0
      %v3490 = vadd.f32 0.0, %v3489
      %3491 = vmatmul.f32.gmra.mxu0 %v3380
      %v3492 = vpop.f32.mrf.mxu0
      %v3493 = vadd.f32 0.0, %v3492
      %3494 = vmatmul.f32.gmra.mxu0 %v3383
      %v3495 = vpop.f32.mrf.mxu0
      %v3496 = vadd.f32 0.0, %v3495
      %3497 = vmatmul.f32.gmra.mxu0 %v3386
      %v3498 = vpop.f32.mrf.mxu0
      %v3499 = vadd.f32 0.0, %v3498
      %3500 = vmatmul.f32.gmra.mxu0 %v3389
      %v3501 = vpop.f32.mrf.mxu0
      %v3502 = vadd.f32 0.0, %v3501
      %3503 = vmatmul.f32.gmra.mxu0 %v3392
      %v3504 = vpop.f32.mrf.mxu0
      %v3505 = vadd.f32 0.0, %v3504
      %3506 = vmatmul.f32.gmra.mxu0 %v3395
      %v3507 = vpop.f32.mrf.mxu0
      %v3508 = vadd.f32 0.0, %v3507
      %3509 = vmatmul.f32.gmra.mxu0 %v3398
      %v3510 = vpop.f32.mrf.mxu0
      %v3511 = vadd.f32 0.0, %v3510
      %3512 = vmatmul.f32.gmra.mxu0 %v3401
      %v3513 = vpop.f32.mrf.mxu0
      %v3514 = vadd.f32 0.0, %v3513
      %3515 = vmatmul.f32.gmra.mxu0 %v3404
      %v3516 = vpop.f32.mrf.mxu0
      %v3517 = vadd.f32 0.0, %v3516
      %3518 = vmatmul.f32.gmra.mxu0 %v3407
      %v3519 = vpop.f32.mrf.mxu0
      %v3520 = vadd.f32 0.0, %v3519
      %3521 = vdwg.mxu0
      %v3523 = vsel %vm3312, %v2857, 0
      %v3526 = vsel %vm3312, %v2858, 0
      %v3529 = vsel %vm3312, %v2859, 0
      %v3532 = vsel %vm3312, %v2860, 0
      %v3535 = vsel %vm3312, %v2861, 0
      %v3538 = vsel %vm3312, %v2862, 0
      %v3541 = vsel %vm3312, %v2863, 0
      %v3544 = vsel %vm3312, %v2864, 0
      %v3547 = vsel %vm3312, %v2865, 0
      %v3550 = vsel %vm3312, %v2866, 0
      %v3553 = vsel %vm3312, %v2867, 0
      %v3556 = vsel %vm3312, %v2868, 0
      %v3559 = vsel %vm3312, %v2869, 0
      %v3562 = vsel %vm3312, %v2870, 0
      %v3565 = vsel %vm3312, %v2871, 0
      %v3568 = vsel %vm3312, %v2872, 0
      %v3571 = vsel %vm3312, %v2873, 0
      %v3574 = vsel %vm3312, %v2874, 0
      %v3577 = vsel %vm3312, %v2875, 0
      %v3580 = vsel %vm3312, %v2876, 0
      %v3583 = vsel %vm3312, %v2877, 0
      %v3586 = vsel %vm3312, %v2878, 0
      %v3589 = vsel %vm3312, %v2879, 0
      %v3592 = vsel %vm3312, %v2880, 0
      %v3595 = vsel %vm3312, %v2881, 0
      %v3598 = vsel %vm3312, %v2882, 0
      %v3601 = vsel %vm3312, %v2883, 0
      %v3604 = vsel %vm3312, %v2884, 0
      %v3607 = vsel %vm3312, %v2885, 0
      %v3610 = vsel %vm3312, %v2886, 0
      %v3613 = vsel %vm3312, %v2887, 0
      %v3616 = vsel %vm3312, %v2888, 0
      %3618 = vmatpush.msra.mxu0 0.0
      %3619 = vmatpush.msra.mxu0 0.0
      %3620 = vmatpush.msra.mxu0 0.0
      %3621 = vmatpush.msra.mxu0 0.0
      %3622 = vmatpush.msra.mxu0 0.0
      %3623 = vmatpush.msra.mxu0 0.0
      %3624 = vmatpush.msra.mxu0 0.0
      %3625 = vmatpush.msra.mxu0 0.0
      %3626 = vmatpush.msra.mxu0 0.0
      %3627 = vmatpush.msra.mxu0 0.0
      %3628 = vmatpush.msra.mxu0 0.0
      %3629 = vmatpush.msra.mxu0 0.0
      %3630 = vmatpush.msra.mxu0 0.0
      %3631 = vmatpush.msra.mxu0 %v2891
      %3632 = vmatpush.msra.mxu0 %v2890
      %3633 = vmatpush.msra.mxu0 %v2889
      %3634 = vmatmul.f32.gmra.mxu0 %v3523
      %v3635 = vpop.f32.mrf.mxu0
      %v3636 = vadd.f32 %v3427, %v3635
      %3637 = vmatmul.f32.gmra.mxu0 %v3526
      %v3638 = vpop.f32.mrf.mxu0
      %v3639 = vadd.f32 %v3430, %v3638
      %3640 = vmatmul.f32.gmra.mxu0 %v3529
      %v3641 = vpop.f32.mrf.mxu0
      %v3642 = vadd.f32 %v3433, %v3641
      %3643 = vmatmul.f32.gmra.mxu0 %v3532
      %v3644 = vpop.f32.mrf.mxu0
      %v3645 = vadd.f32 %v3436, %v3644
      %3646 = vmatmul.f32.gmra.mxu0 %v3535
      %v3647 = vpop.f32.mrf.mxu0
      %v3648 = vadd.f32 %v3439, %v3647
      %3649 = vmatmul.f32.gmra.mxu0 %v3538
      %v3650 = vpop.f32.mrf.mxu0
      %v3651 = vadd.f32 %v3442, %v3650
      %3652 = vmatmul.f32.gmra.mxu0 %v3541
      %v3653 = vpop.f32.mrf.mxu0
      %v3654 = vadd.f32 %v3445, %v3653
      %3655 = vmatmul.f32.gmra.mxu0 %v3544
      %v3656 = vpop.f32.mrf.mxu0
      %v3657 = vadd.f32 %v3448, %v3656
      %3658 = vmatmul.f32.gmra.mxu0 %v3547
      %v3659 = vpop.f32.mrf.mxu0
      %v3660 = vadd.f32 %v3451, %v3659
      %3661 = vmatmul.f32.gmra.mxu0 %v3550
      %v3662 = vpop.f32.mrf.mxu0
      %v3663 = vadd.f32 %v3454, %v3662
      %3664 = vmatmul.f32.gmra.mxu0 %v3553
      %v3665 = vpop.f32.mrf.mxu0
      %v3666 = vadd.f32 %v3457, %v3665
      %3667 = vmatmul.f32.gmra.mxu0 %v3556
      %v3668 = vpop.f32.mrf.mxu0
      %v3669 = vadd.f32 %v3460, %v3668
      %3670 = vmatmul.f32.gmra.mxu0 %v3559
      %v3671 = vpop.f32.mrf.mxu0
      %v3672 = vadd.f32 %v3463, %v3671
      %3673 = vmatmul.f32.gmra.mxu0 %v3562
      %v3674 = vpop.f32.mrf.mxu0
      %v3675 = vadd.f32 %v3466, %v3674
      %3676 = vmatmul.f32.gmra.mxu0 %v3565
      %v3677 = vpop.f32.mrf.mxu0
      %v3678 = vadd.f32 %v3469, %v3677
      %3679 = vmatmul.f32.gmra.mxu0 %v3568
      %v3680 = vpop.f32.mrf.mxu0
      %v3681 = vadd.f32 %v3472, %v3680
      %3682 = vmatmul.f32.gmra.mxu0 %v3571
      %v3683 = vpop.f32.mrf.mxu0
      %v3684 = vadd.f32 %v3475, %v3683
      %3685 = vmatmul.f32.gmra.mxu0 %v3574
      %v3686 = vpop.f32.mrf.mxu0
      %v3687 = vadd.f32 %v3478, %v3686
      %3688 = vmatmul.f32.gmra.mxu0 %v3577
      %v3689 = vpop.f32.mrf.mxu0
      %v3690 = vadd.f32 %v3481, %v3689
      %3691 = vmatmul.f32.gmra.mxu0 %v3580
      %v3692 = vpop.f32.mrf.mxu0
      %v3693 = vadd.f32 %v3484, %v3692
      %3694 = vmatmul.f32.gmra.mxu0 %v3583
      %v3695 = vpop.f32.mrf.mxu0
      %v3696 = vadd.f32 %v3487, %v3695
      %3697 = vmatmul.f32.gmra.mxu0 %v3586
      %v3698 = vpop.f32.mrf.mxu0
      %v3699 = vadd.f32 %v3490, %v3698
      %3700 = vmatmul.f32.gmra.mxu0 %v3589
      %v3701 = vpop.f32.mrf.mxu0
      %v3702 = vadd.f32 %v3493, %v3701
      %3703 = vmatmul.f32.gmra.mxu0 %v3592
      %v3704 = vpop.f32.mrf.mxu0
      %v3705 = vadd.f32 %v3496, %v3704
      %3706 = vmatmul.f32.gmra.mxu0 %v3595
      %v3707 = vpop.f32.mrf.mxu0
      %v3708 = vadd.f32 %v3499, %v3707
      %3709 = vmatmul.f32.gmra.mxu0 %v3598
      %v3710 = vpop.f32.mrf.mxu0
      %v3711 = vadd.f32 %v3502, %v3710
      %3712 = vmatmul.f32.gmra.mxu0 %v3601
      %v3713 = vpop.f32.mrf.mxu0
      %v3714 = vadd.f32 %v3505, %v3713
      %3715 = vmatmul.f32.gmra.mxu0 %v3604
      %v3716 = vpop.f32.mrf.mxu0
      %v3717 = vadd.f32 %v3508, %v3716
      %3718 = vmatmul.f32.gmra.mxu0 %v3607
      %v3719 = vpop.f32.mrf.mxu0
      %v3720 = vadd.f32 %v3511, %v3719
      %3721 = vmatmul.f32.gmra.mxu0 %v3610
      %v3722 = vpop.f32.mrf.mxu0
      %v3723 = vadd.f32 %v3514, %v3722
      %3724 = vmatmul.f32.gmra.mxu0 %v3613
      %v3725 = vpop.f32.mrf.mxu0
      %v3726 = vadd.f32 %v3517, %v3725
      %3727 = vmatmul.f32.gmra.mxu0 %v3616
      %v3728 = vpop.f32.mrf.mxu0
      %v3729 = vadd.f32 %v3520, %v3728
      %3730 = vdwg.mxu0
      %v3731 = vld [vmem:[%s1708] sm:$0xff]
      %v3732 = vld [vmem:[%s1708 + $0x8] sm:$0xff]
      %v3733 = vld [vmem:[%s1708 + $0x18] sm:$0xff]
      %v3734 = vld [vmem:[%s1708 + $0x20] sm:$0xff]
      %v3735 = vld [vmem:[%s1708 + $0x30] sm:$0xff]
      %v3736 = vld [vmem:[%s1708 + $0x38] sm:$0xff]
      %v3737 = vld [vmem:[%s1708 + $0x48] sm:$0xff]
      %v3738 = vld [vmem:[%s1708 + $0x50] sm:$0xff]
      %v3739 = vld [vmem:[%s1708 + $0x60] sm:$0xff]
      %v3740 = vld [vmem:[%s1708 + $0x68] sm:$0xff]
      %v3741 = vld [vmem:[%s1708 + $0x78] sm:$0xff]
      %v3742 = vld [vmem:[%s1708 + $0x80] sm:$0xff]
      %v3743 = vld [vmem:[%s1708 + $0x90] sm:$0xff]
      %v3744 = vld [vmem:[%s1708 + $0x98] sm:$0xff]
      %v3745 = vld [vmem:[%s1708 + $0xa8] sm:$0xff]
      %v3746 = vld [vmem:[%s1708 + $0xb0] sm:$0xff]
      %v3747 = vld [vmem:[%s1708 + $0xc0] sm:$0xff]
      %v3748 = vld [vmem:[%s1708 + $0xc8] sm:$0xff]
      %v3749 = vld [vmem:[%s1708 + $0xd8] sm:$0xff]
      %v3750 = vld [vmem:[%s1708 + $0xe0] sm:$0xff]
      %v3751 = vld [vmem:[%s1708 + $0xf0] sm:$0xff]
      %v3752 = vld [vmem:[%s1708 + $0xf8] sm:$0xff]
      %v3753 = vld [vmem:[%s1708 + $0x108] sm:$0xff]
      %v3754 = vld [vmem:[%s1708 + $0x110] sm:$0xff]
      %v3755 = vld [vmem:[%s1708 + $0x120] sm:$0xff]
      %v3756 = vld [vmem:[%s1708 + $0x128] sm:$0xff]
      %v3757 = vld [vmem:[%s1708 + $0x138] sm:$0xff]
      %v3758 = vld [vmem:[%s1708 + $0x140] sm:$0xff]
      %v3759 = vld [vmem:[%s1708 + $0x150] sm:$0xff]
      %v3760 = vld [vmem:[%s1708 + $0x158] sm:$0xff]
      %v3761 = vld [vmem:[%s1708 + $0x168] sm:$0xff]
      %v3762 = vld [vmem:[%s1708 + $0x170] sm:$0xff]
      %v3763 = vld [vmem:[%s1708 + $0x1] sm:$0xff]
      %v3764 = vld [vmem:[%s1708 + $0x9] sm:$0xff]
      %v3765 = vld [vmem:[%s1708 + $0x19] sm:$0xff]
      %v3766 = vld [vmem:[%s1708 + $0x21] sm:$0xff]
      %v3767 = vld [vmem:[%s1708 + $0x31] sm:$0xff]
      %v3768 = vld [vmem:[%s1708 + $0x39] sm:$0xff]
      %v3769 = vld [vmem:[%s1708 + $0x49] sm:$0xff]
      %v3770 = vld [vmem:[%s1708 + $0x51] sm:$0xff]
      %v3771 = vld [vmem:[%s1708 + $0x61] sm:$0xff]
      %v3772 = vld [vmem:[%s1708 + $0x69] sm:$0xff]
      %v3773 = vld [vmem:[%s1708 + $0x79] sm:$0xff]
      %v3774 = vld [vmem:[%s1708 + $0x81] sm:$0xff]
      %v3775 = vld [vmem:[%s1708 + $0x91] sm:$0xff]
      %v3776 = vld [vmem:[%s1708 + $0x99] sm:$0xff]
      %v3777 = vld [vmem:[%s1708 + $0xa9] sm:$0xff]
      %v3778 = vld [vmem:[%s1708 + $0xb1] sm:$0xff]
      %v3779 = vld [vmem:[%s1708 + $0xc1] sm:$0xff]
      %v3780 = vld [vmem:[%s1708 + $0xc9] sm:$0xff]
      %v3781 = vld [vmem:[%s1708 + $0xd9] sm:$0xff]
      %v3782 = vld [vmem:[%s1708 + $0xe1] sm:$0xff]
      %v3783 = vld [vmem:[%s1708 + $0xf1] sm:$0xff]
      %v3784 = vld [vmem:[%s1708 + $0xf9] sm:$0xff]
      %v3785 = vld [vmem:[%s1708 + $0x109] sm:$0xff]
      %v3786 = vld [vmem:[%s1708 + $0x111] sm:$0xff]
      %v3787 = vld [vmem:[%s1708 + $0x121] sm:$0xff]
      %v3788 = vld [vmem:[%s1708 + $0x129] sm:$0xff]
      %v3789 = vld [vmem:[%s1708 + $0x139] sm:$0xff]
      %v3790 = vld [vmem:[%s1708 + $0x141] sm:$0xff]
      %v3791 = vld [vmem:[%s1708 + $0x151] sm:$0xff]
      %v3792 = vld [vmem:[%s1708 + $0x159] sm:$0xff]
      %v3793 = vld [vmem:[%s1708 + $0x169] sm:$0xff]
      %v3794 = vld [vmem:[%s1708 + $0x171] sm:$0xff]
      %v3795 = vld [vmem:[%s1708 + $0x2] sm:$0xff]
      %v3796 = vld [vmem:[%s1708 + $0xa] sm:$0xff]
      %v3797 = vld [vmem:[%s1708 + $0x1a] sm:$0xff]
      %v3798 = vld [vmem:[%s1708 + $0x22] sm:$0xff]
      %v3799 = vld [vmem:[%s1708 + $0x32] sm:$0xff]
      %v3800 = vld [vmem:[%s1708 + $0x3a] sm:$0xff]
      %v3801 = vld [vmem:[%s1708 + $0x4a] sm:$0xff]
      %v3802 = vld [vmem:[%s1708 + $0x52] sm:$0xff]
      %v3803 = vld [vmem:[%s1708 + $0x62] sm:$0xff]
      %v3804 = vld [vmem:[%s1708 + $0x6a] sm:$0xff]
      %v3805 = vld [vmem:[%s1708 + $0x7a] sm:$0xff]
      %v3806 = vld [vmem:[%s1708 + $0x82] sm:$0xff]
      %v3807 = vld [vmem:[%s1708 + $0x92] sm:$0xff]
      %v3808 = vld [vmem:[%s1708 + $0x9a] sm:$0xff]
      %v3809 = vld [vmem:[%s1708 + $0xaa] sm:$0xff]
      %v3810 = vld [vmem:[%s1708 + $0xb2] sm:$0xff]
      %v3811 = vld [vmem:[%s1708 + $0xc2] sm:$0xff]
      %v3812 = vld [vmem:[%s1708 + $0xca] sm:$0xff]
      %v3813 = vld [vmem:[%s1708 + $0xda] sm:$0xff]
      %v3814 = vld [vmem:[%s1708 + $0xe2] sm:$0xff]
      %v3815 = vld [vmem:[%s1708 + $0xf2] sm:$0xff]
      %v3816 = vld [vmem:[%s1708 + $0xfa] sm:$0xff]
      %v3817 = vld [vmem:[%s1708 + $0x10a] sm:$0xff]
      %v3818 = vld [vmem:[%s1708 + $0x112] sm:$0xff]
      %v3819 = vld [vmem:[%s1708 + $0x122] sm:$0xff]
      %v3820 = vld [vmem:[%s1708 + $0x12a] sm:$0xff]
      %v3821 = vld [vmem:[%s1708 + $0x13a] sm:$0xff]
      %v3822 = vld [vmem:[%s1708 + $0x142] sm:$0xff]
      %v3823 = vld [vmem:[%s1708 + $0x152] sm:$0xff]
      %v3824 = vld [vmem:[%s1708 + $0x15a] sm:$0xff]
      %v3825 = vld [vmem:[%s1708 + $0x16a] sm:$0xff]
      %v3826 = vld [vmem:[%s1708 + $0x172] sm:$0xff]
      %3859 = vrot.lane.b32.xlu0 %v3763, 8
      %v3860 = vpop.permute.xlu0 %3859
      %3861 = vrot.lane.b32.xlu0 %v3764, 8
      %v3862 = vpop.permute.xlu0 %3861
      %3863 = vrot.lane.b32.xlu0 %v3765, 8
      %v3864 = vpop.permute.xlu0 %3863
      %3865 = vrot.lane.b32.xlu0 %v3766, 8
      %v3866 = vpop.permute.xlu0 %3865
      %3867 = vrot.lane.b32.xlu0 %v3767, 8
      %v3868 = vpop.permute.xlu0 %3867
      %3869 = vrot.lane.b32.xlu0 %v3768, 8
      %v3870 = vpop.permute.xlu0 %3869
      %3871 = vrot.lane.b32.xlu0 %v3769, 8
      %v3872 = vpop.permute.xlu0 %3871
      %3873 = vrot.lane.b32.xlu0 %v3770, 8
      %v3874 = vpop.permute.xlu0 %3873
      %3875 = vrot.lane.b32.xlu0 %v3771, 8
      %v3876 = vpop.permute.xlu0 %3875
      %3877 = vrot.lane.b32.xlu0 %v3772, 8
      %v3878 = vpop.permute.xlu0 %3877
      %3879 = vrot.lane.b32.xlu0 %v3773, 8
      %v3880 = vpop.permute.xlu0 %3879
      %3881 = vrot.lane.b32.xlu0 %v3774, 8
      %v3882 = vpop.permute.xlu0 %3881
      %3883 = vrot.lane.b32.xlu0 %v3775, 8
      %v3884 = vpop.permute.xlu0 %3883
      %3885 = vrot.lane.b32.xlu0 %v3776, 8
      %v3886 = vpop.permute.xlu0 %3885
      %3887 = vrot.lane.b32.xlu0 %v3777, 8
      %v3888 = vpop.permute.xlu0 %3887
      %3889 = vrot.lane.b32.xlu0 %v3778, 8
      %v3890 = vpop.permute.xlu0 %3889
      %3891 = vrot.lane.b32.xlu0 %v3779, 8
      %v3892 = vpop.permute.xlu0 %3891
      %3893 = vrot.lane.b32.xlu0 %v3780, 8
      %v3894 = vpop.permute.xlu0 %3893
      %3895 = vrot.lane.b32.xlu0 %v3781, 8
      %v3896 = vpop.permute.xlu0 %3895
      %3897 = vrot.lane.b32.xlu0 %v3782, 8
      %v3898 = vpop.permute.xlu0 %3897
      %3899 = vrot.lane.b32.xlu0 %v3783, 8
      %v3900 = vpop.permute.xlu0 %3899
      %3901 = vrot.lane.b32.xlu0 %v3784, 8
      %v3902 = vpop.permute.xlu0 %3901
      %3903 = vrot.lane.b32.xlu0 %v3785, 8
      %v3904 = vpop.permute.xlu0 %3903
      %3905 = vrot.lane.b32.xlu0 %v3786, 8
      %v3906 = vpop.permute.xlu0 %3905
      %3907 = vrot.lane.b32.xlu0 %v3787, 8
      %v3908 = vpop.permute.xlu0 %3907
      %3909 = vrot.lane.b32.xlu0 %v3788, 8
      %v3910 = vpop.permute.xlu0 %3909
      %3911 = vrot.lane.b32.xlu0 %v3789, 8
      %v3912 = vpop.permute.xlu0 %3911
      %3913 = vrot.lane.b32.xlu0 %v3790, 8
      %v3914 = vpop.permute.xlu0 %3913
      %3915 = vrot.lane.b32.xlu0 %v3791, 8
      %v3916 = vpop.permute.xlu0 %3915
      %3917 = vrot.lane.b32.xlu0 %v3792, 8
      %v3918 = vpop.permute.xlu0 %3917
      %3919 = vrot.lane.b32.xlu0 %v3793, 8
      %v3920 = vpop.permute.xlu0 %3919
      %3921 = vrot.lane.b32.xlu0 %v3794, 8
      %v3922 = vpop.permute.xlu0 %3921
      %3987 = vrot.lane.b32.xlu0 %v3795, 16
      %v3988 = vpop.permute.xlu0 %3987
      %3989 = vrot.lane.b32.xlu0 %v3796, 16
      %v3990 = vpop.permute.xlu0 %3989
      %3991 = vrot.lane.b32.xlu0 %v3797, 16
      %v3992 = vpop.permute.xlu0 %3991
      %3993 = vrot.lane.b32.xlu0 %v3798, 16
      %v3994 = vpop.permute.xlu0 %3993
      %3995 = vrot.lane.b32.xlu0 %v3799, 16
      %v3996 = vpop.permute.xlu0 %3995
      %3997 = vrot.lane.b32.xlu0 %v3800, 16
      %v3998 = vpop.permute.xlu0 %3997
      %3999 = vrot.lane.b32.xlu0 %v3801, 16
      %v4000 = vpop.permute.xlu0 %3999
      %4001 = vrot.lane.b32.xlu0 %v3802, 16
      %v4002 = vpop.permute.xlu0 %4001
      %4003 = vrot.lane.b32.xlu0 %v3803, 16
      %v4004 = vpop.permute.xlu0 %4003
      %4005 = vrot.lane.b32.xlu0 %v3804, 16
      %v4006 = vpop.permute.xlu0 %4005
      %4007 = vrot.lane.b32.xlu0 %v3805, 16
      %v4008 = vpop.permute.xlu0 %4007
      %4009 = vrot.lane.b32.xlu0 %v3806, 16
      %v4010 = vpop.permute.xlu0 %4009
      %4011 = vrot.lane.b32.xlu0 %v3807, 16
      %v4012 = vpop.permute.xlu0 %4011
      %4013 = vrot.lane.b32.xlu0 %v3808, 16
      %v4014 = vpop.permute.xlu0 %4013
      %4015 = vrot.lane.b32.xlu0 %v3809, 16
      %v4016 = vpop.permute.xlu0 %4015
      %4017 = vrot.lane.b32.xlu0 %v3810, 16
      %v4018 = vpop.permute.xlu0 %4017
      %4019 = vrot.lane.b32.xlu0 %v3811, 16
      %v4020 = vpop.permute.xlu0 %4019
      %4021 = vrot.lane.b32.xlu0 %v3812, 16
      %v4022 = vpop.permute.xlu0 %4021
      %4023 = vrot.lane.b32.xlu0 %v3813, 16
      %v4024 = vpop.permute.xlu0 %4023
      %4025 = vrot.lane.b32.xlu0 %v3814, 16
      %v4026 = vpop.permute.xlu0 %4025
      %4027 = vrot.lane.b32.xlu0 %v3815, 16
      %v4028 = vpop.permute.xlu0 %4027
      %4029 = vrot.lane.b32.xlu0 %v3816, 16
      %v4030 = vpop.permute.xlu0 %4029
      %4031 = vrot.lane.b32.xlu0 %v3817, 16
      %v4032 = vpop.permute.xlu0 %4031
      %4033 = vrot.lane.b32.xlu0 %v3818, 16
      %v4034 = vpop.permute.xlu0 %4033
      %4035 = vrot.lane.b32.xlu0 %v3819, 16
      %v4036 = vpop.permute.xlu0 %4035
      %4037 = vrot.lane.b32.xlu0 %v3820, 16
      %v4038 = vpop.permute.xlu0 %4037
      %4039 = vrot.lane.b32.xlu0 %v3821, 16
      %v4040 = vpop.permute.xlu0 %4039
      %4041 = vrot.lane.b32.xlu0 %v3822, 16
      %v4042 = vpop.permute.xlu0 %4041
      %4043 = vrot.lane.b32.xlu0 %v3823, 16
      %v4044 = vpop.permute.xlu0 %4043
      %4045 = vrot.lane.b32.xlu0 %v3824, 16
      %v4046 = vpop.permute.xlu0 %4045
      %4047 = vrot.lane.b32.xlu0 %v3825, 16
      %v4048 = vpop.permute.xlu0 %4047
      %4049 = vrot.lane.b32.xlu0 %v3826, 16
      %v4050 = vpop.permute.xlu0 %4049
      %v4083 = vsel %vm333, %v3731, %v3860
      %v4084 = vsel %vm333, %v3732, %v3862
      %v4085 = vsel %vm333, %v3733, %v3864
      %v4086 = vsel %vm333, %v3734, %v3866
      %v4087 = vsel %vm333, %v3735, %v3868
      %v4088 = vsel %vm333, %v3736, %v3870
      %v4089 = vsel %vm333, %v3737, %v3872
      %v4090 = vsel %vm333, %v3738, %v3874
      %v4091 = vsel %vm333, %v3739, %v3876
      %v4092 = vsel %vm333, %v3740, %v3878
      %v4093 = vsel %vm333, %v3741, %v3880
      %v4094 = vsel %vm333, %v3742, %v3882
      %v4095 = vsel %vm333, %v3743, %v3884
      %v4096 = vsel %vm333, %v3744, %v3886
      %v4097 = vsel %vm333, %v3745, %v3888
      %v4098 = vsel %vm333, %v3746, %v3890
      %v4099 = vsel %vm333, %v3747, %v3892
      %v4100 = vsel %vm333, %v3748, %v3894
      %v4101 = vsel %vm333, %v3749, %v3896
      %v4102 = vsel %vm333, %v3750, %v3898
      %v4103 = vsel %vm333, %v3751, %v3900
      %v4104 = vsel %vm333, %v3752, %v3902
      %v4105 = vsel %vm333, %v3753, %v3904
      %v4106 = vsel %vm333, %v3754, %v3906
      %v4107 = vsel %vm333, %v3755, %v3908
      %v4108 = vsel %vm333, %v3756, %v3910
      %v4109 = vsel %vm333, %v3757, %v3912
      %v4110 = vsel %vm333, %v3758, %v3914
      %v4111 = vsel %vm333, %v3759, %v3916
      %v4112 = vsel %vm333, %v3760, %v3918
      %v4113 = vsel %vm333, %v3761, %v3920
      %v4114 = vsel %vm333, %v3762, %v3922
      %v4115 = vsel %vm2856, %v4083, %v3988
      %v4116 = vsel %vm2856, %v4084, %v3990
      %v4117 = vsel %vm2856, %v4085, %v3992
      %v4118 = vsel %vm2856, %v4086, %v3994
      %v4119 = vsel %vm2856, %v4087, %v3996
      %v4120 = vsel %vm2856, %v4088, %v3998
      %v4121 = vsel %vm2856, %v4089, %v4000
      %v4122 = vsel %vm2856, %v4090, %v4002
      %v4123 = vsel %vm2856, %v4091, %v4004
      %v4124 = vsel %vm2856, %v4092, %v4006
      %v4125 = vsel %vm2856, %v4093, %v4008
      %v4126 = vsel %vm2856, %v4094, %v4010
      %v4127 = vsel %vm2856, %v4095, %v4012
      %v4128 = vsel %vm2856, %v4096, %v4014
      %v4129 = vsel %vm2856, %v4097, %v4016
      %v4130 = vsel %vm2856, %v4098, %v4018
      %v4131 = vsel %vm2856, %v4099, %v4020
      %v4132 = vsel %vm2856, %v4100, %v4022
      %v4133 = vsel %vm2856, %v4101, %v4024
      %v4134 = vsel %vm2856, %v4102, %v4026
      %v4135 = vsel %vm2856, %v4103, %v4028
      %v4136 = vsel %vm2856, %v4104, %v4030
      %v4137 = vsel %vm2856, %v4105, %v4032
      %v4138 = vsel %vm2856, %v4106, %v4034
      %v4139 = vsel %vm2856, %v4107, %v4036
      %v4140 = vsel %vm2856, %v4108, %v4038
      %v4141 = vsel %vm2856, %v4109, %v4040
      %v4142 = vsel %vm2856, %v4110, %v4042
      %v4143 = vsel %vm2856, %v4111, %v4044
      %v4144 = vsel %vm2856, %v4112, %v4046
      %v4145 = vsel %vm2856, %v4113, %v4048
      %v4146 = vsel %vm2856, %v4114, %v4050
      %s4147 = scalar_lea.vmem %s3, 48
      %v4148 = vld [vmem:[%s4147] sm:$0xff]
      %v4149 = vld [vmem:[%s4147 + $0x8] sm:$0xff]
      %v4150 = vld [vmem:[%s4147 + $0x10] sm:$0xff]
      %v4152 = vsel %vm3312, %v4115, 0
      %v4155 = vsel %vm3312, %v4116, 0
      %v4158 = vsel %vm3312, %v4117, 0
      %v4161 = vsel %vm3312, %v4118, 0
      %v4164 = vsel %vm3312, %v4119, 0
      %v4167 = vsel %vm3312, %v4120, 0
      %v4170 = vsel %vm3312, %v4121, 0
      %v4173 = vsel %vm3312, %v4122, 0
      %v4176 = vsel %vm3312, %v4123, 0
      %v4179 = vsel %vm3312, %v4124, 0
      %v4182 = vsel %vm3312, %v4125, 0
      %v4185 = vsel %vm3312, %v4126, 0
      %v4188 = vsel %vm3312, %v4127, 0
      %v4191 = vsel %vm3312, %v4128, 0
      %v4194 = vsel %vm3312, %v4129, 0
      %v4197 = vsel %vm3312, %v4130, 0
      %v4200 = vsel %vm3312, %v4131, 0
      %v4203 = vsel %vm3312, %v4132, 0
      %v4206 = vsel %vm3312, %v4133, 0
      %v4209 = vsel %vm3312, %v4134, 0
      %v4212 = vsel %vm3312, %v4135, 0
      %v4215 = vsel %vm3312, %v4136, 0
      %v4218 = vsel %vm3312, %v4137, 0
      %v4221 = vsel %vm3312, %v4138, 0
      %v4224 = vsel %vm3312, %v4139, 0
      %v4227 = vsel %vm3312, %v4140, 0
      %v4230 = vsel %vm3312, %v4141, 0
      %v4233 = vsel %vm3312, %v4142, 0
      %v4236 = vsel %vm3312, %v4143, 0
      %v4239 = vsel %vm3312, %v4144, 0
      %v4242 = vsel %vm3312, %v4145, 0
      %v4245 = vsel %vm3312, %v4146, 0
      %4247 = vmatpush.msra.mxu0 0.0
      %4248 = vmatpush.msra.mxu0 0.0
      %4249 = vmatpush.msra.mxu0 0.0
      %4250 = vmatpush.msra.mxu0 0.0
      %4251 = vmatpush.msra.mxu0 0.0
      %4252 = vmatpush.msra.mxu0 0.0
      %4253 = vmatpush.msra.mxu0 0.0
      %4254 = vmatpush.msra.mxu0 0.0
      %4255 = vmatpush.msra.mxu0 0.0
      %4256 = vmatpush.msra.mxu0 0.0
      %4257 = vmatpush.msra.mxu0 0.0
      %4258 = vmatpush.msra.mxu0 0.0
      %4259 = vmatpush.msra.mxu0 0.0
      %4260 = vmatpush.msra.mxu0 %v4150
      %4261 = vmatpush.msra.mxu0 %v4149
      %4262 = vmatpush.msra.mxu0 %v4148
      %4263 = vmatmul.f32.gmra.mxu0 %v4152
      %v4264 = vpop.f32.mrf.mxu0
      %v4265 = vadd.f32 0.0, %v4264
      %4266 = vmatmul.f32.gmra.mxu0 %v4155
      %v4267 = vpop.f32.mrf.mxu0
      %v4268 = vadd.f32 0.0, %v4267
      %4269 = vmatmul.f32.gmra.mxu0 %v4158
      %v4270 = vpop.f32.mrf.mxu0
      %v4271 = vadd.f32 0.0, %v4270
      %4272 = vmatmul.f32.gmra.mxu0 %v4161
      %v4273 = vpop.f32.mrf.mxu0
      %v4274 = vadd.f32 0.0, %v4273
      %4275 = vmatmul.f32.gmra.mxu0 %v4164
      %v4276 = vpop.f32.mrf.mxu0
      %v4277 = vadd.f32 0.0, %v4276
      %4278 = vmatmul.f32.gmra.mxu0 %v4167
      %v4279 = vpop.f32.mrf.mxu0
      %v4280 = vadd.f32 0.0, %v4279
      %4281 = vmatmul.f32.gmra.mxu0 %v4170
      %v4282 = vpop.f32.mrf.mxu0
      %v4283 = vadd.f32 0.0, %v4282
      %4284 = vmatmul.f32.gmra.mxu0 %v4173
      %v4285 = vpop.f32.mrf.mxu0
      %v4286 = vadd.f32 0.0, %v4285
      %4287 = vmatmul.f32.gmra.mxu0 %v4176
      %v4288 = vpop.f32.mrf.mxu0
      %v4289 = vadd.f32 0.0, %v4288
      %4290 = vmatmul.f32.gmra.mxu0 %v4179
      %v4291 = vpop.f32.mrf.mxu0
      %v4292 = vadd.f32 0.0, %v4291
      %4293 = vmatmul.f32.gmra.mxu0 %v4182
      %v4294 = vpop.f32.mrf.mxu0
      %v4295 = vadd.f32 0.0, %v4294
      %4296 = vmatmul.f32.gmra.mxu0 %v4185
      %v4297 = vpop.f32.mrf.mxu0
      %v4298 = vadd.f32 0.0, %v4297
      %4299 = vmatmul.f32.gmra.mxu0 %v4188
      %v4300 = vpop.f32.mrf.mxu0
      %v4301 = vadd.f32 0.0, %v4300
      %4302 = vmatmul.f32.gmra.mxu0 %v4191
      %v4303 = vpop.f32.mrf.mxu0
      %v4304 = vadd.f32 0.0, %v4303
      %4305 = vmatmul.f32.gmra.mxu0 %v4194
      %v4306 = vpop.f32.mrf.mxu0
      %v4307 = vadd.f32 0.0, %v4306
      %4308 = vmatmul.f32.gmra.mxu0 %v4197
      %v4309 = vpop.f32.mrf.mxu0
      %v4310 = vadd.f32 0.0, %v4309
      %4311 = vmatmul.f32.gmra.mxu0 %v4200
      %v4312 = vpop.f32.mrf.mxu0
      %v4313 = vadd.f32 0.0, %v4312
      %4314 = vmatmul.f32.gmra.mxu0 %v4203
      %v4315 = vpop.f32.mrf.mxu0
      %v4316 = vadd.f32 0.0, %v4315
      %4317 = vmatmul.f32.gmra.mxu0 %v4206
      %v4318 = vpop.f32.mrf.mxu0
      %v4319 = vadd.f32 0.0, %v4318
      %4320 = vmatmul.f32.gmra.mxu0 %v4209
      %v4321 = vpop.f32.mrf.mxu0
      %v4322 = vadd.f32 0.0, %v4321
      %4323 = vmatmul.f32.gmra.mxu0 %v4212
      %v4324 = vpop.f32.mrf.mxu0
      %v4325 = vadd.f32 0.0, %v4324
      %4326 = vmatmul.f32.gmra.mxu0 %v4215
      %v4327 = vpop.f32.mrf.mxu0
      %v4328 = vadd.f32 0.0, %v4327
      %4329 = vmatmul.f32.gmra.mxu0 %v4218
      %v4330 = vpop.f32.mrf.mxu0
      %v4331 = vadd.f32 0.0, %v4330
      %4332 = vmatmul.f32.gmra.mxu0 %v4221
      %v4333 = vpop.f32.mrf.mxu0
      %v4334 = vadd.f32 0.0, %v4333
      %4335 = vmatmul.f32.gmra.mxu0 %v4224
      %v4336 = vpop.f32.mrf.mxu0
      %v4337 = vadd.f32 0.0, %v4336
      %4338 = vmatmul.f32.gmra.mxu0 %v4227
      %v4339 = vpop.f32.mrf.mxu0
      %v4340 = vadd.f32 0.0, %v4339
      %4341 = vmatmul.f32.gmra.mxu0 %v4230
      %v4342 = vpop.f32.mrf.mxu0
      %v4343 = vadd.f32 0.0, %v4342
      %4344 = vmatmul.f32.gmra.mxu0 %v4233
      %v4345 = vpop.f32.mrf.mxu0
      %v4346 = vadd.f32 0.0, %v4345
      %4347 = vmatmul.f32.gmra.mxu0 %v4236
      %v4348 = vpop.f32.mrf.mxu0
      %v4349 = vadd.f32 0.0, %v4348
      %4350 = vmatmul.f32.gmra.mxu0 %v4239
      %v4351 = vpop.f32.mrf.mxu0
      %v4352 = vadd.f32 0.0, %v4351
      %4353 = vmatmul.f32.gmra.mxu0 %v4242
      %v4354 = vpop.f32.mrf.mxu0
      %v4355 = vadd.f32 0.0, %v4354
      %4356 = vmatmul.f32.gmra.mxu0 %v4245
      %v4357 = vpop.f32.mrf.mxu0
      %v4358 = vadd.f32 0.0, %v4357
      %4359 = vdwg.mxu0
      %v4360 = vadd.f32 %v3636, %v4265
      %v4361 = vadd.f32 %v3639, %v4268
      %v4362 = vadd.f32 %v3642, %v4271
      %v4363 = vadd.f32 %v3645, %v4274
      %v4364 = vadd.f32 %v3648, %v4277
      %v4365 = vadd.f32 %v3651, %v4280
      %v4366 = vadd.f32 %v3654, %v4283
      %v4367 = vadd.f32 %v3657, %v4286
      %v4368 = vadd.f32 %v3660, %v4289
      %v4369 = vadd.f32 %v3663, %v4292
      %v4370 = vadd.f32 %v3666, %v4295
      %v4371 = vadd.f32 %v3669, %v4298
      %v4372 = vadd.f32 %v3672, %v4301
      %v4373 = vadd.f32 %v3675, %v4304
      %v4374 = vadd.f32 %v3678, %v4307
      %v4375 = vadd.f32 %v3681, %v4310
      %v4376 = vadd.f32 %v3684, %v4313
      %v4377 = vadd.f32 %v3687, %v4316
      %v4378 = vadd.f32 %v3690, %v4319
      %v4379 = vadd.f32 %v3693, %v4322
      %v4380 = vadd.f32 %v3696, %v4325
      %v4381 = vadd.f32 %v3699, %v4328
      %v4382 = vadd.f32 %v3702, %v4331
      %v4383 = vadd.f32 %v3705, %v4334
      %v4384 = vadd.f32 %v3708, %v4337
      %v4385 = vadd.f32 %v3711, %v4340
      %v4386 = vadd.f32 %v3714, %v4343
      %v4387 = vadd.f32 %v3717, %v4346
      %v4388 = vadd.f32 %v3720, %v4349
      %v4389 = vadd.f32 %v3723, %v4352
      %v4390 = vadd.f32 %v3726, %v4355
      %v4391 = vadd.f32 %v3729, %v4358
      %v4392 = vld [vmem:[%s4] sm:$0x1]
      %v4394 = vperm.slane %v4392, 0
      %v4396 = vadd.f32 %v4360, %v4394
      %v4397 = vadd.f32 %v4361, %v4394
      %v4398 = vadd.f32 %v4362, %v4394
      %v4399 = vadd.f32 %v4363, %v4394
      %v4400 = vadd.f32 %v4364, %v4394
      %v4401 = vadd.f32 %v4365, %v4394
      %v4402 = vadd.f32 %v4366, %v4394
      %v4403 = vadd.f32 %v4367, %v4394
      %v4404 = vadd.f32 %v4368, %v4394
      %v4405 = vadd.f32 %v4369, %v4394
      %v4406 = vadd.f32 %v4370, %v4394
      %v4407 = vadd.f32 %v4371, %v4394
      %v4408 = vadd.f32 %v4372, %v4394
      %v4409 = vadd.f32 %v4373, %v4394
      %v4410 = vadd.f32 %v4374, %v4394
      %v4411 = vadd.f32 %v4375, %v4394
      %v4412 = vadd.f32 %v4376, %v4394
      %v4413 = vadd.f32 %v4377, %v4394
      %v4414 = vadd.f32 %v4378, %v4394
      %v4415 = vadd.f32 %v4379, %v4394
      %v4416 = vadd.f32 %v4380, %v4394
      %v4417 = vadd.f32 %v4381, %v4394
      %v4418 = vadd.f32 %v4382, %v4394
      %v4419 = vadd.f32 %v4383, %v4394
      %v4420 = vadd.f32 %v4384, %v4394
      %v4421 = vadd.f32 %v4385, %v4394
      %v4422 = vadd.f32 %v4386, %v4394
      %v4423 = vadd.f32 %v4387, %v4394
      %v4424 = vadd.f32 %v4388, %v4394
      %v4425 = vadd.f32 %v4389, %v4394
      %v4426 = vadd.f32 %v4390, %v4394
      %v4427 = vadd.f32 %v4391, %v4394
      %v4428 = vmax.f32 %v4396, 0.0
      %v4429 = vmax.f32 %v4397, 0.0
      %v4430 = vmax.f32 %v4398, 0.0
      %v4431 = vmax.f32 %v4399, 0.0
      %v4432 = vmax.f32 %v4400, 0.0
      %v4433 = vmax.f32 %v4401, 0.0
      %v4434 = vmax.f32 %v4402, 0.0
      %v4435 = vmax.f32 %v4403, 0.0
      %v4436 = vmax.f32 %v4404, 0.0
      %v4437 = vmax.f32 %v4405, 0.0
      %v4438 = vmax.f32 %v4406, 0.0
      %v4439 = vmax.f32 %v4407, 0.0
      %v4440 = vmax.f32 %v4408, 0.0
      %v4441 = vmax.f32 %v4409, 0.0
      %v4442 = vmax.f32 %v4410, 0.0
      %v4443 = vmax.f32 %v4411, 0.0
      %v4444 = vmax.f32 %v4412, 0.0
      %v4445 = vmax.f32 %v4413, 0.0
      %v4446 = vmax.f32 %v4414, 0.0
      %v4447 = vmax.f32 %v4415, 0.0
      %v4448 = vmax.f32 %v4416, 0.0
      %v4449 = vmax.f32 %v4417, 0.0
      %v4450 = vmax.f32 %v4418, 0.0
      %v4451 = vmax.f32 %v4419, 0.0
      %v4452 = vmax.f32 %v4420, 0.0
      %v4453 = vmax.f32 %v4421, 0.0
      %v4454 = vmax.f32 %v4422, 0.0
      %v4455 = vmax.f32 %v4423, 0.0
      %v4456 = vmax.f32 %v4424, 0.0
      %v4457 = vmax.f32 %v4425, 0.0
      %v4458 = vmax.f32 %v4426, 0.0
      %v4459 = vmax.f32 %v4427, 0.0
      %4460 = vst.msk [vmem:[%s411 + $0x1] sm:$0xff] %vm333, %v4428
      %4461 = vst.msk [vmem:[%s411 + $0x9] sm:$0xff] %vm333, %v4429
      %4462 = vst.msk [vmem:[%s411 + $0x19] sm:$0xff] %vm333, %v4430
      %4463 = vst.msk [vmem:[%s411 + $0x21] sm:$0xff] %vm333, %v4431
      %4464 = vst.msk [vmem:[%s411 + $0x31] sm:$0xff] %vm333, %v4432
      %4465 = vst.msk [vmem:[%s411 + $0x39] sm:$0xff] %vm333, %v4433
      %4466 = vst.msk [vmem:[%s411 + $0x49] sm:$0xff] %vm333, %v4434
      %4467 = vst.msk [vmem:[%s411 + $0x51] sm:$0xff] %vm333, %v4435
      %4468 = vst.msk [vmem:[%s411 + $0x61] sm:$0xff] %vm333, %v4436
      %4469 = vst.msk [vmem:[%s411 + $0x69] sm:$0xff] %vm333, %v4437
      %4470 = vst.msk [vmem:[%s411 + $0x79] sm:$0xff] %vm333, %v4438
      %4471 = vst.msk [vmem:[%s411 + $0x81] sm:$0xff] %vm333, %v4439
      %4472 = vst.msk [vmem:[%s411 + $0x91] sm:$0xff] %vm333, %v4440
      %4473 = vst.msk [vmem:[%s411 + $0x99] sm:$0xff] %vm333, %v4441
      %4474 = vst.msk [vmem:[%s411 + $0xa9] sm:$0xff] %vm333, %v4442
      %4475 = vst.msk [vmem:[%s411 + $0xb1] sm:$0xff] %vm333, %v4443
      %4476 = vst.msk [vmem:[%s411 + $0xc1] sm:$0xff] %vm333, %v4444
      %4477 = vst.msk [vmem:[%s411 + $0xc9] sm:$0xff] %vm333, %v4445
      %4478 = vst.msk [vmem:[%s411 + $0xd9] sm:$0xff] %vm333, %v4446
      %4479 = vst.msk [vmem:[%s411 + $0xe1] sm:$0xff] %vm333, %v4447
      %4480 = vst.msk [vmem:[%s411 + $0xf1] sm:$0xff] %vm333, %v4448
      %4481 = vst.msk [vmem:[%s411 + $0xf9] sm:$0xff] %vm333, %v4449
      %4482 = vst.msk [vmem:[%s411 + $0x109] sm:$0xff] %vm333, %v4450
      %4483 = vst.msk [vmem:[%s411 + $0x111] sm:$0xff] %vm333, %v4451
      %4484 = vst.msk [vmem:[%s411 + $0x121] sm:$0xff] %vm333, %v4452
      %4485 = vst.msk [vmem:[%s411 + $0x129] sm:$0xff] %vm333, %v4453
      %4486 = vst.msk [vmem:[%s411 + $0x139] sm:$0xff] %vm333, %v4454
      %4487 = vst.msk [vmem:[%s411 + $0x141] sm:$0xff] %vm333, %v4455
      %4488 = vst.msk [vmem:[%s411 + $0x151] sm:$0xff] %vm333, %v4456
      %4489 = vst.msk [vmem:[%s411 + $0x159] sm:$0xff] %vm333, %v4457
      %4490 = vst.msk [vmem:[%s411 + $0x169] sm:$0xff] %vm333, %v4458
      %4491 = vst.msk [vmem:[%s411 + $0x171] sm:$0xff] %vm333, %v4459
      %v4492 = vld [vmem:[#allocation2] sm:$0xff]
      %v4493 = vld [vmem:[#allocation2 + $0x8] sm:$0xff]
      %v4494 = vld [vmem:[#allocation2 + $0x18] sm:$0xff]
      %v4495 = vld [vmem:[#allocation2 + $0x20] sm:$0xff]
      %v4496 = vld [vmem:[#allocation2 + $0x30] sm:$0xff]
      %v4497 = vld [vmem:[#allocation2 + $0x38] sm:$0xff]
      %v4498 = vld [vmem:[#allocation2 + $0x48] sm:$0xff]
      %v4499 = vld [vmem:[#allocation2 + $0x50] sm:$0xff]
      %v4500 = vld [vmem:[#allocation2 + $0x60] sm:$0xff]
      %v4501 = vld [vmem:[#allocation2 + $0x68] sm:$0xff]
      %v4502 = vld [vmem:[#allocation2 + $0x78] sm:$0xff]
      %v4503 = vld [vmem:[#allocation2 + $0x80] sm:$0xff]
      %v4504 = vld [vmem:[#allocation2 + $0x90] sm:$0xff]
      %v4505 = vld [vmem:[#allocation2 + $0x98] sm:$0xff]
      %v4506 = vld [vmem:[#allocation2 + $0xa8] sm:$0xff]
      %v4507 = vld [vmem:[#allocation2 + $0xb0] sm:$0xff]
      %v4508 = vld [vmem:[#allocation2 + $0xc0] sm:$0xff]
      %v4509 = vld [vmem:[#allocation2 + $0xc8] sm:$0xff]
      %v4510 = vld [vmem:[#allocation2 + $0xd8] sm:$0xff]
      %v4511 = vld [vmem:[#allocation2 + $0xe0] sm:$0xff]
      %v4512 = vld [vmem:[#allocation2 + $0xf0] sm:$0xff]
      %v4513 = vld [vmem:[#allocation2 + $0xf8] sm:$0xff]
      %v4514 = vld [vmem:[#allocation2 + $0x108] sm:$0xff]
      %v4515 = vld [vmem:[#allocation2 + $0x110] sm:$0xff]
      %v4516 = vld [vmem:[#allocation2 + $0x120] sm:$0xff]
      %v4517 = vld [vmem:[#allocation2 + $0x128] sm:$0xff]
      %v4518 = vld [vmem:[#allocation2 + $0x138] sm:$0xff]
      %v4519 = vld [vmem:[#allocation2 + $0x140] sm:$0xff]
      %v4520 = vld [vmem:[#allocation2 + $0x150] sm:$0xff]
      %v4521 = vld [vmem:[#allocation2 + $0x158] sm:$0xff]
      %v4522 = vld [vmem:[#allocation2 + $0x168] sm:$0xff]
      %v4523 = vld [vmem:[#allocation2 + $0x170] sm:$0xff]
      %v4524 = vld [vmem:[#allocation2 + $0x1] sm:$0xff]
      %v4525 = vld [vmem:[#allocation2 + $0x9] sm:$0xff]
      %v4526 = vld [vmem:[#allocation2 + $0x19] sm:$0xff]
      %v4527 = vld [vmem:[#allocation2 + $0x21] sm:$0xff]
      %v4528 = vld [vmem:[#allocation2 + $0x31] sm:$0xff]
      %v4529 = vld [vmem:[#allocation2 + $0x39] sm:$0xff]
      %v4530 = vld [vmem:[#allocation2 + $0x49] sm:$0xff]
      %v4531 = vld [vmem:[#allocation2 + $0x51] sm:$0xff]
      %v4532 = vld [vmem:[#allocation2 + $0x61] sm:$0xff]
      %v4533 = vld [vmem:[#allocation2 + $0x69] sm:$0xff]
      %v4534 = vld [vmem:[#allocation2 + $0x79] sm:$0xff]
      %v4535 = vld [vmem:[#allocation2 + $0x81] sm:$0xff]
      %v4536 = vld [vmem:[#allocation2 + $0x91] sm:$0xff]
      %v4537 = vld [vmem:[#allocation2 + $0x99] sm:$0xff]
      %v4538 = vld [vmem:[#allocation2 + $0xa9] sm:$0xff]
      %v4539 = vld [vmem:[#allocation2 + $0xb1] sm:$0xff]
      %v4540 = vld [vmem:[#allocation2 + $0xc1] sm:$0xff]
      %v4541 = vld [vmem:[#allocation2 + $0xc9] sm:$0xff]
      %v4542 = vld [vmem:[#allocation2 + $0xd9] sm:$0xff]
      %v4543 = vld [vmem:[#allocation2 + $0xe1] sm:$0xff]
      %v4544 = vld [vmem:[#allocation2 + $0xf1] sm:$0xff]
      %v4545 = vld [vmem:[#allocation2 + $0xf9] sm:$0xff]
      %v4546 = vld [vmem:[#allocation2 + $0x109] sm:$0xff]
      %v4547 = vld [vmem:[#allocation2 + $0x111] sm:$0xff]
      %v4548 = vld [vmem:[#allocation2 + $0x121] sm:$0xff]
      %v4549 = vld [vmem:[#allocation2 + $0x129] sm:$0xff]
      %v4550 = vld [vmem:[#allocation2 + $0x139] sm:$0xff]
      %v4551 = vld [vmem:[#allocation2 + $0x141] sm:$0xff]
      %v4552 = vld [vmem:[#allocation2 + $0x151] sm:$0xff]
      %v4553 = vld [vmem:[#allocation2 + $0x159] sm:$0xff]
      %v4554 = vld [vmem:[#allocation2 + $0x169] sm:$0xff]
      %v4555 = vld [vmem:[#allocation2 + $0x171] sm:$0xff]
      %v4556 = vld [vmem:[#allocation2 + $0x2] sm:$0xff]
      %v4557 = vld [vmem:[#allocation2 + $0xa] sm:$0xff]
      %v4558 = vld [vmem:[#allocation2 + $0x1a] sm:$0xff]
      %v4559 = vld [vmem:[#allocation2 + $0x22] sm:$0xff]
      %v4560 = vld [vmem:[#allocation2 + $0x32] sm:$0xff]
      %v4561 = vld [vmem:[#allocation2 + $0x3a] sm:$0xff]
      %v4562 = vld [vmem:[#allocation2 + $0x4a] sm:$0xff]
      %v4563 = vld [vmem:[#allocation2 + $0x52] sm:$0xff]
      %v4564 = vld [vmem:[#allocation2 + $0x62] sm:$0xff]
      %v4565 = vld [vmem:[#allocation2 + $0x6a] sm:$0xff]
      %v4566 = vld [vmem:[#allocation2 + $0x7a] sm:$0xff]
      %v4567 = vld [vmem:[#allocation2 + $0x82] sm:$0xff]
      %v4568 = vld [vmem:[#allocation2 + $0x92] sm:$0xff]
      %v4569 = vld [vmem:[#allocation2 + $0x9a] sm:$0xff]
      %v4570 = vld [vmem:[#allocation2 + $0xaa] sm:$0xff]
      %v4571 = vld [vmem:[#allocation2 + $0xb2] sm:$0xff]
      %v4572 = vld [vmem:[#allocation2 + $0xc2] sm:$0xff]
      %v4573 = vld [vmem:[#allocation2 + $0xca] sm:$0xff]
      %v4574 = vld [vmem:[#allocation2 + $0xda] sm:$0xff]
      %v4575 = vld [vmem:[#allocation2 + $0xe2] sm:$0xff]
      %v4576 = vld [vmem:[#allocation2 + $0xf2] sm:$0xff]
      %v4577 = vld [vmem:[#allocation2 + $0xfa] sm:$0xff]
      %v4578 = vld [vmem:[#allocation2 + $0x10a] sm:$0xff]
      %v4579 = vld [vmem:[#allocation2 + $0x112] sm:$0xff]
      %v4580 = vld [vmem:[#allocation2 + $0x122] sm:$0xff]
      %v4581 = vld [vmem:[#allocation2 + $0x12a] sm:$0xff]
      %v4582 = vld [vmem:[#allocation2 + $0x13a] sm:$0xff]
      %v4583 = vld [vmem:[#allocation2 + $0x142] sm:$0xff]
      %v4584 = vld [vmem:[#allocation2 + $0x152] sm:$0xff]
      %v4585 = vld [vmem:[#allocation2 + $0x15a] sm:$0xff]
      %v4586 = vld [vmem:[#allocation2 + $0x16a] sm:$0xff]
      %v4587 = vld [vmem:[#allocation2 + $0x172] sm:$0xff]
      %4620 = vrot.lane.b32.xlu0 %v4524, 8
      %v4621 = vpop.permute.xlu0 %4620
      %4622 = vrot.lane.b32.xlu0 %v4525, 8
      %v4623 = vpop.permute.xlu0 %4622
      %4624 = vrot.lane.b32.xlu0 %v4526, 8
      %v4625 = vpop.permute.xlu0 %4624
      %4626 = vrot.lane.b32.xlu0 %v4527, 8
      %v4627 = vpop.permute.xlu0 %4626
      %4628 = vrot.lane.b32.xlu0 %v4528, 8
      %v4629 = vpop.permute.xlu0 %4628
      %4630 = vrot.lane.b32.xlu0 %v4529, 8
      %v4631 = vpop.permute.xlu0 %4630
      %4632 = vrot.lane.b32.xlu0 %v4530, 8
      %v4633 = vpop.permute.xlu0 %4632
      %4634 = vrot.lane.b32.xlu0 %v4531, 8
      %v4635 = vpop.permute.xlu0 %4634
      %4636 = vrot.lane.b32.xlu0 %v4532, 8
      %v4637 = vpop.permute.xlu0 %4636
      %4638 = vrot.lane.b32.xlu0 %v4533, 8
      %v4639 = vpop.permute.xlu0 %4638
      %4640 = vrot.lane.b32.xlu0 %v4534, 8
      %v4641 = vpop.permute.xlu0 %4640
      %4642 = vrot.lane.b32.xlu0 %v4535, 8
      %v4643 = vpop.permute.xlu0 %4642
      %4644 = vrot.lane.b32.xlu0 %v4536, 8
      %v4645 = vpop.permute.xlu0 %4644
      %4646 = vrot.lane.b32.xlu0 %v4537, 8
      %v4647 = vpop.permute.xlu0 %4646
      %4648 = vrot.lane.b32.xlu0 %v4538, 8
      %v4649 = vpop.permute.xlu0 %4648
      %4650 = vrot.lane.b32.xlu0 %v4539, 8
      %v4651 = vpop.permute.xlu0 %4650
      %4652 = vrot.lane.b32.xlu0 %v4540, 8
      %v4653 = vpop.permute.xlu0 %4652
      %4654 = vrot.lane.b32.xlu0 %v4541, 8
      %v4655 = vpop.permute.xlu0 %4654
      %4656 = vrot.lane.b32.xlu0 %v4542, 8
      %v4657 = vpop.permute.xlu0 %4656
      %4658 = vrot.lane.b32.xlu0 %v4543, 8
      %v4659 = vpop.permute.xlu0 %4658
      %4660 = vrot.lane.b32.xlu0 %v4544, 8
      %v4661 = vpop.permute.xlu0 %4660
      %4662 = vrot.lane.b32.xlu0 %v4545, 8
      %v4663 = vpop.permute.xlu0 %4662
      %4664 = vrot.lane.b32.xlu0 %v4546, 8
      %v4665 = vpop.permute.xlu0 %4664
      %4666 = vrot.lane.b32.xlu0 %v4547, 8
      %v4667 = vpop.permute.xlu0 %4666
      %4668 = vrot.lane.b32.xlu0 %v4548, 8
      %v4669 = vpop.permute.xlu0 %4668
      %4670 = vrot.lane.b32.xlu0 %v4549, 8
      %v4671 = vpop.permute.xlu0 %4670
      %4672 = vrot.lane.b32.xlu0 %v4550, 8
      %v4673 = vpop.permute.xlu0 %4672
      %4674 = vrot.lane.b32.xlu0 %v4551, 8
      %v4675 = vpop.permute.xlu0 %4674
      %4676 = vrot.lane.b32.xlu0 %v4552, 8
      %v4677 = vpop.permute.xlu0 %4676
      %4678 = vrot.lane.b32.xlu0 %v4553, 8
      %v4679 = vpop.permute.xlu0 %4678
      %4680 = vrot.lane.b32.xlu0 %v4554, 8
      %v4681 = vpop.permute.xlu0 %4680
      %4682 = vrot.lane.b32.xlu0 %v4555, 8
      %v4683 = vpop.permute.xlu0 %4682
      %4748 = vrot.lane.b32.xlu0 %v4556, 16
      %v4749 = vpop.permute.xlu0 %4748
      %4750 = vrot.lane.b32.xlu0 %v4557, 16
      %v4751 = vpop.permute.xlu0 %4750
      %4752 = vrot.lane.b32.xlu0 %v4558, 16
      %v4753 = vpop.permute.xlu0 %4752
      %4754 = vrot.lane.b32.xlu0 %v4559, 16
      %v4755 = vpop.permute.xlu0 %4754
      %4756 = vrot.lane.b32.xlu0 %v4560, 16
      %v4757 = vpop.permute.xlu0 %4756
      %4758 = vrot.lane.b32.xlu0 %v4561, 16
      %v4759 = vpop.permute.xlu0 %4758
      %4760 = vrot.lane.b32.xlu0 %v4562, 16
      %v4761 = vpop.permute.xlu0 %4760
      %4762 = vrot.lane.b32.xlu0 %v4563, 16
      %v4763 = vpop.permute.xlu0 %4762
      %4764 = vrot.lane.b32.xlu0 %v4564, 16
      %v4765 = vpop.permute.xlu0 %4764
      %4766 = vrot.lane.b32.xlu0 %v4565, 16
      %v4767 = vpop.permute.xlu0 %4766
      %4768 = vrot.lane.b32.xlu0 %v4566, 16
      %v4769 = vpop.permute.xlu0 %4768
      %4770 = vrot.lane.b32.xlu0 %v4567, 16
      %v4771 = vpop.permute.xlu0 %4770
      %4772 = vrot.lane.b32.xlu0 %v4568, 16
      %v4773 = vpop.permute.xlu0 %4772
      %4774 = vrot.lane.b32.xlu0 %v4569, 16
      %v4775 = vpop.permute.xlu0 %4774
      %4776 = vrot.lane.b32.xlu0 %v4570, 16
      %v4777 = vpop.permute.xlu0 %4776
      %4778 = vrot.lane.b32.xlu0 %v4571, 16
      %v4779 = vpop.permute.xlu0 %4778
      %4780 = vrot.lane.b32.xlu0 %v4572, 16
      %v4781 = vpop.permute.xlu0 %4780
      %4782 = vrot.lane.b32.xlu0 %v4573, 16
      %v4783 = vpop.permute.xlu0 %4782
      %4784 = vrot.lane.b32.xlu0 %v4574, 16
      %v4785 = vpop.permute.xlu0 %4784
      %4786 = vrot.lane.b32.xlu0 %v4575, 16
      %v4787 = vpop.permute.xlu0 %4786
      %4788 = vrot.lane.b32.xlu0 %v4576, 16
      %v4789 = vpop.permute.xlu0 %4788
      %4790 = vrot.lane.b32.xlu0 %v4577, 16
      %v4791 = vpop.permute.xlu0 %4790
      %4792 = vrot.lane.b32.xlu0 %v4578, 16
      %v4793 = vpop.permute.xlu0 %4792
      %4794 = vrot.lane.b32.xlu0 %v4579, 16
      %v4795 = vpop.permute.xlu0 %4794
      %4796 = vrot.lane.b32.xlu0 %v4580, 16
      %v4797 = vpop.permute.xlu0 %4796
      %4798 = vrot.lane.b32.xlu0 %v4581, 16
      %v4799 = vpop.permute.xlu0 %4798
      %4800 = vrot.lane.b32.xlu0 %v4582, 16
      %v4801 = vpop.permute.xlu0 %4800
      %4802 = vrot.lane.b32.xlu0 %v4583, 16
      %v4803 = vpop.permute.xlu0 %4802
      %4804 = vrot.lane.b32.xlu0 %v4584, 16
      %v4805 = vpop.permute.xlu0 %4804
      %4806 = vrot.lane.b32.xlu0 %v4585, 16
      %v4807 = vpop.permute.xlu0 %4806
      %4808 = vrot.lane.b32.xlu0 %v4586, 16
      %v4809 = vpop.permute.xlu0 %4808
      %4810 = vrot.lane.b32.xlu0 %v4587, 16
      %v4811 = vpop.permute.xlu0 %4810
      %v4844 = vsel %vm333, %v4492, %v4621
      %v4845 = vsel %vm333, %v4493, %v4623
      %v4846 = vsel %vm333, %v4494, %v4625
      %v4847 = vsel %vm333, %v4495, %v4627
      %v4848 = vsel %vm333, %v4496, %v4629
      %v4849 = vsel %vm333, %v4497, %v4631
      %v4850 = vsel %vm333, %v4498, %v4633
      %v4851 = vsel %vm333, %v4499, %v4635
      %v4852 = vsel %vm333, %v4500, %v4637
      %v4853 = vsel %vm333, %v4501, %v4639
      %v4854 = vsel %vm333, %v4502, %v4641
      %v4855 = vsel %vm333, %v4503, %v4643
      %v4856 = vsel %vm333, %v4504, %v4645
      %v4857 = vsel %vm333, %v4505, %v4647
      %v4858 = vsel %vm333, %v4506, %v4649
      %v4859 = vsel %vm333, %v4507, %v4651
      %v4860 = vsel %vm333, %v4508, %v4653
      %v4861 = vsel %vm333, %v4509, %v4655
      %v4862 = vsel %vm333, %v4510, %v4657
      %v4863 = vsel %vm333, %v4511, %v4659
      %v4864 = vsel %vm333, %v4512, %v4661
      %v4865 = vsel %vm333, %v4513, %v4663
      %v4866 = vsel %vm333, %v4514, %v4665
      %v4867 = vsel %vm333, %v4515, %v4667
      %v4868 = vsel %vm333, %v4516, %v4669
      %v4869 = vsel %vm333, %v4517, %v4671
      %v4870 = vsel %vm333, %v4518, %v4673
      %v4871 = vsel %vm333, %v4519, %v4675
      %v4872 = vsel %vm333, %v4520, %v4677
      %v4873 = vsel %vm333, %v4521, %v4679
      %v4874 = vsel %vm333, %v4522, %v4681
      %v4875 = vsel %vm333, %v4523, %v4683
      %v4876 = vsel %vm2856, %v4844, %v4749
      %v4877 = vsel %vm2856, %v4845, %v4751
      %v4878 = vsel %vm2856, %v4846, %v4753
      %v4879 = vsel %vm2856, %v4847, %v4755
      %v4880 = vsel %vm2856, %v4848, %v4757
      %v4881 = vsel %vm2856, %v4849, %v4759
      %v4882 = vsel %vm2856, %v4850, %v4761
      %v4883 = vsel %vm2856, %v4851, %v4763
      %v4884 = vsel %vm2856, %v4852, %v4765
      %v4885 = vsel %vm2856, %v4853, %v4767
      %v4886 = vsel %vm2856, %v4854, %v4769
      %v4887 = vsel %vm2856, %v4855, %v4771
      %v4888 = vsel %vm2856, %v4856, %v4773
      %v4889 = vsel %vm2856, %v4857, %v4775
      %v4890 = vsel %vm2856, %v4858, %v4777
      %v4891 = vsel %vm2856, %v4859, %v4779
      %v4892 = vsel %vm2856, %v4860, %v4781
      %v4893 = vsel %vm2856, %v4861, %v4783
      %v4894 = vsel %vm2856, %v4862, %v4785
      %v4895 = vsel %vm2856, %v4863, %v4787
      %v4896 = vsel %vm2856, %v4864, %v4789
      %v4897 = vsel %vm2856, %v4865, %v4791
      %v4898 = vsel %vm2856, %v4866, %v4793
      %v4899 = vsel %vm2856, %v4867, %v4795
      %v4900 = vsel %vm2856, %v4868, %v4797
      %v4901 = vsel %vm2856, %v4869, %v4799
      %v4902 = vsel %vm2856, %v4870, %v4801
      %v4903 = vsel %vm2856, %v4871, %v4803
      %v4904 = vsel %vm2856, %v4872, %v4805
      %v4905 = vsel %vm2856, %v4873, %v4807
      %v4906 = vsel %vm2856, %v4874, %v4809
      %v4907 = vsel %vm2856, %v4875, %v4811
      %v4908 = vld [vmem:[%s5] sm:$0xff]
      %v4909 = vld [vmem:[%s5 + $0x8] sm:$0xff]
      %v4910 = vld [vmem:[%s5 + $0x10] sm:$0xff]
      %v4911 = vld [vmem:[%s411] sm:$0xff]
      %v4912 = vld [vmem:[%s411 + $0x8] sm:$0xff]
      %v4913 = vld [vmem:[%s411 + $0x18] sm:$0xff]
      %v4914 = vld [vmem:[%s411 + $0x20] sm:$0xff]
      %v4915 = vld [vmem:[%s411 + $0x30] sm:$0xff]
      %v4916 = vld [vmem:[%s411 + $0x38] sm:$0xff]
      %v4917 = vld [vmem:[%s411 + $0x48] sm:$0xff]
      %v4918 = vld [vmem:[%s411 + $0x50] sm:$0xff]
      %v4919 = vld [vmem:[%s411 + $0x60] sm:$0xff]
      %v4920 = vld [vmem:[%s411 + $0x68] sm:$0xff]
      %v4921 = vld [vmem:[%s411 + $0x78] sm:$0xff]
      %v4922 = vld [vmem:[%s411 + $0x80] sm:$0xff]
      %v4923 = vld [vmem:[%s411 + $0x90] sm:$0xff]
      %v4924 = vld [vmem:[%s411 + $0x98] sm:$0xff]
      %v4925 = vld [vmem:[%s411 + $0xa8] sm:$0xff]
      %v4926 = vld [vmem:[%s411 + $0xb0] sm:$0xff]
      %v4927 = vld [vmem:[%s411 + $0xc0] sm:$0xff]
      %v4928 = vld [vmem:[%s411 + $0xc8] sm:$0xff]
      %v4929 = vld [vmem:[%s411 + $0xd8] sm:$0xff]
      %v4930 = vld [vmem:[%s411 + $0xe0] sm:$0xff]
      %v4931 = vld [vmem:[%s411 + $0xf0] sm:$0xff]
      %v4932 = vld [vmem:[%s411 + $0xf8] sm:$0xff]
      %v4933 = vld [vmem:[%s411 + $0x108] sm:$0xff]
      %v4934 = vld [vmem:[%s411 + $0x110] sm:$0xff]
      %v4935 = vld [vmem:[%s411 + $0x120] sm:$0xff]
      %v4936 = vld [vmem:[%s411 + $0x128] sm:$0xff]
      %v4937 = vld [vmem:[%s411 + $0x138] sm:$0xff]
      %v4938 = vld [vmem:[%s411 + $0x140] sm:$0xff]
      %v4939 = vld [vmem:[%s411 + $0x150] sm:$0xff]
      %v4940 = vld [vmem:[%s411 + $0x158] sm:$0xff]
      %v4941 = vld [vmem:[%s411 + $0x168] sm:$0xff]
      %v4942 = vld [vmem:[%s411 + $0x170] sm:$0xff]
      %v4943 = vld [vmem:[%s411 + $0x1] sm:$0xff]
      %v4944 = vld [vmem:[%s411 + $0x9] sm:$0xff]
      %v4945 = vld [vmem:[%s411 + $0x19] sm:$0xff]
      %v4946 = vld [vmem:[%s411 + $0x21] sm:$0xff]
      %v4947 = vld [vmem:[%s411 + $0x31] sm:$0xff]
      %v4948 = vld [vmem:[%s411 + $0x39] sm:$0xff]
      %v4949 = vld [vmem:[%s411 + $0x49] sm:$0xff]
      %v4950 = vld [vmem:[%s411 + $0x51] sm:$0xff]
      %v4951 = vld [vmem:[%s411 + $0x61] sm:$0xff]
      %v4952 = vld [vmem:[%s411 + $0x69] sm:$0xff]
      %v4953 = vld [vmem:[%s411 + $0x79] sm:$0xff]
      %v4954 = vld [vmem:[%s411 + $0x81] sm:$0xff]
      %v4955 = vld [vmem:[%s411 + $0x91] sm:$0xff]
      %v4956 = vld [vmem:[%s411 + $0x99] sm:$0xff]
      %v4957 = vld [vmem:[%s411 + $0xa9] sm:$0xff]
      %v4958 = vld [vmem:[%s411 + $0xb1] sm:$0xff]
      %v4959 = vld [vmem:[%s411 + $0xc1] sm:$0xff]
      %v4960 = vld [vmem:[%s411 + $0xc9] sm:$0xff]
      %v4961 = vld [vmem:[%s411 + $0xd9] sm:$0xff]
      %v4962 = vld [vmem:[%s411 + $0xe1] sm:$0xff]
      %v4963 = vld [vmem:[%s411 + $0xf1] sm:$0xff]
      %v4964 = vld [vmem:[%s411 + $0xf9] sm:$0xff]
      %v4965 = vld [vmem:[%s411 + $0x109] sm:$0xff]
      %v4966 = vld [vmem:[%s411 + $0x111] sm:$0xff]
      %v4967 = vld [vmem:[%s411 + $0x121] sm:$0xff]
      %v4968 = vld [vmem:[%s411 + $0x129] sm:$0xff]
      %v4969 = vld [vmem:[%s411 + $0x139] sm:$0xff]
      %v4970 = vld [vmem:[%s411 + $0x141] sm:$0xff]
      %v4971 = vld [vmem:[%s411 + $0x151] sm:$0xff]
      %v4972 = vld [vmem:[%s411 + $0x159] sm:$0xff]
      %v4973 = vld [vmem:[%s411 + $0x169] sm:$0xff]
      %v4974 = vld [vmem:[%s411 + $0x171] sm:$0xff]
      %v4975 = vld [vmem:[%s411 + $0x2] sm:$0xff]
      %v4976 = vld [vmem:[%s411 + $0xa] sm:$0xff]
      %v4977 = vld [vmem:[%s411 + $0x1a] sm:$0xff]
      %v4978 = vld [vmem:[%s411 + $0x22] sm:$0xff]
      %v4979 = vld [vmem:[%s411 + $0x32] sm:$0xff]
      %v4980 = vld [vmem:[%s411 + $0x3a] sm:$0xff]
      %v4981 = vld [vmem:[%s411 + $0x4a] sm:$0xff]
      %v4982 = vld [vmem:[%s411 + $0x52] sm:$0xff]
      %v4983 = vld [vmem:[%s411 + $0x62] sm:$0xff]
      %v4984 = vld [vmem:[%s411 + $0x6a] sm:$0xff]
      %v4985 = vld [vmem:[%s411 + $0x7a] sm:$0xff]
      %v4986 = vld [vmem:[%s411 + $0x82] sm:$0xff]
      %v4987 = vld [vmem:[%s411 + $0x92] sm:$0xff]
      %v4988 = vld [vmem:[%s411 + $0x9a] sm:$0xff]
      %v4989 = vld [vmem:[%s411 + $0xaa] sm:$0xff]
      %v4990 = vld [vmem:[%s411 + $0xb2] sm:$0xff]
      %v4991 = vld [vmem:[%s411 + $0xc2] sm:$0xff]
      %v4992 = vld [vmem:[%s411 + $0xca] sm:$0xff]
      %v4993 = vld [vmem:[%s411 + $0xda] sm:$0xff]
      %v4994 = vld [vmem:[%s411 + $0xe2] sm:$0xff]
      %v4995 = vld [vmem:[%s411 + $0xf2] sm:$0xff]
      %v4996 = vld [vmem:[%s411 + $0xfa] sm:$0xff]
      %v4997 = vld [vmem:[%s411 + $0x10a] sm:$0xff]
      %v4998 = vld [vmem:[%s411 + $0x112] sm:$0xff]
      %v4999 = vld [vmem:[%s411 + $0x122] sm:$0xff]
      %v5000 = vld [vmem:[%s411 + $0x12a] sm:$0xff]
      %v5001 = vld [vmem:[%s411 + $0x13a] sm:$0xff]
      %v5002 = vld [vmem:[%s411 + $0x142] sm:$0xff]
      %v5003 = vld [vmem:[%s411 + $0x152] sm:$0xff]
      %v5004 = vld [vmem:[%s411 + $0x15a] sm:$0xff]
      %v5005 = vld [vmem:[%s411 + $0x16a] sm:$0xff]
      %v5006 = vld [vmem:[%s411 + $0x172] sm:$0xff]
      %5039 = vrot.lane.b32.xlu0 %v4943, 8
      %v5040 = vpop.permute.xlu0 %5039
      %5041 = vrot.lane.b32.xlu0 %v4944, 8
      %v5042 = vpop.permute.xlu0 %5041
      %5043 = vrot.lane.b32.xlu0 %v4945, 8
      %v5044 = vpop.permute.xlu0 %5043
      %5045 = vrot.lane.b32.xlu0 %v4946, 8
      %v5046 = vpop.permute.xlu0 %5045
      %5047 = vrot.lane.b32.xlu0 %v4947, 8
      %v5048 = vpop.permute.xlu0 %5047
      %5049 = vrot.lane.b32.xlu0 %v4948, 8
      %v5050 = vpop.permute.xlu0 %5049
      %5051 = vrot.lane.b32.xlu0 %v4949, 8
      %v5052 = vpop.permute.xlu0 %5051
      %5053 = vrot.lane.b32.xlu0 %v4950, 8
      %v5054 = vpop.permute.xlu0 %5053
      %5055 = vrot.lane.b32.xlu0 %v4951, 8
      %v5056 = vpop.permute.xlu0 %5055
      %5057 = vrot.lane.b32.xlu0 %v4952, 8
      %v5058 = vpop.permute.xlu0 %5057
      %5059 = vrot.lane.b32.xlu0 %v4953, 8
      %v5060 = vpop.permute.xlu0 %5059
      %5061 = vrot.lane.b32.xlu0 %v4954, 8
      %v5062 = vpop.permute.xlu0 %5061
      %5063 = vrot.lane.b32.xlu0 %v4955, 8
      %v5064 = vpop.permute.xlu0 %5063
      %5065 = vrot.lane.b32.xlu0 %v4956, 8
      %v5066 = vpop.permute.xlu0 %5065
      %5067 = vrot.lane.b32.xlu0 %v4957, 8
      %v5068 = vpop.permute.xlu0 %5067
      %5069 = vrot.lane.b32.xlu0 %v4958, 8
      %v5070 = vpop.permute.xlu0 %5069
      %5071 = vrot.lane.b32.xlu0 %v4959, 8
      %v5072 = vpop.permute.xlu0 %5071
      %5073 = vrot.lane.b32.xlu0 %v4960, 8
      %v5074 = vpop.permute.xlu0 %5073
      %5075 = vrot.lane.b32.xlu0 %v4961, 8
      %v5076 = vpop.permute.xlu0 %5075
      %5077 = vrot.lane.b32.xlu0 %v4962, 8
      %v5078 = vpop.permute.xlu0 %5077
      %5079 = vrot.lane.b32.xlu0 %v4963, 8
      %v5080 = vpop.permute.xlu0 %5079
      %5081 = vrot.lane.b32.xlu0 %v4964, 8
      %v5082 = vpop.permute.xlu0 %5081
      %5083 = vrot.lane.b32.xlu0 %v4965, 8
      %v5084 = vpop.permute.xlu0 %5083
      %5085 = vrot.lane.b32.xlu0 %v4966, 8
      %v5086 = vpop.permute.xlu0 %5085
      %5087 = vrot.lane.b32.xlu0 %v4967, 8
      %v5088 = vpop.permute.xlu0 %5087
      %5089 = vrot.lane.b32.xlu0 %v4968, 8
      %v5090 = vpop.permute.xlu0 %5089
      %5091 = vrot.lane.b32.xlu0 %v4969, 8
      %v5092 = vpop.permute.xlu0 %5091
      %5093 = vrot.lane.b32.xlu0 %v4970, 8
      %v5094 = vpop.permute.xlu0 %5093
      %5095 = vrot.lane.b32.xlu0 %v4971, 8
      %v5096 = vpop.permute.xlu0 %5095
      %5097 = vrot.lane.b32.xlu0 %v4972, 8
      %v5098 = vpop.permute.xlu0 %5097
      %5099 = vrot.lane.b32.xlu0 %v4973, 8
      %v5100 = vpop.permute.xlu0 %5099
      %5101 = vrot.lane.b32.xlu0 %v4974, 8
      %v5102 = vpop.permute.xlu0 %5101
      %5167 = vrot.lane.b32.xlu0 %v4975, 16
      %v5168 = vpop.permute.xlu0 %5167
      %5169 = vrot.lane.b32.xlu0 %v4976, 16
      %v5170 = vpop.permute.xlu0 %5169
      %5171 = vrot.lane.b32.xlu0 %v4977, 16
      %v5172 = vpop.permute.xlu0 %5171
      %5173 = vrot.lane.b32.xlu0 %v4978, 16
      %v5174 = vpop.permute.xlu0 %5173
      %5175 = vrot.lane.b32.xlu0 %v4979, 16
      %v5176 = vpop.permute.xlu0 %5175
      %5177 = vrot.lane.b32.xlu0 %v4980, 16
      %v5178 = vpop.permute.xlu0 %5177
      %5179 = vrot.lane.b32.xlu0 %v4981, 16
      %v5180 = vpop.permute.xlu0 %5179
      %5181 = vrot.lane.b32.xlu0 %v4982, 16
      %v5182 = vpop.permute.xlu0 %5181
      %5183 = vrot.lane.b32.xlu0 %v4983, 16
      %v5184 = vpop.permute.xlu0 %5183
      %5185 = vrot.lane.b32.xlu0 %v4984, 16
      %v5186 = vpop.permute.xlu0 %5185
      %5187 = vrot.lane.b32.xlu0 %v4985, 16
      %v5188 = vpop.permute.xlu0 %5187
      %5189 = vrot.lane.b32.xlu0 %v4986, 16
      %v5190 = vpop.permute.xlu0 %5189
      %5191 = vrot.lane.b32.xlu0 %v4987, 16
      %v5192 = vpop.permute.xlu0 %5191
      %5193 = vrot.lane.b32.xlu0 %v4988, 16
      %v5194 = vpop.permute.xlu0 %5193
      %5195 = vrot.lane.b32.xlu0 %v4989, 16
      %v5196 = vpop.permute.xlu0 %5195
      %5197 = vrot.lane.b32.xlu0 %v4990, 16
      %v5198 = vpop.permute.xlu0 %5197
      %5199 = vrot.lane.b32.xlu0 %v4991, 16
      %v5200 = vpop.permute.xlu0 %5199
      %5201 = vrot.lane.b32.xlu0 %v4992, 16
      %v5202 = vpop.permute.xlu0 %5201
      %5203 = vrot.lane.b32.xlu0 %v4993, 16
      %v5204 = vpop.permute.xlu0 %5203
      %5205 = vrot.lane.b32.xlu0 %v4994, 16
      %v5206 = vpop.permute.xlu0 %5205
      %5207 = vrot.lane.b32.xlu0 %v4995, 16
      %v5208 = vpop.permute.xlu0 %5207
      %5209 = vrot.lane.b32.xlu0 %v4996, 16
      %v5210 = vpop.permute.xlu0 %5209
      %5211 = vrot.lane.b32.xlu0 %v4997, 16
      %v5212 = vpop.permute.xlu0 %5211
      %5213 = vrot.lane.b32.xlu0 %v4998, 16
      %v5214 = vpop.permute.xlu0 %5213
      %5215 = vrot.lane.b32.xlu0 %v4999, 16
      %v5216 = vpop.permute.xlu0 %5215
      %5217 = vrot.lane.b32.xlu0 %v5000, 16
      %v5218 = vpop.permute.xlu0 %5217
      %5219 = vrot.lane.b32.xlu0 %v5001, 16
      %v5220 = vpop.permute.xlu0 %5219
      %5221 = vrot.lane.b32.xlu0 %v5002, 16
      %v5222 = vpop.permute.xlu0 %5221
      %5223 = vrot.lane.b32.xlu0 %v5003, 16
      %v5224 = vpop.permute.xlu0 %5223
      %5225 = vrot.lane.b32.xlu0 %v5004, 16
      %v5226 = vpop.permute.xlu0 %5225
      %5227 = vrot.lane.b32.xlu0 %v5005, 16
      %v5228 = vpop.permute.xlu0 %5227
      %5229 = vrot.lane.b32.xlu0 %v5006, 16
      %v5230 = vpop.permute.xlu0 %5229
      %v5263 = vsel %vm333, %v4911, %v5040
      %v5264 = vsel %vm333, %v4912, %v5042
      %v5265 = vsel %vm333, %v4913, %v5044
      %v5266 = vsel %vm333, %v4914, %v5046
      %v5267 = vsel %vm333, %v4915, %v5048
      %v5268 = vsel %vm333, %v4916, %v5050
      %v5269 = vsel %vm333, %v4917, %v5052
      %v5270 = vsel %vm333, %v4918, %v5054
      %v5271 = vsel %vm333, %v4919, %v5056
      %v5272 = vsel %vm333, %v4920, %v5058
      %v5273 = vsel %vm333, %v4921, %v5060
      %v5274 = vsel %vm333, %v4922, %v5062
      %v5275 = vsel %vm333, %v4923, %v5064
      %v5276 = vsel %vm333, %v4924, %v5066
      %v5277 = vsel %vm333, %v4925, %v5068
      %v5278 = vsel %vm333, %v4926, %v5070
      %v5279 = vsel %vm333, %v4927, %v5072
      %v5280 = vsel %vm333, %v4928, %v5074
      %v5281 = vsel %vm333, %v4929, %v5076
      %v5282 = vsel %vm333, %v4930, %v5078
      %v5283 = vsel %vm333, %v4931, %v5080
      %v5284 = vsel %vm333, %v4932, %v5082
      %v5285 = vsel %vm333, %v4933, %v5084
      %v5286 = vsel %vm333, %v4934, %v5086
      %v5287 = vsel %vm333, %v4935, %v5088
      %v5288 = vsel %vm333, %v4936, %v5090
      %v5289 = vsel %vm333, %v4937, %v5092
      %v5290 = vsel %vm333, %v4938, %v5094
      %v5291 = vsel %vm333, %v4939, %v5096
      %v5292 = vsel %vm333, %v4940, %v5098
      %v5293 = vsel %vm333, %v4941, %v5100
      %v5294 = vsel %vm333, %v4942, %v5102
      %v5295 = vsel %vm2856, %v5263, %v5168
      %v5296 = vsel %vm2856, %v5264, %v5170
      %v5297 = vsel %vm2856, %v5265, %v5172
      %v5298 = vsel %vm2856, %v5266, %v5174
      %v5299 = vsel %vm2856, %v5267, %v5176
      %v5300 = vsel %vm2856, %v5268, %v5178
      %v5301 = vsel %vm2856, %v5269, %v5180
      %v5302 = vsel %vm2856, %v5270, %v5182
      %v5303 = vsel %vm2856, %v5271, %v5184
      %v5304 = vsel %vm2856, %v5272, %v5186
      %v5305 = vsel %vm2856, %v5273, %v5188
      %v5306 = vsel %vm2856, %v5274, %v5190
      %v5307 = vsel %vm2856, %v5275, %v5192
      %v5308 = vsel %vm2856, %v5276, %v5194
      %v5309 = vsel %vm2856, %v5277, %v5196
      %v5310 = vsel %vm2856, %v5278, %v5198
      %v5311 = vsel %vm2856, %v5279, %v5200
      %v5312 = vsel %vm2856, %v5280, %v5202
      %v5313 = vsel %vm2856, %v5281, %v5204
      %v5314 = vsel %vm2856, %v5282, %v5206
      %v5315 = vsel %vm2856, %v5283, %v5208
      %v5316 = vsel %vm2856, %v5284, %v5210
      %v5317 = vsel %vm2856, %v5285, %v5212
      %v5318 = vsel %vm2856, %v5286, %v5214
      %v5319 = vsel %vm2856, %v5287, %v5216
      %v5320 = vsel %vm2856, %v5288, %v5218
      %v5321 = vsel %vm2856, %v5289, %v5220
      %v5322 = vsel %vm2856, %v5290, %v5222
      %v5323 = vsel %vm2856, %v5291, %v5224
      %v5324 = vsel %vm2856, %v5292, %v5226
      %v5325 = vsel %vm2856, %v5293, %v5228
      %v5326 = vsel %vm2856, %v5294, %v5230
      %s5327 = scalar_lea.vmem %s5, 24
      %v5328 = vld [vmem:[%s5327] sm:$0xff]
      %v5329 = vld [vmem:[%s5327 + $0x8] sm:$0xff]
      %v5330 = vld [vmem:[%s5327 + $0x10] sm:$0xff]
      %v5332 = vsel %vm3312, %v5295, 0
      %v5335 = vsel %vm3312, %v5296, 0
      %v5338 = vsel %vm3312, %v5297, 0
      %v5341 = vsel %vm3312, %v5298, 0
      %v5344 = vsel %vm3312, %v5299, 0
      %v5347 = vsel %vm3312, %v5300, 0
      %v5350 = vsel %vm3312, %v5301, 0
      %v5353 = vsel %vm3312, %v5302, 0
      %v5356 = vsel %vm3312, %v5303, 0
      %v5359 = vsel %vm3312, %v5304, 0
      %v5362 = vsel %vm3312, %v5305, 0
      %v5365 = vsel %vm3312, %v5306, 0
      %v5368 = vsel %vm3312, %v5307, 0
      %v5371 = vsel %vm3312, %v5308, 0
      %v5374 = vsel %vm3312, %v5309, 0
      %v5377 = vsel %vm3312, %v5310, 0
      %v5380 = vsel %vm3312, %v5311, 0
      %v5383 = vsel %vm3312, %v5312, 0
      %v5386 = vsel %vm3312, %v5313, 0
      %v5389 = vsel %vm3312, %v5314, 0
      %v5392 = vsel %vm3312, %v5315, 0
      %v5395 = vsel %vm3312, %v5316, 0
      %v5398 = vsel %vm3312, %v5317, 0
      %v5401 = vsel %vm3312, %v5318, 0
      %v5404 = vsel %vm3312, %v5319, 0
      %v5407 = vsel %vm3312, %v5320, 0
      %v5410 = vsel %vm3312, %v5321, 0
      %v5413 = vsel %vm3312, %v5322, 0
      %v5416 = vsel %vm3312, %v5323, 0
      %v5419 = vsel %vm3312, %v5324, 0
      %v5422 = vsel %vm3312, %v5325, 0
      %v5425 = vsel %vm3312, %v5326, 0
      %5427 = vmatpush.msra.mxu0 0.0
      %5428 = vmatpush.msra.mxu0 0.0
      %5429 = vmatpush.msra.mxu0 0.0
      %5430 = vmatpush.msra.mxu0 0.0
      %5431 = vmatpush.msra.mxu0 0.0
      %5432 = vmatpush.msra.mxu0 0.0
      %5433 = vmatpush.msra.mxu0 0.0
      %5434 = vmatpush.msra.mxu0 0.0
      %5435 = vmatpush.msra.mxu0 0.0
      %5436 = vmatpush.msra.mxu0 0.0
      %5437 = vmatpush.msra.mxu0 0.0
      %5438 = vmatpush.msra.mxu0 0.0
      %5439 = vmatpush.msra.mxu0 0.0
      %5440 = vmatpush.msra.mxu0 %v5330
      %5441 = vmatpush.msra.mxu0 %v5329
      %5442 = vmatpush.msra.mxu0 %v5328
      %5443 = vmatmul.f32.gmra.mxu0 %v5332
      %v5444 = vpop.f32.mrf.mxu0
      %v5445 = vadd.f32 0.0, %v5444
      %5446 = vmatmul.f32.gmra.mxu0 %v5335
      %v5447 = vpop.f32.mrf.mxu0
      %v5448 = vadd.f32 0.0, %v5447
      %5449 = vmatmul.f32.gmra.mxu0 %v5338
      %v5450 = vpop.f32.mrf.mxu0
      %v5451 = vadd.f32 0.0, %v5450
      %5452 = vmatmul.f32.gmra.mxu0 %v5341
      %v5453 = vpop.f32.mrf.mxu0
      %v5454 = vadd.f32 0.0, %v5453
      %5455 = vmatmul.f32.gmra.mxu0 %v5344
      %v5456 = vpop.f32.mrf.mxu0
      %v5457 = vadd.f32 0.0, %v5456
      %5458 = vmatmul.f32.gmra.mxu0 %v5347
      %v5459 = vpop.f32.mrf.mxu0
      %v5460 = vadd.f32 0.0, %v5459
      %5461 = vmatmul.f32.gmra.mxu0 %v5350
      %v5462 = vpop.f32.mrf.mxu0
      %v5463 = vadd.f32 0.0, %v5462
      %5464 = vmatmul.f32.gmra.mxu0 %v5353
      %v5465 = vpop.f32.mrf.mxu0
      %v5466 = vadd.f32 0.0, %v5465
      %5467 = vmatmul.f32.gmra.mxu0 %v5356
      %v5468 = vpop.f32.mrf.mxu0
      %v5469 = vadd.f32 0.0, %v5468
      %5470 = vmatmul.f32.gmra.mxu0 %v5359
      %v5471 = vpop.f32.mrf.mxu0
      %v5472 = vadd.f32 0.0, %v5471
      %5473 = vmatmul.f32.gmra.mxu0 %v5362
      %v5474 = vpop.f32.mrf.mxu0
      %v5475 = vadd.f32 0.0, %v5474
      %5476 = vmatmul.f32.gmra.mxu0 %v5365
      %v5477 = vpop.f32.mrf.mxu0
      %v5478 = vadd.f32 0.0, %v5477
      %5479 = vmatmul.f32.gmra.mxu0 %v5368
      %v5480 = vpop.f32.mrf.mxu0
      %v5481 = vadd.f32 0.0, %v5480
      %5482 = vmatmul.f32.gmra.mxu0 %v5371
      %v5483 = vpop.f32.mrf.mxu0
      %v5484 = vadd.f32 0.0, %v5483
      %5485 = vmatmul.f32.gmra.mxu0 %v5374
      %v5486 = vpop.f32.mrf.mxu0
      %v5487 = vadd.f32 0.0, %v5486
      %5488 = vmatmul.f32.gmra.mxu0 %v5377
      %v5489 = vpop.f32.mrf.mxu0
      %v5490 = vadd.f32 0.0, %v5489
      %5491 = vmatmul.f32.gmra.mxu0 %v5380
      %v5492 = vpop.f32.mrf.mxu0
      %v5493 = vadd.f32 0.0, %v5492
      %5494 = vmatmul.f32.gmra.mxu0 %v5383
      %v5495 = vpop.f32.mrf.mxu0
      %v5496 = vadd.f32 0.0, %v5495
      %5497 = vmatmul.f32.gmra.mxu0 %v5386
      %v5498 = vpop.f32.mrf.mxu0
      %v5499 = vadd.f32 0.0, %v5498
      %5500 = vmatmul.f32.gmra.mxu0 %v5389
      %v5501 = vpop.f32.mrf.mxu0
      %v5502 = vadd.f32 0.0, %v5501
      %5503 = vmatmul.f32.gmra.mxu0 %v5392
      %v5504 = vpop.f32.mrf.mxu0
      %v5505 = vadd.f32 0.0, %v5504
      %5506 = vmatmul.f32.gmra.mxu0 %v5395
      %v5507 = vpop.f32.mrf.mxu0
      %v5508 = vadd.f32 0.0, %v5507
      %5509 = vmatmul.f32.gmra.mxu0 %v5398
      %v5510 = vpop.f32.mrf.mxu0
      %v5511 = vadd.f32 0.0, %v5510
      %5512 = vmatmul.f32.gmra.mxu0 %v5401
      %v5513 = vpop.f32.mrf.mxu0
      %v5514 = vadd.f32 0.0, %v5513
      %5515 = vmatmul.f32.gmra.mxu0 %v5404
      %v5516 = vpop.f32.mrf.mxu0
      %v5517 = vadd.f32 0.0, %v5516
      %5518 = vmatmul.f32.gmra.mxu0 %v5407
      %v5519 = vpop.f32.mrf.mxu0
      %v5520 = vadd.f32 0.0, %v5519
      %5521 = vmatmul.f32.gmra.mxu0 %v5410
      %v5522 = vpop.f32.mrf.mxu0
      %v5523 = vadd.f32 0.0, %v5522
      %5524 = vmatmul.f32.gmra.mxu0 %v5413
      %v5525 = vpop.f32.mrf.mxu0
      %v5526 = vadd.f32 0.0, %v5525
      %5527 = vmatmul.f32.gmra.mxu0 %v5416
      %v5528 = vpop.f32.mrf.mxu0
      %v5529 = vadd.f32 0.0, %v5528
      %5530 = vmatmul.f32.gmra.mxu0 %v5419
      %v5531 = vpop.f32.mrf.mxu0
      %v5532 = vadd.f32 0.0, %v5531
      %5533 = vmatmul.f32.gmra.mxu0 %v5422
      %v5534 = vpop.f32.mrf.mxu0
      %v5535 = vadd.f32 0.0, %v5534
      %5536 = vmatmul.f32.gmra.mxu0 %v5425
      %v5537 = vpop.f32.mrf.mxu0
      %v5538 = vadd.f32 0.0, %v5537
      %5539 = vdwg.mxu0
      %v5541 = vsel %vm3312, %v4876, 0
      %v5544 = vsel %vm3312, %v4877, 0
      %v5547 = vsel %vm3312, %v4878, 0
      %v5550 = vsel %vm3312, %v4879, 0
      %v5553 = vsel %vm3312, %v4880, 0
      %v5556 = vsel %vm3312, %v4881, 0
      %v5559 = vsel %vm3312, %v4882, 0
      %v5562 = vsel %vm3312, %v4883, 0
      %v5565 = vsel %vm3312, %v4884, 0
      %v5568 = vsel %vm3312, %v4885, 0
      %v5571 = vsel %vm3312, %v4886, 0
      %v5574 = vsel %vm3312, %v4887, 0
      %v5577 = vsel %vm3312, %v4888, 0
      %v5580 = vsel %vm3312, %v4889, 0
      %v5583 = vsel %vm3312, %v4890, 0
      %v5586 = vsel %vm3312, %v4891, 0
      %v5589 = vsel %vm3312, %v4892, 0
      %v5592 = vsel %vm3312, %v4893, 0
      %v5595 = vsel %vm3312, %v4894, 0
      %v5598 = vsel %vm3312, %v4895, 0
      %v5601 = vsel %vm3312, %v4896, 0
      %v5604 = vsel %vm3312, %v4897, 0
      %v5607 = vsel %vm3312, %v4898, 0
      %v5610 = vsel %vm3312, %v4899, 0
      %v5613 = vsel %vm3312, %v4900, 0
      %v5616 = vsel %vm3312, %v4901, 0
      %v5619 = vsel %vm3312, %v4902, 0
      %v5622 = vsel %vm3312, %v4903, 0
      %v5625 = vsel %vm3312, %v4904, 0
      %v5628 = vsel %vm3312, %v4905, 0
      %v5631 = vsel %vm3312, %v4906, 0
      %v5634 = vsel %vm3312, %v4907, 0
      %5636 = vmatpush.msra.mxu0 0.0
      %5637 = vmatpush.msra.mxu0 0.0
      %5638 = vmatpush.msra.mxu0 0.0
      %5639 = vmatpush.msra.mxu0 0.0
      %5640 = vmatpush.msra.mxu0 0.0
      %5641 = vmatpush.msra.mxu0 0.0
      %5642 = vmatpush.msra.mxu0 0.0
      %5643 = vmatpush.msra.mxu0 0.0
      %5644 = vmatpush.msra.mxu0 0.0
      %5645 = vmatpush.msra.mxu0 0.0
      %5646 = vmatpush.msra.mxu0 0.0
      %5647 = vmatpush.msra.mxu0 0.0
      %5648 = vmatpush.msra.mxu0 0.0
      %5649 = vmatpush.msra.mxu0 %v4910
      %5650 = vmatpush.msra.mxu0 %v4909
      %5651 = vmatpush.msra.mxu0 %v4908
      %5652 = vmatmul.f32.gmra.mxu0 %v5541
      %v5653 = vpop.f32.mrf.mxu0
      %v5654 = vadd.f32 %v5445, %v5653
      %5655 = vmatmul.f32.gmra.mxu0 %v5544
      %v5656 = vpop.f32.mrf.mxu0
      %v5657 = vadd.f32 %v5448, %v5656
      %5658 = vmatmul.f32.gmra.mxu0 %v5547
      %v5659 = vpop.f32.mrf.mxu0
      %v5660 = vadd.f32 %v5451, %v5659
      %5661 = vmatmul.f32.gmra.mxu0 %v5550
      %v5662 = vpop.f32.mrf.mxu0
      %v5663 = vadd.f32 %v5454, %v5662
      %5664 = vmatmul.f32.gmra.mxu0 %v5553
      %v5665 = vpop.f32.mrf.mxu0
      %v5666 = vadd.f32 %v5457, %v5665
      %5667 = vmatmul.f32.gmra.mxu0 %v5556
      %v5668 = vpop.f32.mrf.mxu0
      %v5669 = vadd.f32 %v5460, %v5668
      %5670 = vmatmul.f32.gmra.mxu0 %v5559
      %v5671 = vpop.f32.mrf.mxu0
      %v5672 = vadd.f32 %v5463, %v5671
      %5673 = vmatmul.f32.gmra.mxu0 %v5562
      %v5674 = vpop.f32.mrf.mxu0
      %v5675 = vadd.f32 %v5466, %v5674
      %5676 = vmatmul.f32.gmra.mxu0 %v5565
      %v5677 = vpop.f32.mrf.mxu0
      %v5678 = vadd.f32 %v5469, %v5677
      %5679 = vmatmul.f32.gmra.mxu0 %v5568
      %v5680 = vpop.f32.mrf.mxu0
      %v5681 = vadd.f32 %v5472, %v5680
      %5682 = vmatmul.f32.gmra.mxu0 %v5571
      %v5683 = vpop.f32.mrf.mxu0
      %v5684 = vadd.f32 %v5475, %v5683
      %5685 = vmatmul.f32.gmra.mxu0 %v5574
      %v5686 = vpop.f32.mrf.mxu0
      %v5687 = vadd.f32 %v5478, %v5686
      %5688 = vmatmul.f32.gmra.mxu0 %v5577
      %v5689 = vpop.f32.mrf.mxu0
      %v5690 = vadd.f32 %v5481, %v5689
      %5691 = vmatmul.f32.gmra.mxu0 %v5580
      %v5692 = vpop.f32.mrf.mxu0
      %v5693 = vadd.f32 %v5484, %v5692
      %5694 = vmatmul.f32.gmra.mxu0 %v5583
      %v5695 = vpop.f32.mrf.mxu0
      %v5696 = vadd.f32 %v5487, %v5695
      %5697 = vmatmul.f32.gmra.mxu0 %v5586
      %v5698 = vpop.f32.mrf.mxu0
      %v5699 = vadd.f32 %v5490, %v5698
      %5700 = vmatmul.f32.gmra.mxu0 %v5589
      %v5701 = vpop.f32.mrf.mxu0
      %v5702 = vadd.f32 %v5493, %v5701
      %5703 = vmatmul.f32.gmra.mxu0 %v5592
      %v5704 = vpop.f32.mrf.mxu0
      %v5705 = vadd.f32 %v5496, %v5704
      %5706 = vmatmul.f32.gmra.mxu0 %v5595
      %v5707 = vpop.f32.mrf.mxu0
      %v5708 = vadd.f32 %v5499, %v5707
      %5709 = vmatmul.f32.gmra.mxu0 %v5598
      %v5710 = vpop.f32.mrf.mxu0
      %v5711 = vadd.f32 %v5502, %v5710
      %5712 = vmatmul.f32.gmra.mxu0 %v5601
      %v5713 = vpop.f32.mrf.mxu0
      %v5714 = vadd.f32 %v5505, %v5713
      %5715 = vmatmul.f32.gmra.mxu0 %v5604
      %v5716 = vpop.f32.mrf.mxu0
      %v5717 = vadd.f32 %v5508, %v5716
      %5718 = vmatmul.f32.gmra.mxu0 %v5607
      %v5719 = vpop.f32.mrf.mxu0
      %v5720 = vadd.f32 %v5511, %v5719
      %5721 = vmatmul.f32.gmra.mxu0 %v5610
      %v5722 = vpop.f32.mrf.mxu0
      %v5723 = vadd.f32 %v5514, %v5722
      %5724 = vmatmul.f32.gmra.mxu0 %v5613
      %v5725 = vpop.f32.mrf.mxu0
      %v5726 = vadd.f32 %v5517, %v5725
      %5727 = vmatmul.f32.gmra.mxu0 %v5616
      %v5728 = vpop.f32.mrf.mxu0
      %v5729 = vadd.f32 %v5520, %v5728
      %5730 = vmatmul.f32.gmra.mxu0 %v5619
      %v5731 = vpop.f32.mrf.mxu0
      %v5732 = vadd.f32 %v5523, %v5731
      %5733 = vmatmul.f32.gmra.mxu0 %v5622
      %v5734 = vpop.f32.mrf.mxu0
      %v5735 = vadd.f32 %v5526, %v5734
      %5736 = vmatmul.f32.gmra.mxu0 %v5625
      %v5737 = vpop.f32.mrf.mxu0
      %v5738 = vadd.f32 %v5529, %v5737
      %5739 = vmatmul.f32.gmra.mxu0 %v5628
      %v5740 = vpop.f32.mrf.mxu0
      %v5741 = vadd.f32 %v5532, %v5740
      %5742 = vmatmul.f32.gmra.mxu0 %v5631
      %v5743 = vpop.f32.mrf.mxu0
      %v5744 = vadd.f32 %v5535, %v5743
      %5745 = vmatmul.f32.gmra.mxu0 %v5634
      %v5746 = vpop.f32.mrf.mxu0
      %v5747 = vadd.f32 %v5538, %v5746
      %5748 = vdwg.mxu0
      %v5749 = vld [vmem:[%s1708] sm:$0xff]
      %v5750 = vld [vmem:[%s1708 + $0x8] sm:$0xff]
      %v5751 = vld [vmem:[%s1708 + $0x18] sm:$0xff]
      %v5752 = vld [vmem:[%s1708 + $0x20] sm:$0xff]
      %v5753 = vld [vmem:[%s1708 + $0x30] sm:$0xff]
      %v5754 = vld [vmem:[%s1708 + $0x38] sm:$0xff]
      %v5755 = vld [vmem:[%s1708 + $0x48] sm:$0xff]
      %v5756 = vld [vmem:[%s1708 + $0x50] sm:$0xff]
      %v5757 = vld [vmem:[%s1708 + $0x60] sm:$0xff]
      %v5758 = vld [vmem:[%s1708 + $0x68] sm:$0xff]
      %v5759 = vld [vmem:[%s1708 + $0x78] sm:$0xff]
      %v5760 = vld [vmem:[%s1708 + $0x80] sm:$0xff]
      %v5761 = vld [vmem:[%s1708 + $0x90] sm:$0xff]
      %v5762 = vld [vmem:[%s1708 + $0x98] sm:$0xff]
      %v5763 = vld [vmem:[%s1708 + $0xa8] sm:$0xff]
      %v5764 = vld [vmem:[%s1708 + $0xb0] sm:$0xff]
      %v5765 = vld [vmem:[%s1708 + $0xc0] sm:$0xff]
      %v5766 = vld [vmem:[%s1708 + $0xc8] sm:$0xff]
      %v5767 = vld [vmem:[%s1708 + $0xd8] sm:$0xff]
      %v5768 = vld [vmem:[%s1708 + $0xe0] sm:$0xff]
      %v5769 = vld [vmem:[%s1708 + $0xf0] sm:$0xff]
      %v5770 = vld [vmem:[%s1708 + $0xf8] sm:$0xff]
      %v5771 = vld [vmem:[%s1708 + $0x108] sm:$0xff]
      %v5772 = vld [vmem:[%s1708 + $0x110] sm:$0xff]
      %v5773 = vld [vmem:[%s1708 + $0x120] sm:$0xff]
      %v5774 = vld [vmem:[%s1708 + $0x128] sm:$0xff]
      %v5775 = vld [vmem:[%s1708 + $0x138] sm:$0xff]
      %v5776 = vld [vmem:[%s1708 + $0x140] sm:$0xff]
      %v5777 = vld [vmem:[%s1708 + $0x150] sm:$0xff]
      %v5778 = vld [vmem:[%s1708 + $0x158] sm:$0xff]
      %v5779 = vld [vmem:[%s1708 + $0x168] sm:$0xff]
      %v5780 = vld [vmem:[%s1708 + $0x170] sm:$0xff]
      %v5781 = vld [vmem:[%s1708 + $0x1] sm:$0xff]
      %v5782 = vld [vmem:[%s1708 + $0x9] sm:$0xff]
      %v5783 = vld [vmem:[%s1708 + $0x19] sm:$0xff]
      %v5784 = vld [vmem:[%s1708 + $0x21] sm:$0xff]
      %v5785 = vld [vmem:[%s1708 + $0x31] sm:$0xff]
      %v5786 = vld [vmem:[%s1708 + $0x39] sm:$0xff]
      %v5787 = vld [vmem:[%s1708 + $0x49] sm:$0xff]
      %v5788 = vld [vmem:[%s1708 + $0x51] sm:$0xff]
      %v5789 = vld [vmem:[%s1708 + $0x61] sm:$0xff]
      %v5790 = vld [vmem:[%s1708 + $0x69] sm:$0xff]
      %v5791 = vld [vmem:[%s1708 + $0x79] sm:$0xff]
      %v5792 = vld [vmem:[%s1708 + $0x81] sm:$0xff]
      %v5793 = vld [vmem:[%s1708 + $0x91] sm:$0xff]
      %v5794 = vld [vmem:[%s1708 + $0x99] sm:$0xff]
      %v5795 = vld [vmem:[%s1708 + $0xa9] sm:$0xff]
      %v5796 = vld [vmem:[%s1708 + $0xb1] sm:$0xff]
      %v5797 = vld [vmem:[%s1708 + $0xc1] sm:$0xff]
      %v5798 = vld [vmem:[%s1708 + $0xc9] sm:$0xff]
      %v5799 = vld [vmem:[%s1708 + $0xd9] sm:$0xff]
      %v5800 = vld [vmem:[%s1708 + $0xe1] sm:$0xff]
      %v5801 = vld [vmem:[%s1708 + $0xf1] sm:$0xff]
      %v5802 = vld [vmem:[%s1708 + $0xf9] sm:$0xff]
      %v5803 = vld [vmem:[%s1708 + $0x109] sm:$0xff]
      %v5804 = vld [vmem:[%s1708 + $0x111] sm:$0xff]
      %v5805 = vld [vmem:[%s1708 + $0x121] sm:$0xff]
      %v5806 = vld [vmem:[%s1708 + $0x129] sm:$0xff]
      %v5807 = vld [vmem:[%s1708 + $0x139] sm:$0xff]
      %v5808 = vld [vmem:[%s1708 + $0x141] sm:$0xff]
      %v5809 = vld [vmem:[%s1708 + $0x151] sm:$0xff]
      %v5810 = vld [vmem:[%s1708 + $0x159] sm:$0xff]
      %v5811 = vld [vmem:[%s1708 + $0x169] sm:$0xff]
      %v5812 = vld [vmem:[%s1708 + $0x171] sm:$0xff]
      %v5813 = vld [vmem:[%s1708 + $0x2] sm:$0xff]
      %v5814 = vld [vmem:[%s1708 + $0xa] sm:$0xff]
      %v5815 = vld [vmem:[%s1708 + $0x1a] sm:$0xff]
      %v5816 = vld [vmem:[%s1708 + $0x22] sm:$0xff]
      %v5817 = vld [vmem:[%s1708 + $0x32] sm:$0xff]
      %v5818 = vld [vmem:[%s1708 + $0x3a] sm:$0xff]
      %v5819 = vld [vmem:[%s1708 + $0x4a] sm:$0xff]
      %v5820 = vld [vmem:[%s1708 + $0x52] sm:$0xff]
      %v5821 = vld [vmem:[%s1708 + $0x62] sm:$0xff]
      %v5822 = vld [vmem:[%s1708 + $0x6a] sm:$0xff]
      %v5823 = vld [vmem:[%s1708 + $0x7a] sm:$0xff]
      %v5824 = vld [vmem:[%s1708 + $0x82] sm:$0xff]
      %v5825 = vld [vmem:[%s1708 + $0x92] sm:$0xff]
      %v5826 = vld [vmem:[%s1708 + $0x9a] sm:$0xff]
      %v5827 = vld [vmem:[%s1708 + $0xaa] sm:$0xff]
      %v5828 = vld [vmem:[%s1708 + $0xb2] sm:$0xff]
      %v5829 = vld [vmem:[%s1708 + $0xc2] sm:$0xff]
      %v5830 = vld [vmem:[%s1708 + $0xca] sm:$0xff]
      %v5831 = vld [vmem:[%s1708 + $0xda] sm:$0xff]
      %v5832 = vld [vmem:[%s1708 + $0xe2] sm:$0xff]
      %v5833 = vld [vmem:[%s1708 + $0xf2] sm:$0xff]
      %v5834 = vld [vmem:[%s1708 + $0xfa] sm:$0xff]
      %v5835 = vld [vmem:[%s1708 + $0x10a] sm:$0xff]
      %v5836 = vld [vmem:[%s1708 + $0x112] sm:$0xff]
      %v5837 = vld [vmem:[%s1708 + $0x122] sm:$0xff]
      %v5838 = vld [vmem:[%s1708 + $0x12a] sm:$0xff]
      %v5839 = vld [vmem:[%s1708 + $0x13a] sm:$0xff]
      %v5840 = vld [vmem:[%s1708 + $0x142] sm:$0xff]
      %v5841 = vld [vmem:[%s1708 + $0x152] sm:$0xff]
      %v5842 = vld [vmem:[%s1708 + $0x15a] sm:$0xff]
      %v5843 = vld [vmem:[%s1708 + $0x16a] sm:$0xff]
      %v5844 = vld [vmem:[%s1708 + $0x172] sm:$0xff]
      %5877 = vrot.lane.b32.xlu0 %v5781, 8
      %v5878 = vpop.permute.xlu0 %5877
      %5879 = vrot.lane.b32.xlu0 %v5782, 8
      %v5880 = vpop.permute.xlu0 %5879
      %5881 = vrot.lane.b32.xlu0 %v5783, 8
      %v5882 = vpop.permute.xlu0 %5881
      %5883 = vrot.lane.b32.xlu0 %v5784, 8
      %v5884 = vpop.permute.xlu0 %5883
      %5885 = vrot.lane.b32.xlu0 %v5785, 8
      %v5886 = vpop.permute.xlu0 %5885
      %5887 = vrot.lane.b32.xlu0 %v5786, 8
      %v5888 = vpop.permute.xlu0 %5887
      %5889 = vrot.lane.b32.xlu0 %v5787, 8
      %v5890 = vpop.permute.xlu0 %5889
      %5891 = vrot.lane.b32.xlu0 %v5788, 8
      %v5892 = vpop.permute.xlu0 %5891
      %5893 = vrot.lane.b32.xlu0 %v5789, 8
      %v5894 = vpop.permute.xlu0 %5893
      %5895 = vrot.lane.b32.xlu0 %v5790, 8
      %v5896 = vpop.permute.xlu0 %5895
      %5897 = vrot.lane.b32.xlu0 %v5791, 8
      %v5898 = vpop.permute.xlu0 %5897
      %5899 = vrot.lane.b32.xlu0 %v5792, 8
      %v5900 = vpop.permute.xlu0 %5899
      %5901 = vrot.lane.b32.xlu0 %v5793, 8
      %v5902 = vpop.permute.xlu0 %5901
      %5903 = vrot.lane.b32.xlu0 %v5794, 8
      %v5904 = vpop.permute.xlu0 %5903
      %5905 = vrot.lane.b32.xlu0 %v5795, 8
      %v5906 = vpop.permute.xlu0 %5905
      %5907 = vrot.lane.b32.xlu0 %v5796, 8
      %v5908 = vpop.permute.xlu0 %5907
      %5909 = vrot.lane.b32.xlu0 %v5797, 8
      %v5910 = vpop.permute.xlu0 %5909
      %5911 = vrot.lane.b32.xlu0 %v5798, 8
      %v5912 = vpop.permute.xlu0 %5911
      %5913 = vrot.lane.b32.xlu0 %v5799, 8
      %v5914 = vpop.permute.xlu0 %5913
      %5915 = vrot.lane.b32.xlu0 %v5800, 8
      %v5916 = vpop.permute.xlu0 %5915
      %5917 = vrot.lane.b32.xlu0 %v5801, 8
      %v5918 = vpop.permute.xlu0 %5917
      %5919 = vrot.lane.b32.xlu0 %v5802, 8
      %v5920 = vpop.permute.xlu0 %5919
      %5921 = vrot.lane.b32.xlu0 %v5803, 8
      %v5922 = vpop.permute.xlu0 %5921
      %5923 = vrot.lane.b32.xlu0 %v5804, 8
      %v5924 = vpop.permute.xlu0 %5923
      %5925 = vrot.lane.b32.xlu0 %v5805, 8
      %v5926 = vpop.permute.xlu0 %5925
      %5927 = vrot.lane.b32.xlu0 %v5806, 8
      %v5928 = vpop.permute.xlu0 %5927
      %5929 = vrot.lane.b32.xlu0 %v5807, 8
      %v5930 = vpop.permute.xlu0 %5929
      %5931 = vrot.lane.b32.xlu0 %v5808, 8
      %v5932 = vpop.permute.xlu0 %5931
      %5933 = vrot.lane.b32.xlu0 %v5809, 8
      %v5934 = vpop.permute.xlu0 %5933
      %5935 = vrot.lane.b32.xlu0 %v5810, 8
      %v5936 = vpop.permute.xlu0 %5935
      %5937 = vrot.lane.b32.xlu0 %v5811, 8
      %v5938 = vpop.permute.xlu0 %5937
      %5939 = vrot.lane.b32.xlu0 %v5812, 8
      %v5940 = vpop.permute.xlu0 %5939
      %6005 = vrot.lane.b32.xlu0 %v5813, 16
      %v6006 = vpop.permute.xlu0 %6005
      %6007 = vrot.lane.b32.xlu0 %v5814, 16
      %v6008 = vpop.permute.xlu0 %6007
      %6009 = vrot.lane.b32.xlu0 %v5815, 16
      %v6010 = vpop.permute.xlu0 %6009
      %6011 = vrot.lane.b32.xlu0 %v5816, 16
      %v6012 = vpop.permute.xlu0 %6011
      %6013 = vrot.lane.b32.xlu0 %v5817, 16
      %v6014 = vpop.permute.xlu0 %6013
      %6015 = vrot.lane.b32.xlu0 %v5818, 16
      %v6016 = vpop.permute.xlu0 %6015
      %6017 = vrot.lane.b32.xlu0 %v5819, 16
      %v6018 = vpop.permute.xlu0 %6017
      %6019 = vrot.lane.b32.xlu0 %v5820, 16
      %v6020 = vpop.permute.xlu0 %6019
      %6021 = vrot.lane.b32.xlu0 %v5821, 16
      %v6022 = vpop.permute.xlu0 %6021
      %6023 = vrot.lane.b32.xlu0 %v5822, 16
      %v6024 = vpop.permute.xlu0 %6023
      %6025 = vrot.lane.b32.xlu0 %v5823, 16
      %v6026 = vpop.permute.xlu0 %6025
      %6027 = vrot.lane.b32.xlu0 %v5824, 16
      %v6028 = vpop.permute.xlu0 %6027
      %6029 = vrot.lane.b32.xlu0 %v5825, 16
      %v6030 = vpop.permute.xlu0 %6029
      %6031 = vrot.lane.b32.xlu0 %v5826, 16
      %v6032 = vpop.permute.xlu0 %6031
      %6033 = vrot.lane.b32.xlu0 %v5827, 16
      %v6034 = vpop.permute.xlu0 %6033
      %6035 = vrot.lane.b32.xlu0 %v5828, 16
      %v6036 = vpop.permute.xlu0 %6035
      %6037 = vrot.lane.b32.xlu0 %v5829, 16
      %v6038 = vpop.permute.xlu0 %6037
      %6039 = vrot.lane.b32.xlu0 %v5830, 16
      %v6040 = vpop.permute.xlu0 %6039
      %6041 = vrot.lane.b32.xlu0 %v5831, 16
      %v6042 = vpop.permute.xlu0 %6041
      %6043 = vrot.lane.b32.xlu0 %v5832, 16
      %v6044 = vpop.permute.xlu0 %6043
      %6045 = vrot.lane.b32.xlu0 %v5833, 16
      %v6046 = vpop.permute.xlu0 %6045
      %6047 = vrot.lane.b32.xlu0 %v5834, 16
      %v6048 = vpop.permute.xlu0 %6047
      %6049 = vrot.lane.b32.xlu0 %v5835, 16
      %v6050 = vpop.permute.xlu0 %6049
      %6051 = vrot.lane.b32.xlu0 %v5836, 16
      %v6052 = vpop.permute.xlu0 %6051
      %6053 = vrot.lane.b32.xlu0 %v5837, 16
      %v6054 = vpop.permute.xlu0 %6053
      %6055 = vrot.lane.b32.xlu0 %v5838, 16
      %v6056 = vpop.permute.xlu0 %6055
      %6057 = vrot.lane.b32.xlu0 %v5839, 16
      %v6058 = vpop.permute.xlu0 %6057
      %6059 = vrot.lane.b32.xlu0 %v5840, 16
      %v6060 = vpop.permute.xlu0 %6059
      %6061 = vrot.lane.b32.xlu0 %v5841, 16
      %v6062 = vpop.permute.xlu0 %6061
      %6063 = vrot.lane.b32.xlu0 %v5842, 16
      %v6064 = vpop.permute.xlu0 %6063
      %6065 = vrot.lane.b32.xlu0 %v5843, 16
      %v6066 = vpop.permute.xlu0 %6065
      %6067 = vrot.lane.b32.xlu0 %v5844, 16
      %v6068 = vpop.permute.xlu0 %6067
      %v6101 = vsel %vm333, %v5749, %v5878
      %v6102 = vsel %vm333, %v5750, %v5880
      %v6103 = vsel %vm333, %v5751, %v5882
      %v6104 = vsel %vm333, %v5752, %v5884
      %v6105 = vsel %vm333, %v5753, %v5886
      %v6106 = vsel %vm333, %v5754, %v5888
      %v6107 = vsel %vm333, %v5755, %v5890
      %v6108 = vsel %vm333, %v5756, %v5892
      %v6109 = vsel %vm333, %v5757, %v5894
      %v6110 = vsel %vm333, %v5758, %v5896
      %v6111 = vsel %vm333, %v5759, %v5898
      %v6112 = vsel %vm333, %v5760, %v5900
      %v6113 = vsel %vm333, %v5761, %v5902
      %v6114 = vsel %vm333, %v5762, %v5904
      %v6115 = vsel %vm333, %v5763, %v5906
      %v6116 = vsel %vm333, %v5764, %v5908
      %v6117 = vsel %vm333, %v5765, %v5910
      %v6118 = vsel %vm333, %v5766, %v5912
      %v6119 = vsel %vm333, %v5767, %v5914
      %v6120 = vsel %vm333, %v5768, %v5916
      %v6121 = vsel %vm333, %v5769, %v5918
      %v6122 = vsel %vm333, %v5770, %v5920
      %v6123 = vsel %vm333, %v5771, %v5922
      %v6124 = vsel %vm333, %v5772, %v5924
      %v6125 = vsel %vm333, %v5773, %v5926
      %v6126 = vsel %vm333, %v5774, %v5928
      %v6127 = vsel %vm333, %v5775, %v5930
      %v6128 = vsel %vm333, %v5776, %v5932
      %v6129 = vsel %vm333, %v5777, %v5934
      %v6130 = vsel %vm333, %v5778, %v5936
      %v6131 = vsel %vm333, %v5779, %v5938
      %v6132 = vsel %vm333, %v5780, %v5940
      %v6133 = vsel %vm2856, %v6101, %v6006
      %v6134 = vsel %vm2856, %v6102, %v6008
      %v6135 = vsel %vm2856, %v6103, %v6010
      %v6136 = vsel %vm2856, %v6104, %v6012
      %v6137 = vsel %vm2856, %v6105, %v6014
      %v6138 = vsel %vm2856, %v6106, %v6016
      %v6139 = vsel %vm2856, %v6107, %v6018
      %v6140 = vsel %vm2856, %v6108, %v6020
      %v6141 = vsel %vm2856, %v6109, %v6022
      %v6142 = vsel %vm2856, %v6110, %v6024
      %v6143 = vsel %vm2856, %v6111, %v6026
      %v6144 = vsel %vm2856, %v6112, %v6028
      %v6145 = vsel %vm2856, %v6113, %v6030
      %v6146 = vsel %vm2856, %v6114, %v6032
      %v6147 = vsel %vm2856, %v6115, %v6034
      %v6148 = vsel %vm2856, %v6116, %v6036
      %v6149 = vsel %vm2856, %v6117, %v6038
      %v6150 = vsel %vm2856, %v6118, %v6040
      %v6151 = vsel %vm2856, %v6119, %v6042
      %v6152 = vsel %vm2856, %v6120, %v6044
      %v6153 = vsel %vm2856, %v6121, %v6046
      %v6154 = vsel %vm2856, %v6122, %v6048
      %v6155 = vsel %vm2856, %v6123, %v6050
      %v6156 = vsel %vm2856, %v6124, %v6052
      %v6157 = vsel %vm2856, %v6125, %v6054
      %v6158 = vsel %vm2856, %v6126, %v6056
      %v6159 = vsel %vm2856, %v6127, %v6058
      %v6160 = vsel %vm2856, %v6128, %v6060
      %v6161 = vsel %vm2856, %v6129, %v6062
      %v6162 = vsel %vm2856, %v6130, %v6064
      %v6163 = vsel %vm2856, %v6131, %v6066
      %v6164 = vsel %vm2856, %v6132, %v6068
      %s6165 = scalar_lea.vmem %s5, 48
      %v6166 = vld [vmem:[%s6165] sm:$0xff]
      %v6167 = vld [vmem:[%s6165 + $0x8] sm:$0xff]
      %v6168 = vld [vmem:[%s6165 + $0x10] sm:$0xff]
      %v6170 = vsel %vm3312, %v6133, 0
      %v6173 = vsel %vm3312, %v6134, 0
      %v6176 = vsel %vm3312, %v6135, 0
      %v6179 = vsel %vm3312, %v6136, 0
      %v6182 = vsel %vm3312, %v6137, 0
      %v6185 = vsel %vm3312, %v6138, 0
      %v6188 = vsel %vm3312, %v6139, 0
      %v6191 = vsel %vm3312, %v6140, 0
      %v6194 = vsel %vm3312, %v6141, 0
      %v6197 = vsel %vm3312, %v6142, 0
      %v6200 = vsel %vm3312, %v6143, 0
      %v6203 = vsel %vm3312, %v6144, 0
      %v6206 = vsel %vm3312, %v6145, 0
      %v6209 = vsel %vm3312, %v6146, 0
      %v6212 = vsel %vm3312, %v6147, 0
      %v6215 = vsel %vm3312, %v6148, 0
      %v6218 = vsel %vm3312, %v6149, 0
      %v6221 = vsel %vm3312, %v6150, 0
      %v6224 = vsel %vm3312, %v6151, 0
      %v6227 = vsel %vm3312, %v6152, 0
      %v6230 = vsel %vm3312, %v6153, 0
      %v6233 = vsel %vm3312, %v6154, 0
      %v6236 = vsel %vm3312, %v6155, 0
      %v6239 = vsel %vm3312, %v6156, 0
      %v6242 = vsel %vm3312, %v6157, 0
      %v6245 = vsel %vm3312, %v6158, 0
      %v6248 = vsel %vm3312, %v6159, 0
      %v6251 = vsel %vm3312, %v6160, 0
      %v6254 = vsel %vm3312, %v6161, 0
      %v6257 = vsel %vm3312, %v6162, 0
      %v6260 = vsel %vm3312, %v6163, 0
      %v6263 = vsel %vm3312, %v6164, 0
      %6265 = vmatpush.msra.mxu0 0.0
      %6266 = vmatpush.msra.mxu0 0.0
      %6267 = vmatpush.msra.mxu0 0.0
      %6268 = vmatpush.msra.mxu0 0.0
      %6269 = vmatpush.msra.mxu0 0.0
      %6270 = vmatpush.msra.mxu0 0.0
      %6271 = vmatpush.msra.mxu0 0.0
      %6272 = vmatpush.msra.mxu0 0.0
      %6273 = vmatpush.msra.mxu0 0.0
      %6274 = vmatpush.msra.mxu0 0.0
      %6275 = vmatpush.msra.mxu0 0.0
      %6276 = vmatpush.msra.mxu0 0.0
      %6277 = vmatpush.msra.mxu0 0.0
      %6278 = vmatpush.msra.mxu0 %v6168
      %6279 = vmatpush.msra.mxu0 %v6167
      %6280 = vmatpush.msra.mxu0 %v6166
      %6281 = vmatmul.f32.gmra.mxu0 %v6170
      %v6282 = vpop.f32.mrf.mxu0
      %v6283 = vadd.f32 0.0, %v6282
      %6284 = vmatmul.f32.gmra.mxu0 %v6173
      %v6285 = vpop.f32.mrf.mxu0
      %v6286 = vadd.f32 0.0, %v6285
      %6287 = vmatmul.f32.gmra.mxu0 %v6176
      %v6288 = vpop.f32.mrf.mxu0
      %v6289 = vadd.f32 0.0, %v6288
      %6290 = vmatmul.f32.gmra.mxu0 %v6179
      %v6291 = vpop.f32.mrf.mxu0
      %v6292 = vadd.f32 0.0, %v6291
      %6293 = vmatmul.f32.gmra.mxu0 %v6182
      %v6294 = vpop.f32.mrf.mxu0
      %v6295 = vadd.f32 0.0, %v6294
      %6296 = vmatmul.f32.gmra.mxu0 %v6185
      %v6297 = vpop.f32.mrf.mxu0
      %v6298 = vadd.f32 0.0, %v6297
      %6299 = vmatmul.f32.gmra.mxu0 %v6188
      %v6300 = vpop.f32.mrf.mxu0
      %v6301 = vadd.f32 0.0, %v6300
      %6302 = vmatmul.f32.gmra.mxu0 %v6191
      %v6303 = vpop.f32.mrf.mxu0
      %v6304 = vadd.f32 0.0, %v6303
      %6305 = vmatmul.f32.gmra.mxu0 %v6194
      %v6306 = vpop.f32.mrf.mxu0
      %v6307 = vadd.f32 0.0, %v6306
      %6308 = vmatmul.f32.gmra.mxu0 %v6197
      %v6309 = vpop.f32.mrf.mxu0
      %v6310 = vadd.f32 0.0, %v6309
      %6311 = vmatmul.f32.gmra.mxu0 %v6200
      %v6312 = vpop.f32.mrf.mxu0
      %v6313 = vadd.f32 0.0, %v6312
      %6314 = vmatmul.f32.gmra.mxu0 %v6203
      %v6315 = vpop.f32.mrf.mxu0
      %v6316 = vadd.f32 0.0, %v6315
      %6317 = vmatmul.f32.gmra.mxu0 %v6206
      %v6318 = vpop.f32.mrf.mxu0
      %v6319 = vadd.f32 0.0, %v6318
      %6320 = vmatmul.f32.gmra.mxu0 %v6209
      %v6321 = vpop.f32.mrf.mxu0
      %v6322 = vadd.f32 0.0, %v6321
      %6323 = vmatmul.f32.gmra.mxu0 %v6212
      %v6324 = vpop.f32.mrf.mxu0
      %v6325 = vadd.f32 0.0, %v6324
      %6326 = vmatmul.f32.gmra.mxu0 %v6215
      %v6327 = vpop.f32.mrf.mxu0
      %v6328 = vadd.f32 0.0, %v6327
      %6329 = vmatmul.f32.gmra.mxu0 %v6218
      %v6330 = vpop.f32.mrf.mxu0
      %v6331 = vadd.f32 0.0, %v6330
      %6332 = vmatmul.f32.gmra.mxu0 %v6221
      %v6333 = vpop.f32.mrf.mxu0
      %v6334 = vadd.f32 0.0, %v6333
      %6335 = vmatmul.f32.gmra.mxu0 %v6224
      %v6336 = vpop.f32.mrf.mxu0
      %v6337 = vadd.f32 0.0, %v6336
      %6338 = vmatmul.f32.gmra.mxu0 %v6227
      %v6339 = vpop.f32.mrf.mxu0
      %v6340 = vadd.f32 0.0, %v6339
      %6341 = vmatmul.f32.gmra.mxu0 %v6230
      %v6342 = vpop.f32.mrf.mxu0
      %v6343 = vadd.f32 0.0, %v6342
      %6344 = vmatmul.f32.gmra.mxu0 %v6233
      %v6345 = vpop.f32.mrf.mxu0
      %v6346 = vadd.f32 0.0, %v6345
      %6347 = vmatmul.f32.gmra.mxu0 %v6236
      %v6348 = vpop.f32.mrf.mxu0
      %v6349 = vadd.f32 0.0, %v6348
      %6350 = vmatmul.f32.gmra.mxu0 %v6239
      %v6351 = vpop.f32.mrf.mxu0
      %v6352 = vadd.f32 0.0, %v6351
      %6353 = vmatmul.f32.gmra.mxu0 %v6242
      %v6354 = vpop.f32.mrf.mxu0
      %v6355 = vadd.f32 0.0, %v6354
      %6356 = vmatmul.f32.gmra.mxu0 %v6245
      %v6357 = vpop.f32.mrf.mxu0
      %v6358 = vadd.f32 0.0, %v6357
      %6359 = vmatmul.f32.gmra.mxu0 %v6248
      %v6360 = vpop.f32.mrf.mxu0
      %v6361 = vadd.f32 0.0, %v6360
      %6362 = vmatmul.f32.gmra.mxu0 %v6251
      %v6363 = vpop.f32.mrf.mxu0
      %v6364 = vadd.f32 0.0, %v6363
      %6365 = vmatmul.f32.gmra.mxu0 %v6254
      %v6366 = vpop.f32.mrf.mxu0
      %v6367 = vadd.f32 0.0, %v6366
      %6368 = vmatmul.f32.gmra.mxu0 %v6257
      %v6369 = vpop.f32.mrf.mxu0
      %v6370 = vadd.f32 0.0, %v6369
      %6371 = vmatmul.f32.gmra.mxu0 %v6260
      %v6372 = vpop.f32.mrf.mxu0
      %v6373 = vadd.f32 0.0, %v6372
      %6374 = vmatmul.f32.gmra.mxu0 %v6263
      %v6375 = vpop.f32.mrf.mxu0
      %v6376 = vadd.f32 0.0, %v6375
      %6377 = vdwg.mxu0
      %v6378 = vadd.f32 %v5654, %v6283
      %v6379 = vadd.f32 %v5657, %v6286
      %v6380 = vadd.f32 %v5660, %v6289
      %v6381 = vadd.f32 %v5663, %v6292
      %v6382 = vadd.f32 %v5666, %v6295
      %v6383 = vadd.f32 %v5669, %v6298
      %v6384 = vadd.f32 %v5672, %v6301
      %v6385 = vadd.f32 %v5675, %v6304
      %v6386 = vadd.f32 %v5678, %v6307
      %v6387 = vadd.f32 %v5681, %v6310
      %v6388 = vadd.f32 %v5684, %v6313
      %v6389 = vadd.f32 %v5687, %v6316
      %v6390 = vadd.f32 %v5690, %v6319
      %v6391 = vadd.f32 %v5693, %v6322
      %v6392 = vadd.f32 %v5696, %v6325
      %v6393 = vadd.f32 %v5699, %v6328
      %v6394 = vadd.f32 %v5702, %v6331
      %v6395 = vadd.f32 %v5705, %v6334
      %v6396 = vadd.f32 %v5708, %v6337
      %v6397 = vadd.f32 %v5711, %v6340
      %v6398 = vadd.f32 %v5714, %v6343
      %v6399 = vadd.f32 %v5717, %v6346
      %v6400 = vadd.f32 %v5720, %v6349
      %v6401 = vadd.f32 %v5723, %v6352
      %v6402 = vadd.f32 %v5726, %v6355
      %v6403 = vadd.f32 %v5729, %v6358
      %v6404 = vadd.f32 %v5732, %v6361
      %v6405 = vadd.f32 %v5735, %v6364
      %v6406 = vadd.f32 %v5738, %v6367
      %v6407 = vadd.f32 %v5741, %v6370
      %v6408 = vadd.f32 %v5744, %v6373
      %v6409 = vadd.f32 %v5747, %v6376
      %v6410 = vld [vmem:[%s6] sm:$0x1]
      %v6412 = vperm.slane %v6410, 0
      %v6414 = vadd.f32 %v6378, %v6412
      %v6415 = vadd.f32 %v6379, %v6412
      %v6416 = vadd.f32 %v6380, %v6412
      %v6417 = vadd.f32 %v6381, %v6412
      %v6418 = vadd.f32 %v6382, %v6412
      %v6419 = vadd.f32 %v6383, %v6412
      %v6420 = vadd.f32 %v6384, %v6412
      %v6421 = vadd.f32 %v6385, %v6412
      %v6422 = vadd.f32 %v6386, %v6412
      %v6423 = vadd.f32 %v6387, %v6412
      %v6424 = vadd.f32 %v6388, %v6412
      %v6425 = vadd.f32 %v6389, %v6412
      %v6426 = vadd.f32 %v6390, %v6412
      %v6427 = vadd.f32 %v6391, %v6412
      %v6428 = vadd.f32 %v6392, %v6412
      %v6429 = vadd.f32 %v6393, %v6412
      %v6430 = vadd.f32 %v6394, %v6412
      %v6431 = vadd.f32 %v6395, %v6412
      %v6432 = vadd.f32 %v6396, %v6412
      %v6433 = vadd.f32 %v6397, %v6412
      %v6434 = vadd.f32 %v6398, %v6412
      %v6435 = vadd.f32 %v6399, %v6412
      %v6436 = vadd.f32 %v6400, %v6412
      %v6437 = vadd.f32 %v6401, %v6412
      %v6438 = vadd.f32 %v6402, %v6412
      %v6439 = vadd.f32 %v6403, %v6412
      %v6440 = vadd.f32 %v6404, %v6412
      %v6441 = vadd.f32 %v6405, %v6412
      %v6442 = vadd.f32 %v6406, %v6412
      %v6443 = vadd.f32 %v6407, %v6412
      %v6444 = vadd.f32 %v6408, %v6412
      %v6445 = vadd.f32 %v6409, %v6412
      %v6446 = vmax.f32 %v6414, 0.0
      %v6447 = vmax.f32 %v6415, 0.0
      %v6448 = vmax.f32 %v6416, 0.0
      %v6449 = vmax.f32 %v6417, 0.0
      %v6450 = vmax.f32 %v6418, 0.0
      %v6451 = vmax.f32 %v6419, 0.0
      %v6452 = vmax.f32 %v6420, 0.0
      %v6453 = vmax.f32 %v6421, 0.0
      %v6454 = vmax.f32 %v6422, 0.0
      %v6455 = vmax.f32 %v6423, 0.0
      %v6456 = vmax.f32 %v6424, 0.0
      %v6457 = vmax.f32 %v6425, 0.0
      %v6458 = vmax.f32 %v6426, 0.0
      %v6459 = vmax.f32 %v6427, 0.0
      %v6460 = vmax.f32 %v6428, 0.0
      %v6461 = vmax.f32 %v6429, 0.0
      %v6462 = vmax.f32 %v6430, 0.0
      %v6463 = vmax.f32 %v6431, 0.0
      %v6464 = vmax.f32 %v6432, 0.0
      %v6465 = vmax.f32 %v6433, 0.0
      %v6466 = vmax.f32 %v6434, 0.0
      %v6467 = vmax.f32 %v6435, 0.0
      %v6468 = vmax.f32 %v6436, 0.0
      %v6469 = vmax.f32 %v6437, 0.0
      %v6470 = vmax.f32 %v6438, 0.0
      %v6471 = vmax.f32 %v6439, 0.0
      %v6472 = vmax.f32 %v6440, 0.0
      %v6473 = vmax.f32 %v6441, 0.0
      %v6474 = vmax.f32 %v6442, 0.0
      %v6475 = vmax.f32 %v6443, 0.0
      %v6476 = vmax.f32 %v6444, 0.0
      %v6477 = vmax.f32 %v6445, 0.0
      %v6478 = vadd.f32 %v6446, %v2408
      %v6479 = vadd.f32 %v6447, %v2409
      %v6480 = vadd.f32 %v6448, %v2410
      %v6481 = vadd.f32 %v6449, %v2411
      %v6482 = vadd.f32 %v6450, %v2412
      %v6483 = vadd.f32 %v6451, %v2413
      %v6484 = vadd.f32 %v6452, %v2414
      %v6485 = vadd.f32 %v6453, %v2415
      %v6486 = vadd.f32 %v6454, %v2416
      %v6487 = vadd.f32 %v6455, %v2417
      %v6488 = vadd.f32 %v6456, %v2418
      %v6489 = vadd.f32 %v6457, %v2419
      %v6490 = vadd.f32 %v6458, %v2420
      %v6491 = vadd.f32 %v6459, %v2421
      %v6492 = vadd.f32 %v6460, %v2422
      %v6493 = vadd.f32 %v6461, %v2423
      %v6494 = vadd.f32 %v6462, %v2424
      %v6495 = vadd.f32 %v6463, %v2425
      %v6496 = vadd.f32 %v6464, %v2426
      %v6497 = vadd.f32 %v6465, %v2427
      %v6498 = vadd.f32 %v6466, %v2428
      %v6499 = vadd.f32 %v6467, %v2429
      %v6500 = vadd.f32 %v6468, %v2430
      %v6501 = vadd.f32 %v6469, %v2431
      %v6502 = vadd.f32 %v6470, %v2432
      %v6503 = vadd.f32 %v6471, %v2433
      %v6504 = vadd.f32 %v6472, %v2434
      %v6505 = vadd.f32 %v6473, %v2435
      %v6506 = vadd.f32 %v6474, %v2436
      %v6507 = vadd.f32 %v6475, %v2437
      %v6508 = vadd.f32 %v6476, %v2438
      %v6509 = vadd.f32 %v6477, %v2439
      %6510 = vst.msk [vmem:[%s411 + $0x1] sm:$0xff] %vm333, %v6478
      %6511 = vst.msk [vmem:[%s411 + $0x9] sm:$0xff] %vm333, %v6479
      %6512 = vst.msk [vmem:[%s411 + $0x19] sm:$0xff] %vm333, %v6480
      %6513 = vst.msk [vmem:[%s411 + $0x21] sm:$0xff] %vm333, %v6481
      %6514 = vst.msk [vmem:[%s411 + $0x31] sm:$0xff] %vm333, %v6482
      %6515 = vst.msk [vmem:[%s411 + $0x39] sm:$0xff] %vm333, %v6483
      %6516 = vst.msk [vmem:[%s411 + $0x49] sm:$0xff] %vm333, %v6484
      %6517 = vst.msk [vmem:[%s411 + $0x51] sm:$0xff] %vm333, %v6485
      %6518 = vst.msk [vmem:[%s411 + $0x61] sm:$0xff] %vm333, %v6486
      %6519 = vst.msk [vmem:[%s411 + $0x69] sm:$0xff] %vm333, %v6487
      %6520 = vst.msk [vmem:[%s411 + $0x79] sm:$0xff] %vm333, %v6488
      %6521 = vst.msk [vmem:[%s411 + $0x81] sm:$0xff] %vm333, %v6489
      %6522 = vst.msk [vmem:[%s411 + $0x91] sm:$0xff] %vm333, %v6490
      %6523 = vst.msk [vmem:[%s411 + $0x99] sm:$0xff] %vm333, %v6491
      %6524 = vst.msk [vmem:[%s411 + $0xa9] sm:$0xff] %vm333, %v6492
      %6525 = vst.msk [vmem:[%s411 + $0xb1] sm:$0xff] %vm333, %v6493
      %6526 = vst.msk [vmem:[%s411 + $0xc1] sm:$0xff] %vm333, %v6494
      %6527 = vst.msk [vmem:[%s411 + $0xc9] sm:$0xff] %vm333, %v6495
      %6528 = vst.msk [vmem:[%s411 + $0xd9] sm:$0xff] %vm333, %v6496
      %6529 = vst.msk [vmem:[%s411 + $0xe1] sm:$0xff] %vm333, %v6497
      %6530 = vst.msk [vmem:[%s411 + $0xf1] sm:$0xff] %vm333, %v6498
      %6531 = vst.msk [vmem:[%s411 + $0xf9] sm:$0xff] %vm333, %v6499
      %6532 = vst.msk [vmem:[%s411 + $0x109] sm:$0xff] %vm333, %v6500
      %6533 = vst.msk [vmem:[%s411 + $0x111] sm:$0xff] %vm333, %v6501
      %6534 = vst.msk [vmem:[%s411 + $0x121] sm:$0xff] %vm333, %v6502
      %6535 = vst.msk [vmem:[%s411 + $0x129] sm:$0xff] %vm333, %v6503
      %6536 = vst.msk [vmem:[%s411 + $0x139] sm:$0xff] %vm333, %v6504
      %6537 = vst.msk [vmem:[%s411 + $0x141] sm:$0xff] %vm333, %v6505
      %6538 = vst.msk [vmem:[%s411 + $0x151] sm:$0xff] %vm333, %v6506
      %6539 = vst.msk [vmem:[%s411 + $0x159] sm:$0xff] %vm333, %v6507
      %6540 = vst.msk [vmem:[%s411 + $0x169] sm:$0xff] %vm333, %v6508
      %6541 = vst.msk [vmem:[%s411 + $0x171] sm:$0xff] %vm333, %v6509
      %v6542 = vld [vmem:[%s7] sm:$0xf]
      %v6543 = vld [vmem:[#allocation2] sm:$0xff]
      %v6544 = vld [vmem:[#allocation2 + $0x8] sm:$0xff]
      %v6545 = vld [vmem:[#allocation2 + $0x18] sm:$0xff]
      %v6546 = vld [vmem:[#allocation2 + $0x20] sm:$0xff]
      %v6547 = vld [vmem:[#allocation2 + $0x30] sm:$0xff]
      %v6548 = vld [vmem:[#allocation2 + $0x38] sm:$0xff]
      %v6549 = vld [vmem:[#allocation2 + $0x48] sm:$0xff]
      %v6550 = vld [vmem:[#allocation2 + $0x50] sm:$0xff]
      %v6551 = vld [vmem:[#allocation2 + $0x60] sm:$0xff]
      %v6552 = vld [vmem:[#allocation2 + $0x68] sm:$0xff]
      %v6553 = vld [vmem:[#allocation2 + $0x78] sm:$0xff]
      %v6554 = vld [vmem:[#allocation2 + $0x80] sm:$0xff]
      %v6555 = vld [vmem:[#allocation2 + $0x90] sm:$0xff]
      %v6556 = vld [vmem:[#allocation2 + $0x98] sm:$0xff]
      %v6557 = vld [vmem:[#allocation2 + $0xa8] sm:$0xff]
      %v6558 = vld [vmem:[#allocation2 + $0xb0] sm:$0xff]
      %v6559 = vld [vmem:[#allocation2 + $0xc0] sm:$0xff]
      %v6560 = vld [vmem:[#allocation2 + $0xc8] sm:$0xff]
      %v6561 = vld [vmem:[#allocation2 + $0xd8] sm:$0xff]
      %v6562 = vld [vmem:[#allocation2 + $0xe0] sm:$0xff]
      %v6563 = vld [vmem:[#allocation2 + $0xf0] sm:$0xff]
      %v6564 = vld [vmem:[#allocation2 + $0xf8] sm:$0xff]
      %v6565 = vld [vmem:[#allocation2 + $0x108] sm:$0xff]
      %v6566 = vld [vmem:[#allocation2 + $0x110] sm:$0xff]
      %v6567 = vld [vmem:[#allocation2 + $0x120] sm:$0xff]
      %v6568 = vld [vmem:[#allocation2 + $0x128] sm:$0xff]
      %v6569 = vld [vmem:[#allocation2 + $0x138] sm:$0xff]
      %v6570 = vld [vmem:[#allocation2 + $0x140] sm:$0xff]
      %v6571 = vld [vmem:[#allocation2 + $0x150] sm:$0xff]
      %v6572 = vld [vmem:[#allocation2 + $0x158] sm:$0xff]
      %v6573 = vld [vmem:[#allocation2 + $0x168] sm:$0xff]
      %v6574 = vld [vmem:[#allocation2 + $0x170] sm:$0xff]
      %v6575 = vld [vmem:[#allocation2 + $0x1] sm:$0xff]
      %v6576 = vld [vmem:[#allocation2 + $0x9] sm:$0xff]
      %v6577 = vld [vmem:[#allocation2 + $0x19] sm:$0xff]
      %v6578 = vld [vmem:[#allocation2 + $0x21] sm:$0xff]
      %v6579 = vld [vmem:[#allocation2 + $0x31] sm:$0xff]
      %v6580 = vld [vmem:[#allocation2 + $0x39] sm:$0xff]
      %v6581 = vld [vmem:[#allocation2 + $0x49] sm:$0xff]
      %v6582 = vld [vmem:[#allocation2 + $0x51] sm:$0xff]
      %v6583 = vld [vmem:[#allocation2 + $0x61] sm:$0xff]
      %v6584 = vld [vmem:[#allocation2 + $0x69] sm:$0xff]
      %v6585 = vld [vmem:[#allocation2 + $0x79] sm:$0xff]
      %v6586 = vld [vmem:[#allocation2 + $0x81] sm:$0xff]
      %v6587 = vld [vmem:[#allocation2 + $0x91] sm:$0xff]
      %v6588 = vld [vmem:[#allocation2 + $0x99] sm:$0xff]
      %v6589 = vld [vmem:[#allocation2 + $0xa9] sm:$0xff]
      %v6590 = vld [vmem:[#allocation2 + $0xb1] sm:$0xff]
      %v6591 = vld [vmem:[#allocation2 + $0xc1] sm:$0xff]
      %v6592 = vld [vmem:[#allocation2 + $0xc9] sm:$0xff]
      %v6593 = vld [vmem:[#allocation2 + $0xd9] sm:$0xff]
      %v6594 = vld [vmem:[#allocation2 + $0xe1] sm:$0xff]
      %v6595 = vld [vmem:[#allocation2 + $0xf1] sm:$0xff]
      %v6596 = vld [vmem:[#allocation2 + $0xf9] sm:$0xff]
      %v6597 = vld [vmem:[#allocation2 + $0x109] sm:$0xff]
      %v6598 = vld [vmem:[#allocation2 + $0x111] sm:$0xff]
      %v6599 = vld [vmem:[#allocation2 + $0x121] sm:$0xff]
      %v6600 = vld [vmem:[#allocation2 + $0x129] sm:$0xff]
      %v6601 = vld [vmem:[#allocation2 + $0x139] sm:$0xff]
      %v6602 = vld [vmem:[#allocation2 + $0x141] sm:$0xff]
      %v6603 = vld [vmem:[#allocation2 + $0x151] sm:$0xff]
      %v6604 = vld [vmem:[#allocation2 + $0x159] sm:$0xff]
      %v6605 = vld [vmem:[#allocation2 + $0x169] sm:$0xff]
      %v6606 = vld [vmem:[#allocation2 + $0x171] sm:$0xff]
      %v6607 = vld [vmem:[#allocation2 + $0x2] sm:$0xff]
      %v6608 = vld [vmem:[#allocation2 + $0xa] sm:$0xff]
      %v6609 = vld [vmem:[#allocation2 + $0x1a] sm:$0xff]
      %v6610 = vld [vmem:[#allocation2 + $0x22] sm:$0xff]
      %v6611 = vld [vmem:[#allocation2 + $0x32] sm:$0xff]
      %v6612 = vld [vmem:[#allocation2 + $0x3a] sm:$0xff]
      %v6613 = vld [vmem:[#allocation2 + $0x4a] sm:$0xff]
      %v6614 = vld [vmem:[#allocation2 + $0x52] sm:$0xff]
      %v6615 = vld [vmem:[#allocation2 + $0x62] sm:$0xff]
      %v6616 = vld [vmem:[#allocation2 + $0x6a] sm:$0xff]
      %v6617 = vld [vmem:[#allocation2 + $0x7a] sm:$0xff]
      %v6618 = vld [vmem:[#allocation2 + $0x82] sm:$0xff]
      %v6619 = vld [vmem:[#allocation2 + $0x92] sm:$0xff]
      %v6620 = vld [vmem:[#allocation2 + $0x9a] sm:$0xff]
      %v6621 = vld [vmem:[#allocation2 + $0xaa] sm:$0xff]
      %v6622 = vld [vmem:[#allocation2 + $0xb2] sm:$0xff]
      %v6623 = vld [vmem:[#allocation2 + $0xc2] sm:$0xff]
      %v6624 = vld [vmem:[#allocation2 + $0xca] sm:$0xff]
      %v6625 = vld [vmem:[#allocation2 + $0xda] sm:$0xff]
      %v6626 = vld [vmem:[#allocation2 + $0xe2] sm:$0xff]
      %v6627 = vld [vmem:[#allocation2 + $0xf2] sm:$0xff]
      %v6628 = vld [vmem:[#allocation2 + $0xfa] sm:$0xff]
      %v6629 = vld [vmem:[#allocation2 + $0x10a] sm:$0xff]
      %v6630 = vld [vmem:[#allocation2 + $0x112] sm:$0xff]
      %v6631 = vld [vmem:[#allocation2 + $0x122] sm:$0xff]
      %v6632 = vld [vmem:[#allocation2 + $0x12a] sm:$0xff]
      %v6633 = vld [vmem:[#allocation2 + $0x13a] sm:$0xff]
      %v6634 = vld [vmem:[#allocation2 + $0x142] sm:$0xff]
      %v6635 = vld [vmem:[#allocation2 + $0x152] sm:$0xff]
      %v6636 = vld [vmem:[#allocation2 + $0x15a] sm:$0xff]
      %v6637 = vld [vmem:[#allocation2 + $0x16a] sm:$0xff]
      %v6638 = vld [vmem:[#allocation2 + $0x172] sm:$0xff]
      %6671 = vrot.lane.b32.xlu0 %v6575, 8
      %v6672 = vpop.permute.xlu0 %6671
      %6673 = vrot.lane.b32.xlu0 %v6576, 8
      %v6674 = vpop.permute.xlu0 %6673
      %6675 = vrot.lane.b32.xlu0 %v6577, 8
      %v6676 = vpop.permute.xlu0 %6675
      %6677 = vrot.lane.b32.xlu0 %v6578, 8
      %v6678 = vpop.permute.xlu0 %6677
      %6679 = vrot.lane.b32.xlu0 %v6579, 8
      %v6680 = vpop.permute.xlu0 %6679
      %6681 = vrot.lane.b32.xlu0 %v6580, 8
      %v6682 = vpop.permute.xlu0 %6681
      %6683 = vrot.lane.b32.xlu0 %v6581, 8
      %v6684 = vpop.permute.xlu0 %6683
      %6685 = vrot.lane.b32.xlu0 %v6582, 8
      %v6686 = vpop.permute.xlu0 %6685
      %6687 = vrot.lane.b32.xlu0 %v6583, 8
      %v6688 = vpop.permute.xlu0 %6687
      %6689 = vrot.lane.b32.xlu0 %v6584, 8
      %v6690 = vpop.permute.xlu0 %6689
      %6691 = vrot.lane.b32.xlu0 %v6585, 8
      %v6692 = vpop.permute.xlu0 %6691
      %6693 = vrot.lane.b32.xlu0 %v6586, 8
      %v6694 = vpop.permute.xlu0 %6693
      %6695 = vrot.lane.b32.xlu0 %v6587, 8
      %v6696 = vpop.permute.xlu0 %6695
      %6697 = vrot.lane.b32.xlu0 %v6588, 8
      %v6698 = vpop.permute.xlu0 %6697
      %6699 = vrot.lane.b32.xlu0 %v6589, 8
      %v6700 = vpop.permute.xlu0 %6699
      %6701 = vrot.lane.b32.xlu0 %v6590, 8
      %v6702 = vpop.permute.xlu0 %6701
      %6703 = vrot.lane.b32.xlu0 %v6591, 8
      %v6704 = vpop.permute.xlu0 %6703
      %6705 = vrot.lane.b32.xlu0 %v6592, 8
      %v6706 = vpop.permute.xlu0 %6705
      %6707 = vrot.lane.b32.xlu0 %v6593, 8
      %v6708 = vpop.permute.xlu0 %6707
      %6709 = vrot.lane.b32.xlu0 %v6594, 8
      %v6710 = vpop.permute.xlu0 %6709
      %6711 = vrot.lane.b32.xlu0 %v6595, 8
      %v6712 = vpop.permute.xlu0 %6711
      %6713 = vrot.lane.b32.xlu0 %v6596, 8
      %v6714 = vpop.permute.xlu0 %6713
      %6715 = vrot.lane.b32.xlu0 %v6597, 8
      %v6716 = vpop.permute.xlu0 %6715
      %6717 = vrot.lane.b32.xlu0 %v6598, 8
      %v6718 = vpop.permute.xlu0 %6717
      %6719 = vrot.lane.b32.xlu0 %v6599, 8
      %v6720 = vpop.permute.xlu0 %6719
      %6721 = vrot.lane.b32.xlu0 %v6600, 8
      %v6722 = vpop.permute.xlu0 %6721
      %6723 = vrot.lane.b32.xlu0 %v6601, 8
      %v6724 = vpop.permute.xlu0 %6723
      %6725 = vrot.lane.b32.xlu0 %v6602, 8
      %v6726 = vpop.permute.xlu0 %6725
      %6727 = vrot.lane.b32.xlu0 %v6603, 8
      %v6728 = vpop.permute.xlu0 %6727
      %6729 = vrot.lane.b32.xlu0 %v6604, 8
      %v6730 = vpop.permute.xlu0 %6729
      %6731 = vrot.lane.b32.xlu0 %v6605, 8
      %v6732 = vpop.permute.xlu0 %6731
      %6733 = vrot.lane.b32.xlu0 %v6606, 8
      %v6734 = vpop.permute.xlu0 %6733
      %6799 = vrot.lane.b32.xlu0 %v6607, 16
      %v6800 = vpop.permute.xlu0 %6799
      %6801 = vrot.lane.b32.xlu0 %v6608, 16
      %v6802 = vpop.permute.xlu0 %6801
      %6803 = vrot.lane.b32.xlu0 %v6609, 16
      %v6804 = vpop.permute.xlu0 %6803
      %6805 = vrot.lane.b32.xlu0 %v6610, 16
      %v6806 = vpop.permute.xlu0 %6805
      %6807 = vrot.lane.b32.xlu0 %v6611, 16
      %v6808 = vpop.permute.xlu0 %6807
      %6809 = vrot.lane.b32.xlu0 %v6612, 16
      %v6810 = vpop.permute.xlu0 %6809
      %6811 = vrot.lane.b32.xlu0 %v6613, 16
      %v6812 = vpop.permute.xlu0 %6811
      %6813 = vrot.lane.b32.xlu0 %v6614, 16
      %v6814 = vpop.permute.xlu0 %6813
      %6815 = vrot.lane.b32.xlu0 %v6615, 16
      %v6816 = vpop.permute.xlu0 %6815
      %6817 = vrot.lane.b32.xlu0 %v6616, 16
      %v6818 = vpop.permute.xlu0 %6817
      %6819 = vrot.lane.b32.xlu0 %v6617, 16
      %v6820 = vpop.permute.xlu0 %6819
      %6821 = vrot.lane.b32.xlu0 %v6618, 16
      %v6822 = vpop.permute.xlu0 %6821
      %6823 = vrot.lane.b32.xlu0 %v6619, 16
      %v6824 = vpop.permute.xlu0 %6823
      %6825 = vrot.lane.b32.xlu0 %v6620, 16
      %v6826 = vpop.permute.xlu0 %6825
      %6827 = vrot.lane.b32.xlu0 %v6621, 16
      %v6828 = vpop.permute.xlu0 %6827
      %6829 = vrot.lane.b32.xlu0 %v6622, 16
      %v6830 = vpop.permute.xlu0 %6829
      %6831 = vrot.lane.b32.xlu0 %v6623, 16
      %v6832 = vpop.permute.xlu0 %6831
      %6833 = vrot.lane.b32.xlu0 %v6624, 16
      %v6834 = vpop.permute.xlu0 %6833
      %6835 = vrot.lane.b32.xlu0 %v6625, 16
      %v6836 = vpop.permute.xlu0 %6835
      %6837 = vrot.lane.b32.xlu0 %v6626, 16
      %v6838 = vpop.permute.xlu0 %6837
      %6839 = vrot.lane.b32.xlu0 %v6627, 16
      %v6840 = vpop.permute.xlu0 %6839
      %6841 = vrot.lane.b32.xlu0 %v6628, 16
      %v6842 = vpop.permute.xlu0 %6841
      %6843 = vrot.lane.b32.xlu0 %v6629, 16
      %v6844 = vpop.permute.xlu0 %6843
      %6845 = vrot.lane.b32.xlu0 %v6630, 16
      %v6846 = vpop.permute.xlu0 %6845
      %6847 = vrot.lane.b32.xlu0 %v6631, 16
      %v6848 = vpop.permute.xlu0 %6847
      %6849 = vrot.lane.b32.xlu0 %v6632, 16
      %v6850 = vpop.permute.xlu0 %6849
      %6851 = vrot.lane.b32.xlu0 %v6633, 16
      %v6852 = vpop.permute.xlu0 %6851
      %6853 = vrot.lane.b32.xlu0 %v6634, 16
      %v6854 = vpop.permute.xlu0 %6853
      %6855 = vrot.lane.b32.xlu0 %v6635, 16
      %v6856 = vpop.permute.xlu0 %6855
      %6857 = vrot.lane.b32.xlu0 %v6636, 16
      %v6858 = vpop.permute.xlu0 %6857
      %6859 = vrot.lane.b32.xlu0 %v6637, 16
      %v6860 = vpop.permute.xlu0 %6859
      %6861 = vrot.lane.b32.xlu0 %v6638, 16
      %v6862 = vpop.permute.xlu0 %6861
      %v6895 = vsel %vm333, %v6543, %v6672
      %v6896 = vsel %vm333, %v6544, %v6674
      %v6897 = vsel %vm333, %v6545, %v6676
      %v6898 = vsel %vm333, %v6546, %v6678
      %v6899 = vsel %vm333, %v6547, %v6680
      %v6900 = vsel %vm333, %v6548, %v6682
      %v6901 = vsel %vm333, %v6549, %v6684
      %v6902 = vsel %vm333, %v6550, %v6686
      %v6903 = vsel %vm333, %v6551, %v6688
      %v6904 = vsel %vm333, %v6552, %v6690
      %v6905 = vsel %vm333, %v6553, %v6692
      %v6906 = vsel %vm333, %v6554, %v6694
      %v6907 = vsel %vm333, %v6555, %v6696
      %v6908 = vsel %vm333, %v6556, %v6698
      %v6909 = vsel %vm333, %v6557, %v6700
      %v6910 = vsel %vm333, %v6558, %v6702
      %v6911 = vsel %vm333, %v6559, %v6704
      %v6912 = vsel %vm333, %v6560, %v6706
      %v6913 = vsel %vm333, %v6561, %v6708
      %v6914 = vsel %vm333, %v6562, %v6710
      %v6915 = vsel %vm333, %v6563, %v6712
      %v6916 = vsel %vm333, %v6564, %v6714
      %v6917 = vsel %vm333, %v6565, %v6716
      %v6918 = vsel %vm333, %v6566, %v6718
      %v6919 = vsel %vm333, %v6567, %v6720
      %v6920 = vsel %vm333, %v6568, %v6722
      %v6921 = vsel %vm333, %v6569, %v6724
      %v6922 = vsel %vm333, %v6570, %v6726
      %v6923 = vsel %vm333, %v6571, %v6728
      %v6924 = vsel %vm333, %v6572, %v6730
      %v6925 = vsel %vm333, %v6573, %v6732
      %v6926 = vsel %vm333, %v6574, %v6734
      %v6927 = vsel %vm2856, %v6895, %v6800
      %v6928 = vsel %vm2856, %v6896, %v6802
      %v6929 = vsel %vm2856, %v6897, %v6804
      %v6930 = vsel %vm2856, %v6898, %v6806
      %v6931 = vsel %vm2856, %v6899, %v6808
      %v6932 = vsel %vm2856, %v6900, %v6810
      %v6933 = vsel %vm2856, %v6901, %v6812
      %v6934 = vsel %vm2856, %v6902, %v6814
      %v6935 = vsel %vm2856, %v6903, %v6816
      %v6936 = vsel %vm2856, %v6904, %v6818
      %v6937 = vsel %vm2856, %v6905, %v6820
      %v6938 = vsel %vm2856, %v6906, %v6822
      %v6939 = vsel %vm2856, %v6907, %v6824
      %v6940 = vsel %vm2856, %v6908, %v6826
      %v6941 = vsel %vm2856, %v6909, %v6828
      %v6942 = vsel %vm2856, %v6910, %v6830
      %v6943 = vsel %vm2856, %v6911, %v6832
      %v6944 = vsel %vm2856, %v6912, %v6834
      %v6945 = vsel %vm2856, %v6913, %v6836
      %v6946 = vsel %vm2856, %v6914, %v6838
      %v6947 = vsel %vm2856, %v6915, %v6840
      %v6948 = vsel %vm2856, %v6916, %v6842
      %v6949 = vsel %vm2856, %v6917, %v6844
      %v6950 = vsel %vm2856, %v6918, %v6846
      %v6951 = vsel %vm2856, %v6919, %v6848
      %v6952 = vsel %vm2856, %v6920, %v6850
      %v6953 = vsel %vm2856, %v6921, %v6852
      %v6954 = vsel %vm2856, %v6922, %v6854
      %v6955 = vsel %vm2856, %v6923, %v6856
      %v6956 = vsel %vm2856, %v6924, %v6858
      %v6957 = vsel %vm2856, %v6925, %v6860
      %v6958 = vsel %vm2856, %v6926, %v6862
      %s6959 = scalar_lea.vmem %s7, 4
      %v6960 = vld [vmem:[%s6959] sm:$0xf]
      %v6961 = vld [vmem:[%s411] sm:$0xff]
      %v6962 = vld [vmem:[%s411 + $0x8] sm:$0xff]
      %v6963 = vld [vmem:[%s411 + $0x18] sm:$0xff]
      %v6964 = vld [vmem:[%s411 + $0x20] sm:$0xff]
      %v6965 = vld [vmem:[%s411 + $0x30] sm:$0xff]
      %v6966 = vld [vmem:[%s411 + $0x38] sm:$0xff]
      %v6967 = vld [vmem:[%s411 + $0x48] sm:$0xff]
      %v6968 = vld [vmem:[%s411 + $0x50] sm:$0xff]
      %v6969 = vld [vmem:[%s411 + $0x60] sm:$0xff]
      %v6970 = vld [vmem:[%s411 + $0x68] sm:$0xff]
      %v6971 = vld [vmem:[%s411 + $0x78] sm:$0xff]
      %v6972 = vld [vmem:[%s411 + $0x80] sm:$0xff]
      %v6973 = vld [vmem:[%s411 + $0x90] sm:$0xff]
      %v6974 = vld [vmem:[%s411 + $0x98] sm:$0xff]
      %v6975 = vld [vmem:[%s411 + $0xa8] sm:$0xff]
      %v6976 = vld [vmem:[%s411 + $0xb0] sm:$0xff]
      %v6977 = vld [vmem:[%s411 + $0xc0] sm:$0xff]
      %v6978 = vld [vmem:[%s411 + $0xc8] sm:$0xff]
      %v6979 = vld [vmem:[%s411 + $0xd8] sm:$0xff]
      %v6980 = vld [vmem:[%s411 + $0xe0] sm:$0xff]
      %v6981 = vld [vmem:[%s411 + $0xf0] sm:$0xff]
      %v6982 = vld [vmem:[%s411 + $0xf8] sm:$0xff]
      %v6983 = vld [vmem:[%s411 + $0x108] sm:$0xff]
      %v6984 = vld [vmem:[%s411 + $0x110] sm:$0xff]
      %v6985 = vld [vmem:[%s411 + $0x120] sm:$0xff]
      %v6986 = vld [vmem:[%s411 + $0x128] sm:$0xff]
      %v6987 = vld [vmem:[%s411 + $0x138] sm:$0xff]
      %v6988 = vld [vmem:[%s411 + $0x140] sm:$0xff]
      %v6989 = vld [vmem:[%s411 + $0x150] sm:$0xff]
      %v6990 = vld [vmem:[%s411 + $0x158] sm:$0xff]
      %v6991 = vld [vmem:[%s411 + $0x168] sm:$0xff]
      %v6992 = vld [vmem:[%s411 + $0x170] sm:$0xff]
      %v6993 = vld [vmem:[%s411 + $0x1] sm:$0xff]
      %v6994 = vld [vmem:[%s411 + $0x9] sm:$0xff]
      %v6995 = vld [vmem:[%s411 + $0x19] sm:$0xff]
      %v6996 = vld [vmem:[%s411 + $0x21] sm:$0xff]
      %v6997 = vld [vmem:[%s411 + $0x31] sm:$0xff]
      %v6998 = vld [vmem:[%s411 + $0x39] sm:$0xff]
      %v6999 = vld [vmem:[%s411 + $0x49] sm:$0xff]
      %v7000 = vld [vmem:[%s411 + $0x51] sm:$0xff]
      %v7001 = vld [vmem:[%s411 + $0x61] sm:$0xff]
      %v7002 = vld [vmem:[%s411 + $0x69] sm:$0xff]
      %v7003 = vld [vmem:[%s411 + $0x79] sm:$0xff]
      %v7004 = vld [vmem:[%s411 + $0x81] sm:$0xff]
      %v7005 = vld [vmem:[%s411 + $0x91] sm:$0xff]
      %v7006 = vld [vmem:[%s411 + $0x99] sm:$0xff]
      %v7007 = vld [vmem:[%s411 + $0xa9] sm:$0xff]
      %v7008 = vld [vmem:[%s411 + $0xb1] sm:$0xff]
      %v7009 = vld [vmem:[%s411 + $0xc1] sm:$0xff]
      %v7010 = vld [vmem:[%s411 + $0xc9] sm:$0xff]
      %v7011 = vld [vmem:[%s411 + $0xd9] sm:$0xff]
      %v7012 = vld [vmem:[%s411 + $0xe1] sm:$0xff]
      %v7013 = vld [vmem:[%s411 + $0xf1] sm:$0xff]
      %v7014 = vld [vmem:[%s411 + $0xf9] sm:$0xff]
      %v7015 = vld [vmem:[%s411 + $0x109] sm:$0xff]
      %v7016 = vld [vmem:[%s411 + $0x111] sm:$0xff]
      %v7017 = vld [vmem:[%s411 + $0x121] sm:$0xff]
      %v7018 = vld [vmem:[%s411 + $0x129] sm:$0xff]
      %v7019 = vld [vmem:[%s411 + $0x139] sm:$0xff]
      %v7020 = vld [vmem:[%s411 + $0x141] sm:$0xff]
      %v7021 = vld [vmem:[%s411 + $0x151] sm:$0xff]
      %v7022 = vld [vmem:[%s411 + $0x159] sm:$0xff]
      %v7023 = vld [vmem:[%s411 + $0x169] sm:$0xff]
      %v7024 = vld [vmem:[%s411 + $0x171] sm:$0xff]
      %v7025 = vld [vmem:[%s411 + $0x2] sm:$0xff]
      %v7026 = vld [vmem:[%s411 + $0xa] sm:$0xff]
      %v7027 = vld [vmem:[%s411 + $0x1a] sm:$0xff]
      %v7028 = vld [vmem:[%s411 + $0x22] sm:$0xff]
      %v7029 = vld [vmem:[%s411 + $0x32] sm:$0xff]
      %v7030 = vld [vmem:[%s411 + $0x3a] sm:$0xff]
      %v7031 = vld [vmem:[%s411 + $0x4a] sm:$0xff]
      %v7032 = vld [vmem:[%s411 + $0x52] sm:$0xff]
      %v7033 = vld [vmem:[%s411 + $0x62] sm:$0xff]
      %v7034 = vld [vmem:[%s411 + $0x6a] sm:$0xff]
      %v7035 = vld [vmem:[%s411 + $0x7a] sm:$0xff]
      %v7036 = vld [vmem:[%s411 + $0x82] sm:$0xff]
      %v7037 = vld [vmem:[%s411 + $0x92] sm:$0xff]
      %v7038 = vld [vmem:[%s411 + $0x9a] sm:$0xff]
      %v7039 = vld [vmem:[%s411 + $0xaa] sm:$0xff]
      %v7040 = vld [vmem:[%s411 + $0xb2] sm:$0xff]
      %v7041 = vld [vmem:[%s411 + $0xc2] sm:$0xff]
      %v7042 = vld [vmem:[%s411 + $0xca] sm:$0xff]
      %v7043 = vld [vmem:[%s411 + $0xda] sm:$0xff]
      %v7044 = vld [vmem:[%s411 + $0xe2] sm:$0xff]
      %v7045 = vld [vmem:[%s411 + $0xf2] sm:$0xff]
      %v7046 = vld [vmem:[%s411 + $0xfa] sm:$0xff]
      %v7047 = vld [vmem:[%s411 + $0x10a] sm:$0xff]
      %v7048 = vld [vmem:[%s411 + $0x112] sm:$0xff]
      %v7049 = vld [vmem:[%s411 + $0x122] sm:$0xff]
      %v7050 = vld [vmem:[%s411 + $0x12a] sm:$0xff]
      %v7051 = vld [vmem:[%s411 + $0x13a] sm:$0xff]
      %v7052 = vld [vmem:[%s411 + $0x142] sm:$0xff]
      %v7053 = vld [vmem:[%s411 + $0x152] sm:$0xff]
      %v7054 = vld [vmem:[%s411 + $0x15a] sm:$0xff]
      %v7055 = vld [vmem:[%s411 + $0x16a] sm:$0xff]
      %v7056 = vld [vmem:[%s411 + $0x172] sm:$0xff]
      %7089 = vrot.lane.b32.xlu0 %v6993, 8
      %v7090 = vpop.permute.xlu0 %7089
      %7091 = vrot.lane.b32.xlu0 %v6994, 8
      %v7092 = vpop.permute.xlu0 %7091
      %7093 = vrot.lane.b32.xlu0 %v6995, 8
      %v7094 = vpop.permute.xlu0 %7093
      %7095 = vrot.lane.b32.xlu0 %v6996, 8
      %v7096 = vpop.permute.xlu0 %7095
      %7097 = vrot.lane.b32.xlu0 %v6997, 8
      %v7098 = vpop.permute.xlu0 %7097
      %7099 = vrot.lane.b32.xlu0 %v6998, 8
      %v7100 = vpop.permute.xlu0 %7099
      %7101 = vrot.lane.b32.xlu0 %v6999, 8
      %v7102 = vpop.permute.xlu0 %7101
      %7103 = vrot.lane.b32.xlu0 %v7000, 8
      %v7104 = vpop.permute.xlu0 %7103
      %7105 = vrot.lane.b32.xlu0 %v7001, 8
      %v7106 = vpop.permute.xlu0 %7105
      %7107 = vrot.lane.b32.xlu0 %v7002, 8
      %v7108 = vpop.permute.xlu0 %7107
      %7109 = vrot.lane.b32.xlu0 %v7003, 8
      %v7110 = vpop.permute.xlu0 %7109
      %7111 = vrot.lane.b32.xlu0 %v7004, 8
      %v7112 = vpop.permute.xlu0 %7111
      %7113 = vrot.lane.b32.xlu0 %v7005, 8
      %v7114 = vpop.permute.xlu0 %7113
      %7115 = vrot.lane.b32.xlu0 %v7006, 8
      %v7116 = vpop.permute.xlu0 %7115
      %7117 = vrot.lane.b32.xlu0 %v7007, 8
      %v7118 = vpop.permute.xlu0 %7117
      %7119 = vrot.lane.b32.xlu0 %v7008, 8
      %v7120 = vpop.permute.xlu0 %7119
      %7121 = vrot.lane.b32.xlu0 %v7009, 8
      %v7122 = vpop.permute.xlu0 %7121
      %7123 = vrot.lane.b32.xlu0 %v7010, 8
      %v7124 = vpop.permute.xlu0 %7123
      %7125 = vrot.lane.b32.xlu0 %v7011, 8
      %v7126 = vpop.permute.xlu0 %7125
      %7127 = vrot.lane.b32.xlu0 %v7012, 8
      %v7128 = vpop.permute.xlu0 %7127
      %7129 = vrot.lane.b32.xlu0 %v7013, 8
      %v7130 = vpop.permute.xlu0 %7129
      %7131 = vrot.lane.b32.xlu0 %v7014, 8
      %v7132 = vpop.permute.xlu0 %7131
      %7133 = vrot.lane.b32.xlu0 %v7015, 8
      %v7134 = vpop.permute.xlu0 %7133
      %7135 = vrot.lane.b32.xlu0 %v7016, 8
      %v7136 = vpop.permute.xlu0 %7135
      %7137 = vrot.lane.b32.xlu0 %v7017, 8
      %v7138 = vpop.permute.xlu0 %7137
      %7139 = vrot.lane.b32.xlu0 %v7018, 8
      %v7140 = vpop.permute.xlu0 %7139
      %7141 = vrot.lane.b32.xlu0 %v7019, 8
      %v7142 = vpop.permute.xlu0 %7141
      %7143 = vrot.lane.b32.xlu0 %v7020, 8
      %v7144 = vpop.permute.xlu0 %7143
      %7145 = vrot.lane.b32.xlu0 %v7021, 8
      %v7146 = vpop.permute.xlu0 %7145
      %7147 = vrot.lane.b32.xlu0 %v7022, 8
      %v7148 = vpop.permute.xlu0 %7147
      %7149 = vrot.lane.b32.xlu0 %v7023, 8
      %v7150 = vpop.permute.xlu0 %7149
      %7151 = vrot.lane.b32.xlu0 %v7024, 8
      %v7152 = vpop.permute.xlu0 %7151
      %7217 = vrot.lane.b32.xlu0 %v7025, 16
      %v7218 = vpop.permute.xlu0 %7217
      %7219 = vrot.lane.b32.xlu0 %v7026, 16
      %v7220 = vpop.permute.xlu0 %7219
      %7221 = vrot.lane.b32.xlu0 %v7027, 16
      %v7222 = vpop.permute.xlu0 %7221
      %7223 = vrot.lane.b32.xlu0 %v7028, 16
      %v7224 = vpop.permute.xlu0 %7223
      %7225 = vrot.lane.b32.xlu0 %v7029, 16
      %v7226 = vpop.permute.xlu0 %7225
      %7227 = vrot.lane.b32.xlu0 %v7030, 16
      %v7228 = vpop.permute.xlu0 %7227
      %7229 = vrot.lane.b32.xlu0 %v7031, 16
      %v7230 = vpop.permute.xlu0 %7229
      %7231 = vrot.lane.b32.xlu0 %v7032, 16
      %v7232 = vpop.permute.xlu0 %7231
      %7233 = vrot.lane.b32.xlu0 %v7033, 16
      %v7234 = vpop.permute.xlu0 %7233
      %7235 = vrot.lane.b32.xlu0 %v7034, 16
      %v7236 = vpop.permute.xlu0 %7235
      %7237 = vrot.lane.b32.xlu0 %v7035, 16
      %v7238 = vpop.permute.xlu0 %7237
      %7239 = vrot.lane.b32.xlu0 %v7036, 16
      %v7240 = vpop.permute.xlu0 %7239
      %7241 = vrot.lane.b32.xlu0 %v7037, 16
      %v7242 = vpop.permute.xlu0 %7241
      %7243 = vrot.lane.b32.xlu0 %v7038, 16
      %v7244 = vpop.permute.xlu0 %7243
      %7245 = vrot.lane.b32.xlu0 %v7039, 16
      %v7246 = vpop.permute.xlu0 %7245
      %7247 = vrot.lane.b32.xlu0 %v7040, 16
      %v7248 = vpop.permute.xlu0 %7247
      %7249 = vrot.lane.b32.xlu0 %v7041, 16
      %v7250 = vpop.permute.xlu0 %7249
      %7251 = vrot.lane.b32.xlu0 %v7042, 16
      %v7252 = vpop.permute.xlu0 %7251
      %7253 = vrot.lane.b32.xlu0 %v7043, 16
      %v7254 = vpop.permute.xlu0 %7253
      %7255 = vrot.lane.b32.xlu0 %v7044, 16
      %v7256 = vpop.permute.xlu0 %7255
      %7257 = vrot.lane.b32.xlu0 %v7045, 16
      %v7258 = vpop.permute.xlu0 %7257
      %7259 = vrot.lane.b32.xlu0 %v7046, 16
      %v7260 = vpop.permute.xlu0 %7259
      %7261 = vrot.lane.b32.xlu0 %v7047, 16
      %v7262 = vpop.permute.xlu0 %7261
      %7263 = vrot.lane.b32.xlu0 %v7048, 16
      %v7264 = vpop.permute.xlu0 %7263
      %7265 = vrot.lane.b32.xlu0 %v7049, 16
      %v7266 = vpop.permute.xlu0 %7265
      %7267 = vrot.lane.b32.xlu0 %v7050, 16
      %v7268 = vpop.permute.xlu0 %7267
      %7269 = vrot.lane.b32.xlu0 %v7051, 16
      %v7270 = vpop.permute.xlu0 %7269
      %7271 = vrot.lane.b32.xlu0 %v7052, 16
      %v7272 = vpop.permute.xlu0 %7271
      %7273 = vrot.lane.b32.xlu0 %v7053, 16
      %v7274 = vpop.permute.xlu0 %7273
      %7275 = vrot.lane.b32.xlu0 %v7054, 16
      %v7276 = vpop.permute.xlu0 %7275
      %7277 = vrot.lane.b32.xlu0 %v7055, 16
      %v7278 = vpop.permute.xlu0 %7277
      %7279 = vrot.lane.b32.xlu0 %v7056, 16
      %v7280 = vpop.permute.xlu0 %7279
      %v7313 = vsel %vm333, %v6961, %v7090
      %v7314 = vsel %vm333, %v6962, %v7092
      %v7315 = vsel %vm333, %v6963, %v7094
      %v7316 = vsel %vm333, %v6964, %v7096
      %v7317 = vsel %vm333, %v6965, %v7098
      %v7318 = vsel %vm333, %v6966, %v7100
      %v7319 = vsel %vm333, %v6967, %v7102
      %v7320 = vsel %vm333, %v6968, %v7104
      %v7321 = vsel %vm333, %v6969, %v7106
      %v7322 = vsel %vm333, %v6970, %v7108
      %v7323 = vsel %vm333, %v6971, %v7110
      %v7324 = vsel %vm333, %v6972, %v7112
      %v7325 = vsel %vm333, %v6973, %v7114
      %v7326 = vsel %vm333, %v6974, %v7116
      %v7327 = vsel %vm333, %v6975, %v7118
      %v7328 = vsel %vm333, %v6976, %v7120
      %v7329 = vsel %vm333, %v6977, %v7122
      %v7330 = vsel %vm333, %v6978, %v7124
      %v7331 = vsel %vm333, %v6979, %v7126
      %v7332 = vsel %vm333, %v6980, %v7128
      %v7333 = vsel %vm333, %v6981, %v7130
      %v7334 = vsel %vm333, %v6982, %v7132
      %v7335 = vsel %vm333, %v6983, %v7134
      %v7336 = vsel %vm333, %v6984, %v7136
      %v7337 = vsel %vm333, %v6985, %v7138
      %v7338 = vsel %vm333, %v6986, %v7140
      %v7339 = vsel %vm333, %v6987, %v7142
      %v7340 = vsel %vm333, %v6988, %v7144
      %v7341 = vsel %vm333, %v6989, %v7146
      %v7342 = vsel %vm333, %v6990, %v7148
      %v7343 = vsel %vm333, %v6991, %v7150
      %v7344 = vsel %vm333, %v6992, %v7152
      %v7345 = vsel %vm2856, %v7313, %v7218
      %v7346 = vsel %vm2856, %v7314, %v7220
      %v7347 = vsel %vm2856, %v7315, %v7222
      %v7348 = vsel %vm2856, %v7316, %v7224
      %v7349 = vsel %vm2856, %v7317, %v7226
      %v7350 = vsel %vm2856, %v7318, %v7228
      %v7351 = vsel %vm2856, %v7319, %v7230
      %v7352 = vsel %vm2856, %v7320, %v7232
      %v7353 = vsel %vm2856, %v7321, %v7234
      %v7354 = vsel %vm2856, %v7322, %v7236
      %v7355 = vsel %vm2856, %v7323, %v7238
      %v7356 = vsel %vm2856, %v7324, %v7240
      %v7357 = vsel %vm2856, %v7325, %v7242
      %v7358 = vsel %vm2856, %v7326, %v7244
      %v7359 = vsel %vm2856, %v7327, %v7246
      %v7360 = vsel %vm2856, %v7328, %v7248
      %v7361 = vsel %vm2856, %v7329, %v7250
      %v7362 = vsel %vm2856, %v7330, %v7252
      %v7363 = vsel %vm2856, %v7331, %v7254
      %v7364 = vsel %vm2856, %v7332, %v7256
      %v7365 = vsel %vm2856, %v7333, %v7258
      %v7366 = vsel %vm2856, %v7334, %v7260
      %v7367 = vsel %vm2856, %v7335, %v7262
      %v7368 = vsel %vm2856, %v7336, %v7264
      %v7369 = vsel %vm2856, %v7337, %v7266
      %v7370 = vsel %vm2856, %v7338, %v7268
      %v7371 = vsel %vm2856, %v7339, %v7270
      %v7372 = vsel %vm2856, %v7340, %v7272
      %v7373 = vsel %vm2856, %v7341, %v7274
      %v7374 = vsel %vm2856, %v7342, %v7276
      %v7375 = vsel %vm2856, %v7343, %v7278
      %v7376 = vsel %vm2856, %v7344, %v7280
      %v7378 = vsel %vm3312, %v6960, 0
      %v7381 = vsel %vm3312, %v7345, 0
      %v7384 = vsel %vm3312, %v7346, 0
      %v7387 = vsel %vm3312, %v7347, 0
      %v7390 = vsel %vm3312, %v7348, 0
      %v7393 = vsel %vm3312, %v7349, 0
      %v7396 = vsel %vm3312, %v7350, 0
      %v7399 = vsel %vm3312, %v7351, 0
      %v7402 = vsel %vm3312, %v7352, 0
      %v7405 = vsel %vm3312, %v7353, 0
      %v7408 = vsel %vm3312, %v7354, 0
      %v7411 = vsel %vm3312, %v7355, 0
      %v7414 = vsel %vm3312, %v7356, 0
      %v7417 = vsel %vm3312, %v7357, 0
      %v7420 = vsel %vm3312, %v7358, 0
      %v7423 = vsel %vm3312, %v7359, 0
      %v7426 = vsel %vm3312, %v7360, 0
      %v7429 = vsel %vm3312, %v7361, 0
      %v7432 = vsel %vm3312, %v7362, 0
      %v7435 = vsel %vm3312, %v7363, 0
      %v7438 = vsel %vm3312, %v7364, 0
      %v7441 = vsel %vm3312, %v7365, 0
      %v7444 = vsel %vm3312, %v7366, 0
      %v7447 = vsel %vm3312, %v7367, 0
      %v7450 = vsel %vm3312, %v7368, 0
      %v7453 = vsel %vm3312, %v7369, 0
      %v7456 = vsel %vm3312, %v7370, 0
      %v7459 = vsel %vm3312, %v7371, 0
      %v7462 = vsel %vm3312, %v7372, 0
      %v7465 = vsel %vm3312, %v7373, 0
      %v7468 = vsel %vm3312, %v7374, 0
      %v7471 = vsel %vm3312, %v7375, 0
      %v7474 = vsel %vm3312, %v7376, 0
      %7476 = vmatpush.xpose.msra.mxu0 %v7426
      %7477 = vmatpush.xpose.msra.mxu0 %v7423
      %7478 = vmatpush.xpose.msra.mxu0 %v7420
      %7479 = vmatpush.xpose.msra.mxu0 %v7417
      %7480 = vmatpush.xpose.msra.mxu0 %v7414
      %7481 = vmatpush.xpose.msra.mxu0 %v7411
      %7482 = vmatpush.xpose.msra.mxu0 %v7408
      %7483 = vmatpush.xpose.msra.mxu0 %v7405
      %7484 = vmatpush.xpose.msra.mxu0 %v7402
      %7485 = vmatpush.xpose.msra.mxu0 %v7399
      %7486 = vmatpush.xpose.msra.mxu0 %v7396
      %7487 = vmatpush.xpose.msra.mxu0 %v7393
      %7488 = vmatpush.xpose.msra.mxu0 %v7390
      %7489 = vmatpush.xpose.msra.mxu0 %v7387
      %7490 = vmatpush.xpose.msra.mxu0 %v7384
      %7491 = vmatpush.xpose.msra.mxu0 %v7381
      %7492 = vmatmul.f32.gmra.mxu0 %v7378
      %v7493 = vpop.f32.mrf.mxu0
      %v7494 = vadd.f32 0.0, %v7493
      %7495 = vdwg.mxu0
      %7496 = vmatpush.xpose.msra.mxu0 %v7474
      %7497 = vmatpush.xpose.msra.mxu0 %v7471
      %7498 = vmatpush.xpose.msra.mxu0 %v7468
      %7499 = vmatpush.xpose.msra.mxu0 %v7465
      %7500 = vmatpush.xpose.msra.mxu0 %v7462
      %7501 = vmatpush.xpose.msra.mxu0 %v7459
      %7502 = vmatpush.xpose.msra.mxu0 %v7456
      %7503 = vmatpush.xpose.msra.mxu0 %v7453
      %7504 = vmatpush.xpose.msra.mxu0 %v7450
      %7505 = vmatpush.xpose.msra.mxu0 %v7447
      %7506 = vmatpush.xpose.msra.mxu0 %v7444
      %7507 = vmatpush.xpose.msra.mxu0 %v7441
      %7508 = vmatpush.xpose.msra.mxu0 %v7438
      %7509 = vmatpush.xpose.msra.mxu0 %v7435
      %7510 = vmatpush.xpose.msra.mxu0 %v7432
      %7511 = vmatpush.xpose.msra.mxu0 %v7429
      %7512 = vmatmul.f32.gmra.mxu0 %v7378
      %v7513 = vpop.f32.mrf.mxu0
      %v7514 = vadd.f32 0.0, %v7513
      %7515 = vdwg.mxu0
      %v7517 = vsel %vm3312, %v6542, 0
      %v7520 = vsel %vm3312, %v6927, 0
      %v7523 = vsel %vm3312, %v6928, 0
      %v7526 = vsel %vm3312, %v6929, 0
      %v7529 = vsel %vm3312, %v6930, 0
      %v7532 = vsel %vm3312, %v6931, 0
      %v7535 = vsel %vm3312, %v6932, 0
      %v7538 = vsel %vm3312, %v6933, 0
      %v7541 = vsel %vm3312, %v6934, 0
      %v7544 = vsel %vm3312, %v6935, 0
      %v7547 = vsel %vm3312, %v6936, 0
      %v7550 = vsel %vm3312, %v6937, 0
      %v7553 = vsel %vm3312, %v6938, 0
      %v7556 = vsel %vm3312, %v6939, 0
      %v7559 = vsel %vm3312, %v6940, 0
      %v7562 = vsel %vm3312, %v6941, 0
      %v7565 = vsel %vm3312, %v6942, 0
      %v7568 = vsel %vm3312, %v6943, 0
      %v7571 = vsel %vm3312, %v6944, 0
      %v7574 = vsel %vm3312, %v6945, 0
      %v7577 = vsel %vm3312, %v6946, 0
      %v7580 = vsel %vm3312, %v6947, 0
      %v7583 = vsel %vm3312, %v6948, 0
      %v7586 = vsel %vm3312, %v6949, 0
      %v7589 = vsel %vm3312, %v6950, 0
      %v7592 = vsel %vm3312, %v6951, 0
      %v7595 = vsel %vm3312, %v6952, 0
      %v7598 = vsel %vm3312, %v6953, 0
      %v7601 = vsel %vm3312, %v6954, 0
      %v7604 = vsel %vm3312, %v6955, 0
      %v7607 = vsel %vm3312, %v6956, 0
      %v7610 = vsel %vm3312, %v6957, 0
      %v7613 = vsel %vm3312, %v6958, 0
      %7615 = vmatpush.xpose.msra.mxu0 %v7565
      %7616 = vmatpush.xpose.msra.mxu0 %v7562
      %7617 = vmatpush.xpose.msra.mxu0 %v7559
      %7618 = vmatpush.xpose.msra.mxu0 %v7556
      %7619 = vmatpush.xpose.msra.mxu0 %v7553
      %7620 = vmatpush.xpose.msra.mxu0 %v7550
      %7621 = vmatpush.xpose.msra.mxu0 %v7547
      %7622 = vmatpush.xpose.msra.mxu0 %v7544
      %7623 = vmatpush.xpose.msra.mxu0 %v7541
      %7624 = vmatpush.xpose.msra.mxu0 %v7538
      %7625 = vmatpush.xpose.msra.mxu0 %v7535
      %7626 = vmatpush.xpose.msra.mxu0 %v7532
      %7627 = vmatpush.xpose.msra.mxu0 %v7529
      %7628 = vmatpush.xpose.msra.mxu0 %v7526
      %7629 = vmatpush.xpose.msra.mxu0 %v7523
      %7630 = vmatpush.xpose.msra.mxu0 %v7520
      %7631 = vmatmul.f32.gmra.mxu0 %v7517
      %v7632 = vpop.f32.mrf.mxu0
      %v7633 = vadd.f32 %v7494, %v7632
      %7634 = vdwg.mxu0
      %7635 = vmatpush.xpose.msra.mxu0 %v7613
      %7636 = vmatpush.xpose.msra.mxu0 %v7610
      %7637 = vmatpush.xpose.msra.mxu0 %v7607
      %7638 = vmatpush.xpose.msra.mxu0 %v7604
      %7639 = vmatpush.xpose.msra.mxu0 %v7601
      %7640 = vmatpush.xpose.msra.mxu0 %v7598
      %7641 = vmatpush.xpose.msra.mxu0 %v7595
      %7642 = vmatpush.xpose.msra.mxu0 %v7592
      %7643 = vmatpush.xpose.msra.mxu0 %v7589
      %7644 = vmatpush.xpose.msra.mxu0 %v7586
      %7645 = vmatpush.xpose.msra.mxu0 %v7583
      %7646 = vmatpush.xpose.msra.mxu0 %v7580
      %7647 = vmatpush.xpose.msra.mxu0 %v7577
      %7648 = vmatpush.xpose.msra.mxu0 %v7574
      %7649 = vmatpush.xpose.msra.mxu0 %v7571
      %7650 = vmatpush.xpose.msra.mxu0 %v7568
      %7651 = vmatmul.f32.gmra.mxu0 %v7517
      %v7652 = vpop.f32.mrf.mxu0
      %v7653 = vadd.f32 %v7514, %v7652
      %7654 = vdwg.mxu0
      %s7655 = scalar_lea.vmem %s7, 8
      %v7656 = vld [vmem:[%s7655] sm:$0xf]
      %v7657 = vld [vmem:[%s1708] sm:$0xff]
      %v7658 = vld [vmem:[%s1708 + $0x8] sm:$0xff]
      %v7659 = vld [vmem:[%s1708 + $0x18] sm:$0xff]
      %v7660 = vld [vmem:[%s1708 + $0x20] sm:$0xff]
      %v7661 = vld [vmem:[%s1708 + $0x30] sm:$0xff]
      %v7662 = vld [vmem:[%s1708 + $0x38] sm:$0xff]
      %v7663 = vld [vmem:[%s1708 + $0x48] sm:$0xff]
      %v7664 = vld [vmem:[%s1708 + $0x50] sm:$0xff]
      %v7665 = vld [vmem:[%s1708 + $0x60] sm:$0xff]
      %v7666 = vld [vmem:[%s1708 + $0x68] sm:$0xff]
      %v7667 = vld [vmem:[%s1708 + $0x78] sm:$0xff]
      %v7668 = vld [vmem:[%s1708 + $0x80] sm:$0xff]
      %v7669 = vld [vmem:[%s1708 + $0x90] sm:$0xff]
      %v7670 = vld [vmem:[%s1708 + $0x98] sm:$0xff]
      %v7671 = vld [vmem:[%s1708 + $0xa8] sm:$0xff]
      %v7672 = vld [vmem:[%s1708 + $0xb0] sm:$0xff]
      %v7673 = vld [vmem:[%s1708 + $0xc0] sm:$0xff]
      %v7674 = vld [vmem:[%s1708 + $0xc8] sm:$0xff]
      %v7675 = vld [vmem:[%s1708 + $0xd8] sm:$0xff]
      %v7676 = vld [vmem:[%s1708 + $0xe0] sm:$0xff]
      %v7677 = vld [vmem:[%s1708 + $0xf0] sm:$0xff]
      %v7678 = vld [vmem:[%s1708 + $0xf8] sm:$0xff]
      %v7679 = vld [vmem:[%s1708 + $0x108] sm:$0xff]
      %v7680 = vld [vmem:[%s1708 + $0x110] sm:$0xff]
      %v7681 = vld [vmem:[%s1708 + $0x120] sm:$0xff]
      %v7682 = vld [vmem:[%s1708 + $0x128] sm:$0xff]
      %v7683 = vld [vmem:[%s1708 + $0x138] sm:$0xff]
      %v7684 = vld [vmem:[%s1708 + $0x140] sm:$0xff]
      %v7685 = vld [vmem:[%s1708 + $0x150] sm:$0xff]
      %v7686 = vld [vmem:[%s1708 + $0x158] sm:$0xff]
      %v7687 = vld [vmem:[%s1708 + $0x168] sm:$0xff]
      %v7688 = vld [vmem:[%s1708 + $0x170] sm:$0xff]
      %v7689 = vld [vmem:[%s1708 + $0x1] sm:$0xff]
      %v7690 = vld [vmem:[%s1708 + $0x9] sm:$0xff]
      %v7691 = vld [vmem:[%s1708 + $0x19] sm:$0xff]
      %v7692 = vld [vmem:[%s1708 + $0x21] sm:$0xff]
      %v7693 = vld [vmem:[%s1708 + $0x31] sm:$0xff]
      %v7694 = vld [vmem:[%s1708 + $0x39] sm:$0xff]
      %v7695 = vld [vmem:[%s1708 + $0x49] sm:$0xff]
      %v7696 = vld [vmem:[%s1708 + $0x51] sm:$0xff]
      %v7697 = vld [vmem:[%s1708 + $0x61] sm:$0xff]
      %v7698 = vld [vmem:[%s1708 + $0x69] sm:$0xff]
      %v7699 = vld [vmem:[%s1708 + $0x79] sm:$0xff]
      %v7700 = vld [vmem:[%s1708 + $0x81] sm:$0xff]
      %v7701 = vld [vmem:[%s1708 + $0x91] sm:$0xff]
      %v7702 = vld [vmem:[%s1708 + $0x99] sm:$0xff]
      %v7703 = vld [vmem:[%s1708 + $0xa9] sm:$0xff]
      %v7704 = vld [vmem:[%s1708 + $0xb1] sm:$0xff]
      %v7705 = vld [vmem:[%s1708 + $0xc1] sm:$0xff]
      %v7706 = vld [vmem:[%s1708 + $0xc9] sm:$0xff]
      %v7707 = vld [vmem:[%s1708 + $0xd9] sm:$0xff]
      %v7708 = vld [vmem:[%s1708 + $0xe1] sm:$0xff]
      %v7709 = vld [vmem:[%s1708 + $0xf1] sm:$0xff]
      %v7710 = vld [vmem:[%s1708 + $0xf9] sm:$0xff]
      %v7711 = vld [vmem:[%s1708 + $0x109] sm:$0xff]
      %v7712 = vld [vmem:[%s1708 + $0x111] sm:$0xff]
      %v7713 = vld [vmem:[%s1708 + $0x121] sm:$0xff]
      %v7714 = vld [vmem:[%s1708 + $0x129] sm:$0xff]
      %v7715 = vld [vmem:[%s1708 + $0x139] sm:$0xff]
      %v7716 = vld [vmem:[%s1708 + $0x141] sm:$0xff]
      %v7717 = vld [vmem:[%s1708 + $0x151] sm:$0xff]
      %v7718 = vld [vmem:[%s1708 + $0x159] sm:$0xff]
      %v7719 = vld [vmem:[%s1708 + $0x169] sm:$0xff]
      %v7720 = vld [vmem:[%s1708 + $0x171] sm:$0xff]
      %v7721 = vld [vmem:[%s1708 + $0x2] sm:$0xff]
      %v7722 = vld [vmem:[%s1708 + $0xa] sm:$0xff]
      %v7723 = vld [vmem:[%s1708 + $0x1a] sm:$0xff]
      %v7724 = vld [vmem:[%s1708 + $0x22] sm:$0xff]
      %v7725 = vld [vmem:[%s1708 + $0x32] sm:$0xff]
      %v7726 = vld [vmem:[%s1708 + $0x3a] sm:$0xff]
      %v7727 = vld [vmem:[%s1708 + $0x4a] sm:$0xff]
      %v7728 = vld [vmem:[%s1708 + $0x52] sm:$0xff]
      %v7729 = vld [vmem:[%s1708 + $0x62] sm:$0xff]
      %v7730 = vld [vmem:[%s1708 + $0x6a] sm:$0xff]
      %v7731 = vld [vmem:[%s1708 + $0x7a] sm:$0xff]
      %v7732 = vld [vmem:[%s1708 + $0x82] sm:$0xff]
      %v7733 = vld [vmem:[%s1708 + $0x92] sm:$0xff]
      %v7734 = vld [vmem:[%s1708 + $0x9a] sm:$0xff]
      %v7735 = vld [vmem:[%s1708 + $0xaa] sm:$0xff]
      %v7736 = vld [vmem:[%s1708 + $0xb2] sm:$0xff]
      %v7737 = vld [vmem:[%s1708 + $0xc2] sm:$0xff]
      %v7738 = vld [vmem:[%s1708 + $0xca] sm:$0xff]
      %v7739 = vld [vmem:[%s1708 + $0xda] sm:$0xff]
      %v7740 = vld [vmem:[%s1708 + $0xe2] sm:$0xff]
      %v7741 = vld [vmem:[%s1708 + $0xf2] sm:$0xff]
      %v7742 = vld [vmem:[%s1708 + $0xfa] sm:$0xff]
      %v7743 = vld [vmem:[%s1708 + $0x10a] sm:$0xff]
      %v7744 = vld [vmem:[%s1708 + $0x112] sm:$0xff]
      %v7745 = vld [vmem:[%s1708 + $0x122] sm:$0xff]
      %v7746 = vld [vmem:[%s1708 + $0x12a] sm:$0xff]
      %v7747 = vld [vmem:[%s1708 + $0x13a] sm:$0xff]
      %v7748 = vld [vmem:[%s1708 + $0x142] sm:$0xff]
      %v7749 = vld [vmem:[%s1708 + $0x152] sm:$0xff]
      %v7750 = vld [vmem:[%s1708 + $0x15a] sm:$0xff]
      %v7751 = vld [vmem:[%s1708 + $0x16a] sm:$0xff]
      %v7752 = vld [vmem:[%s1708 + $0x172] sm:$0xff]
      %7785 = vrot.lane.b32.xlu0 %v7689, 8
      %v7786 = vpop.permute.xlu0 %7785
      %7787 = vrot.lane.b32.xlu0 %v7690, 8
      %v7788 = vpop.permute.xlu0 %7787
      %7789 = vrot.lane.b32.xlu0 %v7691, 8
      %v7790 = vpop.permute.xlu0 %7789
      %7791 = vrot.lane.b32.xlu0 %v7692, 8
      %v7792 = vpop.permute.xlu0 %7791
      %7793 = vrot.lane.b32.xlu0 %v7693, 8
      %v7794 = vpop.permute.xlu0 %7793
      %7795 = vrot.lane.b32.xlu0 %v7694, 8
      %v7796 = vpop.permute.xlu0 %7795
      %7797 = vrot.lane.b32.xlu0 %v7695, 8
      %v7798 = vpop.permute.xlu0 %7797
      %7799 = vrot.lane.b32.xlu0 %v7696, 8
      %v7800 = vpop.permute.xlu0 %7799
      %7801 = vrot.lane.b32.xlu0 %v7697, 8
      %v7802 = vpop.permute.xlu0 %7801
      %7803 = vrot.lane.b32.xlu0 %v7698, 8
      %v7804 = vpop.permute.xlu0 %7803
      %7805 = vrot.lane.b32.xlu0 %v7699, 8
      %v7806 = vpop.permute.xlu0 %7805
      %7807 = vrot.lane.b32.xlu0 %v7700, 8
      %v7808 = vpop.permute.xlu0 %7807
      %7809 = vrot.lane.b32.xlu0 %v7701, 8
      %v7810 = vpop.permute.xlu0 %7809
      %7811 = vrot.lane.b32.xlu0 %v7702, 8
      %v7812 = vpop.permute.xlu0 %7811
      %7813 = vrot.lane.b32.xlu0 %v7703, 8
      %v7814 = vpop.permute.xlu0 %7813
      %7815 = vrot.lane.b32.xlu0 %v7704, 8
      %v7816 = vpop.permute.xlu0 %7815
      %7817 = vrot.lane.b32.xlu0 %v7705, 8
      %v7818 = vpop.permute.xlu0 %7817
      %7819 = vrot.lane.b32.xlu0 %v7706, 8
      %v7820 = vpop.permute.xlu0 %7819
      %7821 = vrot.lane.b32.xlu0 %v7707, 8
      %v7822 = vpop.permute.xlu0 %7821
      %7823 = vrot.lane.b32.xlu0 %v7708, 8
      %v7824 = vpop.permute.xlu0 %7823
      %7825 = vrot.lane.b32.xlu0 %v7709, 8
      %v7826 = vpop.permute.xlu0 %7825
      %7827 = vrot.lane.b32.xlu0 %v7710, 8
      %v7828 = vpop.permute.xlu0 %7827
      %7829 = vrot.lane.b32.xlu0 %v7711, 8
      %v7830 = vpop.permute.xlu0 %7829
      %7831 = vrot.lane.b32.xlu0 %v7712, 8
      %v7832 = vpop.permute.xlu0 %7831
      %7833 = vrot.lane.b32.xlu0 %v7713, 8
      %v7834 = vpop.permute.xlu0 %7833
      %7835 = vrot.lane.b32.xlu0 %v7714, 8
      %v7836 = vpop.permute.xlu0 %7835
      %7837 = vrot.lane.b32.xlu0 %v7715, 8
      %v7838 = vpop.permute.xlu0 %7837
      %7839 = vrot.lane.b32.xlu0 %v7716, 8
      %v7840 = vpop.permute.xlu0 %7839
      %7841 = vrot.lane.b32.xlu0 %v7717, 8
      %v7842 = vpop.permute.xlu0 %7841
      %7843 = vrot.lane.b32.xlu0 %v7718, 8
      %v7844 = vpop.permute.xlu0 %7843
      %7845 = vrot.lane.b32.xlu0 %v7719, 8
      %v7846 = vpop.permute.xlu0 %7845
      %7847 = vrot.lane.b32.xlu0 %v7720, 8
      %v7848 = vpop.permute.xlu0 %7847
      %7913 = vrot.lane.b32.xlu0 %v7721, 16
      %v7914 = vpop.permute.xlu0 %7913
      %7915 = vrot.lane.b32.xlu0 %v7722, 16
      %v7916 = vpop.permute.xlu0 %7915
      %7917 = vrot.lane.b32.xlu0 %v7723, 16
      %v7918 = vpop.permute.xlu0 %7917
      %7919 = vrot.lane.b32.xlu0 %v7724, 16
      %v7920 = vpop.permute.xlu0 %7919
      %7921 = vrot.lane.b32.xlu0 %v7725, 16
      %v7922 = vpop.permute.xlu0 %7921
      %7923 = vrot.lane.b32.xlu0 %v7726, 16
      %v7924 = vpop.permute.xlu0 %7923
      %7925 = vrot.lane.b32.xlu0 %v7727, 16
      %v7926 = vpop.permute.xlu0 %7925
      %7927 = vrot.lane.b32.xlu0 %v7728, 16
      %v7928 = vpop.permute.xlu0 %7927
      %7929 = vrot.lane.b32.xlu0 %v7729, 16
      %v7930 = vpop.permute.xlu0 %7929
      %7931 = vrot.lane.b32.xlu0 %v7730, 16
      %v7932 = vpop.permute.xlu0 %7931
      %7933 = vrot.lane.b32.xlu0 %v7731, 16
      %v7934 = vpop.permute.xlu0 %7933
      %7935 = vrot.lane.b32.xlu0 %v7732, 16
      %v7936 = vpop.permute.xlu0 %7935
      %7937 = vrot.lane.b32.xlu0 %v7733, 16
      %v7938 = vpop.permute.xlu0 %7937
      %7939 = vrot.lane.b32.xlu0 %v7734, 16
      %v7940 = vpop.permute.xlu0 %7939
      %7941 = vrot.lane.b32.xlu0 %v7735, 16
      %v7942 = vpop.permute.xlu0 %7941
      %7943 = vrot.lane.b32.xlu0 %v7736, 16
      %v7944 = vpop.permute.xlu0 %7943
      %7945 = vrot.lane.b32.xlu0 %v7737, 16
      %v7946 = vpop.permute.xlu0 %7945
      %7947 = vrot.lane.b32.xlu0 %v7738, 16
      %v7948 = vpop.permute.xlu0 %7947
      %7949 = vrot.lane.b32.xlu0 %v7739, 16
      %v7950 = vpop.permute.xlu0 %7949
      %7951 = vrot.lane.b32.xlu0 %v7740, 16
      %v7952 = vpop.permute.xlu0 %7951
      %7953 = vrot.lane.b32.xlu0 %v7741, 16
      %v7954 = vpop.permute.xlu0 %7953
      %7955 = vrot.lane.b32.xlu0 %v7742, 16
      %v7956 = vpop.permute.xlu0 %7955
      %7957 = vrot.lane.b32.xlu0 %v7743, 16
      %v7958 = vpop.permute.xlu0 %7957
      %7959 = vrot.lane.b32.xlu0 %v7744, 16
      %v7960 = vpop.permute.xlu0 %7959
      %7961 = vrot.lane.b32.xlu0 %v7745, 16
      %v7962 = vpop.permute.xlu0 %7961
      %7963 = vrot.lane.b32.xlu0 %v7746, 16
      %v7964 = vpop.permute.xlu0 %7963
      %7965 = vrot.lane.b32.xlu0 %v7747, 16
      %v7966 = vpop.permute.xlu0 %7965
      %7967 = vrot.lane.b32.xlu0 %v7748, 16
      %v7968 = vpop.permute.xlu0 %7967
      %7969 = vrot.lane.b32.xlu0 %v7749, 16
      %v7970 = vpop.permute.xlu0 %7969
      %7971 = vrot.lane.b32.xlu0 %v7750, 16
      %v7972 = vpop.permute.xlu0 %7971
      %7973 = vrot.lane.b32.xlu0 %v7751, 16
      %v7974 = vpop.permute.xlu0 %7973
      %7975 = vrot.lane.b32.xlu0 %v7752, 16
      %v7976 = vpop.permute.xlu0 %7975
      %v8009 = vsel %vm333, %v7657, %v7786
      %v8010 = vsel %vm333, %v7658, %v7788
      %v8011 = vsel %vm333, %v7659, %v7790
      %v8012 = vsel %vm333, %v7660, %v7792
      %v8013 = vsel %vm333, %v7661, %v7794
      %v8014 = vsel %vm333, %v7662, %v7796
      %v8015 = vsel %vm333, %v7663, %v7798
      %v8016 = vsel %vm333, %v7664, %v7800
      %v8017 = vsel %vm333, %v7665, %v7802
      %v8018 = vsel %vm333, %v7666, %v7804
      %v8019 = vsel %vm333, %v7667, %v7806
      %v8020 = vsel %vm333, %v7668, %v7808
      %v8021 = vsel %vm333, %v7669, %v7810
      %v8022 = vsel %vm333, %v7670, %v7812
      %v8023 = vsel %vm333, %v7671, %v7814
      %v8024 = vsel %vm333, %v7672, %v7816
      %v8025 = vsel %vm333, %v7673, %v7818
      %v8026 = vsel %vm333, %v7674, %v7820
      %v8027 = vsel %vm333, %v7675, %v7822
      %v8028 = vsel %vm333, %v7676, %v7824
      %v8029 = vsel %vm333, %v7677, %v7826
      %v8030 = vsel %vm333, %v7678, %v7828
      %v8031 = vsel %vm333, %v7679, %v7830
      %v8032 = vsel %vm333, %v7680, %v7832
      %v8033 = vsel %vm333, %v7681, %v7834
      %v8034 = vsel %vm333, %v7682, %v7836
      %v8035 = vsel %vm333, %v7683, %v7838
      %v8036 = vsel %vm333, %v7684, %v7840
      %v8037 = vsel %vm333, %v7685, %v7842
      %v8038 = vsel %vm333, %v7686, %v7844
      %v8039 = vsel %vm333, %v7687, %v7846
      %v8040 = vsel %vm333, %v7688, %v7848
      %v8041 = vsel %vm2856, %v8009, %v7914
      %v8042 = vsel %vm2856, %v8010, %v7916
      %v8043 = vsel %vm2856, %v8011, %v7918
      %v8044 = vsel %vm2856, %v8012, %v7920
      %v8045 = vsel %vm2856, %v8013, %v7922
      %v8046 = vsel %vm2856, %v8014, %v7924
      %v8047 = vsel %vm2856, %v8015, %v7926
      %v8048 = vsel %vm2856, %v8016, %v7928
      %v8049 = vsel %vm2856, %v8017, %v7930
      %v8050 = vsel %vm2856, %v8018, %v7932
      %v8051 = vsel %vm2856, %v8019, %v7934
      %v8052 = vsel %vm2856, %v8020, %v7936
      %v8053 = vsel %vm2856, %v8021, %v7938
      %v8054 = vsel %vm2856, %v8022, %v7940
      %v8055 = vsel %vm2856, %v8023, %v7942
      %v8056 = vsel %vm2856, %v8024, %v7944
      %v8057 = vsel %vm2856, %v8025, %v7946
      %v8058 = vsel %vm2856, %v8026, %v7948
      %v8059 = vsel %vm2856, %v8027, %v7950
      %v8060 = vsel %vm2856, %v8028, %v7952
      %v8061 = vsel %vm2856, %v8029, %v7954
      %v8062 = vsel %vm2856, %v8030, %v7956
      %v8063 = vsel %vm2856, %v8031, %v7958
      %v8064 = vsel %vm2856, %v8032, %v7960
      %v8065 = vsel %vm2856, %v8033, %v7962
      %v8066 = vsel %vm2856, %v8034, %v7964
      %v8067 = vsel %vm2856, %v8035, %v7966
      %v8068 = vsel %vm2856, %v8036, %v7968
      %v8069 = vsel %vm2856, %v8037, %v7970
      %v8070 = vsel %vm2856, %v8038, %v7972
      %v8071 = vsel %vm2856, %v8039, %v7974
      %v8072 = vsel %vm2856, %v8040, %v7976
      %v8074 = vsel %vm3312, %v7656, 0
      %v8077 = vsel %vm3312, %v8041, 0
      %v8080 = vsel %vm3312, %v8042, 0
      %v8083 = vsel %vm3312, %v8043, 0
      %v8086 = vsel %vm3312, %v8044, 0
      %v8089 = vsel %vm3312, %v8045, 0
      %v8092 = vsel %vm3312, %v8046, 0
      %v8095 = vsel %vm3312, %v8047, 0
      %v8098 = vsel %vm3312, %v8048, 0
      %v8101 = vsel %vm3312, %v8049, 0
      %v8104 = vsel %vm3312, %v8050, 0
      %v8107 = vsel %vm3312, %v8051, 0
      %v8110 = vsel %vm3312, %v8052, 0
      %v8113 = vsel %vm3312, %v8053, 0
      %v8116 = vsel %vm3312, %v8054, 0
      %v8119 = vsel %vm3312, %v8055, 0
      %v8122 = vsel %vm3312, %v8056, 0
      %v8125 = vsel %vm3312, %v8057, 0
      %v8128 = vsel %vm3312, %v8058, 0
      %v8131 = vsel %vm3312, %v8059, 0
      %v8134 = vsel %vm3312, %v8060, 0
      %v8137 = vsel %vm3312, %v8061, 0
      %v8140 = vsel %vm3312, %v8062, 0
      %v8143 = vsel %vm3312, %v8063, 0
      %v8146 = vsel %vm3312, %v8064, 0
      %v8149 = vsel %vm3312, %v8065, 0
      %v8152 = vsel %vm3312, %v8066, 0
      %v8155 = vsel %vm3312, %v8067, 0
      %v8158 = vsel %vm3312, %v8068, 0
      %v8161 = vsel %vm3312, %v8069, 0
      %v8164 = vsel %vm3312, %v8070, 0
      %v8167 = vsel %vm3312, %v8071, 0
      %v8170 = vsel %vm3312, %v8072, 0
      %8172 = vmatpush.xpose.msra.mxu0 %v8122
      %8173 = vmatpush.xpose.msra.mxu0 %v8119
      %8174 = vmatpush.xpose.msra.mxu0 %v8116
      %8175 = vmatpush.xpose.msra.mxu0 %v8113
      %8176 = vmatpush.xpose.msra.mxu0 %v8110
      %8177 = vmatpush.xpose.msra.mxu0 %v8107
      %8178 = vmatpush.xpose.msra.mxu0 %v8104
      %8179 = vmatpush.xpose.msra.mxu0 %v8101
      %8180 = vmatpush.xpose.msra.mxu0 %v8098
      %8181 = vmatpush.xpose.msra.mxu0 %v8095
      %8182 = vmatpush.xpose.msra.mxu0 %v8092
      %8183 = vmatpush.xpose.msra.mxu0 %v8089
      %8184 = vmatpush.xpose.msra.mxu0 %v8086
      %8185 = vmatpush.xpose.msra.mxu0 %v8083
      %8186 = vmatpush.xpose.msra.mxu0 %v8080
      %8187 = vmatpush.xpose.msra.mxu0 %v8077
      %8188 = vmatmul.f32.gmra.mxu0 %v8074
      %v8189 = vpop.f32.mrf.mxu0
      %v8190 = vadd.f32 0.0, %v8189
      %8191 = vdwg.mxu0
      %8192 = vmatpush.xpose.msra.mxu0 %v8170
      %8193 = vmatpush.xpose.msra.mxu0 %v8167
      %8194 = vmatpush.xpose.msra.mxu0 %v8164
      %8195 = vmatpush.xpose.msra.mxu0 %v8161
      %8196 = vmatpush.xpose.msra.mxu0 %v8158
      %8197 = vmatpush.xpose.msra.mxu0 %v8155
      %8198 = vmatpush.xpose.msra.mxu0 %v8152
      %8199 = vmatpush.xpose.msra.mxu0 %v8149
      %8200 = vmatpush.xpose.msra.mxu0 %v8146
      %8201 = vmatpush.xpose.msra.mxu0 %v8143
      %8202 = vmatpush.xpose.msra.mxu0 %v8140
      %8203 = vmatpush.xpose.msra.mxu0 %v8137
      %8204 = vmatpush.xpose.msra.mxu0 %v8134
      %8205 = vmatpush.xpose.msra.mxu0 %v8131
      %8206 = vmatpush.xpose.msra.mxu0 %v8128
      %8207 = vmatpush.xpose.msra.mxu0 %v8125
      %8208 = vmatmul.f32.gmra.mxu0 %v8074
      %v8209 = vpop.f32.mrf.mxu0
      %v8210 = vadd.f32 0.0, %v8209
      %8211 = vdwg.mxu0
      %v8212 = vadd.f32 %v7633, %v8190
      %v8213 = vadd.f32 %v7653, %v8210
      %v8214 = vld [vmem:[%s8] sm:$0xf]
      %8216 = vset.pattern.permute.xlu0 0
      %8217 = vperm.xlu0 %8216, %v8214
      %v8218 = vpop.permute.xlu0 %8217
      %v8220 = vadd.f32 %v8212, %v8218
      %v8221 = vadd.f32 %v8213, %v8218
      %v8224 = vrot.slane %v8221, 4
      %v8225 = vsel %vm1379, %v8220, %v8224
      %8227 = vst [vmem:[%s332] sm:$0xff] %v8225
      %p8228 = scmp.lt.s32.totalorder %s20, 1
      %s8229 = scalar_select %p8228, %s20, 1
      %s8230 = smul.addr %s8229, 2
      %s8231 = smul.addr %s8230, 4
      %s8232 = scalar_lea.vmem %s9, %s8231
      // Predicated region
      $region57: #{depth_aggregation_forward.1} parent=55 // pred_check
        %p8233 = pneg %p232
      $region58: #{depth_aggregation_forward.1} parent=55 // pred_check_branch
        %8235 = sbr.rel (%p8233) target = $region60
      $region59: #{depth_aggregation_forward.1} parent=55 // pred_region
        _
      $region60: #{depth_aggregation_forward.1} parent=55 // pred_fallthru
        _
    $region56: #{depth_aggregation_forward.1} parent=5 // pred_fallthru
      _
    %p8236 = scmp.le.s32.totalorder 2, %s15
    // Predicated region
    $region61: #{depth_aggregation_forward.1} parent=5 // pred_check
      %p8237 = pneg %p8236
    $region62: #{depth_aggregation_forward.1} parent=5 // pred_check_branch
      %8239 = sbr.rel (%p8237) target = $region64
    $region63: #{depth_aggregation_forward.1} parent=5 // pred_region
      %s8240 = ssub.s32 %s15, 2
      // Predicated region
      $region65: #{depth_aggregation_forward.1} parent=63 // pred_check
        %p8241 = pneg %p238
      $region66: #{depth_aggregation_forward.1} parent=63 // pred_check_branch
        %8243 = sbr.rel (%p8241) target = $region68
      $region67: #{depth_aggregation_forward.1} parent=63 // pred_region
        %p8244 = scmp.lt.s32.totalorder %s21, 1
        %s8245 = scalar_select %p8244, %s21, 1
        %s8246 = smul.addr %s8245, 2
        %s8247 = smul.addr %s8246, 4
        %s8248 = scalar_lea.vmem %s9, %s8247
      $region68: #{depth_aggregation_forward.1} parent=63 // pred_fallthru
        _
    $region64: #{depth_aggregation_forward.1} parent=5 // pred_fallthru
      _
  $region6: #{depth_aggregation_forward.1} parent=0 // loop_footer
    %s19 = sadd.s32 1, %s15
  $region7: #{depth_aggregation_forward.1} parent=0 // loop_footer_branch
    %14 = sbr.rel target = $region3
  $region8: #{depth_aggregation_forward.1} parent=0 // loop_exit
    _

</llo_original>
